<compile_context>
chip_gen: v7x
topology: tpu7x:2x2x1
jax: 0.10.0
libtpu: 0.0.40
codegen_flags: <defaults>
</compile_context>

<pallas_src>
import functools

import jax
import jax.numpy as jnp
from jax import lax
from jax.experimental import pallas as pl
from jax.experimental.pallas import tpu as pltpu

BN_EPS = 1e-5


# ---------------------------------------------------------------------------
# Kernel 1: 3x3 conv (stride 1, pad 1) + folded BN + ReLU, one image per step.
# ---------------------------------------------------------------------------
def _conv3x3_bn_relu_kernel(xp_ref, w_ref, b_ref, o_ref):
    # xp_ref: (1, H+2, W+2, Cin)  w_ref: (3, 3, Cin, Cout)
    # b_ref : (1, Cout)           o_ref: (1, H*W, Cout)
    H = xp_ref.shape[1] - 2
    W = xp_ref.shape[2] - 2
    Cin = xp_ref.shape[3]
    Cout = o_ref.shape[2]

    xp = xp_ref[0]  # (H+2, W+2, Cin), loaded once
    acc = jnp.zeros((H * W, Cout), jnp.float32)
    for dh in range(3):
        for dw in range(3):
            patch = xp[dh:dh + H, dw:dw + W, :].reshape(H * W, Cin)
            acc = acc + jnp.dot(patch, w_ref[dh, dw],
                                preferred_element_type=jnp.float32)
    acc = jnp.maximum(acc + b_ref[...], 0.0)          # folded BN bias + ReLU
    o_ref[0] = acc.astype(o_ref.dtype)


def conv3x3_bn_relu(x_nhwc, w_folded, b_folded):
    N, H, W, Cin = x_nhwc.shape
    Cout = w_folded.shape[-1]
    xp = jnp.pad(x_nhwc, ((0, 0), (1, 1), (1, 1), (0, 0)))
    b2 = b_folded.reshape(1, Cout)
    out = pl.pallas_call(
        _conv3x3_bn_relu_kernel,
        out_shape=jax.ShapeDtypeStruct((N, H * W, Cout), x_nhwc.dtype),
        grid_spec=pltpu.PrefetchScalarGridSpec(
            num_scalar_prefetch=0,
            grid=(N,),
            in_specs=[
                pl.BlockSpec((1, H + 2, W + 2, Cin), lambda n: (n, 0, 0, 0)),
                pl.BlockSpec((3, 3, Cin, Cout), lambda n: (0, 0, 0, 0)),
                pl.BlockSpec((1, Cout), lambda n: (0, 0)),
            ],
            out_specs=pl.BlockSpec((1, H * W, Cout), lambda n: (n, 0, 0)),
        ),
        compiler_params=pltpu.CompilerParams(
            dimension_semantics=("parallel",)),
    )(xp, w_folded, b2)
    return out.reshape(N, H, W, Cout)


# ---------------------------------------------------------------------------
# Kernel 2: fused concat_conv (1x1 conv + folded BN + ReLU) + eSE block
# (avg-pool -> 1x1 conv with bias -> hard_sigmoid -> channel scale).
# One image per grid step; the intermediate activation never leaves VMEM.
# ---------------------------------------------------------------------------
def _concat_conv_ese_kernel(xc_ref, w1_ref, b1_ref, wse_ref, bse_ref, o_ref):
    # xc_ref: (1, HW, Ccat)  w1_ref: (Ccat, Cout)  b1_ref: (1, Cout)
    # wse_ref: (Cout, Cout)  bse_ref: (1, Cout)    o_ref: (1, HW, Cout)
    x = xc_ref[0]
    y = jnp.dot(x, w1_ref[...], preferred_element_type=jnp.float32)
    y = jnp.maximum(y + b1_ref[...], 0.0)                       # concat_conv
    inv_hw = 1.0 / y.shape[0]
    s = jnp.sum(y, axis=0, keepdims=True) * inv_hw              # global avg pool
    z = jnp.dot(s, wse_ref[...], preferred_element_type=jnp.float32) + bse_ref[...]
    g = jnp.clip(z + 3.0, 0.0, 6.0) * (1.0 / 6.0)               # hard_sigmoid
    o_ref[0] = (y * g).astype(o_ref.dtype)                      # eSE scale


def _conv1x1_bn_relu_kernel(xc_ref, w1_ref, b1_ref, o_ref):     # has_se=False path
    y = jnp.dot(xc_ref[0], w1_ref[...], preferred_element_type=jnp.float32)
    o_ref[0] = jnp.maximum(y + b1_ref[...], 0.0).astype(o_ref.dtype)


def concat_conv_ese(xc_nhwc, w1, b1, wse=None, bse=None, *, has_se=True):
    N, H, W, Ccat = xc_nhwc.shape
    Cout = w1.shape[-1]
    x2 = xc_nhwc.reshape(N, H * W, Ccat)
    b1r = b1.reshape(1, Cout)
    cparams = pltpu.CompilerParams(dimension_semantics=("parallel",))
    out_shape = jax.ShapeDtypeStruct((N, H * W, Cout), xc_nhwc.dtype)

    if has_se:
        out = pl.pallas_call(
            _concat_conv_ese_kernel,
            out_shape=out_shape,
            grid_spec=pltpu.PrefetchScalarGridSpec(
                num_scalar_prefetch=0,
                grid=(N,),
                in_specs=[
                    pl.BlockSpec((1, H * W, Ccat), lambda n: (n, 0, 0)),
                    pl.BlockSpec((Ccat, Cout), lambda n: (0, 0)),
                    pl.BlockSpec((1, Cout), lambda n: (0, 0)),
                    pl.BlockSpec((Cout, Cout), lambda n: (0, 0)),
                    pl.BlockSpec((1, Cout), lambda n: (0, 0)),
                ],
                out_specs=pl.BlockSpec((1, H * W, Cout), lambda n: (n, 0, 0)),
            ),
            compiler_params=cparams,
        )(x2, w1, b1r, wse, bse.reshape(1, Cout))
    else:
        out = pl.pallas_call(
            _conv1x1_bn_relu_kernel,
            out_shape=out_shape,
            grid_spec=pltpu.PrefetchScalarGridSpec(
                num_scalar_prefetch=0,
                grid=(N,),
                in_specs=[
                    pl.BlockSpec((1, H * W, Ccat), lambda n: (n, 0, 0)),
                    pl.BlockSpec((Ccat, Cout), lambda n: (0, 0)),
                    pl.BlockSpec((1, Cout), lambda n: (0, 0)),
                ],
                out_specs=pl.BlockSpec((1, H * W, Cout), lambda n: (n, 0, 0)),
            ),
            compiler_params=cparams,
        )(x2, w1, b1r)
    return out.reshape(N, H, W, Cout)


# ---------------------------------------------------------------------------
# OSABlock forward (non-depthwise path), NCHW in / NCHW out like PyTorch.
# ---------------------------------------------------------------------------
def fold_bn(w, gamma, beta, mean, var, eps=BN_EPS):
    """Fold inference-mode BatchNorm into conv weight (..., Cout) and bias."""
    scale = gamma / jnp.sqrt(var + eps)
    return w * scale, beta - mean * scale


def osa_block_forward(x_nchw, params, *, has_se=True, has_identity=False,
                      has_depthwise=False):
    if has_depthwise:
        # TODO(synk): depthwise (grouped 3x3 + pointwise) OSABlock path not implemented.
        raise NotImplementedError("depthwise OSABlock path not implemented")
    x = jnp.transpose(x_nchw, (0, 2, 3, 1))            # NCHW -> NHWC (channels on lanes)
    feats = [x]
    cur = x
    for lp in params["layers"]:
        w_f, b_f = fold_bn(lp["w"], lp["gamma"], lp["beta"], lp["mean"], lp["var"])
        cur = conv3x3_bn_relu(cur, w_f, b_f)
        feats.append(cur)
    xc = jnp.concatenate(feats, axis=-1)                # channel concat
    cp = params["concat"]
    w1_f, b1_f = fold_bn(cp["w"], cp["gamma"], cp["beta"], cp["mean"], cp["var"])
    if has_se:
        se = params["ese"]
        out = concat_conv_ese(xc, w1_f, b1_f, se["w"], se["b"], has_se=True)
    else:
        out = concat_conv_ese(xc, w1_f, b1_f, has_se=False)
    if has_identity:
        out = out + x  # TODO(synk): fuse the residual add into the eSE kernel.
    return jnp.transpose(out, (0, 3, 1, 2))             # back to NCHW


# ---------------------------------------------------------------------------
# Pure-JAX reference (same parameters, inference-mode BN), for validation.
# ---------------------------------------------------------------------------
def osa_block_reference(x_nchw, params, *, has_se=True, has_identity=False):
    hi = lax.Precision.HIGHEST
    x = jnp.transpose(x_nchw, (0, 2, 3, 1))
    feats = [x]
    cur = x
    for lp in params["layers"]:
        y = lax.conv_general_dilated(
            cur, lp["w"], window_strides=(1, 1), padding=((1, 1), (1, 1)),
            dimension_numbers=("NHWC", "HWIO", "NHWC"), precision=hi)
        y = (y - lp["mean"]) * (lp["gamma"] / jnp.sqrt(lp["var"] + BN_EPS)) + lp["beta"]
        cur = jnp.maximum(y, 0.0)
        feats.append(cur)
    xc = jnp.concatenate(feats, axis=-1)
    cp = params["concat"]
    y = jnp.einsum("nhwc,cd->nhwd", xc, cp["w"], precision=hi)
    y = (y - cp["mean"]) * (cp["gamma"] / jnp.sqrt(cp["var"] + BN_EPS)) + cp["beta"]
    y = jnp.maximum(y, 0.0)
    if has_se:
        se = params["ese"]
        s = jnp.mean(y, axis=(1, 2), keepdims=True)
        z = jnp.einsum("nhwc,cd->nhwd", s, se["w"], precision=hi) + se["b"]
        g = jnp.clip(z + 3.0, 0.0, 6.0) / 6.0
        y = y * g
    if has_identity:
        y = y + x
    return jnp.transpose(y, (0, 3, 1, 2))


def make_params(key, inplanes, interplanes, planes, n_layers):
    params = {"layers": []}
    keys = jax.random.split(key, n_layers + 2)
    cin = inplanes
    for i in range(n_layers):
        k = jax.random.split(keys[i], 5)
        params["layers"].append(dict(
            w=jax.random.normal(k[0], (3, 3, cin, interplanes), jnp.float32) * 0.2,
            gamma=jax.random.uniform(k[1], (interplanes,), jnp.float32, 0.5, 1.5),
            beta=jax.random.normal(k[2], (interplanes,), jnp.float32) * 0.1,
            mean=jax.random.normal(k[3], (interplanes,), jnp.float32) * 0.1,
            var=jax.random.uniform(k[4], (interplanes,), jnp.float32, 0.5, 1.5),
        ))
        cin = interplanes
    ccat = inplanes + n_layers * interplanes
    k = jax.random.split(keys[n_layers], 5)
    params["concat"] = dict(
        w=jax.random.normal(k[0], (ccat, planes), jnp.float32) * 0.2,
        gamma=jax.random.uniform(k[1], (planes,), jnp.float32, 0.5, 1.5),
        beta=jax.random.normal(k[2], (planes,), jnp.float32) * 0.1,
        mean=jax.random.normal(k[3], (planes,), jnp.float32) * 0.1,
        var=jax.random.uniform(k[4], (planes,), jnp.float32, 0.5, 1.5),
    )
    k = jax.random.split(keys[n_layers + 1], 2)
    params["ese"] = dict(
        w=jax.random.normal(k[0], (planes, planes), jnp.float32) * 0.2,
        b=jax.random.normal(k[1], (planes,), jnp.float32) * 0.1,
    )
    return params


if __name__ == "__main__":
    key = jax.random.PRNGKey(0)
    kx, kp = jax.random.split(key)

    # Small OSABlock config: inplanes=4, interplanes=8, planes=16, 3 layers, eSE on.
    N, Cin, H, W = 2, 4, 16, 16
    interplanes, planes, n_layers = 8, 16, 3

    x = jax.random.normal(kx, (N, Cin, H, W), jnp.float32)
    params = make_params(kp, Cin, interplanes, planes, n_layers)

    fwd = jax.jit(functools.partial(osa_block_forward,
                                    has_se=True, has_identity=False))
    y = jax.block_until_ready(fwd(x, params))

    y_ref = osa_block_reference(x, params, has_se=True, has_identity=False)
    assert y.shape == (N, planes, H, W) and y.dtype == x.dtype
    max_err = float(jnp.max(jnp.abs(y - y_ref)))
    assert jnp.allclose(y, y_ref, atol=1e-3, rtol=1e-3), f"mismatch: {max_err}"

    print("KERNEL_OK")
</pallas_src>

<mosaic_0001>
module attributes {stable_mosaic.version = 11 : i64} {
  func.func @_conv3x3_bn_relu_kernel(%arg0: i32, %arg1: memref<1x18x18x4xf32, #tpu.memory_space<vmem>>, %arg2: memref<3x3x4x8xf32, #tpu.memory_space<vmem>>, %arg3: memref<1x8xf32, #tpu.memory_space<vmem>>, %arg4: memref<1x256x8xf32, #tpu.memory_space<vmem>>) attributes {dimension_semantics = [#tpu.dimension_semantics<parallel>], iteration_bounds = array<i64: 2>, scalar_prefetch = 0 : i64, scratch_operands = 0 : i64, tpu.core_type = #tpu.core_type<tc>, window_params = [{transform_indices = @transform_0, window_bounds = array<i64: 1, 18, 18, 4>}, {pipeline_mode = #tpu.pipeline_mode<synchronous>, transform_indices = @transform_1, window_bounds = array<i64: 3, 3, 4, 8>}, {pipeline_mode = #tpu.pipeline_mode<synchronous>, transform_indices = @transform_2, window_bounds = array<i64: 1, 8>}, {transform_indices = @transform_3, window_bounds = array<i64: 1, 256, 8>}]} {
    %c0 = arith.constant 0 : index
    %c0_0 = arith.constant 0 : index
    %c0_1 = arith.constant 0 : index
    %c0_2 = arith.constant 0 : index
    %0 = vector.load %arg1[%c0, %c0_0, %c0_1, %c0_2] : memref<1x18x18x4xf32, #tpu.memory_space<vmem>>, vector<1x18x18x4xf32>
    %1 = vector.shape_cast %0 : vector<1x18x18x4xf32> to vector<18x18x4xf32>
    %cst = arith.constant 0.000000e+00 : f32
    %2 = vector.broadcast %cst : f32 to vector<256x8xf32>
    %3 = vector.extract_strided_slice %1 {offsets = [0, 0, 0], sizes = [16, 16, 4], strides = [1, 1, 1]} : vector<18x18x4xf32> to vector<16x16x4xf32>
    %4 = vector.shape_cast %3 : vector<16x16x4xf32> to vector<256x4xf32>
    %c0_3 = arith.constant 0 : index
    %c0_4 = arith.constant 0 : index
    %c0_5 = arith.constant 0 : index
    %c0_6 = arith.constant 0 : index
    %5 = vector.load %arg2[%c0_3, %c0_4, %c0_5, %c0_6] : memref<3x3x4x8xf32, #tpu.memory_space<vmem>>, vector<1x1x4x8xf32>
    %6 = vector.shape_cast %5 : vector<1x1x4x8xf32> to vector<4x8xf32>
    %cst_7 = arith.constant dense<0.000000e+00> : vector<256x8xf32>
    %7 = tpu.matmul %4, %6, %cst_7 {dimension_numbers = #tpu.dot_dimension_numbers<[1], [0], [0], [1], [0, 0, 1, 1], [], []>} : vector<256x4xf32>, vector<4x8xf32>, vector<256x8xf32> -> vector<256x8xf32>
    %8 = arith.addf %2, %7 : vector<256x8xf32>
    %9 = vector.extract_strided_slice %1 {offsets = [0, 1, 0], sizes = [16, 16, 4], strides = [1, 1, 1]} : vector<18x18x4xf32> to vector<16x16x4xf32>
    %10 = vector.shape_cast %9 : vector<16x16x4xf32> to vector<256x4xf32>
    %c0_8 = arith.constant 0 : index
    %c1 = arith.constant 1 : index
    %c0_9 = arith.constant 0 : index
    %c0_10 = arith.constant 0 : index
    %11 = vector.load %arg2[%c0_8, %c1, %c0_9, %c0_10] : memref<3x3x4x8xf32, #tpu.memory_space<vmem>>, vector<1x1x4x8xf32>
    %12 = vector.shape_cast %11 : vector<1x1x4x8xf32> to vector<4x8xf32>
    %cst_11 = arith.constant dense<0.000000e+00> : vector<256x8xf32>
    %13 = tpu.matmul %10, %12, %cst_11 {dimension_numbers = #tpu.dot_dimension_numbers<[1], [0], [0], [1], [0, 0, 1, 1], [], []>} : vector<256x4xf32>, vector<4x8xf32>, vector<256x8xf32> -> vector<256x8xf32>
    %14 = arith.addf %8, %13 : vector<256x8xf32>
    %15 = vector.extract_strided_slice %1 {offsets = [0, 2, 0], sizes = [16, 16, 4], strides = [1, 1, 1]} : vector<18x18x4xf32> to vector<16x16x4xf32>
    %16 = vector.shape_cast %15 : vector<16x16x4xf32> to vector<256x4xf32>
    %c0_12 = arith.constant 0 : index
    %c2 = arith.constant 2 : index
    %c0_13 = arith.constant 0 : index
    %c0_14 = arith.constant 0 : index
    %17 = vector.load %arg2[%c0_12, %c2, %c0_13, %c0_14] : memref<3x3x4x8xf32, #tpu.memory_space<vmem>>, vector<1x1x4x8xf32>
    %18 = vector.shape_cast %17 : vector<1x1x4x8xf32> to vector<4x8xf32>
    %cst_15 = arith.constant dense<0.000000e+00> : vector<256x8xf32>
    %19 = tpu.matmul %16, %18, %cst_15 {dimension_numbers = #tpu.dot_dimension_numbers<[1], [0], [0], [1], [0, 0, 1, 1], [], []>} : vector<256x4xf32>, vector<4x8xf32>, vector<256x8xf32> -> vector<256x8xf32>
    %20 = arith.addf %14, %19 : vector<256x8xf32>
    %21 = vector.extract_strided_slice %1 {offsets = [1, 0, 0], sizes = [16, 16, 4], strides = [1, 1, 1]} : vector<18x18x4xf32> to vector<16x16x4xf32>
    %22 = vector.shape_cast %21 : vector<16x16x4xf32> to vector<256x4xf32>
    %c1_16 = arith.constant 1 : index
    %c0_17 = arith.constant 0 : index
    %c0_18 = arith.constant 0 : index
    %c0_19 = arith.constant 0 : index
    %23 = vector.load %arg2[%c1_16, %c0_17, %c0_18, %c0_19] : memref<3x3x4x8xf32, #tpu.memory_space<vmem>>, vector<1x1x4x8xf32>
    %24 = vector.shape_cast %23 : vector<1x1x4x8xf32> to vector<4x8xf32>
    %cst_20 = arith.constant dense<0.000000e+00> : vector<256x8xf32>
    %25 = tpu.matmul %22, %24, %cst_20 {dimension_numbers = #tpu.dot_dimension_numbers<[1], [0], [0], [1], [0, 0, 1, 1], [], []>} : vector<256x4xf32>, vector<4x8xf32>, vector<256x8xf32> -> vector<256x8xf32>
    %26 = arith.addf %20, %25 : vector<256x8xf32>
    %27 = vector.extract_strided_slice %1 {offsets = [1, 1, 0], sizes = [16, 16, 4], strides = [1, 1, 1]} : vector<18x18x4xf32> to vector<16x16x4xf32>
    %28 = vector.shape_cast %27 : vector<16x16x4xf32> to vector<256x4xf32>
    %c1_21 = arith.constant 1 : index
    %c1_22 = arith.constant 1 : index
    %c0_23 = arith.constant 0 : index
    %c0_24 = arith.constant 0 : index
    %29 = vector.load %arg2[%c1_21, %c1_22, %c0_23, %c0_24] : memref<3x3x4x8xf32, #tpu.memory_space<vmem>>, vector<1x1x4x8xf32>
    %30 = vector.shape_cast %29 : vector<1x1x4x8xf32> to vector<4x8xf32>
    %cst_25 = arith.constant dense<0.000000e+00> : vector<256x8xf32>
    %31 = tpu.matmul %28, %30, %cst_25 {dimension_numbers = #tpu.dot_dimension_numbers<[1], [0], [0], [1], [0, 0, 1, 1], [], []>} : vector<256x4xf32>, vector<4x8xf32>, vector<256x8xf32> -> vector<256x8xf32>
    %32 = arith.addf %26, %31 : vector<256x8xf32>
    %33 = vector.extract_strided_slice %1 {offsets = [1, 2, 0], sizes = [16, 16, 4], strides = [1, 1, 1]} : vector<18x18x4xf32> to vector<16x16x4xf32>
    %34 = vector.shape_cast %33 : vector<16x16x4xf32> to vector<256x4xf32>
    %c1_26 = arith.constant 1 : index
    %c2_27 = arith.constant 2 : index
    %c0_28 = arith.constant 0 : index
    %c0_29 = arith.constant 0 : index
    %35 = vector.load %arg2[%c1_26, %c2_27, %c0_28, %c0_29] : memref<3x3x4x8xf32, #tpu.memory_space<vmem>>, vector<1x1x4x8xf32>
    %36 = vector.shape_cast %35 : vector<1x1x4x8xf32> to vector<4x8xf32>
    %cst_30 = arith.constant dense<0.000000e+00> : vector<256x8xf32>
    %37 = tpu.matmul %34, %36, %cst_30 {dimension_numbers = #tpu.dot_dimension_numbers<[1], [0], [0], [1], [0, 0, 1, 1], [], []>} : vector<256x4xf32>, vector<4x8xf32>, vector<256x8xf32> -> vector<256x8xf32>
    %38 = arith.addf %32, %37 : vector<256x8xf32>
    %39 = vector.extract_strided_slice %1 {offsets = [2, 0, 0], sizes = [16, 16, 4], strides = [1, 1, 1]} : vector<18x18x4xf32> to vector<16x16x4xf32>
    %40 = vector.shape_cast %39 : vector<16x16x4xf32> to vector<256x4xf32>
    %c2_31 = arith.constant 2 : index
    %c0_32 = arith.constant 0 : index
    %c0_33 = arith.constant 0 : index
    %c0_34 = arith.constant 0 : index
    %41 = vector.load %arg2[%c2_31, %c0_32, %c0_33, %c0_34] : memref<3x3x4x8xf32, #tpu.memory_space<vmem>>, vector<1x1x4x8xf32>
    %42 = vector.shape_cast %41 : vector<1x1x4x8xf32> to vector<4x8xf32>
    %cst_35 = arith.constant dense<0.000000e+00> : vector<256x8xf32>
    %43 = tpu.matmul %40, %42, %cst_35 {dimension_numbers = #tpu.dot_dimension_numbers<[1], [0], [0], [1], [0, 0, 1, 1], [], []>} : vector<256x4xf32>, vector<4x8xf32>, vector<256x8xf32> -> vector<256x8xf32>
    %44 = arith.addf %38, %43 : vector<256x8xf32>
    %45 = vector.extract_strided_slice %1 {offsets = [2, 1, 0], sizes = [16, 16, 4], strides = [1, 1, 1]} : vector<18x18x4xf32> to vector<16x16x4xf32>
    %46 = vector.shape_cast %45 : vector<16x16x4xf32> to vector<256x4xf32>
    %c2_36 = arith.constant 2 : index
    %c1_37 = arith.constant 1 : index
    %c0_38 = arith.constant 0 : index
    %c0_39 = arith.constant 0 : index
    %47 = vector.load %arg2[%c2_36, %c1_37, %c0_38, %c0_39] : memref<3x3x4x8xf32, #tpu.memory_space<vmem>>, vector<1x1x4x8xf32>
    %48 = vector.shape_cast %47 : vector<1x1x4x8xf32> to vector<4x8xf32>
    %cst_40 = arith.constant dense<0.000000e+00> : vector<256x8xf32>
    %49 = tpu.matmul %46, %48, %cst_40 {dimension_numbers = #tpu.dot_dimension_numbers<[1], [0], [0], [1], [0, 0, 1, 1], [], []>} : vector<256x4xf32>, vector<4x8xf32>, vector<256x8xf32> -> vector<256x8xf32>
    %50 = arith.addf %44, %49 : vector<256x8xf32>
    %51 = vector.extract_strided_slice %1 {offsets = [2, 2, 0], sizes = [16, 16, 4], strides = [1, 1, 1]} : vector<18x18x4xf32> to vector<16x16x4xf32>
    %52 = vector.shape_cast %51 : vector<16x16x4xf32> to vector<256x4xf32>
    %c2_41 = arith.constant 2 : index
    %c2_42 = arith.constant 2 : index
    %c0_43 = arith.constant 0 : index
    %c0_44 = arith.constant 0 : index
    %53 = vector.load %arg2[%c2_41, %c2_42, %c0_43, %c0_44] : memref<3x3x4x8xf32, #tpu.memory_space<vmem>>, vector<1x1x4x8xf32>
    %54 = vector.shape_cast %53 : vector<1x1x4x8xf32> to vector<4x8xf32>
    %cst_45 = arith.constant dense<0.000000e+00> : vector<256x8xf32>
    %55 = tpu.matmul %52, %54, %cst_45 {dimension_numbers = #tpu.dot_dimension_numbers<[1], [0], [0], [1], [0, 0, 1, 1], [], []>} : vector<256x4xf32>, vector<4x8xf32>, vector<256x8xf32> -> vector<256x8xf32>
    %56 = arith.addf %50, %55 : vector<256x8xf32>
    %c0_46 = arith.constant 0 : index
    %c0_47 = arith.constant 0 : index
    %57 = vector.load %arg3[%c0_46, %c0_47] : memref<1x8xf32, #tpu.memory_space<vmem>>, vector<1x8xf32>
    %58 = vector.broadcast %57 : vector<1x8xf32> to vector<256x8xf32>
    %59 = arith.addf %56, %58 : vector<256x8xf32>
    %cst_48 = arith.constant 0.000000e+00 : f32
    %60 = vector.broadcast %cst_48 : f32 to vector<256x8xf32>
    %61 = arith.maximumf %59, %60 : vector<256x8xf32>
    %c0_49 = arith.constant 0 : index
    %c0_50 = arith.constant 0 : index
    %c0_51 = arith.constant 0 : index
    %62 = vector.load %arg4[%c0_49, %c0_50, %c0_51] : memref<1x256x8xf32, #tpu.memory_space<vmem>>, vector<1x256x8xf32>
    %63 = vector.shape_cast %62 : vector<1x256x8xf32> to vector<256x8xf32>
    %64 = vector.shape_cast %61 : vector<256x8xf32> to vector<1x256x8xf32>
    tpu.vector_store %arg4[%c0_49, %c0_50, %c0_51], %64 {strides = array<i32>} : memref<1x256x8xf32, #tpu.memory_space<vmem>>, vector<1x256x8xf32>,
    return
  }
  func.func @transform_0(%arg0: i32) -> (i32, i32, i32, i32) {
    %c0_i32 = arith.constant 0 : i32
    %c0_i32_0 = arith.constant 0 : i32
    %c0_i32_1 = arith.constant 0 : i32
    %c0_i32_2 = arith.constant 0 : i32
    return %arg0, %c0_i32, %c0_i32_0, %c0_i32_1 : i32, i32, i32, i32
  }
  func.func @transform_1(%arg0: i32) -> (i32, i32, i32, i32) {
    %c0_i32 = arith.constant 0 : i32
    %c0_i32_0 = arith.constant 0 : i32
    %c0_i32_1 = arith.constant 0 : i32
    %c0_i32_2 = arith.constant 0 : i32
    %c0_i32_3 = arith.constant 0 : i32
    return %c0_i32, %c0_i32_0, %c0_i32_1, %c0_i32_2 : i32, i32, i32, i32
  }
  func.func @transform_2(%arg0: i32) -> (i32, i32) {
    %c0_i32 = arith.constant 0 : i32
    %c0_i32_0 = arith.constant 0 : i32
    %c0_i32_1 = arith.constant 0 : i32
    return %c0_i32, %c0_i32_0 : i32, i32
  }
  func.func @transform_3(%arg0: i32) -> (i32, i32, i32) {
    %c0_i32 = arith.constant 0 : i32
    %c0_i32_0 = arith.constant 0 : i32
    %c0_i32_1 = arith.constant 0 : i32
    return %arg0, %c0_i32, %c0_i32_0 : i32, i32, i32
  }
}

module attributes {stable_mosaic.version = 11 : i64} {
  func.func @_conv3x3_bn_relu_kernel(%arg0: i32, %arg1: memref<1x18x18x8xf32, #tpu.memory_space<vmem>>, %arg2: memref<3x3x8x8xf32, #tpu.memory_space<vmem>>, %arg3: memref<1x8xf32, #tpu.memory_space<vmem>>, %arg4: memref<1x256x8xf32, #tpu.memory_space<vmem>>) attributes {dimension_semantics = [#tpu.dimension_semantics<parallel>], iteration_bounds = array<i64: 2>, scalar_prefetch = 0 : i64, scratch_operands = 0 : i64, tpu.core_type = #tpu.core_type<tc>, window_params = [{transform_indices = @transform_0, window_bounds = array<i64: 1, 18, 18, 8>}, {pipeline_mode = #tpu.pipeline_mode<synchronous>, transform_indices = @transform_1, window_bounds = array<i64: 3, 3, 8, 8>}, {pipeline_mode = #tpu.pipeline_mode<synchronous>, transform_indices = @transform_2, window_bounds = array<i64: 1, 8>}, {transform_indices = @transform_3, window_bounds = array<i64: 1, 256, 8>}]} {
    %c0 = arith.constant 0 : index
    %c0_0 = arith.constant 0 : index
    %c0_1 = arith.constant 0 : index
    %c0_2 = arith.constant 0 : index
    %0 = vector.load %arg1[%c0, %c0_0, %c0_1, %c0_2] : memref<1x18x18x8xf32, #tpu.memory_space<vmem>>, vector<1x18x18x8xf32>
    %1 = vector.shape_cast %0 : vector<1x18x18x8xf32> to vector<18x18x8xf32>
    %cst = arith.constant 0.000000e+00 : f32
    %2 = vector.broadcast %cst : f32 to vector<256x8xf32>
    %3 = vector.extract_strided_slice %1 {offsets = [0, 0, 0], sizes = [16, 16, 8], strides = [1, 1, 1]} : vector<18x18x8xf32> to vector<16x16x8xf32>
    %4 = vector.shape_cast %3 : vector<16x16x8xf32> to vector<256x8xf32>
    %c0_3 = arith.constant 0 : index
    %c0_4 = arith.constant 0 : index
    %c0_5 = arith.constant 0 : index
    %c0_6 = arith.constant 0 : index
    %5 = vector.load %arg2[%c0_3, %c0_4, %c0_5, %c0_6] : memref<3x3x8x8xf32, #tpu.memory_space<vmem>>, vector<1x1x8x8xf32>
    %6 = vector.shape_cast %5 : vector<1x1x8x8xf32> to vector<8x8xf32>
    %cst_7 = arith.constant dense<0.000000e+00> : vector<256x8xf32>
    %7 = tpu.matmul %4, %6, %cst_7 {dimension_numbers = #tpu.dot_dimension_numbers<[1], [0], [0], [1], [0, 0, 1, 1], [], []>} : vector<256x8xf32>, vector<8x8xf32>, vector<256x8xf32> -> vector<256x8xf32>
    %8 = arith.addf %2, %7 : vector<256x8xf32>
    %9 = vector.extract_strided_slice %1 {offsets = [0, 1, 0], sizes = [16, 16, 8], strides = [1, 1, 1]} : vector<18x18x8xf32> to vector<16x16x8xf32>
    %10 = vector.shape_cast %9 : vector<16x16x8xf32> to vector<256x8xf32>
    %c0_8 = arith.constant 0 : index
    %c1 = arith.constant 1 : index
    %c0_9 = arith.constant 0 : index
    %c0_10 = arith.constant 0 : index
    %11 = vector.load %arg2[%c0_8, %c1, %c0_9, %c0_10] : memref<3x3x8x8xf32, #tpu.memory_space<vmem>>, vector<1x1x8x8xf32>
    %12 = vector.shape_cast %11 : vector<1x1x8x8xf32> to vector<8x8xf32>
    %cst_11 = arith.constant dense<0.000000e+00> : vector<256x8xf32>
    %13 = tpu.matmul %10, %12, %cst_11 {dimension_numbers = #tpu.dot_dimension_numbers<[1], [0], [0], [1], [0, 0, 1, 1], [], []>} : vector<256x8xf32>, vector<8x8xf32>, vector<256x8xf32> -> vector<256x8xf32>
    %14 = arith.addf %8, %13 : vector<256x8xf32>
    %15 = vector.extract_strided_slice %1 {offsets = [0, 2, 0], sizes = [16, 16, 8], strides = [1, 1, 1]} : vector<18x18x8xf32> to vector<16x16x8xf32>
    %16 = vector.shape_cast %15 : vector<16x16x8xf32> to vector<256x8xf32>
    %c0_12 = arith.constant 0 : index
    %c2 = arith.constant 2 : index
    %c0_13 = arith.constant 0 : index
    %c0_14 = arith.constant 0 : index
    %17 = vector.load %arg2[%c0_12, %c2, %c0_13, %c0_14] : memref<3x3x8x8xf32, #tpu.memory_space<vmem>>, vector<1x1x8x8xf32>
    %18 = vector.shape_cast %17 : vector<1x1x8x8xf32> to vector<8x8xf32>
    %cst_15 = arith.constant dense<0.000000e+00> : vector<256x8xf32>
    %19 = tpu.matmul %16, %18, %cst_15 {dimension_numbers = #tpu.dot_dimension_numbers<[1], [0], [0], [1], [0, 0, 1, 1], [], []>} : vector<256x8xf32>, vector<8x8xf32>, vector<256x8xf32> -> vector<256x8xf32>
    %20 = arith.addf %14, %19 : vector<256x8xf32>
    %21 = vector.extract_strided_slice %1 {offsets = [1, 0, 0], sizes = [16, 16, 8], strides = [1, 1, 1]} : vector<18x18x8xf32> to vector<16x16x8xf32>
    %22 = vector.shape_cast %21 : vector<16x16x8xf32> to vector<256x8xf32>
    %c1_16 = arith.constant 1 : index
    %c0_17 = arith.constant 0 : index
    %c0_18 = arith.constant 0 : index
    %c0_19 = arith.constant 0 : index
    %23 = vector.load %arg2[%c1_16, %c0_17, %c0_18, %c0_19] : memref<3x3x8x8xf32, #tpu.memory_space<vmem>>, vector<1x1x8x8xf32>
    %24 = vector.shape_cast %23 : vector<1x1x8x8xf32> to vector<8x8xf32>
    %cst_20 = arith.constant dense<0.000000e+00> : vector<256x8xf32>
    %25 = tpu.matmul %22, %24, %cst_20 {dimension_numbers = #tpu.dot_dimension_numbers<[1], [0], [0], [1], [0, 0, 1, 1], [], []>} : vector<256x8xf32>, vector<8x8xf32>, vector<256x8xf32> -> vector<256x8xf32>
    %26 = arith.addf %20, %25 : vector<256x8xf32>
    %27 = vector.extract_strided_slice %1 {offsets = [1, 1, 0], sizes = [16, 16, 8], strides = [1, 1, 1]} : vector<18x18x8xf32> to vector<16x16x8xf32>
    %28 = vector.shape_cast %27 : vector<16x16x8xf32> to vector<256x8xf32>
    %c1_21 = arith.constant 1 : index
    %c1_22 = arith.constant 1 : index
    %c0_23 = arith.constant 0 : index
    %c0_24 = arith.constant 0 : index
    %29 = vector.load %arg2[%c1_21, %c1_22, %c0_23, %c0_24] : memref<3x3x8x8xf32, #tpu.memory_space<vmem>>, vector<1x1x8x8xf32>
    %30 = vector.shape_cast %29 : vector<1x1x8x8xf32> to vector<8x8xf32>
    %cst_25 = arith.constant dense<0.000000e+00> : vector<256x8xf32>
    %31 = tpu.matmul %28, %30, %cst_25 {dimension_numbers = #tpu.dot_dimension_numbers<[1], [0], [0], [1], [0, 0, 1, 1], [], []>} : vector<256x8xf32>, vector<8x8xf32>, vector<256x8xf32> -> vector<256x8xf32>
    %32 = arith.addf %26, %31 : vector<256x8xf32>
    %33 = vector.extract_strided_slice %1 {offsets = [1, 2, 0], sizes = [16, 16, 8], strides = [1, 1, 1]} : vector<18x18x8xf32> to vector<16x16x8xf32>
    %34 = vector.shape_cast %33 : vector<16x16x8xf32> to vector<256x8xf32>
    %c1_26 = arith.constant 1 : index
    %c2_27 = arith.constant 2 : index
    %c0_28 = arith.constant 0 : index
    %c0_29 = arith.constant 0 : index
    %35 = vector.load %arg2[%c1_26, %c2_27, %c0_28, %c0_29] : memref<3x3x8x8xf32, #tpu.memory_space<vmem>>, vector<1x1x8x8xf32>
    %36 = vector.shape_cast %35 : vector<1x1x8x8xf32> to vector<8x8xf32>
    %cst_30 = arith.constant dense<0.000000e+00> : vector<256x8xf32>
    %37 = tpu.matmul %34, %36, %cst_30 {dimension_numbers = #tpu.dot_dimension_numbers<[1], [0], [0], [1], [0, 0, 1, 1], [], []>} : vector<256x8xf32>, vector<8x8xf32>, vector<256x8xf32> -> vector<256x8xf32>
    %38 = arith.addf %32, %37 : vector<256x8xf32>
    %39 = vector.extract_strided_slice %1 {offsets = [2, 0, 0], sizes = [16, 16, 8], strides = [1, 1, 1]} : vector<18x18x8xf32> to vector<16x16x8xf32>
    %40 = vector.shape_cast %39 : vector<16x16x8xf32> to vector<256x8xf32>
    %c2_31 = arith.constant 2 : index
    %c0_32 = arith.constant 0 : index
    %c0_33 = arith.constant 0 : index
    %c0_34 = arith.constant 0 : index
    %41 = vector.load %arg2[%c2_31, %c0_32, %c0_33, %c0_34] : memref<3x3x8x8xf32, #tpu.memory_space<vmem>>, vector<1x1x8x8xf32>
    %42 = vector.shape_cast %41 : vector<1x1x8x8xf32> to vector<8x8xf32>
    %cst_35 = arith.constant dense<0.000000e+00> : vector<256x8xf32>
    %43 = tpu.matmul %40, %42, %cst_35 {dimension_numbers = #tpu.dot_dimension_numbers<[1], [0], [0], [1], [0, 0, 1, 1], [], []>} : vector<256x8xf32>, vector<8x8xf32>, vector<256x8xf32> -> vector<256x8xf32>
    %44 = arith.addf %38, %43 : vector<256x8xf32>
    %45 = vector.extract_strided_slice %1 {offsets = [2, 1, 0], sizes = [16, 16, 8], strides = [1, 1, 1]} : vector<18x18x8xf32> to vector<16x16x8xf32>
    %46 = vector.shape_cast %45 : vector<16x16x8xf32> to vector<256x8xf32>
    %c2_36 = arith.constant 2 : index
    %c1_37 = arith.constant 1 : index
    %c0_38 = arith.constant 0 : index
    %c0_39 = arith.constant 0 : index
    %47 = vector.load %arg2[%c2_36, %c1_37, %c0_38, %c0_39] : memref<3x3x8x8xf32, #tpu.memory_space<vmem>>, vector<1x1x8x8xf32>
    %48 = vector.shape_cast %47 : vector<1x1x8x8xf32> to vector<8x8xf32>
    %cst_40 = arith.constant dense<0.000000e+00> : vector<256x8xf32>
    %49 = tpu.matmul %46, %48, %cst_40 {dimension_numbers = #tpu.dot_dimension_numbers<[1], [0], [0], [1], [0, 0, 1, 1], [], []>} : vector<256x8xf32>, vector<8x8xf32>, vector<256x8xf32> -> vector<256x8xf32>
    %50 = arith.addf %44, %49 : vector<256x8xf32>
    %51 = vector.extract_strided_slice %1 {offsets = [2, 2, 0], sizes = [16, 16, 8], strides = [1, 1, 1]} : vector<18x18x8xf32> to vector<16x16x8xf32>
    %52 = vector.shape_cast %51 : vector<16x16x8xf32> to vector<256x8xf32>
    %c2_41 = arith.constant 2 : index
    %c2_42 = arith.constant 2 : index
    %c0_43 = arith.constant 0 : index
    %c0_44 = arith.constant 0 : index
    %53 = vector.load %arg2[%c2_41, %c2_42, %c0_43, %c0_44] : memref<3x3x8x8xf32, #tpu.memory_space<vmem>>, vector<1x1x8x8xf32>
    %54 = vector.shape_cast %53 : vector<1x1x8x8xf32> to vector<8x8xf32>
    %cst_45 = arith.constant dense<0.000000e+00> : vector<256x8xf32>
    %55 = tpu.matmul %52, %54, %cst_45 {dimension_numbers = #tpu.dot_dimension_numbers<[1], [0], [0], [1], [0, 0, 1, 1], [], []>} : vector<256x8xf32>, vector<8x8xf32>, vector<256x8xf32> -> vector<256x8xf32>
    %56 = arith.addf %50, %55 : vector<256x8xf32>
    %c0_46 = arith.constant 0 : index
    %c0_47 = arith.constant 0 : index
    %57 = vector.load %arg3[%c0_46, %c0_47] : memref<1x8xf32, #tpu.memory_space<vmem>>, vector<1x8xf32>
    %58 = vector.broadcast %57 : vector<1x8xf32> to vector<256x8xf32>
    %59 = arith.addf %56, %58 : vector<256x8xf32>
    %cst_48 = arith.constant 0.000000e+00 : f32
    %60 = vector.broadcast %cst_48 : f32 to vector<256x8xf32>
    %61 = arith.maximumf %59, %60 : vector<256x8xf32>
    %c0_49 = arith.constant 0 : index
    %c0_50 = arith.constant 0 : index
    %c0_51 = arith.constant 0 : index
    %62 = vector.load %arg4[%c0_49, %c0_50, %c0_51] : memref<1x256x8xf32, #tpu.memory_space<vmem>>, vector<1x256x8xf32>
    %63 = vector.shape_cast %62 : vector<1x256x8xf32> to vector<256x8xf32>
    %64 = vector.shape_cast %61 : vector<256x8xf32> to vector<1x256x8xf32>
    tpu.vector_store %arg4[%c0_49, %c0_50, %c0_51], %64 {strides = array<i32>} : memref<1x256x8xf32, #tpu.memory_space<vmem>>, vector<1x256x8xf32>,
    return
  }
  func.func @transform_0(%arg0: i32) -> (i32, i32, i32, i32) {
    %c0_i32 = arith.constant 0 : i32
    %c0_i32_0 = arith.constant 0 : i32
    %c0_i32_1 = arith.constant 0 : i32
    %c0_i32_2 = arith.constant 0 : i32
    return %arg0, %c0_i32, %c0_i32_0, %c0_i32_1 : i32, i32, i32, i32
  }
  func.func @transform_1(%arg0: i32) -> (i32, i32, i32, i32) {
    %c0_i32 = arith.constant 0 : i32
    %c0_i32_0 = arith.constant 0 : i32
    %c0_i32_1 = arith.constant 0 : i32
    %c0_i32_2 = arith.constant 0 : i32
    %c0_i32_3 = arith.constant 0 : i32
    return %c0_i32, %c0_i32_0, %c0_i32_1, %c0_i32_2 : i32, i32, i32, i32
  }
  func.func @transform_2(%arg0: i32) -> (i32, i32) {
    %c0_i32 = arith.constant 0 : i32
    %c0_i32_0 = arith.constant 0 : i32
    %c0_i32_1 = arith.constant 0 : i32
    return %c0_i32, %c0_i32_0 : i32, i32
  }
  func.func @transform_3(%arg0: i32) -> (i32, i32, i32) {
    %c0_i32 = arith.constant 0 : i32
    %c0_i32_0 = arith.constant 0 : i32
    %c0_i32_1 = arith.constant 0 : i32
    return %arg0, %c0_i32, %c0_i32_0 : i32, i32, i32
  }
}

module attributes {stable_mosaic.version = 11 : i64} {
  func.func @_concat_conv_ese_kernel(%arg0: i32, %arg1: memref<1x256x28xf32, #tpu.memory_space<vmem>>, %arg2: memref<28x16xf32, #tpu.memory_space<vmem>>, %arg3: memref<1x16xf32, #tpu.memory_space<vmem>>, %arg4: memref<16x16xf32, #tpu.memory_space<vmem>>, %arg5: memref<1x16xf32, #tpu.memory_space<vmem>>, %arg6: memref<1x256x16xf32, #tpu.memory_space<vmem>>) attributes {dimension_semantics = [#tpu.dimension_semantics<parallel>], iteration_bounds = array<i64: 2>, scalar_prefetch = 0 : i64, scratch_operands = 0 : i64, tpu.core_type = #tpu.core_type<tc>, window_params = [{transform_indices = @transform_0, window_bounds = array<i64: 1, 256, 28>}, {pipeline_mode = #tpu.pipeline_mode<synchronous>, transform_indices = @transform_1, window_bounds = array<i64: 28, 16>}, {pipeline_mode = #tpu.pipeline_mode<synchronous>, transform_indices = @transform_2, window_bounds = array<i64: 1, 16>}, {pipeline_mode = #tpu.pipeline_mode<synchronous>, transform_indices = @transform_3, window_bounds = array<i64: 16, 16>}, {pipeline_mode = #tpu.pipeline_mode<synchronous>, transform_indices = @transform_4, window_bounds = array<i64: 1, 16>}, {transform_indices = @transform_5, window_bounds = array<i64: 1, 256, 16>}]} {
    %c0 = arith.constant 0 : index
    %c0_0 = arith.constant 0 : index
    %c0_1 = arith.constant 0 : index
    %0 = vector.load %arg1[%c0, %c0_0, %c0_1] : memref<1x256x28xf32, #tpu.memory_space<vmem>>, vector<1x256x28xf32>
    %1 = vector.shape_cast %0 : vector<1x256x28xf32> to vector<256x28xf32>
    %c0_2 = arith.constant 0 : index
    %c0_3 = arith.constant 0 : index
    %2 = vector.load %arg2[%c0_2, %c0_3] : memref<28x16xf32, #tpu.memory_space<vmem>>, vector<28x16xf32>
    %cst = arith.constant dense<0.000000e+00> : vector<256x16xf32>
    %3 = tpu.matmul %1, %2, %cst {dimension_numbers = #tpu.dot_dimension_numbers<[1], [0], [0], [1], [0, 0, 1, 1], [], []>} : vector<256x28xf32>, vector<28x16xf32>, vector<256x16xf32> -> vector<256x16xf32>
    %c0_4 = arith.constant 0 : index
    %c0_5 = arith.constant 0 : index
    %4 = vector.load %arg3[%c0_4, %c0_5] : memref<1x16xf32, #tpu.memory_space<vmem>>, vector<1x16xf32>
    %5 = vector.broadcast %4 : vector<1x16xf32> to vector<256x16xf32>
    %6 = arith.addf %3, %5 : vector<256x16xf32>
    %cst_6 = arith.constant 0.000000e+00 : f32
    %7 = vector.broadcast %cst_6 : f32 to vector<256x16xf32>
    %8 = arith.maximumf %6, %7 : vector<256x16xf32>
    %cst_7 = arith.constant dense<0.000000e+00> : vector<16xf32>
    %9 = vector.multi_reduction <add>, %8, %cst_7 [0] : vector<256x16xf32> to vector<16xf32>
    %10 = vector.shape_cast %9 : vector<16xf32> to vector<1x16xf32>
    %cst_8 = arith.constant 3.906250e-03 : f32
    %11 = vector.broadcast %cst_8 : f32 to vector<1x16xf32>
    %12 = arith.mulf %10, %11 : vector<1x16xf32>
    %c0_9 = arith.constant 0 : index
    %c0_10 = arith.constant 0 : index
    %13 = vector.load %arg4[%c0_9, %c0_10] : memref<16x16xf32, #tpu.memory_space<vmem>>, vector<16x16xf32>
    %cst_11 = arith.constant dense<0.000000e+00> : vector<1x16xf32>
    %14 = tpu.matmul %12, %13, %cst_11 {dimension_numbers = #tpu.dot_dimension_numbers<[1], [0], [0], [1], [0, 0, 1, 1], [], []>} : vector<1x16xf32>, vector<16x16xf32>, vector<1x16xf32> -> vector<1x16xf32>
    %c0_12 = arith.constant 0 : index
    %c0_13 = arith.constant 0 : index
    %15 = vector.load %arg5[%c0_12, %c0_13] : memref<1x16xf32, #tpu.memory_space<vmem>>, vector<1x16xf32>
    %16 = arith.addf %14, %15 : vector<1x16xf32>
    %cst_14 = arith.constant 3.000000e+00 : f32
    %17 = vector.broadcast %cst_14 : f32 to vector<1x16xf32>
    %18 = arith.addf %16, %17 : vector<1x16xf32>
    %cst_15 = arith.constant 0.000000e+00 : f32
    %cst_16 = arith.constant 6.000000e+00 : f32
    %19 = vector.broadcast %cst_15 : f32 to vector<1x16xf32>
    %20 = arith.maximumf %19, %18 : vector<1x16xf32>
    %21 = vector.broadcast %cst_16 : f32 to vector<1x16xf32>
    %22 = arith.minimumf %21, %20 : vector<1x16xf32>
    %cst_17 = arith.constant 0.166666672 : f32
    %23 = vector.broadcast %cst_17 : f32 to vector<1x16xf32>
    %24 = arith.mulf %22, %23 : vector<1x16xf32>
    %25 = vector.broadcast %24 : vector<1x16xf32> to vector<256x16xf32>
    %26 = arith.mulf %8, %25 : vector<256x16xf32>
    %c0_18 = arith.constant 0 : index
    %c0_19 = arith.constant 0 : index
    %c0_20 = arith.constant 0 : index
    %27 = vector.load %arg6[%c0_18, %c0_19, %c0_20] : memref<1x256x16xf32, #tpu.memory_space<vmem>>, vector<1x256x16xf32>
    %28 = vector.shape_cast %27 : vector<1x256x16xf32> to vector<256x16xf32>
    %29 = vector.shape_cast %26 : vector<256x16xf32> to vector<1x256x16xf32>
    tpu.vector_store %arg6[%c0_18, %c0_19, %c0_20], %29 {strides = array<i32>} : memref<1x256x16xf32, #tpu.memory_space<vmem>>, vector<1x256x16xf32>,
    return
  }
  func.func @transform_0(%arg0: i32) -> (i32, i32, i32) {
    %c0_i32 = arith.constant 0 : i32
    %c0_i32_0 = arith.constant 0 : i32
    %c0_i32_1 = arith.constant 0 : i32
    return %arg0, %c0_i32, %c0_i32_0 : i32, i32, i32
  }
  func.func @transform_1(%arg0: i32) -> (i32, i32) {
    %c0_i32 = arith.constant 0 : i32
    %c0_i32_0 = arith.constant 0 : i32
    %c0_i32_1 = arith.constant 0 : i32
    return %c0_i32, %c0_i32_0 : i32, i32
  }
  func.func @transform_2(%arg0: i32) -> (i32, i32) {
    %c0_i32 = arith.constant 0 : i32
    %c0_i32_0 = arith.constant 0 : i32
    %c0_i32_1 = arith.constant 0 : i32
    return %c0_i32, %c0_i32_0 : i32, i32
  }
  func.func @transform_3(%arg0: i32) -> (i32, i32) {
    %c0_i32 = arith.constant 0 : i32
    %c0_i32_0 = arith.constant 0 : i32
    %c0_i32_1 = arith.constant 0 : i32
    return %c0_i32, %c0_i32_0 : i32, i32
  }
  func.func @transform_4(%arg0: i32) -> (i32, i32) {
    %c0_i32 = arith.constant 0 : i32
    %c0_i32_0 = arith.constant 0 : i32
    %c0_i32_1 = arith.constant 0 : i32
    return %c0_i32, %c0_i32_0 : i32, i32
  }
  func.func @transform_5(%arg0: i32) -> (i32, i32, i32) {
    %c0_i32 = arith.constant 0 : i32
    %c0_i32_0 = arith.constant 0 : i32
    %c0_i32_1 = arith.constant 0 : i32
    return %arg0, %c0_i32, %c0_i32_0 : i32, i32, i32
  }
}

</mosaic_0001>

<llo_original>
// kernel: osa_block_forward.7
$region0: #{osa_block_forward.7}
  #allocation0 [shape = 'u32[]', space=smem, size = 0x4, offset = 0x4, fixed_abs, tag = 'smem constant byte address 0x4 - core index']
  #allocation1 [shape = 'u32[144,128]{1,0:T(1,128)}', space=vmem, size = 0x12000, scoped, tag = 'internal scratch']
  %s0 = inlined_call_operand.vmem [shape: f32[2,256,28], index: 0, kind: input, shape index: {}]
  %s1 = inlined_call_operand.vmem [shape: f32[28,16], index: 1, kind: input, shape index: {}]
  %s2 = inlined_call_operand.vmem [shape: f32[1,16], index: 2, kind: input, shape index: {}]
  %s3 = inlined_call_operand.vmem [shape: f32[16,16], index: 3, kind: input, shape index: {}]
  %s4 = inlined_call_operand.vmem [shape: f32[1,16], index: 4, kind: input, shape index: {}]
  %s5 = inlined_call_operand.vmem [shape: f32[2,256,16], index: 5, kind: output, shape index: {}]
  %s6 = sld [smem:[#allocation0]]
  $region53: #{osa_block_forward.7} parent=0
    _
  %s8 = ssub.s32 1, %s6
  %s9 = scalar_select 0, %s8, %s6
  loop: start=0, step=1, limit=4
  $region2: #{osa_block_forward.7} parent=0 // loop_pre_header
    _
  $region3: #{osa_block_forward.7} parent=0 // loop_header
    %s11 = sphi 0, %s15
    %p12 = scmp.ge.s32.totalorder %s11, 4
    %s21 = sphi 0, %s23
    %s24 = sphi 0, %s21
    %s25 = sphi 0, %s24
    %s41 = sphi 0, %s25
    %s45 = sphi 0, %s45
    %s47 = sphi 0, %s45
    %s48 = sphi 0, %s47
    %s62 = sphi 0, %s48
    %s66 = sphi 0, %s66
    %s68 = sphi 0, %s66
    %s69 = sphi 0, %s68
    %s83 = sphi 0, %s69
    %s87 = sphi 0, %s87
    %s89 = sphi 0, %s87
    %s90 = sphi 0, %s89
    %s104 = sphi 0, %s90
    %s108 = sphi 0, %s108
    %s110 = sphi 0, %s108
    %s111 = sphi 0, %s110
    %s125 = sphi 0, %s111
    %s131 = sphi 0, %s133
    %s134 = sphi 0, %s131
    %s135 = sphi 0, %s134
    %s151 = sphi 0, %s135
  $region4: #{osa_block_forward.7} parent=0 // loop_header_branch
    %14 = sbr.rel (%p12) target = $region8
  $region5: #{osa_block_forward.7} parent=0 // loop_body
    %s16 = ssub.s32 %s11, 1
    %s17 = ssub.s32 %s11, 2
    %s18 = sadd.s32 %s11, 1
    %s19 = ssub.s32 %s11, %s18
    %p20 = scmp.eq.s32.totalorder %s19, 0
    %s22 = sadd.s32 %s21, 1
    %s23 = scalar_select %p20, %s21, %s22
    %p26 = pneg %p20
    %p27 = scmp.eq.s32.totalorder %s11, 1
    %p28 = por %p26, %p27
    %p29 = scmp.ne.s32.totalorder %s21, %s24
    %p30 = scmp.eq.s32.totalorder %s11, 0
    %p31 = por %p29, %p30
    %p32 = scmp.ne.s32.totalorder %s21, %s24
    %p33 = scmp.eq.s32.totalorder %s16, 1
    %p34 = por %p32, %p33
    %p35 = scmp.ne.s32.totalorder %s24, %s25
    %p36 = scmp.eq.s32.totalorder %s16, 0
    %p37 = por %p35, %p36
    %p38 = scmp.ne.s32.totalorder %s24, %s25
    %p39 = scmp.eq.s32.totalorder %s17, 1
    %p40 = por %p38, %p39
    %p42 = scmp.ne.s32.totalorder %s25, %s41
    %p43 = scmp.eq.s32.totalorder %s17, 0
    %p44 = por %p42, %p43
    %s46 = sadd.s32 %s45, 1
    %p49 = scmp.eq.s32.totalorder %s11, 1
    %p50 = scmp.ne.s32.totalorder %s45, %s47
    %p51 = scmp.eq.s32.totalorder %s11, 0
    %p52 = por %p50, %p51
    %p53 = scmp.ne.s32.totalorder %s45, %s47
    %p54 = scmp.eq.s32.totalorder %s16, 1
    %p55 = por %p53, %p54
    %p56 = scmp.ne.s32.totalorder %s47, %s48
    %p57 = scmp.eq.s32.totalorder %s16, 0
    %p58 = por %p56, %p57
    %p59 = scmp.ne.s32.totalorder %s47, %s48
    %p60 = scmp.eq.s32.totalorder %s17, 1
    %p61 = por %p59, %p60
    %p63 = scmp.ne.s32.totalorder %s48, %s62
    %p64 = scmp.eq.s32.totalorder %s17, 0
    %p65 = por %p63, %p64
    %s67 = sadd.s32 %s66, 1
    %p70 = scmp.eq.s32.totalorder %s11, 1
    %p71 = scmp.ne.s32.totalorder %s66, %s68
    %p72 = scmp.eq.s32.totalorder %s11, 0
    %p73 = por %p71, %p72
    %p74 = scmp.ne.s32.totalorder %s66, %s68
    %p75 = scmp.eq.s32.totalorder %s16, 1
    %p76 = por %p74, %p75
    %p77 = scmp.ne.s32.totalorder %s68, %s69
    %p78 = scmp.eq.s32.totalorder %s16, 0
    %p79 = por %p77, %p78
    %p80 = scmp.ne.s32.totalorder %s68, %s69
    %p81 = scmp.eq.s32.totalorder %s17, 1
    %p82 = por %p80, %p81
    %p84 = scmp.ne.s32.totalorder %s69, %s83
    %p85 = scmp.eq.s32.totalorder %s17, 0
    %p86 = por %p84, %p85
    %s88 = sadd.s32 %s87, 1
    %p91 = scmp.eq.s32.totalorder %s11, 1
    %p92 = scmp.ne.s32.totalorder %s87, %s89
    %p93 = scmp.eq.s32.totalorder %s11, 0
    %p94 = por %p92, %p93
    %p95 = scmp.ne.s32.totalorder %s87, %s89
    %p96 = scmp.eq.s32.totalorder %s16, 1
    %p97 = por %p95, %p96
    %p98 = scmp.ne.s32.totalorder %s89, %s90
    %p99 = scmp.eq.s32.totalorder %s16, 0
    %p100 = por %p98, %p99
    %p101 = scmp.ne.s32.totalorder %s89, %s90
    %p102 = scmp.eq.s32.totalorder %s17, 1
    %p103 = por %p101, %p102
    %p105 = scmp.ne.s32.totalorder %s90, %s104
    %p106 = scmp.eq.s32.totalorder %s17, 0
    %p107 = por %p105, %p106
    %s109 = sadd.s32 %s108, 1
    %p112 = scmp.eq.s32.totalorder %s11, 1
    %p113 = scmp.ne.s32.totalorder %s108, %s110
    %p114 = scmp.eq.s32.totalorder %s11, 0
    %p115 = por %p113, %p114
    %p116 = scmp.ne.s32.totalorder %s108, %s110
    %p117 = scmp.eq.s32.totalorder %s16, 1
    %p118 = por %p116, %p117
    %p119 = scmp.ne.s32.totalorder %s110, %s111
    %p120 = scmp.eq.s32.totalorder %s16, 0
    %p121 = por %p119, %p120
    %p122 = scmp.ne.s32.totalorder %s110, %s111
    %p123 = scmp.eq.s32.totalorder %s17, 1
    %p124 = por %p122, %p123
    %p126 = scmp.ne.s32.totalorder %s111, %s125
    %p127 = scmp.eq.s32.totalorder %s17, 0
    %p128 = por %p126, %p127
    %s129 = ssub.s32 %s11, %s18
    %p130 = scmp.eq.s32.totalorder %s129, 0
    %s132 = sadd.s32 %s131, 1
    %s133 = scalar_select %p130, %s131, %s132
    %p136 = pneg %p130
    %p137 = scmp.eq.s32.totalorder %s11, 1
    %p138 = por %p136, %p137
    %p139 = scmp.ne.s32.totalorder %s131, %s134
    %p140 = scmp.eq.s32.totalorder %s11, 0
    %p141 = por %p139, %p140
    %p142 = scmp.ne.s32.totalorder %s131, %s134
    %p143 = scmp.eq.s32.totalorder %s16, 1
    %p144 = por %p142, %p143
    %p145 = scmp.ne.s32.totalorder %s134, %s135
    %p146 = scmp.eq.s32.totalorder %s16, 0
    %p147 = por %p145, %p146
    %p148 = scmp.ne.s32.totalorder %s134, %s135
    %p149 = scmp.eq.s32.totalorder %s17, 1
    %p150 = por %p148, %p149
    %p152 = scmp.ne.s32.totalorder %s135, %s151
    %p153 = scmp.eq.s32.totalorder %s17, 0
    %p154 = por %p152, %p153
    %p155 = scmp.le.s32.totalorder 1, %s11
    %p156 = scmp.lt.s32.totalorder %s11, 3
    %p157 = pnand %p155, %p156
    %p158 = pneg %p157
    // Predicated region
    $region9: #{osa_block_forward.7} parent=5 // pred_check
      _
    $region10: #{osa_block_forward.7} parent=5 // pred_check_branch
      %160 = sbr.rel (%p157) target = $region12
    $region11: #{osa_block_forward.7} parent=5 // pred_region
      %s161 = ssub.s32 %s11, 1
      // Predicated region
      $region13: #{osa_block_forward.7} parent=11 // pred_check
        %p162 = pneg %p58
      $region14: #{osa_block_forward.7} parent=11 // pred_check_branch
        %164 = sbr.rel (%p162) target = $region16
      $region15: #{osa_block_forward.7} parent=11 // pred_region
        _
      $region16: #{osa_block_forward.7} parent=11 // pred_fallthru
        _
      // Predicated region
      $region17: #{osa_block_forward.7} parent=11 // pred_check
        %p165 = pneg %p79
      $region18: #{osa_block_forward.7} parent=11 // pred_check_branch
        %167 = sbr.rel (%p165) target = $region20
      $region19: #{osa_block_forward.7} parent=11 // pred_region
        _
      $region20: #{osa_block_forward.7} parent=11 // pred_fallthru
        _
      // Predicated region
      $region21: #{osa_block_forward.7} parent=11 // pred_check
        %p168 = pneg %p100
      $region22: #{osa_block_forward.7} parent=11 // pred_check_branch
        %170 = sbr.rel (%p168) target = $region24
      $region23: #{osa_block_forward.7} parent=11 // pred_region
        _
      $region24: #{osa_block_forward.7} parent=11 // pred_fallthru
        _
      // Predicated region
      $region25: #{osa_block_forward.7} parent=11 // pred_check
        %p171 = pneg %p121
      $region26: #{osa_block_forward.7} parent=11 // pred_check_branch
        %173 = sbr.rel (%p171) target = $region28
      $region27: #{osa_block_forward.7} parent=11 // pred_region
        _
      $region28: #{osa_block_forward.7} parent=11 // pred_fallthru
        _
    $region12: #{osa_block_forward.7} parent=5 // pred_fallthru
      _
    %p174 = scmp.lt.s32.totalorder %s11, 2
    // Predicated region
    $region29: #{osa_block_forward.7} parent=5 // pred_check
      %p175 = pneg %p174
    $region30: #{osa_block_forward.7} parent=5 // pred_check_branch
      %177 = sbr.rel (%p175) target = $region32
    $region31: #{osa_block_forward.7} parent=5 // pred_region
      // Predicated region
      $region33: #{osa_block_forward.7} parent=31 // pred_check
        %p178 = pneg %p31
      $region34: #{osa_block_forward.7} parent=31 // pred_check_branch
        %180 = sbr.rel (%p178) target = $region36
      $region35: #{osa_block_forward.7} parent=31 // pred_region
        %p181 = scmp.lt.s32.totalorder %s11, 1
        %s182 = scalar_select %p181, %s11, 1
        %s183 = smul.addr %s182, 32
        %s184 = smul.addr %s183, 8
        %s185 = scalar_lea.vmem %s0, %s184
      $region36: #{osa_block_forward.7} parent=31 // pred_fallthru
        _
    $region32: #{osa_block_forward.7} parent=5 // pred_fallthru
      _
    %p186 = scmp.le.s32.totalorder 1, %s11
    %p187 = scmp.lt.s32.totalorder %s11, 3
    %p188 = pnand %p186, %p187
    %p189 = pneg %p188
    // Predicated region
    $region37: #{osa_block_forward.7} parent=5 // pred_check
      _
    $region38: #{osa_block_forward.7} parent=5 // pred_check_branch
      %191 = sbr.rel (%p188) target = $region40
    $region39: #{osa_block_forward.7} parent=5 // pred_region
      %s192 = ssub.s32 %s11, 1
      %p193 = scmp.lt.s32.totalorder %s16, 1
      %s194 = scalar_select %p193, %s16, 1
      %s195 = smul.addr %s194, 32
      %s196 = smul.addr %s195, 8
      %s197 = scalar_lea.vmem %s0, %s196
      %p198 = pneg %p37
      %p199 = pneg %p34
      %p200 = pneg %p58
      %p201 = pneg %p55
      %p202 = pneg %p79
      %p203 = pneg %p76
      %p204 = pneg %p100
      %p205 = pneg %p97
      %p206 = pneg %p121
      %p207 = pneg %p118
      %p208 = pneg %p147
      %p209 = pneg %p144
      %p210 = scmp.lt.s32.totalorder %s16, 1
      %s211 = scalar_select %p210, %s16, 1
      %s212 = smul.addr %s211, 32
      %s213 = smul.addr %s212, 8
      %s214 = scalar_lea.vmem %s5, %s213
      %p215 = scmp.lt.s32.totalorder %s16, 1
      %s216 = scalar_select %p215, %s16, 1
      %s217 = smul.addr %s216, 32
      %s218 = smul.addr %s217, 8
      %s219 = scalar_lea.vmem %s0, %s218
      %p220 = scmp.lt.s32.totalorder %s16, 1
      %s221 = scalar_select %p220, %s16, 1
      %s222 = smul.addr %s221, 32
      %s223 = smul.addr %s222, 8
      %s224 = scalar_lea.vmem %s5, %s223
      %v225 = vld [vmem:[%s219] sm:$0xff]
      %v226 = vld [vmem:[%s219 + $0x8] sm:$0xff]
      %v227 = vld [vmem:[%s219 + $0x10] sm:$0xff]
      %v228 = vld [vmem:[%s219 + $0x18] sm:$0xff]
      %v229 = vld [vmem:[%s219 + $0x20] sm:$0xff]
      %v230 = vld [vmem:[%s219 + $0x28] sm:$0xff]
      %v231 = vld [vmem:[%s219 + $0x30] sm:$0xff]
      %v232 = vld [vmem:[%s219 + $0x38] sm:$0xff]
      %v233 = vld [vmem:[%s219 + $0x40] sm:$0xff]
      %v234 = vld [vmem:[%s219 + $0x48] sm:$0xff]
      %v235 = vld [vmem:[%s219 + $0x50] sm:$0xff]
      %v236 = vld [vmem:[%s219 + $0x58] sm:$0xff]
      %v237 = vld [vmem:[%s219 + $0x60] sm:$0xff]
      %v238 = vld [vmem:[%s219 + $0x68] sm:$0xff]
      %v239 = vld [vmem:[%s219 + $0x70] sm:$0xff]
      %v240 = vld [vmem:[%s219 + $0x78] sm:$0xff]
      %v241 = vld [vmem:[%s219 + $0x80] sm:$0xff]
      %v242 = vld [vmem:[%s219 + $0x88] sm:$0xff]
      %v243 = vld [vmem:[%s219 + $0x90] sm:$0xff]
      %v244 = vld [vmem:[%s219 + $0x98] sm:$0xff]
      %v245 = vld [vmem:[%s219 + $0xa0] sm:$0xff]
      %v246 = vld [vmem:[%s219 + $0xa8] sm:$0xff]
      %v247 = vld [vmem:[%s219 + $0xb0] sm:$0xff]
      %v248 = vld [vmem:[%s219 + $0xb8] sm:$0xff]
      %v249 = vld [vmem:[%s219 + $0xc0] sm:$0xff]
      %v250 = vld [vmem:[%s219 + $0xc8] sm:$0xff]
      %v251 = vld [vmem:[%s219 + $0xd0] sm:$0xff]
      %v252 = vld [vmem:[%s219 + $0xd8] sm:$0xff]
      %v253 = vld [vmem:[%s219 + $0xe0] sm:$0xff]
      %v254 = vld [vmem:[%s219 + $0xe8] sm:$0xff]
      %v255 = vld [vmem:[%s219 + $0xf0] sm:$0xff]
      %v256 = vld [vmem:[%s219 + $0xf8] sm:$0xff]
      %v257 = vld [vmem:[%s1] sm:$0xff]
      %v258 = vld [vmem:[%s1 + $0x8] sm:$0xff]
      %v259 = vld [vmem:[%s1 + $0x10] sm:$0xff]
      %v260 = vld [vmem:[%s1 + $0x18] sm:$0xf]
      %v261 = vld [vmem:[%s2] sm:$0x1]
      %v263 = vlaneseq
      %v264 = vshrl.u32 %v263, 7
      %v265 = vsub.s32 0, %v264
      %v266 = vrot.slane %v261, %v265
      %vm268 = vcmask 228352
      %v270 = vsel %vm268, %v225, 0
      %v273 = vsel %vm268, %v226, 0
      %v276 = vsel %vm268, %v227, 0
      %v279 = vsel %vm268, %v228, 0
      %v282 = vsel %vm268, %v229, 0
      %v285 = vsel %vm268, %v230, 0
      %v288 = vsel %vm268, %v231, 0
      %v291 = vsel %vm268, %v232, 0
      %v294 = vsel %vm268, %v233, 0
      %v297 = vsel %vm268, %v234, 0
      %v300 = vsel %vm268, %v235, 0
      %v303 = vsel %vm268, %v236, 0
      %v306 = vsel %vm268, %v237, 0
      %v309 = vsel %vm268, %v238, 0
      %v312 = vsel %vm268, %v239, 0
      %v315 = vsel %vm268, %v240, 0
      %v318 = vsel %vm268, %v241, 0
      %v321 = vsel %vm268, %v242, 0
      %v324 = vsel %vm268, %v243, 0
      %v327 = vsel %vm268, %v244, 0
      %v330 = vsel %vm268, %v245, 0
      %v333 = vsel %vm268, %v246, 0
      %v336 = vsel %vm268, %v247, 0
      %v339 = vsel %vm268, %v248, 0
      %v342 = vsel %vm268, %v249, 0
      %v345 = vsel %vm268, %v250, 0
      %v348 = vsel %vm268, %v251, 0
      %v351 = vsel %vm268, %v252, 0
      %v354 = vsel %vm268, %v253, 0
      %v357 = vsel %vm268, %v254, 0
      %v360 = vsel %vm268, %v255, 0
      %v363 = vsel %vm268, %v256, 0
      %vm365 = vcmask 1043456
      %v367 = vsel %vm365, %v260, 0
      %369 = vmatprep.subr.mxu0 0.0
      %370 = vmatpush1.msra.mxu0 %v257
      %371 = vmatprep.subr.mxu0 0.0
      %372 = vmatpush1.msra.mxu0 %v258
      %373 = vmatprep.subr.mxu0 0.0
      %374 = vmatpush1.msra.mxu0 %v259
      %375 = vmatprep.subr.mxu0 0.0
      %376 = vmatpush1.msra.mxu0 %v367
      %377 = vmatprep.subr.mxu0 0.0
      %378 = vmatpush1.msra.mxu0 0.0
      %379 = vmatprep.subr.mxu0 0.0
      %380 = vmatpush1.msra.mxu0 0.0
      %381 = vmatprep.subr.mxu0 0.0
      %382 = vmatpush1.msra.mxu0 0.0
      %383 = vmatprep.subr.mxu0 0.0
      %384 = vmatpush1.msra.mxu0 0.0
      %385 = vmatprep.subr.mxu0 0.0
      %386 = vmatpush1.msra.mxu0 0.0
      %387 = vmatprep.subr.mxu0 0.0
      %388 = vmatpush1.msra.mxu0 0.0
      %389 = vmatprep.subr.mxu0 0.0
      %390 = vmatpush1.msra.mxu0 0.0
      %391 = vmatprep.subr.mxu0 0.0
      %392 = vmatpush1.msra.mxu0 0.0
      %393 = vmatprep.subr.mxu0 0.0
      %394 = vmatpush1.msra.mxu0 0.0
      %395 = vmatprep.subr.mxu0 0.0
      %396 = vmatpush1.msra.mxu0 0.0
      %397 = vmatprep.subr.mxu0 0.0
      %398 = vmatpush1.msra.mxu0 0.0
      %399 = vmatprep.subr.mxu0 0.0
      %400 = vmatpush1.msra.mxu0 0.0
      %401 = vmatprep.subr.mxu0 0.0
      %402 = vmatpush1.msra.mxu0 0.0
      %403 = vmatprep.subr.mxu0 0.0
      %404 = vmatpush1.msra.mxu0 0.0
      %405 = vmatprep.subr.mxu0 0.0
      %406 = vmatpush1.msra.mxu0 0.0
      %407 = vmatprep.subr.mxu0 0.0
      %408 = vmatpush1.msra.mxu0 0.0
      %409 = vmatprep.subr.mxu0 0.0
      %410 = vmatpush1.msra.mxu0 0.0
      %411 = vmatprep.subr.mxu0 0.0
      %412 = vmatpush1.msra.mxu0 0.0
      %413 = vmatprep.subr.mxu0 0.0
      %414 = vmatpush1.msra.mxu0 0.0
      %415 = vmatprep.subr.mxu0 0.0
      %416 = vmatpush1.msra.mxu0 0.0
      %417 = vmatprep.subr.mxu0 0.0
      %418 = vmatpush1.msra.mxu0 0.0
      %419 = vmatprep.subr.mxu0 0.0
      %420 = vmatpush1.msra.mxu0 0.0
      %421 = vmatprep.subr.mxu0 0.0
      %422 = vmatpush1.msra.mxu0 0.0
      %423 = vmatprep.subr.mxu0 0.0
      %424 = vmatpush1.msra.mxu0 0.0
      %425 = vmatprep.subr.mxu0 0.0
      %426 = vmatpush1.msra.mxu0 0.0
      %427 = vmatprep.subr.mxu0 0.0
      %428 = vmatpush1.msra.mxu0 0.0
      %429 = vmatprep.subr.mxu0 0.0
      %430 = vmatpush1.msra.mxu0 0.0
      %431 = vmatprep.subr.mxu0 0.0
      %432 = vmatpush1.msra.mxu0 0.0
      %433 = vmatprep.mubr.f32.mxu0 0.0
      %434 = vmatmul.mubr.f32.gmra.mrb[0].mxu0 %v270
      %v435 = vpop.f32.mrb[0].mxu0
      %v436 = vadd.f32 %v266, %v435
      %v437 = vpop.f32.mrb[0].mxu0
      %438 = vmatprep.mubr.f32.mxu0 0.0
      %439 = vmatmul.mubr.f32.gmra.mrb[0].mxu0 %v273
      %v440 = vpop.f32.mrb[0].mxu0
      %v441 = vadd.f32 %v266, %v440
      %v442 = vpop.f32.mrb[0].mxu0
      %443 = vmatprep.mubr.f32.mxu0 0.0
      %444 = vmatmul.mubr.f32.gmra.mrb[0].mxu0 %v276
      %v445 = vpop.f32.mrb[0].mxu0
      %v446 = vadd.f32 %v266, %v445
      %v447 = vpop.f32.mrb[0].mxu0
      %448 = vmatprep.mubr.f32.mxu0 0.0
      %449 = vmatmul.mubr.f32.gmra.mrb[0].mxu0 %v279
      %v450 = vpop.f32.mrb[0].mxu0
      %v451 = vadd.f32 %v266, %v450
      %v452 = vpop.f32.mrb[0].mxu0
      %453 = vmatprep.mubr.f32.mxu0 0.0
      %454 = vmatmul.mubr.f32.gmra.mrb[0].mxu0 %v282
      %v455 = vpop.f32.mrb[0].mxu0
      %v456 = vadd.f32 %v266, %v455
      %v457 = vpop.f32.mrb[0].mxu0
      %458 = vmatprep.mubr.f32.mxu0 0.0
      %459 = vmatmul.mubr.f32.gmra.mrb[0].mxu0 %v285
      %v460 = vpop.f32.mrb[0].mxu0
      %v461 = vadd.f32 %v266, %v460
      %v462 = vpop.f32.mrb[0].mxu0
      %463 = vmatprep.mubr.f32.mxu0 0.0
      %464 = vmatmul.mubr.f32.gmra.mrb[0].mxu0 %v288
      %v465 = vpop.f32.mrb[0].mxu0
      %v466 = vadd.f32 %v266, %v465
      %v467 = vpop.f32.mrb[0].mxu0
      %468 = vmatprep.mubr.f32.mxu0 0.0
      %469 = vmatmul.mubr.f32.gmra.mrb[0].mxu0 %v291
      %v470 = vpop.f32.mrb[0].mxu0
      %v471 = vadd.f32 %v266, %v470
      %v472 = vpop.f32.mrb[0].mxu0
      %473 = vmatprep.mubr.f32.mxu0 0.0
      %474 = vmatmul.mubr.f32.gmra.mrb[0].mxu0 %v294
      %v475 = vpop.f32.mrb[0].mxu0
      %v476 = vadd.f32 %v266, %v475
      %v477 = vpop.f32.mrb[0].mxu0
      %478 = vmatprep.mubr.f32.mxu0 0.0
      %479 = vmatmul.mubr.f32.gmra.mrb[0].mxu0 %v297
      %v480 = vpop.f32.mrb[0].mxu0
      %v481 = vadd.f32 %v266, %v480
      %v482 = vpop.f32.mrb[0].mxu0
      %483 = vmatprep.mubr.f32.mxu0 0.0
      %484 = vmatmul.mubr.f32.gmra.mrb[0].mxu0 %v300
      %v485 = vpop.f32.mrb[0].mxu0
      %v486 = vadd.f32 %v266, %v485
      %v487 = vpop.f32.mrb[0].mxu0
      %488 = vmatprep.mubr.f32.mxu0 0.0
      %489 = vmatmul.mubr.f32.gmra.mrb[0].mxu0 %v303
      %v490 = vpop.f32.mrb[0].mxu0
      %v491 = vadd.f32 %v266, %v490
      %v492 = vpop.f32.mrb[0].mxu0
      %493 = vmatprep.mubr.f32.mxu0 0.0
      %494 = vmatmul.mubr.f32.gmra.mrb[0].mxu0 %v306
      %v495 = vpop.f32.mrb[0].mxu0
      %v496 = vadd.f32 %v266, %v495
      %v497 = vpop.f32.mrb[0].mxu0
      %498 = vmatprep.mubr.f32.mxu0 0.0
      %499 = vmatmul.mubr.f32.gmra.mrb[0].mxu0 %v309
      %v500 = vpop.f32.mrb[0].mxu0
      %v501 = vadd.f32 %v266, %v500
      %v502 = vpop.f32.mrb[0].mxu0
      %503 = vmatprep.mubr.f32.mxu0 0.0
      %504 = vmatmul.mubr.f32.gmra.mrb[0].mxu0 %v312
      %v505 = vpop.f32.mrb[0].mxu0
      %v506 = vadd.f32 %v266, %v505
      %v507 = vpop.f32.mrb[0].mxu0
      %508 = vmatprep.mubr.f32.mxu0 0.0
      %509 = vmatmul.mubr.f32.gmra.mrb[0].mxu0 %v315
      %v510 = vpop.f32.mrb[0].mxu0
      %v511 = vadd.f32 %v266, %v510
      %v512 = vpop.f32.mrb[0].mxu0
      %513 = vmatprep.mubr.f32.mxu0 0.0
      %514 = vmatmul.mubr.f32.gmra.mrb[0].mxu0 %v318
      %v515 = vpop.f32.mrb[0].mxu0
      %v516 = vadd.f32 %v266, %v515
      %v517 = vpop.f32.mrb[0].mxu0
      %518 = vmatprep.mubr.f32.mxu0 0.0
      %519 = vmatmul.mubr.f32.gmra.mrb[0].mxu0 %v321
      %v520 = vpop.f32.mrb[0].mxu0
      %v521 = vadd.f32 %v266, %v520
      %v522 = vpop.f32.mrb[0].mxu0
      %523 = vmatprep.mubr.f32.mxu0 0.0
      %524 = vmatmul.mubr.f32.gmra.mrb[0].mxu0 %v324
      %v525 = vpop.f32.mrb[0].mxu0
      %v526 = vadd.f32 %v266, %v525
      %v527 = vpop.f32.mrb[0].mxu0
      %528 = vmatprep.mubr.f32.mxu0 0.0
      %529 = vmatmul.mubr.f32.gmra.mrb[0].mxu0 %v327
      %v530 = vpop.f32.mrb[0].mxu0
      %v531 = vadd.f32 %v266, %v530
      %v532 = vpop.f32.mrb[0].mxu0
      %533 = vmatprep.mubr.f32.mxu0 0.0
      %534 = vmatmul.mubr.f32.gmra.mrb[0].mxu0 %v330
      %v535 = vpop.f32.mrb[0].mxu0
      %v536 = vadd.f32 %v266, %v535
      %v537 = vpop.f32.mrb[0].mxu0
      %538 = vmatprep.mubr.f32.mxu0 0.0
      %539 = vmatmul.mubr.f32.gmra.mrb[0].mxu0 %v333
      %v540 = vpop.f32.mrb[0].mxu0
      %v541 = vadd.f32 %v266, %v540
      %v542 = vpop.f32.mrb[0].mxu0
      %543 = vmatprep.mubr.f32.mxu0 0.0
      %544 = vmatmul.mubr.f32.gmra.mrb[0].mxu0 %v336
      %v545 = vpop.f32.mrb[0].mxu0
      %v546 = vadd.f32 %v266, %v545
      %v547 = vpop.f32.mrb[0].mxu0
      %548 = vmatprep.mubr.f32.mxu0 0.0
      %549 = vmatmul.mubr.f32.gmra.mrb[0].mxu0 %v339
      %v550 = vpop.f32.mrb[0].mxu0
      %v551 = vadd.f32 %v266, %v550
      %v552 = vpop.f32.mrb[0].mxu0
      %553 = vmatprep.mubr.f32.mxu0 0.0
      %554 = vmatmul.mubr.f32.gmra.mrb[0].mxu0 %v342
      %v555 = vpop.f32.mrb[0].mxu0
      %v556 = vadd.f32 %v266, %v555
      %v557 = vpop.f32.mrb[0].mxu0
      %558 = vmatprep.mubr.f32.mxu0 0.0
      %559 = vmatmul.mubr.f32.gmra.mrb[0].mxu0 %v345
      %v560 = vpop.f32.mrb[0].mxu0
      %v561 = vadd.f32 %v266, %v560
      %v562 = vpop.f32.mrb[0].mxu0
      %563 = vmatprep.mubr.f32.mxu0 0.0
      %564 = vmatmul.mubr.f32.gmra.mrb[0].mxu0 %v348
      %v565 = vpop.f32.mrb[0].mxu0
      %v566 = vadd.f32 %v266, %v565
      %v567 = vpop.f32.mrb[0].mxu0
      %568 = vmatprep.mubr.f32.mxu0 0.0
      %569 = vmatmul.mubr.f32.gmra.mrb[0].mxu0 %v351
      %v570 = vpop.f32.mrb[0].mxu0
      %v571 = vadd.f32 %v266, %v570
      %v572 = vpop.f32.mrb[0].mxu0
      %573 = vmatprep.mubr.f32.mxu0 0.0
      %574 = vmatmul.mubr.f32.gmra.mrb[0].mxu0 %v354
      %v575 = vpop.f32.mrb[0].mxu0
      %v576 = vadd.f32 %v266, %v575
      %v577 = vpop.f32.mrb[0].mxu0
      %578 = vmatprep.mubr.f32.mxu0 0.0
      %579 = vmatmul.mubr.f32.gmra.mrb[0].mxu0 %v357
      %v580 = vpop.f32.mrb[0].mxu0
      %v581 = vadd.f32 %v266, %v580
      %v582 = vpop.f32.mrb[0].mxu0
      %583 = vmatprep.mubr.f32.mxu0 0.0
      %584 = vmatmul.mubr.f32.gmra.mrb[0].mxu0 %v360
      %v585 = vpop.f32.mrb[0].mxu0
      %v586 = vadd.f32 %v266, %v585
      %v587 = vpop.f32.mrb[0].mxu0
      %588 = vmatprep.mubr.f32.mxu0 0.0
      %589 = vmatmul.mubr.f32.gmra.mrb[0].mxu0 %v363
      %v590 = vpop.f32.mrb[0].mxu0
      %v591 = vadd.f32 %v266, %v590
      %v592 = vpop.f32.mrb[0].mxu0
      %593 = vdwg.mxu0
      %v594 = vmax.f32 %v436, 0.0
      %v595 = vmax.f32 %v441, 0.0
      %v596 = vmax.f32 %v446, 0.0
      %v597 = vmax.f32 %v451, 0.0
      %v598 = vmax.f32 %v456, 0.0
      %v599 = vmax.f32 %v461, 0.0
      %v600 = vmax.f32 %v466, 0.0
      %v601 = vmax.f32 %v471, 0.0
      %v602 = vmax.f32 %v476, 0.0
      %v603 = vmax.f32 %v481, 0.0
      %v604 = vmax.f32 %v486, 0.0
      %v605 = vmax.f32 %v491, 0.0
      %v606 = vmax.f32 %v496, 0.0
      %v607 = vmax.f32 %v501, 0.0
      %v608 = vmax.f32 %v506, 0.0
      %v609 = vmax.f32 %v511, 0.0
      %v610 = vmax.f32 %v516, 0.0
      %v611 = vmax.f32 %v521, 0.0
      %v612 = vmax.f32 %v526, 0.0
      %v613 = vmax.f32 %v531, 0.0
      %v614 = vmax.f32 %v536, 0.0
      %v615 = vmax.f32 %v541, 0.0
      %v616 = vmax.f32 %v546, 0.0
      %v617 = vmax.f32 %v551, 0.0
      %v618 = vmax.f32 %v556, 0.0
      %v619 = vmax.f32 %v561, 0.0
      %v620 = vmax.f32 %v566, 0.0
      %v621 = vmax.f32 %v571, 0.0
      %v622 = vmax.f32 %v576, 0.0
      %v623 = vmax.f32 %v581, 0.0
      %v624 = vmax.f32 %v586, 0.0
      %v625 = vmax.f32 %v591, 0.0
      %vm626 = vcmask 130048
      %v627 = vsel %vm626, %v594, 0.0
      %v628 = vsel %vm626, %v595, 0.0
      %v629 = vadd.f32 %v627, %v628
      %v630 = vsel %vm626, %v596, 0.0
      %v631 = vadd.f32 %v629, %v630
      %v632 = vsel %vm626, %v597, 0.0
      %v633 = vadd.f32 %v631, %v632
      %v634 = vsel %vm626, %v598, 0.0
      %v635 = vadd.f32 %v633, %v634
      %v636 = vsel %vm626, %v599, 0.0
      %v637 = vadd.f32 %v635, %v636
      %v638 = vsel %vm626, %v600, 0.0
      %v639 = vadd.f32 %v637, %v638
      %v640 = vsel %vm626, %v601, 0.0
      %v641 = vadd.f32 %v639, %v640
      %v642 = vsel %vm626, %v602, 0.0
      %v643 = vadd.f32 %v641, %v642
      %v644 = vsel %vm626, %v603, 0.0
      %v645 = vadd.f32 %v643, %v644
      %v646 = vsel %vm626, %v604, 0.0
      %v647 = vadd.f32 %v645, %v646
      %v648 = vsel %vm626, %v605, 0.0
      %v649 = vadd.f32 %v647, %v648
      %v650 = vsel %vm626, %v606, 0.0
      %v651 = vadd.f32 %v649, %v650
      %v652 = vsel %vm626, %v607, 0.0
      %v653 = vadd.f32 %v651, %v652
      %v654 = vsel %vm626, %v608, 0.0
      %v655 = vadd.f32 %v653, %v654
      %v656 = vsel %vm626, %v609, 0.0
      %v657 = vadd.f32 %v655, %v656
      %v658 = vsel %vm626, %v610, 0.0
      %v659 = vadd.f32 %v657, %v658
      %v660 = vsel %vm626, %v611, 0.0
      %v661 = vadd.f32 %v659, %v660
      %v662 = vsel %vm626, %v612, 0.0
      %v663 = vadd.f32 %v661, %v662
      %v664 = vsel %vm626, %v613, 0.0
      %v665 = vadd.f32 %v663, %v664
      %v666 = vsel %vm626, %v614, 0.0
      %v667 = vadd.f32 %v665, %v666
      %v668 = vsel %vm626, %v615, 0.0
      %v669 = vadd.f32 %v667, %v668
      %v670 = vsel %vm626, %v616, 0.0
      %v671 = vadd.f32 %v669, %v670
      %v672 = vsel %vm626, %v617, 0.0
      %v673 = vadd.f32 %v671, %v672
      %v674 = vsel %vm626, %v618, 0.0
      %v675 = vadd.f32 %v673, %v674
      %v676 = vsel %vm626, %v619, 0.0
      %v677 = vadd.f32 %v675, %v676
      %v678 = vsel %vm626, %v620, 0.0
      %v679 = vadd.f32 %v677, %v678
      %v680 = vsel %vm626, %v621, 0.0
      %v681 = vadd.f32 %v679, %v680
      %v682 = vsel %vm626, %v622, 0.0
      %v683 = vadd.f32 %v681, %v682
      %v684 = vsel %vm626, %v623, 0.0
      %v685 = vadd.f32 %v683, %v684
      %v686 = vsel %vm626, %v624, 0.0
      %v687 = vadd.f32 %v685, %v686
      %v688 = vsel %vm626, %v625, 0.0
      %v689 = vadd.f32 %v687, %v688
      %v690 = vrot.slane %v689, 4
      %v691 = vadd.f32 %v689, %v690
      %v692 = vrot.slane %v691, 2
      %v693 = vadd.f32 %v691, %v692
      %v694 = vrot.slane %v693, 1
      %v695 = vadd.f32 %v693, %v694
      %v696 = vmul.f32 %v695, 0.00390625
      %v697 = vld [vmem:[%s3] sm:$0xff]
      %v698 = vld [vmem:[%s3 + $0x8] sm:$0xff]
      %v699 = vld [vmem:[%s4] sm:$0x1]
      %v701 = vsel %vm626, %v696, 0
      %703 = vmatprep.subr.mxu0 0.0
      %704 = vmatpush1.msra.mxu0 %v697
      %705 = vmatprep.subr.mxu0 0.0
      %706 = vmatpush1.msra.mxu0 %v698
      %707 = vmatprep.subr.mxu0 0.0
      %708 = vmatpush1.msra.mxu0 0.0
      %709 = vmatprep.subr.mxu0 0.0
      %710 = vmatpush1.msra.mxu0 0.0
      %711 = vmatprep.subr.mxu0 0.0
      %712 = vmatpush1.msra.mxu0 0.0
      %713 = vmatprep.subr.mxu0 0.0
      %714 = vmatpush1.msra.mxu0 0.0
      %715 = vmatprep.subr.mxu0 0.0
      %716 = vmatpush1.msra.mxu0 0.0
      %717 = vmatprep.subr.mxu0 0.0
      %718 = vmatpush1.msra.mxu0 0.0
      %719 = vmatprep.subr.mxu0 0.0
      %720 = vmatpush1.msra.mxu0 0.0
      %721 = vmatprep.subr.mxu0 0.0
      %722 = vmatpush1.msra.mxu0 0.0
      %723 = vmatprep.subr.mxu0 0.0
      %724 = vmatpush1.msra.mxu0 0.0
      %725 = vmatprep.subr.mxu0 0.0
      %726 = vmatpush1.msra.mxu0 0.0
      %727 = vmatprep.subr.mxu0 0.0
      %728 = vmatpush1.msra.mxu0 0.0
      %729 = vmatprep.subr.mxu0 0.0
      %730 = vmatpush1.msra.mxu0 0.0
      %731 = vmatprep.subr.mxu0 0.0
      %732 = vmatpush1.msra.mxu0 0.0
      %733 = vmatprep.subr.mxu0 0.0
      %734 = vmatpush1.msra.mxu0 0.0
      %735 = vmatprep.subr.mxu0 0.0
      %736 = vmatpush1.msra.mxu0 0.0
      %737 = vmatprep.subr.mxu0 0.0
      %738 = vmatpush1.msra.mxu0 0.0
      %739 = vmatprep.subr.mxu0 0.0
      %740 = vmatpush1.msra.mxu0 0.0
      %741 = vmatprep.subr.mxu0 0.0
      %742 = vmatpush1.msra.mxu0 0.0
      %743 = vmatprep.subr.mxu0 0.0
      %744 = vmatpush1.msra.mxu0 0.0
      %745 = vmatprep.subr.mxu0 0.0
      %746 = vmatpush1.msra.mxu0 0.0
      %747 = vmatprep.subr.mxu0 0.0
      %748 = vmatpush1.msra.mxu0 0.0
      %749 = vmatprep.subr.mxu0 0.0
      %750 = vmatpush1.msra.mxu0 0.0
      %751 = vmatprep.subr.mxu0 0.0
      %752 = vmatpush1.msra.mxu0 0.0
      %753 = vmatprep.subr.mxu0 0.0
      %754 = vmatpush1.msra.mxu0 0.0
      %755 = vmatprep.subr.mxu0 0.0
      %756 = vmatpush1.msra.mxu0 0.0
      %757 = vmatprep.subr.mxu0 0.0
      %758 = vmatpush1.msra.mxu0 0.0
      %759 = vmatprep.subr.mxu0 0.0
      %760 = vmatpush1.msra.mxu0 0.0
      %761 = vmatprep.subr.mxu0 0.0
      %762 = vmatpush1.msra.mxu0 0.0
      %763 = vmatprep.subr.mxu0 0.0
      %764 = vmatpush1.msra.mxu0 0.0
      %765 = vmatprep.subr.mxu0 0.0
      %766 = vmatpush1.msra.mxu0 0.0
      %767 = vmatprep.mubr.f32.mxu0 0.0
      %768 = vmatmul.mubr.f32.gmra.mrb[0].mxu0 %v701
      %v769 = vpop.f32.mrb[0].mxu0
      %v770 = vadd.f32 %v699, %v769
      %v771 = vpop.f32.mrb[0].mxu0
      %772 = vdwg.mxu0
      %v773 = vadd.f32 %v770, 3.0
      %v774 = vmax.f32 %v773, 0.0
      %v775 = vmin.f32 %v774, 6.0
      %v776 = vmul.f32 %v775, 0.16666667
      %v777 = vlaneseq
      %v778 = vshrl.u32 %v777, 7
      %v779 = vsub.s32 0, %v778
      %v780 = vrot.slane %v776, %v779
      %v781 = vmul.f32 %v594, %v780
      %v782 = vmul.f32 %v595, %v780
      %v783 = vmul.f32 %v596, %v780
      %v784 = vmul.f32 %v597, %v780
      %v785 = vmul.f32 %v598, %v780
      %v786 = vmul.f32 %v599, %v780
      %v787 = vmul.f32 %v600, %v780
      %v788 = vmul.f32 %v601, %v780
      %v789 = vmul.f32 %v602, %v780
      %v790 = vmul.f32 %v603, %v780
      %v791 = vmul.f32 %v604, %v780
      %v792 = vmul.f32 %v605, %v780
      %v793 = vmul.f32 %v606, %v780
      %v794 = vmul.f32 %v607, %v780
      %v795 = vmul.f32 %v608, %v780
      %v796 = vmul.f32 %v609, %v780
      %v797 = vmul.f32 %v610, %v780
      %v798 = vmul.f32 %v611, %v780
      %v799 = vmul.f32 %v612, %v780
      %v800 = vmul.f32 %v613, %v780
      %v801 = vmul.f32 %v614, %v780
      %v802 = vmul.f32 %v615, %v780
      %v803 = vmul.f32 %v616, %v780
      %v804 = vmul.f32 %v617, %v780
      %v805 = vmul.f32 %v618, %v780
      %v806 = vmul.f32 %v619, %v780
      %v807 = vmul.f32 %v620, %v780
      %v808 = vmul.f32 %v621, %v780
      %v809 = vmul.f32 %v622, %v780
      %v810 = vmul.f32 %v623, %v780
      %v811 = vmul.f32 %v624, %v780
      %v812 = vmul.f32 %v625, %v780
      %813 = vst.msk [vmem:[%s224] sm:$0xff] %vm626, %v781
      %814 = vst.msk [vmem:[%s224 + $0x8] sm:$0xff] %vm626, %v782
      %815 = vst.msk [vmem:[%s224 + $0x10] sm:$0xff] %vm626, %v783
      %816 = vst.msk [vmem:[%s224 + $0x18] sm:$0xff] %vm626, %v784
      %817 = vst.msk [vmem:[%s224 + $0x20] sm:$0xff] %vm626, %v785
      %818 = vst.msk [vmem:[%s224 + $0x28] sm:$0xff] %vm626, %v786
      %819 = vst.msk [vmem:[%s224 + $0x30] sm:$0xff] %vm626, %v787
      %820 = vst.msk [vmem:[%s224 + $0x38] sm:$0xff] %vm626, %v788
      %821 = vst.msk [vmem:[%s224 + $0x40] sm:$0xff] %vm626, %v789
      %822 = vst.msk [vmem:[%s224 + $0x48] sm:$0xff] %vm626, %v790
      %823 = vst.msk [vmem:[%s224 + $0x50] sm:$0xff] %vm626, %v791
      %824 = vst.msk [vmem:[%s224 + $0x58] sm:$0xff] %vm626, %v792
      %825 = vst.msk [vmem:[%s224 + $0x60] sm:$0xff] %vm626, %v793
      %826 = vst.msk [vmem:[%s224 + $0x68] sm:$0xff] %vm626, %v794
      %827 = vst.msk [vmem:[%s224 + $0x70] sm:$0xff] %vm626, %v795
      %828 = vst.msk [vmem:[%s224 + $0x78] sm:$0xff] %vm626, %v796
      %829 = vst.msk [vmem:[%s224 + $0x80] sm:$0xff] %vm626, %v797
      %830 = vst.msk [vmem:[%s224 + $0x88] sm:$0xff] %vm626, %v798
      %831 = vst.msk [vmem:[%s224 + $0x90] sm:$0xff] %vm626, %v799
      %832 = vst.msk [vmem:[%s224 + $0x98] sm:$0xff] %vm626, %v800
      %833 = vst.msk [vmem:[%s224 + $0xa0] sm:$0xff] %vm626, %v801
      %834 = vst.msk [vmem:[%s224 + $0xa8] sm:$0xff] %vm626, %v802
      %835 = vst.msk [vmem:[%s224 + $0xb0] sm:$0xff] %vm626, %v803
      %836 = vst.msk [vmem:[%s224 + $0xb8] sm:$0xff] %vm626, %v804
      %837 = vst.msk [vmem:[%s224 + $0xc0] sm:$0xff] %vm626, %v805
      %838 = vst.msk [vmem:[%s224 + $0xc8] sm:$0xff] %vm626, %v806
      %839 = vst.msk [vmem:[%s224 + $0xd0] sm:$0xff] %vm626, %v807
      %840 = vst.msk [vmem:[%s224 + $0xd8] sm:$0xff] %vm626, %v808
      %841 = vst.msk [vmem:[%s224 + $0xe0] sm:$0xff] %vm626, %v809
      %842 = vst.msk [vmem:[%s224 + $0xe8] sm:$0xff] %vm626, %v810
      %843 = vst.msk [vmem:[%s224 + $0xf0] sm:$0xff] %vm626, %v811
      %844 = vst.msk [vmem:[%s224 + $0xf8] sm:$0xff] %vm626, %v812
      %p845 = scmp.lt.s32.totalorder %s16, 1
      %s846 = scalar_select %p845, %s16, 1
      %s847 = smul.addr %s846, 32
      %s848 = smul.addr %s847, 8
      %s849 = scalar_lea.vmem %s5, %s848
      // Predicated region
      $region41: #{osa_block_forward.7} parent=39 // pred_check
        %p850 = pneg %p144
      $region42: #{osa_block_forward.7} parent=39 // pred_check_branch
        %852 = sbr.rel (%p850) target = $region44
      $region43: #{osa_block_forward.7} parent=39 // pred_region
        _
      $region44: #{osa_block_forward.7} parent=39 // pred_fallthru
        _
    $region40: #{osa_block_forward.7} parent=5 // pred_fallthru
      _
    %p853 = scmp.le.s32.totalorder 2, %s11
    // Predicated region
    $region45: #{osa_block_forward.7} parent=5 // pred_check
      %p854 = pneg %p853
    $region46: #{osa_block_forward.7} parent=5 // pred_check_branch
      %856 = sbr.rel (%p854) target = $region48
    $region47: #{osa_block_forward.7} parent=5 // pred_region
      %s857 = ssub.s32 %s11, 2
      // Predicated region
      $region49: #{osa_block_forward.7} parent=47 // pred_check
        %p858 = pneg %p150
      $region50: #{osa_block_forward.7} parent=47 // pred_check_branch
        %860 = sbr.rel (%p858) target = $region52
      $region51: #{osa_block_forward.7} parent=47 // pred_region
        %p861 = scmp.lt.s32.totalorder %s17, 1
        %s862 = scalar_select %p861, %s17, 1
        %s863 = smul.addr %s862, 32
        %s864 = smul.addr %s863, 8
        %s865 = scalar_lea.vmem %s5, %s864
      $region52: #{osa_block_forward.7} parent=47 // pred_fallthru
        _
    $region48: #{osa_block_forward.7} parent=5 // pred_fallthru
      _
  $region6: #{osa_block_forward.7} parent=0 // loop_footer
    %s15 = sadd.s32 1, %s11
  $region7: #{osa_block_forward.7} parent=0 // loop_footer_branch
    %10 = sbr.rel target = $region3
  $region8: #{osa_block_forward.7} parent=0 // loop_exit
    _

// kernel: osa_block_forward.4
$region0: #{osa_block_forward.4}
  #allocation0 [shape = 'u32[]', space=smem, size = 0x4, offset = 0x4, fixed_abs, tag = 'smem constant byte address 0x4 - core index']
  #allocation1 [shape = 'u32[144,128]{1,0:T(1,128)}', space=vmem, size = 0x12000, scoped, tag = 'internal scratch']
  %s0 = inlined_call_operand.vmem [shape: f32[2,18,18,4], index: 0, kind: input, shape index: {}]
  %s1 = inlined_call_operand.vmem [shape: f32[3,3,4,8], index: 1, kind: input, shape index: {}]
  %s2 = inlined_call_operand.vmem [shape: f32[1,8], index: 2, kind: input, shape index: {}]
  %s3 = inlined_call_operand.vmem [shape: f32[2,256,8], index: 3, kind: output, shape index: {}]
  %s4 = sld [smem:[#allocation0]]
  $region45: #{osa_block_forward.4} parent=0
    _
  %s6 = ssub.s32 1, %s4
  %s7 = scalar_select 0, %s6, %s4
  loop: start=0, step=1, limit=4
  $region2: #{osa_block_forward.4} parent=0 // loop_pre_header
    _
  $region3: #{osa_block_forward.4} parent=0 // loop_header
    %s9 = sphi 0, %s13
    %p10 = scmp.ge.s32.totalorder %s9, 4
    %s19 = sphi 0, %s21
    %s22 = sphi 0, %s19
    %s23 = sphi 0, %s22
    %s39 = sphi 0, %s23
    %s43 = sphi 0, %s43
    %s45 = sphi 0, %s43
    %s46 = sphi 0, %s45
    %s60 = sphi 0, %s46
    %s64 = sphi 0, %s64
    %s66 = sphi 0, %s64
    %s67 = sphi 0, %s66
    %s81 = sphi 0, %s67
    %s87 = sphi 0, %s89
    %s90 = sphi 0, %s87
    %s91 = sphi 0, %s90
    %s107 = sphi 0, %s91
  $region4: #{osa_block_forward.4} parent=0 // loop_header_branch
    %12 = sbr.rel (%p10) target = $region8
  $region5: #{osa_block_forward.4} parent=0 // loop_body
    %s14 = ssub.s32 %s9, 1
    %s15 = ssub.s32 %s9, 2
    %s16 = sadd.s32 %s9, 1
    %s17 = ssub.s32 %s9, %s16
    %p18 = scmp.eq.s32.totalorder %s17, 0
    %s20 = sadd.s32 %s19, 1
    %s21 = scalar_select %p18, %s19, %s20
    %p24 = pneg %p18
    %p25 = scmp.eq.s32.totalorder %s9, 1
    %p26 = por %p24, %p25
    %p27 = scmp.ne.s32.totalorder %s19, %s22
    %p28 = scmp.eq.s32.totalorder %s9, 0
    %p29 = por %p27, %p28
    %p30 = scmp.ne.s32.totalorder %s19, %s22
    %p31 = scmp.eq.s32.totalorder %s14, 1
    %p32 = por %p30, %p31
    %p33 = scmp.ne.s32.totalorder %s22, %s23
    %p34 = scmp.eq.s32.totalorder %s14, 0
    %p35 = por %p33, %p34
    %p36 = scmp.ne.s32.totalorder %s22, %s23
    %p37 = scmp.eq.s32.totalorder %s15, 1
    %p38 = por %p36, %p37
    %p40 = scmp.ne.s32.totalorder %s23, %s39
    %p41 = scmp.eq.s32.totalorder %s15, 0
    %p42 = por %p40, %p41
    %s44 = sadd.s32 %s43, 1
    %p47 = scmp.eq.s32.totalorder %s9, 1
    %p48 = scmp.ne.s32.totalorder %s43, %s45
    %p49 = scmp.eq.s32.totalorder %s9, 0
    %p50 = por %p48, %p49
    %p51 = scmp.ne.s32.totalorder %s43, %s45
    %p52 = scmp.eq.s32.totalorder %s14, 1
    %p53 = por %p51, %p52
    %p54 = scmp.ne.s32.totalorder %s45, %s46
    %p55 = scmp.eq.s32.totalorder %s14, 0
    %p56 = por %p54, %p55
    %p57 = scmp.ne.s32.totalorder %s45, %s46
    %p58 = scmp.eq.s32.totalorder %s15, 1
    %p59 = por %p57, %p58
    %p61 = scmp.ne.s32.totalorder %s46, %s60
    %p62 = scmp.eq.s32.totalorder %s15, 0
    %p63 = por %p61, %p62
    %s65 = sadd.s32 %s64, 1
    %p68 = scmp.eq.s32.totalorder %s9, 1
    %p69 = scmp.ne.s32.totalorder %s64, %s66
    %p70 = scmp.eq.s32.totalorder %s9, 0
    %p71 = por %p69, %p70
    %p72 = scmp.ne.s32.totalorder %s64, %s66
    %p73 = scmp.eq.s32.totalorder %s14, 1
    %p74 = por %p72, %p73
    %p75 = scmp.ne.s32.totalorder %s66, %s67
    %p76 = scmp.eq.s32.totalorder %s14, 0
    %p77 = por %p75, %p76
    %p78 = scmp.ne.s32.totalorder %s66, %s67
    %p79 = scmp.eq.s32.totalorder %s15, 1
    %p80 = por %p78, %p79
    %p82 = scmp.ne.s32.totalorder %s67, %s81
    %p83 = scmp.eq.s32.totalorder %s15, 0
    %p84 = por %p82, %p83
    %s85 = ssub.s32 %s9, %s16
    %p86 = scmp.eq.s32.totalorder %s85, 0
    %s88 = sadd.s32 %s87, 1
    %s89 = scalar_select %p86, %s87, %s88
    %p92 = pneg %p86
    %p93 = scmp.eq.s32.totalorder %s9, 1
    %p94 = por %p92, %p93
    %p95 = scmp.ne.s32.totalorder %s87, %s90
    %p96 = scmp.eq.s32.totalorder %s9, 0
    %p97 = por %p95, %p96
    %p98 = scmp.ne.s32.totalorder %s87, %s90
    %p99 = scmp.eq.s32.totalorder %s14, 1
    %p100 = por %p98, %p99
    %p101 = scmp.ne.s32.totalorder %s90, %s91
    %p102 = scmp.eq.s32.totalorder %s14, 0
    %p103 = por %p101, %p102
    %p104 = scmp.ne.s32.totalorder %s90, %s91
    %p105 = scmp.eq.s32.totalorder %s15, 1
    %p106 = por %p104, %p105
    %p108 = scmp.ne.s32.totalorder %s91, %s107
    %p109 = scmp.eq.s32.totalorder %s15, 0
    %p110 = por %p108, %p109
    %p111 = scmp.le.s32.totalorder 1, %s9
    %p112 = scmp.lt.s32.totalorder %s9, 3
    %p113 = pnand %p111, %p112
    %p114 = pneg %p113
    // Predicated region
    $region9: #{osa_block_forward.4} parent=5 // pred_check
      _
    $region10: #{osa_block_forward.4} parent=5 // pred_check_branch
      %116 = sbr.rel (%p113) target = $region12
    $region11: #{osa_block_forward.4} parent=5 // pred_region
      %s117 = ssub.s32 %s9, 1
      // Predicated region
      $region13: #{osa_block_forward.4} parent=11 // pred_check
        %p118 = pneg %p56
      $region14: #{osa_block_forward.4} parent=11 // pred_check_branch
        %120 = sbr.rel (%p118) target = $region16
      $region15: #{osa_block_forward.4} parent=11 // pred_region
        _
      $region16: #{osa_block_forward.4} parent=11 // pred_fallthru
        _
      // Predicated region
      $region17: #{osa_block_forward.4} parent=11 // pred_check
        %p121 = pneg %p77
      $region18: #{osa_block_forward.4} parent=11 // pred_check_branch
        %123 = sbr.rel (%p121) target = $region20
      $region19: #{osa_block_forward.4} parent=11 // pred_region
        _
      $region20: #{osa_block_forward.4} parent=11 // pred_fallthru
        _
    $region12: #{osa_block_forward.4} parent=5 // pred_fallthru
      _
    %p124 = scmp.lt.s32.totalorder %s9, 2
    // Predicated region
    $region21: #{osa_block_forward.4} parent=5 // pred_check
      %p125 = pneg %p124
    $region22: #{osa_block_forward.4} parent=5 // pred_check_branch
      %127 = sbr.rel (%p125) target = $region24
    $region23: #{osa_block_forward.4} parent=5 // pred_region
      // Predicated region
      $region25: #{osa_block_forward.4} parent=23 // pred_check
        %p128 = pneg %p29
      $region26: #{osa_block_forward.4} parent=23 // pred_check_branch
        %130 = sbr.rel (%p128) target = $region28
      $region27: #{osa_block_forward.4} parent=23 // pred_region
        %p131 = scmp.lt.s32.totalorder %s9, 1
        %s132 = scalar_select %p131, %s9, 1
        %s133 = smul.addr %s132, 54
        %s134 = smul.addr %s133, 8
        %s135 = scalar_lea.vmem %s0, %s134
      $region28: #{osa_block_forward.4} parent=23 // pred_fallthru
        _
    $region24: #{osa_block_forward.4} parent=5 // pred_fallthru
      _
    %p136 = scmp.le.s32.totalorder 1, %s9
    %p137 = scmp.lt.s32.totalorder %s9, 3
    %p138 = pnand %p136, %p137
    %p139 = pneg %p138
    // Predicated region
    $region29: #{osa_block_forward.4} parent=5 // pred_check
      _
    $region30: #{osa_block_forward.4} parent=5 // pred_check_branch
      %141 = sbr.rel (%p138) target = $region32
    $region31: #{osa_block_forward.4} parent=5 // pred_region
      %s142 = ssub.s32 %s9, 1
      %p143 = scmp.lt.s32.totalorder %s14, 1
      %s144 = scalar_select %p143, %s14, 1
      %s145 = smul.addr %s144, 54
      %s146 = smul.addr %s145, 8
      %s147 = scalar_lea.vmem %s0, %s146
      %p148 = pneg %p35
      %p149 = pneg %p32
      %p150 = pneg %p56
      %p151 = pneg %p53
      %p152 = pneg %p77
      %p153 = pneg %p74
      %p154 = pneg %p103
      %p155 = pneg %p100
      %p156 = scmp.lt.s32.totalorder %s14, 1
      %s157 = scalar_select %p156, %s14, 1
      %s158 = smul.addr %s157, 32
      %s159 = smul.addr %s158, 8
      %s160 = scalar_lea.vmem %s3, %s159
      %p161 = scmp.lt.s32.totalorder %s14, 1
      %s162 = scalar_select %p161, %s14, 1
      %s163 = smul.addr %s162, 54
      %s164 = smul.addr %s163, 8
      %s165 = scalar_lea.vmem %s0, %s164
      %p166 = scmp.lt.s32.totalorder %s14, 1
      %s167 = scalar_select %p166, %s14, 1
      %s168 = smul.addr %s167, 32
      %s169 = smul.addr %s168, 8
      %s170 = scalar_lea.vmem %s3, %s169
      %v171 = vld [vmem:[%s165] sm:$0xff]
      %v172 = vld [vmem:[%s165 + $0x8] sm:$0xff]
      %v173 = vld [vmem:[%s165 + $0x10] sm:$0x3]
      %v174 = vld [vmem:[%s165 + $0x18] sm:$0xff]
      %v175 = vld [vmem:[%s165 + $0x20] sm:$0xff]
      %v176 = vld [vmem:[%s165 + $0x28] sm:$0x3]
      %v177 = vld [vmem:[%s165 + $0x30] sm:$0xff]
      %v178 = vld [vmem:[%s165 + $0x38] sm:$0xff]
      %v179 = vld [vmem:[%s165 + $0x40] sm:$0x3]
      %v180 = vld [vmem:[%s165 + $0x48] sm:$0xff]
      %v181 = vld [vmem:[%s165 + $0x50] sm:$0xff]
      %v182 = vld [vmem:[%s165 + $0x58] sm:$0x3]
      %v183 = vld [vmem:[%s165 + $0x60] sm:$0xff]
      %v184 = vld [vmem:[%s165 + $0x68] sm:$0xff]
      %v185 = vld [vmem:[%s165 + $0x70] sm:$0x3]
      %v186 = vld [vmem:[%s165 + $0x78] sm:$0xff]
      %v187 = vld [vmem:[%s165 + $0x80] sm:$0xff]
      %v188 = vld [vmem:[%s165 + $0x88] sm:$0x3]
      %v189 = vld [vmem:[%s165 + $0x90] sm:$0xff]
      %v190 = vld [vmem:[%s165 + $0x98] sm:$0xff]
      %v191 = vld [vmem:[%s165 + $0xa0] sm:$0x3]
      %v192 = vld [vmem:[%s165 + $0xa8] sm:$0xff]
      %v193 = vld [vmem:[%s165 + $0xb0] sm:$0xff]
      %v194 = vld [vmem:[%s165 + $0xb8] sm:$0x3]
      %v195 = vld [vmem:[%s165 + $0xc0] sm:$0xff]
      %v196 = vld [vmem:[%s165 + $0xc8] sm:$0xff]
      %v197 = vld [vmem:[%s165 + $0xd0] sm:$0x3]
      %v198 = vld [vmem:[%s165 + $0xd8] sm:$0xff]
      %v199 = vld [vmem:[%s165 + $0xe0] sm:$0xff]
      %v200 = vld [vmem:[%s165 + $0xe8] sm:$0x3]
      %v201 = vld [vmem:[%s165 + $0xf0] sm:$0xff]
      %v202 = vld [vmem:[%s165 + $0xf8] sm:$0xff]
      %v203 = vld [vmem:[%s165 + $0x100] sm:$0x3]
      %v204 = vld [vmem:[%s165 + $0x108] sm:$0xff]
      %v205 = vld [vmem:[%s165 + $0x110] sm:$0xff]
      %v206 = vld [vmem:[%s165 + $0x118] sm:$0x3]
      %v207 = vld [vmem:[%s165 + $0x120] sm:$0xff]
      %v208 = vld [vmem:[%s165 + $0x128] sm:$0xff]
      %v209 = vld [vmem:[%s165 + $0x130] sm:$0x3]
      %v210 = vld [vmem:[%s165 + $0x138] sm:$0xff]
      %v211 = vld [vmem:[%s165 + $0x140] sm:$0xff]
      %v212 = vld [vmem:[%s165 + $0x148] sm:$0x3]
      %v213 = vld [vmem:[%s165 + $0x150] sm:$0xff]
      %v214 = vld [vmem:[%s165 + $0x158] sm:$0xff]
      %v215 = vld [vmem:[%s165 + $0x160] sm:$0x3]
      %v216 = vld [vmem:[%s165 + $0x168] sm:$0xff]
      %v217 = vld [vmem:[%s165 + $0x170] sm:$0xff]
      %v218 = vld [vmem:[%s165 + $0x178] sm:$0x3]
      %v219 = vld [vmem:[%s165 + $0x180] sm:$0xff]
      %v220 = vld [vmem:[%s165 + $0x188] sm:$0xff]
      %v221 = vld [vmem:[%s165 + $0x190] sm:$0x3]
      %v222 = vld [vmem:[%s165 + $0x198] sm:$0xff]
      %v223 = vld [vmem:[%s165 + $0x1a0] sm:$0xff]
      %v224 = vld [vmem:[%s165 + $0x1a8] sm:$0x3]
      %v225 = vld [vmem:[%s1] sm:$0xf]
      %vm274 = vcmask 1046528
      %v275 = vrot.slane %v171, 1
      %v276 = vrot.slane %v172, 1
      %v277 = vsel %vm274, %v275, %v276
      %v278 = vrot.slane %v173, 1
      %v279 = vsel %vm274, %v276, %v278
      %v280 = vrot.slane %v174, 1
      %v281 = vrot.slane %v175, 1
      %v282 = vsel %vm274, %v280, %v281
      %v283 = vrot.slane %v176, 1
      %v284 = vsel %vm274, %v281, %v283
      %v285 = vrot.slane %v177, 1
      %v286 = vrot.slane %v178, 1
      %v287 = vsel %vm274, %v285, %v286
      %v288 = vrot.slane %v179, 1
      %v289 = vsel %vm274, %v286, %v288
      %v290 = vrot.slane %v180, 1
      %v291 = vrot.slane %v181, 1
      %v292 = vsel %vm274, %v290, %v291
      %v293 = vrot.slane %v182, 1
      %v294 = vsel %vm274, %v291, %v293
      %v295 = vrot.slane %v183, 1
      %v296 = vrot.slane %v184, 1
      %v297 = vsel %vm274, %v295, %v296
      %v298 = vrot.slane %v185, 1
      %v299 = vsel %vm274, %v296, %v298
      %v300 = vrot.slane %v186, 1
      %v301 = vrot.slane %v187, 1
      %v302 = vsel %vm274, %v300, %v301
      %v303 = vrot.slane %v188, 1
      %v304 = vsel %vm274, %v301, %v303
      %v305 = vrot.slane %v189, 1
      %v306 = vrot.slane %v190, 1
      %v307 = vsel %vm274, %v305, %v306
      %v308 = vrot.slane %v191, 1
      %v309 = vsel %vm274, %v306, %v308
      %v310 = vrot.slane %v192, 1
      %v311 = vrot.slane %v193, 1
      %v312 = vsel %vm274, %v310, %v311
      %v313 = vrot.slane %v194, 1
      %v314 = vsel %vm274, %v311, %v313
      %v315 = vrot.slane %v195, 1
      %v316 = vrot.slane %v196, 1
      %v317 = vsel %vm274, %v315, %v316
      %v318 = vrot.slane %v197, 1
      %v319 = vsel %vm274, %v316, %v318
      %v320 = vrot.slane %v198, 1
      %v321 = vrot.slane %v199, 1
      %v322 = vsel %vm274, %v320, %v321
      %v323 = vrot.slane %v200, 1
      %v324 = vsel %vm274, %v321, %v323
      %v325 = vrot.slane %v201, 1
      %v326 = vrot.slane %v202, 1
      %v327 = vsel %vm274, %v325, %v326
      %v328 = vrot.slane %v203, 1
      %v329 = vsel %vm274, %v326, %v328
      %v330 = vrot.slane %v204, 1
      %v331 = vrot.slane %v205, 1
      %v332 = vsel %vm274, %v330, %v331
      %v333 = vrot.slane %v206, 1
      %v334 = vsel %vm274, %v331, %v333
      %v335 = vrot.slane %v207, 1
      %v336 = vrot.slane %v208, 1
      %v337 = vsel %vm274, %v335, %v336
      %v338 = vrot.slane %v209, 1
      %v339 = vsel %vm274, %v336, %v338
      %v340 = vrot.slane %v210, 1
      %v341 = vrot.slane %v211, 1
      %v342 = vsel %vm274, %v340, %v341
      %v343 = vrot.slane %v212, 1
      %v344 = vsel %vm274, %v341, %v343
      %v345 = vrot.slane %v213, 1
      %v346 = vrot.slane %v214, 1
      %v347 = vsel %vm274, %v345, %v346
      %v348 = vrot.slane %v215, 1
      %v349 = vsel %vm274, %v346, %v348
      %v350 = vrot.slane %v216, 1
      %v351 = vrot.slane %v217, 1
      %v352 = vsel %vm274, %v350, %v351
      %v353 = vrot.slane %v218, 1
      %v354 = vsel %vm274, %v351, %v353
      %s355 = scalar_lea.vmem %s1, 4
      %v356 = vld [vmem:[%s355] sm:$0xf]
      %vm357 = vcmask 31744
      %v358 = vsel %vm357, %v277, 0
      %v360 = vsel %vm357, %v279, 0
      %v362 = vsel %vm357, %v282, 0
      %v364 = vsel %vm357, %v284, 0
      %v366 = vsel %vm357, %v287, 0
      %v368 = vsel %vm357, %v289, 0
      %v370 = vsel %vm357, %v292, 0
      %v372 = vsel %vm357, %v294, 0
      %v374 = vsel %vm357, %v297, 0
      %v376 = vsel %vm357, %v299, 0
      %v378 = vsel %vm357, %v302, 0
      %v380 = vsel %vm357, %v304, 0
      %v382 = vsel %vm357, %v307, 0
      %v384 = vsel %vm357, %v309, 0
      %v386 = vsel %vm357, %v312, 0
      %v388 = vsel %vm357, %v314, 0
      %v390 = vsel %vm357, %v317, 0
      %v392 = vsel %vm357, %v319, 0
      %v394 = vsel %vm357, %v322, 0
      %v396 = vsel %vm357, %v324, 0
      %v398 = vsel %vm357, %v327, 0
      %v400 = vsel %vm357, %v329, 0
      %v402 = vsel %vm357, %v332, 0
      %v404 = vsel %vm357, %v334, 0
      %v406 = vsel %vm357, %v337, 0
      %v408 = vsel %vm357, %v339, 0
      %v410 = vsel %vm357, %v342, 0
      %v412 = vsel %vm357, %v344, 0
      %v414 = vsel %vm357, %v347, 0
      %v416 = vsel %vm357, %v349, 0
      %v418 = vsel %vm357, %v352, 0
      %v420 = vsel %vm357, %v354, 0
      %vm422 = vcmask 1043456
      %v424 = vsel %vm422, %v356, 0
      %426 = vmatprep.subr.mxu0 0.0
      %427 = vmatpush1.msra.mxu0 %v424
      %428 = vmatprep.subr.mxu0 0.0
      %429 = vmatpush1.msra.mxu0 0.0
      %430 = vmatprep.subr.mxu0 0.0
      %431 = vmatpush1.msra.mxu0 0.0
      %432 = vmatprep.subr.mxu0 0.0
      %433 = vmatpush1.msra.mxu0 0.0
      %434 = vmatprep.subr.mxu0 0.0
      %435 = vmatpush1.msra.mxu0 0.0
      %436 = vmatprep.subr.mxu0 0.0
      %437 = vmatpush1.msra.mxu0 0.0
      %438 = vmatprep.subr.mxu0 0.0
      %439 = vmatpush1.msra.mxu0 0.0
      %440 = vmatprep.subr.mxu0 0.0
      %441 = vmatpush1.msra.mxu0 0.0
      %442 = vmatprep.subr.mxu0 0.0
      %443 = vmatpush1.msra.mxu0 0.0
      %444 = vmatprep.subr.mxu0 0.0
      %445 = vmatpush1.msra.mxu0 0.0
      %446 = vmatprep.subr.mxu0 0.0
      %447 = vmatpush1.msra.mxu0 0.0
      %448 = vmatprep.subr.mxu0 0.0
      %449 = vmatpush1.msra.mxu0 0.0
      %450 = vmatprep.subr.mxu0 0.0
      %451 = vmatpush1.msra.mxu0 0.0
      %452 = vmatprep.subr.mxu0 0.0
      %453 = vmatpush1.msra.mxu0 0.0
      %454 = vmatprep.subr.mxu0 0.0
      %455 = vmatpush1.msra.mxu0 0.0
      %456 = vmatprep.subr.mxu0 0.0
      %457 = vmatpush1.msra.mxu0 0.0
      %458 = vmatprep.subr.mxu0 0.0
      %459 = vmatpush1.msra.mxu0 0.0
      %460 = vmatprep.subr.mxu0 0.0
      %461 = vmatpush1.msra.mxu0 0.0
      %462 = vmatprep.subr.mxu0 0.0
      %463 = vmatpush1.msra.mxu0 0.0
      %464 = vmatprep.subr.mxu0 0.0
      %465 = vmatpush1.msra.mxu0 0.0
      %466 = vmatprep.subr.mxu0 0.0
      %467 = vmatpush1.msra.mxu0 0.0
      %468 = vmatprep.subr.mxu0 0.0
      %469 = vmatpush1.msra.mxu0 0.0
      %470 = vmatprep.subr.mxu0 0.0
      %471 = vmatpush1.msra.mxu0 0.0
      %472 = vmatprep.subr.mxu0 0.0
      %473 = vmatpush1.msra.mxu0 0.0
      %474 = vmatprep.subr.mxu0 0.0
      %475 = vmatpush1.msra.mxu0 0.0
      %476 = vmatprep.subr.mxu0 0.0
      %477 = vmatpush1.msra.mxu0 0.0
      %478 = vmatprep.subr.mxu0 0.0
      %479 = vmatpush1.msra.mxu0 0.0
      %480 = vmatprep.subr.mxu0 0.0
      %481 = vmatpush1.msra.mxu0 0.0
      %482 = vmatprep.subr.mxu0 0.0
      %483 = vmatpush1.msra.mxu0 0.0
      %484 = vmatprep.subr.mxu0 0.0
      %485 = vmatpush1.msra.mxu0 0.0
      %486 = vmatprep.subr.mxu0 0.0
      %487 = vmatpush1.msra.mxu0 0.0
      %488 = vmatprep.subr.mxu0 0.0
      %489 = vmatpush1.msra.mxu0 0.0
      %490 = vmatprep.mubr.f32.mxu0 0.0
      %491 = vmatmul.mubr.f32.gmra.mrb[0].mxu0 %v358
      %v492 = vpop.f32.mrb[0].mxu0
      %v493 = vadd.f32 0.0, %v492
      %v494 = vpop.f32.mrb[0].mxu0
      %495 = vmatprep.mubr.f32.mxu0 0.0
      %496 = vmatmul.mubr.f32.gmra.mrb[0].mxu0 %v360
      %v497 = vpop.f32.mrb[0].mxu0
      %v498 = vadd.f32 0.0, %v497
      %v499 = vpop.f32.mrb[0].mxu0
      %500 = vmatprep.mubr.f32.mxu0 0.0
      %501 = vmatmul.mubr.f32.gmra.mrb[0].mxu0 %v362
      %v502 = vpop.f32.mrb[0].mxu0
      %v503 = vadd.f32 0.0, %v502
      %v504 = vpop.f32.mrb[0].mxu0
      %505 = vmatprep.mubr.f32.mxu0 0.0
      %506 = vmatmul.mubr.f32.gmra.mrb[0].mxu0 %v364
      %v507 = vpop.f32.mrb[0].mxu0
      %v508 = vadd.f32 0.0, %v507
      %v509 = vpop.f32.mrb[0].mxu0
      %510 = vmatprep.mubr.f32.mxu0 0.0
      %511 = vmatmul.mubr.f32.gmra.mrb[0].mxu0 %v366
      %v512 = vpop.f32.mrb[0].mxu0
      %v513 = vadd.f32 0.0, %v512
      %v514 = vpop.f32.mrb[0].mxu0
      %515 = vmatprep.mubr.f32.mxu0 0.0
      %516 = vmatmul.mubr.f32.gmra.mrb[0].mxu0 %v368
      %v517 = vpop.f32.mrb[0].mxu0
      %v518 = vadd.f32 0.0, %v517
      %v519 = vpop.f32.mrb[0].mxu0
      %520 = vmatprep.mubr.f32.mxu0 0.0
      %521 = vmatmul.mubr.f32.gmra.mrb[0].mxu0 %v370
      %v522 = vpop.f32.mrb[0].mxu0
      %v523 = vadd.f32 0.0, %v522
      %v524 = vpop.f32.mrb[0].mxu0
      %525 = vmatprep.mubr.f32.mxu0 0.0
      %526 = vmatmul.mubr.f32.gmra.mrb[0].mxu0 %v372
      %v527 = vpop.f32.mrb[0].mxu0
      %v528 = vadd.f32 0.0, %v527
      %v529 = vpop.f32.mrb[0].mxu0
      %530 = vmatprep.mubr.f32.mxu0 0.0
      %531 = vmatmul.mubr.f32.gmra.mrb[0].mxu0 %v374
      %v532 = vpop.f32.mrb[0].mxu0
      %v533 = vadd.f32 0.0, %v532
      %v534 = vpop.f32.mrb[0].mxu0
      %535 = vmatprep.mubr.f32.mxu0 0.0
      %536 = vmatmul.mubr.f32.gmra.mrb[0].mxu0 %v376
      %v537 = vpop.f32.mrb[0].mxu0
      %v538 = vadd.f32 0.0, %v537
      %v539 = vpop.f32.mrb[0].mxu0
      %540 = vmatprep.mubr.f32.mxu0 0.0
      %541 = vmatmul.mubr.f32.gmra.mrb[0].mxu0 %v378
      %v542 = vpop.f32.mrb[0].mxu0
      %v543 = vadd.f32 0.0, %v542
      %v544 = vpop.f32.mrb[0].mxu0
      %545 = vmatprep.mubr.f32.mxu0 0.0
      %546 = vmatmul.mubr.f32.gmra.mrb[0].mxu0 %v380
      %v547 = vpop.f32.mrb[0].mxu0
      %v548 = vadd.f32 0.0, %v547
      %v549 = vpop.f32.mrb[0].mxu0
      %550 = vmatprep.mubr.f32.mxu0 0.0
      %551 = vmatmul.mubr.f32.gmra.mrb[0].mxu0 %v382
      %v552 = vpop.f32.mrb[0].mxu0
      %v553 = vadd.f32 0.0, %v552
      %v554 = vpop.f32.mrb[0].mxu0
      %555 = vmatprep.mubr.f32.mxu0 0.0
      %556 = vmatmul.mubr.f32.gmra.mrb[0].mxu0 %v384
      %v557 = vpop.f32.mrb[0].mxu0
      %v558 = vadd.f32 0.0, %v557
      %v559 = vpop.f32.mrb[0].mxu0
      %560 = vmatprep.mubr.f32.mxu0 0.0
      %561 = vmatmul.mubr.f32.gmra.mrb[0].mxu0 %v386
      %v562 = vpop.f32.mrb[0].mxu0
      %v563 = vadd.f32 0.0, %v562
      %v564 = vpop.f32.mrb[0].mxu0
      %565 = vmatprep.mubr.f32.mxu0 0.0
      %566 = vmatmul.mubr.f32.gmra.mrb[0].mxu0 %v388
      %v567 = vpop.f32.mrb[0].mxu0
      %v568 = vadd.f32 0.0, %v567
      %v569 = vpop.f32.mrb[0].mxu0
      %570 = vmatprep.mubr.f32.mxu0 0.0
      %571 = vmatmul.mubr.f32.gmra.mrb[0].mxu0 %v390
      %v572 = vpop.f32.mrb[0].mxu0
      %v573 = vadd.f32 0.0, %v572
      %v574 = vpop.f32.mrb[0].mxu0
      %575 = vmatprep.mubr.f32.mxu0 0.0
      %576 = vmatmul.mubr.f32.gmra.mrb[0].mxu0 %v392
      %v577 = vpop.f32.mrb[0].mxu0
      %v578 = vadd.f32 0.0, %v577
      %v579 = vpop.f32.mrb[0].mxu0
      %580 = vmatprep.mubr.f32.mxu0 0.0
      %581 = vmatmul.mubr.f32.gmra.mrb[0].mxu0 %v394
      %v582 = vpop.f32.mrb[0].mxu0
      %v583 = vadd.f32 0.0, %v582
      %v584 = vpop.f32.mrb[0].mxu0
      %585 = vmatprep.mubr.f32.mxu0 0.0
      %586 = vmatmul.mubr.f32.gmra.mrb[0].mxu0 %v396
      %v587 = vpop.f32.mrb[0].mxu0
      %v588 = vadd.f32 0.0, %v587
      %v589 = vpop.f32.mrb[0].mxu0
      %590 = vmatprep.mubr.f32.mxu0 0.0
      %591 = vmatmul.mubr.f32.gmra.mrb[0].mxu0 %v398
      %v592 = vpop.f32.mrb[0].mxu0
      %v593 = vadd.f32 0.0, %v592
      %v594 = vpop.f32.mrb[0].mxu0
      %595 = vmatprep.mubr.f32.mxu0 0.0
      %596 = vmatmul.mubr.f32.gmra.mrb[0].mxu0 %v400
      %v597 = vpop.f32.mrb[0].mxu0
      %v598 = vadd.f32 0.0, %v597
      %v599 = vpop.f32.mrb[0].mxu0
      %600 = vmatprep.mubr.f32.mxu0 0.0
      %601 = vmatmul.mubr.f32.gmra.mrb[0].mxu0 %v402
      %v602 = vpop.f32.mrb[0].mxu0
      %v603 = vadd.f32 0.0, %v602
      %v604 = vpop.f32.mrb[0].mxu0
      %605 = vmatprep.mubr.f32.mxu0 0.0
      %606 = vmatmul.mubr.f32.gmra.mrb[0].mxu0 %v404
      %v607 = vpop.f32.mrb[0].mxu0
      %v608 = vadd.f32 0.0, %v607
      %v609 = vpop.f32.mrb[0].mxu0
      %610 = vmatprep.mubr.f32.mxu0 0.0
      %611 = vmatmul.mubr.f32.gmra.mrb[0].mxu0 %v406
      %v612 = vpop.f32.mrb[0].mxu0
      %v613 = vadd.f32 0.0, %v612
      %v614 = vpop.f32.mrb[0].mxu0
      %615 = vmatprep.mubr.f32.mxu0 0.0
      %616 = vmatmul.mubr.f32.gmra.mrb[0].mxu0 %v408
      %v617 = vpop.f32.mrb[0].mxu0
      %v618 = vadd.f32 0.0, %v617
      %v619 = vpop.f32.mrb[0].mxu0
      %620 = vmatprep.mubr.f32.mxu0 0.0
      %621 = vmatmul.mubr.f32.gmra.mrb[0].mxu0 %v410
      %v622 = vpop.f32.mrb[0].mxu0
      %v623 = vadd.f32 0.0, %v622
      %v624 = vpop.f32.mrb[0].mxu0
      %625 = vmatprep.mubr.f32.mxu0 0.0
      %626 = vmatmul.mubr.f32.gmra.mrb[0].mxu0 %v412
      %v627 = vpop.f32.mrb[0].mxu0
      %v628 = vadd.f32 0.0, %v627
      %v629 = vpop.f32.mrb[0].mxu0
      %630 = vmatprep.mubr.f32.mxu0 0.0
      %631 = vmatmul.mubr.f32.gmra.mrb[0].mxu0 %v414
      %v632 = vpop.f32.mrb[0].mxu0
      %v633 = vadd.f32 0.0, %v632
      %v634 = vpop.f32.mrb[0].mxu0
      %635 = vmatprep.mubr.f32.mxu0 0.0
      %636 = vmatmul.mubr.f32.gmra.mrb[0].mxu0 %v416
      %v637 = vpop.f32.mrb[0].mxu0
      %v638 = vadd.f32 0.0, %v637
      %v639 = vpop.f32.mrb[0].mxu0
      %640 = vmatprep.mubr.f32.mxu0 0.0
      %641 = vmatmul.mubr.f32.gmra.mrb[0].mxu0 %v418
      %v642 = vpop.f32.mrb[0].mxu0
      %v643 = vadd.f32 0.0, %v642
      %v644 = vpop.f32.mrb[0].mxu0
      %645 = vmatprep.mubr.f32.mxu0 0.0
      %646 = vmatmul.mubr.f32.gmra.mrb[0].mxu0 %v420
      %v647 = vpop.f32.mrb[0].mxu0
      %v648 = vadd.f32 0.0, %v647
      %v649 = vpop.f32.mrb[0].mxu0
      %650 = vdwg.mxu0
      %v651 = vsel %vm357, %v171, 0
      %v653 = vsel %vm357, %v172, 0
      %v655 = vsel %vm357, %v174, 0
      %v657 = vsel %vm357, %v175, 0
      %v659 = vsel %vm357, %v177, 0
      %v661 = vsel %vm357, %v178, 0
      %v663 = vsel %vm357, %v180, 0
      %v665 = vsel %vm357, %v181, 0
      %v667 = vsel %vm357, %v183, 0
      %v669 = vsel %vm357, %v184, 0
      %v671 = vsel %vm357, %v186, 0
      %v673 = vsel %vm357, %v187, 0
      %v675 = vsel %vm357, %v189, 0
      %v677 = vsel %vm357, %v190, 0
      %v679 = vsel %vm357, %v192, 0
      %v681 = vsel %vm357, %v193, 0
      %v683 = vsel %vm357, %v195, 0
      %v685 = vsel %vm357, %v196, 0
      %v687 = vsel %vm357, %v198, 0
      %v689 = vsel %vm357, %v199, 0
      %v691 = vsel %vm357, %v201, 0
      %v693 = vsel %vm357, %v202, 0
      %v695 = vsel %vm357, %v204, 0
      %v697 = vsel %vm357, %v205, 0
      %v699 = vsel %vm357, %v207, 0
      %v701 = vsel %vm357, %v208, 0
      %v703 = vsel %vm357, %v210, 0
      %v705 = vsel %vm357, %v211, 0
      %v707 = vsel %vm357, %v213, 0
      %v709 = vsel %vm357, %v214, 0
      %v711 = vsel %vm357, %v216, 0
      %v713 = vsel %vm357, %v217, 0
      %v716 = vsel %vm422, %v225, 0
      %718 = vmatprep.subr.mxu0 0.0
      %719 = vmatpush1.msra.mxu0 %v716
      %720 = vmatprep.subr.mxu0 0.0
      %721 = vmatpush1.msra.mxu0 0.0
      %722 = vmatprep.subr.mxu0 0.0
      %723 = vmatpush1.msra.mxu0 0.0
      %724 = vmatprep.subr.mxu0 0.0
      %725 = vmatpush1.msra.mxu0 0.0
      %726 = vmatprep.subr.mxu0 0.0
      %727 = vmatpush1.msra.mxu0 0.0
      %728 = vmatprep.subr.mxu0 0.0
      %729 = vmatpush1.msra.mxu0 0.0
      %730 = vmatprep.subr.mxu0 0.0
      %731 = vmatpush1.msra.mxu0 0.0
      %732 = vmatprep.subr.mxu0 0.0
      %733 = vmatpush1.msra.mxu0 0.0
      %734 = vmatprep.subr.mxu0 0.0
      %735 = vmatpush1.msra.mxu0 0.0
      %736 = vmatprep.subr.mxu0 0.0
      %737 = vmatpush1.msra.mxu0 0.0
      %738 = vmatprep.subr.mxu0 0.0
      %739 = vmatpush1.msra.mxu0 0.0
      %740 = vmatprep.subr.mxu0 0.0
      %741 = vmatpush1.msra.mxu0 0.0
      %742 = vmatprep.subr.mxu0 0.0
      %743 = vmatpush1.msra.mxu0 0.0
      %744 = vmatprep.subr.mxu0 0.0
      %745 = vmatpush1.msra.mxu0 0.0
      %746 = vmatprep.subr.mxu0 0.0
      %747 = vmatpush1.msra.mxu0 0.0
      %748 = vmatprep.subr.mxu0 0.0
      %749 = vmatpush1.msra.mxu0 0.0
      %750 = vmatprep.subr.mxu0 0.0
      %751 = vmatpush1.msra.mxu0 0.0
      %752 = vmatprep.subr.mxu0 0.0
      %753 = vmatpush1.msra.mxu0 0.0
      %754 = vmatprep.subr.mxu0 0.0
      %755 = vmatpush1.msra.mxu0 0.0
      %756 = vmatprep.subr.mxu0 0.0
      %757 = vmatpush1.msra.mxu0 0.0
      %758 = vmatprep.subr.mxu0 0.0
      %759 = vmatpush1.msra.mxu0 0.0
      %760 = vmatprep.subr.mxu0 0.0
      %761 = vmatpush1.msra.mxu0 0.0
      %762 = vmatprep.subr.mxu0 0.0
      %763 = vmatpush1.msra.mxu0 0.0
      %764 = vmatprep.subr.mxu0 0.0
      %765 = vmatpush1.msra.mxu0 0.0
      %766 = vmatprep.subr.mxu0 0.0
      %767 = vmatpush1.msra.mxu0 0.0
      %768 = vmatprep.subr.mxu0 0.0
      %769 = vmatpush1.msra.mxu0 0.0
      %770 = vmatprep.subr.mxu0 0.0
      %771 = vmatpush1.msra.mxu0 0.0
      %772 = vmatprep.subr.mxu0 0.0
      %773 = vmatpush1.msra.mxu0 0.0
      %774 = vmatprep.subr.mxu0 0.0
      %775 = vmatpush1.msra.mxu0 0.0
      %776 = vmatprep.subr.mxu0 0.0
      %777 = vmatpush1.msra.mxu0 0.0
      %778 = vmatprep.subr.mxu0 0.0
      %779 = vmatpush1.msra.mxu0 0.0
      %780 = vmatprep.subr.mxu0 0.0
      %781 = vmatpush1.msra.mxu0 0.0
      %782 = vmatprep.mubr.f32.mxu0 0.0
      %783 = vmatmul.mubr.f32.gmra.mrb[0].mxu0 %v651
      %v784 = vpop.f32.mrb[0].mxu0
      %v785 = vadd.f32 %v493, %v784
      %v786 = vpop.f32.mrb[0].mxu0
      %787 = vmatprep.mubr.f32.mxu0 0.0
      %788 = vmatmul.mubr.f32.gmra.mrb[0].mxu0 %v653
      %v789 = vpop.f32.mrb[0].mxu0
      %v790 = vadd.f32 %v498, %v789
      %v791 = vpop.f32.mrb[0].mxu0
      %792 = vmatprep.mubr.f32.mxu0 0.0
      %793 = vmatmul.mubr.f32.gmra.mrb[0].mxu0 %v655
      %v794 = vpop.f32.mrb[0].mxu0
      %v795 = vadd.f32 %v503, %v794
      %v796 = vpop.f32.mrb[0].mxu0
      %797 = vmatprep.mubr.f32.mxu0 0.0
      %798 = vmatmul.mubr.f32.gmra.mrb[0].mxu0 %v657
      %v799 = vpop.f32.mrb[0].mxu0
      %v800 = vadd.f32 %v508, %v799
      %v801 = vpop.f32.mrb[0].mxu0
      %802 = vmatprep.mubr.f32.mxu0 0.0
      %803 = vmatmul.mubr.f32.gmra.mrb[0].mxu0 %v659
      %v804 = vpop.f32.mrb[0].mxu0
      %v805 = vadd.f32 %v513, %v804
      %v806 = vpop.f32.mrb[0].mxu0
      %807 = vmatprep.mubr.f32.mxu0 0.0
      %808 = vmatmul.mubr.f32.gmra.mrb[0].mxu0 %v661
      %v809 = vpop.f32.mrb[0].mxu0
      %v810 = vadd.f32 %v518, %v809
      %v811 = vpop.f32.mrb[0].mxu0
      %812 = vmatprep.mubr.f32.mxu0 0.0
      %813 = vmatmul.mubr.f32.gmra.mrb[0].mxu0 %v663
      %v814 = vpop.f32.mrb[0].mxu0
      %v815 = vadd.f32 %v523, %v814
      %v816 = vpop.f32.mrb[0].mxu0
      %817 = vmatprep.mubr.f32.mxu0 0.0
      %818 = vmatmul.mubr.f32.gmra.mrb[0].mxu0 %v665
      %v819 = vpop.f32.mrb[0].mxu0
      %v820 = vadd.f32 %v528, %v819
      %v821 = vpop.f32.mrb[0].mxu0
      %822 = vmatprep.mubr.f32.mxu0 0.0
      %823 = vmatmul.mubr.f32.gmra.mrb[0].mxu0 %v667
      %v824 = vpop.f32.mrb[0].mxu0
      %v825 = vadd.f32 %v533, %v824
      %v826 = vpop.f32.mrb[0].mxu0
      %827 = vmatprep.mubr.f32.mxu0 0.0
      %828 = vmatmul.mubr.f32.gmra.mrb[0].mxu0 %v669
      %v829 = vpop.f32.mrb[0].mxu0
      %v830 = vadd.f32 %v538, %v829
      %v831 = vpop.f32.mrb[0].mxu0
      %832 = vmatprep.mubr.f32.mxu0 0.0
      %833 = vmatmul.mubr.f32.gmra.mrb[0].mxu0 %v671
      %v834 = vpop.f32.mrb[0].mxu0
      %v835 = vadd.f32 %v543, %v834
      %v836 = vpop.f32.mrb[0].mxu0
      %837 = vmatprep.mubr.f32.mxu0 0.0
      %838 = vmatmul.mubr.f32.gmra.mrb[0].mxu0 %v673
      %v839 = vpop.f32.mrb[0].mxu0
      %v840 = vadd.f32 %v548, %v839
      %v841 = vpop.f32.mrb[0].mxu0
      %842 = vmatprep.mubr.f32.mxu0 0.0
      %843 = vmatmul.mubr.f32.gmra.mrb[0].mxu0 %v675
      %v844 = vpop.f32.mrb[0].mxu0
      %v845 = vadd.f32 %v553, %v844
      %v846 = vpop.f32.mrb[0].mxu0
      %847 = vmatprep.mubr.f32.mxu0 0.0
      %848 = vmatmul.mubr.f32.gmra.mrb[0].mxu0 %v677
      %v849 = vpop.f32.mrb[0].mxu0
      %v850 = vadd.f32 %v558, %v849
      %v851 = vpop.f32.mrb[0].mxu0
      %852 = vmatprep.mubr.f32.mxu0 0.0
      %853 = vmatmul.mubr.f32.gmra.mrb[0].mxu0 %v679
      %v854 = vpop.f32.mrb[0].mxu0
      %v855 = vadd.f32 %v563, %v854
      %v856 = vpop.f32.mrb[0].mxu0
      %857 = vmatprep.mubr.f32.mxu0 0.0
      %858 = vmatmul.mubr.f32.gmra.mrb[0].mxu0 %v681
      %v859 = vpop.f32.mrb[0].mxu0
      %v860 = vadd.f32 %v568, %v859
      %v861 = vpop.f32.mrb[0].mxu0
      %862 = vmatprep.mubr.f32.mxu0 0.0
      %863 = vmatmul.mubr.f32.gmra.mrb[0].mxu0 %v683
      %v864 = vpop.f32.mrb[0].mxu0
      %v865 = vadd.f32 %v573, %v864
      %v866 = vpop.f32.mrb[0].mxu0
      %867 = vmatprep.mubr.f32.mxu0 0.0
      %868 = vmatmul.mubr.f32.gmra.mrb[0].mxu0 %v685
      %v869 = vpop.f32.mrb[0].mxu0
      %v870 = vadd.f32 %v578, %v869
      %v871 = vpop.f32.mrb[0].mxu0
      %872 = vmatprep.mubr.f32.mxu0 0.0
      %873 = vmatmul.mubr.f32.gmra.mrb[0].mxu0 %v687
      %v874 = vpop.f32.mrb[0].mxu0
      %v875 = vadd.f32 %v583, %v874
      %v876 = vpop.f32.mrb[0].mxu0
      %877 = vmatprep.mubr.f32.mxu0 0.0
      %878 = vmatmul.mubr.f32.gmra.mrb[0].mxu0 %v689
      %v879 = vpop.f32.mrb[0].mxu0
      %v880 = vadd.f32 %v588, %v879
      %v881 = vpop.f32.mrb[0].mxu0
      %882 = vmatprep.mubr.f32.mxu0 0.0
      %883 = vmatmul.mubr.f32.gmra.mrb[0].mxu0 %v691
      %v884 = vpop.f32.mrb[0].mxu0
      %v885 = vadd.f32 %v593, %v884
      %v886 = vpop.f32.mrb[0].mxu0
      %887 = vmatprep.mubr.f32.mxu0 0.0
      %888 = vmatmul.mubr.f32.gmra.mrb[0].mxu0 %v693
      %v889 = vpop.f32.mrb[0].mxu0
      %v890 = vadd.f32 %v598, %v889
      %v891 = vpop.f32.mrb[0].mxu0
      %892 = vmatprep.mubr.f32.mxu0 0.0
      %893 = vmatmul.mubr.f32.gmra.mrb[0].mxu0 %v695
      %v894 = vpop.f32.mrb[0].mxu0
      %v895 = vadd.f32 %v603, %v894
      %v896 = vpop.f32.mrb[0].mxu0
      %897 = vmatprep.mubr.f32.mxu0 0.0
      %898 = vmatmul.mubr.f32.gmra.mrb[0].mxu0 %v697
      %v899 = vpop.f32.mrb[0].mxu0
      %v900 = vadd.f32 %v608, %v899
      %v901 = vpop.f32.mrb[0].mxu0
      %902 = vmatprep.mubr.f32.mxu0 0.0
      %903 = vmatmul.mubr.f32.gmra.mrb[0].mxu0 %v699
      %v904 = vpop.f32.mrb[0].mxu0
      %v905 = vadd.f32 %v613, %v904
      %v906 = vpop.f32.mrb[0].mxu0
      %907 = vmatprep.mubr.f32.mxu0 0.0
      %908 = vmatmul.mubr.f32.gmra.mrb[0].mxu0 %v701
      %v909 = vpop.f32.mrb[0].mxu0
      %v910 = vadd.f32 %v618, %v909
      %v911 = vpop.f32.mrb[0].mxu0
      %912 = vmatprep.mubr.f32.mxu0 0.0
      %913 = vmatmul.mubr.f32.gmra.mrb[0].mxu0 %v703
      %v914 = vpop.f32.mrb[0].mxu0
      %v915 = vadd.f32 %v623, %v914
      %v916 = vpop.f32.mrb[0].mxu0
      %917 = vmatprep.mubr.f32.mxu0 0.0
      %918 = vmatmul.mubr.f32.gmra.mrb[0].mxu0 %v705
      %v919 = vpop.f32.mrb[0].mxu0
      %v920 = vadd.f32 %v628, %v919
      %v921 = vpop.f32.mrb[0].mxu0
      %922 = vmatprep.mubr.f32.mxu0 0.0
      %923 = vmatmul.mubr.f32.gmra.mrb[0].mxu0 %v707
      %v924 = vpop.f32.mrb[0].mxu0
      %v925 = vadd.f32 %v633, %v924
      %v926 = vpop.f32.mrb[0].mxu0
      %927 = vmatprep.mubr.f32.mxu0 0.0
      %928 = vmatmul.mubr.f32.gmra.mrb[0].mxu0 %v709
      %v929 = vpop.f32.mrb[0].mxu0
      %v930 = vadd.f32 %v638, %v929
      %v931 = vpop.f32.mrb[0].mxu0
      %932 = vmatprep.mubr.f32.mxu0 0.0
      %933 = vmatmul.mubr.f32.gmra.mrb[0].mxu0 %v711
      %v934 = vpop.f32.mrb[0].mxu0
      %v935 = vadd.f32 %v643, %v934
      %v936 = vpop.f32.mrb[0].mxu0
      %937 = vmatprep.mubr.f32.mxu0 0.0
      %938 = vmatmul.mubr.f32.gmra.mrb[0].mxu0 %v713
      %v939 = vpop.f32.mrb[0].mxu0
      %v940 = vadd.f32 %v648, %v939
      %v941 = vpop.f32.mrb[0].mxu0
      %942 = vdwg.mxu0
      %vm943 = vcmask 1045504
      %v944 = vrot.slane %v171, 2
      %v945 = vrot.slane %v172, 2
      %v946 = vsel %vm943, %v944, %v945
      %v947 = vrot.slane %v173, 2
      %v948 = vsel %vm943, %v945, %v947
      %v949 = vrot.slane %v174, 2
      %v950 = vrot.slane %v175, 2
      %v951 = vsel %vm943, %v949, %v950
      %v952 = vrot.slane %v176, 2
      %v953 = vsel %vm943, %v950, %v952
      %v954 = vrot.slane %v177, 2
      %v955 = vrot.slane %v178, 2
      %v956 = vsel %vm943, %v954, %v955
      %v957 = vrot.slane %v179, 2
      %v958 = vsel %vm943, %v955, %v957
      %v959 = vrot.slane %v180, 2
      %v960 = vrot.slane %v181, 2
      %v961 = vsel %vm943, %v959, %v960
      %v962 = vrot.slane %v182, 2
      %v963 = vsel %vm943, %v960, %v962
      %v964 = vrot.slane %v183, 2
      %v965 = vrot.slane %v184, 2
      %v966 = vsel %vm943, %v964, %v965
      %v967 = vrot.slane %v185, 2
      %v968 = vsel %vm943, %v965, %v967
      %v969 = vrot.slane %v186, 2
      %v970 = vrot.slane %v187, 2
      %v971 = vsel %vm943, %v969, %v970
      %v972 = vrot.slane %v188, 2
      %v973 = vsel %vm943, %v970, %v972
      %v974 = vrot.slane %v189, 2
      %v975 = vrot.slane %v190, 2
      %v976 = vsel %vm943, %v974, %v975
      %v977 = vrot.slane %v191, 2
      %v978 = vsel %vm943, %v975, %v977
      %v979 = vrot.slane %v192, 2
      %v980 = vrot.slane %v193, 2
      %v981 = vsel %vm943, %v979, %v980
      %v982 = vrot.slane %v194, 2
      %v983 = vsel %vm943, %v980, %v982
      %v984 = vrot.slane %v195, 2
      %v985 = vrot.slane %v196, 2
      %v986 = vsel %vm943, %v984, %v985
      %v987 = vrot.slane %v197, 2
      %v988 = vsel %vm943, %v985, %v987
      %v989 = vrot.slane %v198, 2
      %v990 = vrot.slane %v199, 2
      %v991 = vsel %vm943, %v989, %v990
      %v992 = vrot.slane %v200, 2
      %v993 = vsel %vm943, %v990, %v992
      %v994 = vrot.slane %v201, 2
      %v995 = vrot.slane %v202, 2
      %v996 = vsel %vm943, %v994, %v995
      %v997 = vrot.slane %v203, 2
      %v998 = vsel %vm943, %v995, %v997
      %v999 = vrot.slane %v204, 2
      %v1000 = vrot.slane %v205, 2
      %v1001 = vsel %vm943, %v999, %v1000
      %v1002 = vrot.slane %v206, 2
      %v1003 = vsel %vm943, %v1000, %v1002
      %v1004 = vrot.slane %v207, 2
      %v1005 = vrot.slane %v208, 2
      %v1006 = vsel %vm943, %v1004, %v1005
      %v1007 = vrot.slane %v209, 2
      %v1008 = vsel %vm943, %v1005, %v1007
      %v1009 = vrot.slane %v210, 2
      %v1010 = vrot.slane %v211, 2
      %v1011 = vsel %vm943, %v1009, %v1010
      %v1012 = vrot.slane %v212, 2
      %v1013 = vsel %vm943, %v1010, %v1012
      %v1014 = vrot.slane %v213, 2
      %v1015 = vrot.slane %v214, 2
      %v1016 = vsel %vm943, %v1014, %v1015
      %v1017 = vrot.slane %v215, 2
      %v1018 = vsel %vm943, %v1015, %v1017
      %v1019 = vrot.slane %v216, 2
      %v1020 = vrot.slane %v217, 2
      %v1021 = vsel %vm943, %v1019, %v1020
      %v1022 = vrot.slane %v218, 2
      %v1023 = vsel %vm943, %v1020, %v1022
      %s1024 = scalar_lea.vmem %s1, 8
      %v1025 = vld [vmem:[%s1024] sm:$0xf]
      %v1026 = vsel %vm357, %v946, 0
      %v1028 = vsel %vm357, %v948, 0
      %v1030 = vsel %vm357, %v951, 0
      %v1032 = vsel %vm357, %v953, 0
      %v1034 = vsel %vm357, %v956, 0
      %v1036 = vsel %vm357, %v958, 0
      %v1038 = vsel %vm357, %v961, 0
      %v1040 = vsel %vm357, %v963, 0
      %v1042 = vsel %vm357, %v966, 0
      %v1044 = vsel %vm357, %v968, 0
      %v1046 = vsel %vm357, %v971, 0
      %v1048 = vsel %vm357, %v973, 0
      %v1050 = vsel %vm357, %v976, 0
      %v1052 = vsel %vm357, %v978, 0
      %v1054 = vsel %vm357, %v981, 0
      %v1056 = vsel %vm357, %v983, 0
      %v1058 = vsel %vm357, %v986, 0
      %v1060 = vsel %vm357, %v988, 0
      %v1062 = vsel %vm357, %v991, 0
      %v1064 = vsel %vm357, %v993, 0
      %v1066 = vsel %vm357, %v996, 0
      %v1068 = vsel %vm357, %v998, 0
      %v1070 = vsel %vm357, %v1001, 0
      %v1072 = vsel %vm357, %v1003, 0
      %v1074 = vsel %vm357, %v1006, 0
      %v1076 = vsel %vm357, %v1008, 0
      %v1078 = vsel %vm357, %v1011, 0
      %v1080 = vsel %vm357, %v1013, 0
      %v1082 = vsel %vm357, %v1016, 0
      %v1084 = vsel %vm357, %v1018, 0
      %v1086 = vsel %vm357, %v1021, 0
      %v1088 = vsel %vm357, %v1023, 0
      %v1091 = vsel %vm422, %v1025, 0
      %1093 = vmatprep.subr.mxu0 0.0
      %1094 = vmatpush1.msra.mxu0 %v1091
      %1095 = vmatprep.subr.mxu0 0.0
      %1096 = vmatpush1.msra.mxu0 0.0
      %1097 = vmatprep.subr.mxu0 0.0
      %1098 = vmatpush1.msra.mxu0 0.0
      %1099 = vmatprep.subr.mxu0 0.0
      %1100 = vmatpush1.msra.mxu0 0.0
      %1101 = vmatprep.subr.mxu0 0.0
      %1102 = vmatpush1.msra.mxu0 0.0
      %1103 = vmatprep.subr.mxu0 0.0
      %1104 = vmatpush1.msra.mxu0 0.0
      %1105 = vmatprep.subr.mxu0 0.0
      %1106 = vmatpush1.msra.mxu0 0.0
      %1107 = vmatprep.subr.mxu0 0.0
      %1108 = vmatpush1.msra.mxu0 0.0
      %1109 = vmatprep.subr.mxu0 0.0
      %1110 = vmatpush1.msra.mxu0 0.0
      %1111 = vmatprep.subr.mxu0 0.0
      %1112 = vmatpush1.msra.mxu0 0.0
      %1113 = vmatprep.subr.mxu0 0.0
      %1114 = vmatpush1.msra.mxu0 0.0
      %1115 = vmatprep.subr.mxu0 0.0
      %1116 = vmatpush1.msra.mxu0 0.0
      %1117 = vmatprep.subr.mxu0 0.0
      %1118 = vmatpush1.msra.mxu0 0.0
      %1119 = vmatprep.subr.mxu0 0.0
      %1120 = vmatpush1.msra.mxu0 0.0
      %1121 = vmatprep.subr.mxu0 0.0
      %1122 = vmatpush1.msra.mxu0 0.0
      %1123 = vmatprep.subr.mxu0 0.0
      %1124 = vmatpush1.msra.mxu0 0.0
      %1125 = vmatprep.subr.mxu0 0.0
      %1126 = vmatpush1.msra.mxu0 0.0
      %1127 = vmatprep.subr.mxu0 0.0
      %1128 = vmatpush1.msra.mxu0 0.0
      %1129 = vmatprep.subr.mxu0 0.0
      %1130 = vmatpush1.msra.mxu0 0.0
      %1131 = vmatprep.subr.mxu0 0.0
      %1132 = vmatpush1.msra.mxu0 0.0
      %1133 = vmatprep.subr.mxu0 0.0
      %1134 = vmatpush1.msra.mxu0 0.0
      %1135 = vmatprep.subr.mxu0 0.0
      %1136 = vmatpush1.msra.mxu0 0.0
      %1137 = vmatprep.subr.mxu0 0.0
      %1138 = vmatpush1.msra.mxu0 0.0
      %1139 = vmatprep.subr.mxu0 0.0
      %1140 = vmatpush1.msra.mxu0 0.0
      %1141 = vmatprep.subr.mxu0 0.0
      %1142 = vmatpush1.msra.mxu0 0.0
      %1143 = vmatprep.subr.mxu0 0.0
      %1144 = vmatpush1.msra.mxu0 0.0
      %1145 = vmatprep.subr.mxu0 0.0
      %1146 = vmatpush1.msra.mxu0 0.0
      %1147 = vmatprep.subr.mxu0 0.0
      %1148 = vmatpush1.msra.mxu0 0.0
      %1149 = vmatprep.subr.mxu0 0.0
      %1150 = vmatpush1.msra.mxu0 0.0
      %1151 = vmatprep.subr.mxu0 0.0
      %1152 = vmatpush1.msra.mxu0 0.0
      %1153 = vmatprep.subr.mxu0 0.0
      %1154 = vmatpush1.msra.mxu0 0.0
      %1155 = vmatprep.subr.mxu0 0.0
      %1156 = vmatpush1.msra.mxu0 0.0
      %1157 = vmatprep.mubr.f32.mxu0 0.0
      %1158 = vmatmul.mubr.f32.gmra.mrb[0].mxu0 %v1026
      %v1159 = vpop.f32.mrb[0].mxu0
      %v1160 = vadd.f32 0.0, %v1159
      %v1161 = vpop.f32.mrb[0].mxu0
      %1162 = vmatprep.mubr.f32.mxu0 0.0
      %1163 = vmatmul.mubr.f32.gmra.mrb[0].mxu0 %v1028
      %v1164 = vpop.f32.mrb[0].mxu0
      %v1165 = vadd.f32 0.0, %v1164
      %v1166 = vpop.f32.mrb[0].mxu0
      %1167 = vmatprep.mubr.f32.mxu0 0.0
      %1168 = vmatmul.mubr.f32.gmra.mrb[0].mxu0 %v1030
      %v1169 = vpop.f32.mrb[0].mxu0
      %v1170 = vadd.f32 0.0, %v1169
      %v1171 = vpop.f32.mrb[0].mxu0
      %1172 = vmatprep.mubr.f32.mxu0 0.0
      %1173 = vmatmul.mubr.f32.gmra.mrb[0].mxu0 %v1032
      %v1174 = vpop.f32.mrb[0].mxu0
      %v1175 = vadd.f32 0.0, %v1174
      %v1176 = vpop.f32.mrb[0].mxu0
      %1177 = vmatprep.mubr.f32.mxu0 0.0
      %1178 = vmatmul.mubr.f32.gmra.mrb[0].mxu0 %v1034
      %v1179 = vpop.f32.mrb[0].mxu0
      %v1180 = vadd.f32 0.0, %v1179
      %v1181 = vpop.f32.mrb[0].mxu0
      %1182 = vmatprep.mubr.f32.mxu0 0.0
      %1183 = vmatmul.mubr.f32.gmra.mrb[0].mxu0 %v1036
      %v1184 = vpop.f32.mrb[0].mxu0
      %v1185 = vadd.f32 0.0, %v1184
      %v1186 = vpop.f32.mrb[0].mxu0
      %1187 = vmatprep.mubr.f32.mxu0 0.0
      %1188 = vmatmul.mubr.f32.gmra.mrb[0].mxu0 %v1038
      %v1189 = vpop.f32.mrb[0].mxu0
      %v1190 = vadd.f32 0.0, %v1189
      %v1191 = vpop.f32.mrb[0].mxu0
      %1192 = vmatprep.mubr.f32.mxu0 0.0
      %1193 = vmatmul.mubr.f32.gmra.mrb[0].mxu0 %v1040
      %v1194 = vpop.f32.mrb[0].mxu0
      %v1195 = vadd.f32 0.0, %v1194
      %v1196 = vpop.f32.mrb[0].mxu0
      %1197 = vmatprep.mubr.f32.mxu0 0.0
      %1198 = vmatmul.mubr.f32.gmra.mrb[0].mxu0 %v1042
      %v1199 = vpop.f32.mrb[0].mxu0
      %v1200 = vadd.f32 0.0, %v1199
      %v1201 = vpop.f32.mrb[0].mxu0
      %1202 = vmatprep.mubr.f32.mxu0 0.0
      %1203 = vmatmul.mubr.f32.gmra.mrb[0].mxu0 %v1044
      %v1204 = vpop.f32.mrb[0].mxu0
      %v1205 = vadd.f32 0.0, %v1204
      %v1206 = vpop.f32.mrb[0].mxu0
      %1207 = vmatprep.mubr.f32.mxu0 0.0
      %1208 = vmatmul.mubr.f32.gmra.mrb[0].mxu0 %v1046
      %v1209 = vpop.f32.mrb[0].mxu0
      %v1210 = vadd.f32 0.0, %v1209
      %v1211 = vpop.f32.mrb[0].mxu0
      %1212 = vmatprep.mubr.f32.mxu0 0.0
      %1213 = vmatmul.mubr.f32.gmra.mrb[0].mxu0 %v1048
      %v1214 = vpop.f32.mrb[0].mxu0
      %v1215 = vadd.f32 0.0, %v1214
      %v1216 = vpop.f32.mrb[0].mxu0
      %1217 = vmatprep.mubr.f32.mxu0 0.0
      %1218 = vmatmul.mubr.f32.gmra.mrb[0].mxu0 %v1050
      %v1219 = vpop.f32.mrb[0].mxu0
      %v1220 = vadd.f32 0.0, %v1219
      %v1221 = vpop.f32.mrb[0].mxu0
      %1222 = vmatprep.mubr.f32.mxu0 0.0
      %1223 = vmatmul.mubr.f32.gmra.mrb[0].mxu0 %v1052
      %v1224 = vpop.f32.mrb[0].mxu0
      %v1225 = vadd.f32 0.0, %v1224
      %v1226 = vpop.f32.mrb[0].mxu0
      %1227 = vmatprep.mubr.f32.mxu0 0.0
      %1228 = vmatmul.mubr.f32.gmra.mrb[0].mxu0 %v1054
      %v1229 = vpop.f32.mrb[0].mxu0
      %v1230 = vadd.f32 0.0, %v1229
      %v1231 = vpop.f32.mrb[0].mxu0
      %1232 = vmatprep.mubr.f32.mxu0 0.0
      %1233 = vmatmul.mubr.f32.gmra.mrb[0].mxu0 %v1056
      %v1234 = vpop.f32.mrb[0].mxu0
      %v1235 = vadd.f32 0.0, %v1234
      %v1236 = vpop.f32.mrb[0].mxu0
      %1237 = vmatprep.mubr.f32.mxu0 0.0
      %1238 = vmatmul.mubr.f32.gmra.mrb[0].mxu0 %v1058
      %v1239 = vpop.f32.mrb[0].mxu0
      %v1240 = vadd.f32 0.0, %v1239
      %v1241 = vpop.f32.mrb[0].mxu0
      %1242 = vmatprep.mubr.f32.mxu0 0.0
      %1243 = vmatmul.mubr.f32.gmra.mrb[0].mxu0 %v1060
      %v1244 = vpop.f32.mrb[0].mxu0
      %v1245 = vadd.f32 0.0, %v1244
      %v1246 = vpop.f32.mrb[0].mxu0
      %1247 = vmatprep.mubr.f32.mxu0 0.0
      %1248 = vmatmul.mubr.f32.gmra.mrb[0].mxu0 %v1062
      %v1249 = vpop.f32.mrb[0].mxu0
      %v1250 = vadd.f32 0.0, %v1249
      %v1251 = vpop.f32.mrb[0].mxu0
      %1252 = vmatprep.mubr.f32.mxu0 0.0
      %1253 = vmatmul.mubr.f32.gmra.mrb[0].mxu0 %v1064
      %v1254 = vpop.f32.mrb[0].mxu0
      %v1255 = vadd.f32 0.0, %v1254
      %v1256 = vpop.f32.mrb[0].mxu0
      %1257 = vmatprep.mubr.f32.mxu0 0.0
      %1258 = vmatmul.mubr.f32.gmra.mrb[0].mxu0 %v1066
      %v1259 = vpop.f32.mrb[0].mxu0
      %v1260 = vadd.f32 0.0, %v1259
      %v1261 = vpop.f32.mrb[0].mxu0
      %1262 = vmatprep.mubr.f32.mxu0 0.0
      %1263 = vmatmul.mubr.f32.gmra.mrb[0].mxu0 %v1068
      %v1264 = vpop.f32.mrb[0].mxu0
      %v1265 = vadd.f32 0.0, %v1264
      %v1266 = vpop.f32.mrb[0].mxu0
      %1267 = vmatprep.mubr.f32.mxu0 0.0
      %1268 = vmatmul.mubr.f32.gmra.mrb[0].mxu0 %v1070
      %v1269 = vpop.f32.mrb[0].mxu0
      %v1270 = vadd.f32 0.0, %v1269
      %v1271 = vpop.f32.mrb[0].mxu0
      %1272 = vmatprep.mubr.f32.mxu0 0.0
      %1273 = vmatmul.mubr.f32.gmra.mrb[0].mxu0 %v1072
      %v1274 = vpop.f32.mrb[0].mxu0
      %v1275 = vadd.f32 0.0, %v1274
      %v1276 = vpop.f32.mrb[0].mxu0
      %1277 = vmatprep.mubr.f32.mxu0 0.0
      %1278 = vmatmul.mubr.f32.gmra.mrb[0].mxu0 %v1074
      %v1279 = vpop.f32.mrb[0].mxu0
      %v1280 = vadd.f32 0.0, %v1279
      %v1281 = vpop.f32.mrb[0].mxu0
      %1282 = vmatprep.mubr.f32.mxu0 0.0
      %1283 = vmatmul.mubr.f32.gmra.mrb[0].mxu0 %v1076
      %v1284 = vpop.f32.mrb[0].mxu0
      %v1285 = vadd.f32 0.0, %v1284
      %v1286 = vpop.f32.mrb[0].mxu0
      %1287 = vmatprep.mubr.f32.mxu0 0.0
      %1288 = vmatmul.mubr.f32.gmra.mrb[0].mxu0 %v1078
      %v1289 = vpop.f32.mrb[0].mxu0
      %v1290 = vadd.f32 0.0, %v1289
      %v1291 = vpop.f32.mrb[0].mxu0
      %1292 = vmatprep.mubr.f32.mxu0 0.0
      %1293 = vmatmul.mubr.f32.gmra.mrb[0].mxu0 %v1080
      %v1294 = vpop.f32.mrb[0].mxu0
      %v1295 = vadd.f32 0.0, %v1294
      %v1296 = vpop.f32.mrb[0].mxu0
      %1297 = vmatprep.mubr.f32.mxu0 0.0
      %1298 = vmatmul.mubr.f32.gmra.mrb[0].mxu0 %v1082
      %v1299 = vpop.f32.mrb[0].mxu0
      %v1300 = vadd.f32 0.0, %v1299
      %v1301 = vpop.f32.mrb[0].mxu0
      %1302 = vmatprep.mubr.f32.mxu0 0.0
      %1303 = vmatmul.mubr.f32.gmra.mrb[0].mxu0 %v1084
      %v1304 = vpop.f32.mrb[0].mxu0
      %v1305 = vadd.f32 0.0, %v1304
      %v1306 = vpop.f32.mrb[0].mxu0
      %1307 = vmatprep.mubr.f32.mxu0 0.0
      %1308 = vmatmul.mubr.f32.gmra.mrb[0].mxu0 %v1086
      %v1309 = vpop.f32.mrb[0].mxu0
      %v1310 = vadd.f32 0.0, %v1309
      %v1311 = vpop.f32.mrb[0].mxu0
      %1312 = vmatprep.mubr.f32.mxu0 0.0
      %1313 = vmatmul.mubr.f32.gmra.mrb[0].mxu0 %v1088
      %v1314 = vpop.f32.mrb[0].mxu0
      %v1315 = vadd.f32 0.0, %v1314
      %v1316 = vpop.f32.mrb[0].mxu0
      %1317 = vdwg.mxu0
      %v1318 = vadd.f32 %v785, %v1160
      %v1319 = vadd.f32 %v790, %v1165
      %v1320 = vadd.f32 %v795, %v1170
      %v1321 = vadd.f32 %v800, %v1175
      %v1322 = vadd.f32 %v805, %v1180
      %v1323 = vadd.f32 %v810, %v1185
      %v1324 = vadd.f32 %v815, %v1190
      %v1325 = vadd.f32 %v820, %v1195
      %v1326 = vadd.f32 %v825, %v1200
      %v1327 = vadd.f32 %v830, %v1205
      %v1328 = vadd.f32 %v835, %v1210
      %v1329 = vadd.f32 %v840, %v1215
      %v1330 = vadd.f32 %v845, %v1220
      %v1331 = vadd.f32 %v850, %v1225
      %v1332 = vadd.f32 %v855, %v1230
      %v1333 = vadd.f32 %v860, %v1235
      %v1334 = vadd.f32 %v865, %v1240
      %v1335 = vadd.f32 %v870, %v1245
      %v1336 = vadd.f32 %v875, %v1250
      %v1337 = vadd.f32 %v880, %v1255
      %v1338 = vadd.f32 %v885, %v1260
      %v1339 = vadd.f32 %v890, %v1265
      %v1340 = vadd.f32 %v895, %v1270
      %v1341 = vadd.f32 %v900, %v1275
      %v1342 = vadd.f32 %v905, %v1280
      %v1343 = vadd.f32 %v910, %v1285
      %v1344 = vadd.f32 %v915, %v1290
      %v1345 = vadd.f32 %v920, %v1295
      %v1346 = vadd.f32 %v925, %v1300
      %v1347 = vadd.f32 %v930, %v1305
      %v1348 = vadd.f32 %v935, %v1310
      %v1349 = vadd.f32 %v940, %v1315
      %s1350 = scalar_lea.vmem %s1, 12
      %v1351 = vld [vmem:[%s1350] sm:$0xf]
      %v1353 = vsel %vm357, %v219, 0
      %v1356 = vsel %vm357, %v220, 0
      %v1359 = vsel %vm422, %v1351, 0
      %1361 = vmatprep.subr.mxu0 0.0
      %1362 = vmatpush1.msra.mxu0 %v1359
      %1363 = vmatprep.subr.mxu0 0.0
      %1364 = vmatpush1.msra.mxu0 0.0
      %1365 = vmatprep.subr.mxu0 0.0
      %1366 = vmatpush1.msra.mxu0 0.0
      %1367 = vmatprep.subr.mxu0 0.0
      %1368 = vmatpush1.msra.mxu0 0.0
      %1369 = vmatprep.subr.mxu0 0.0
      %1370 = vmatpush1.msra.mxu0 0.0
      %1371 = vmatprep.subr.mxu0 0.0
      %1372 = vmatpush1.msra.mxu0 0.0
      %1373 = vmatprep.subr.mxu0 0.0
      %1374 = vmatpush1.msra.mxu0 0.0
      %1375 = vmatprep.subr.mxu0 0.0
      %1376 = vmatpush1.msra.mxu0 0.0
      %1377 = vmatprep.subr.mxu0 0.0
      %1378 = vmatpush1.msra.mxu0 0.0
      %1379 = vmatprep.subr.mxu0 0.0
      %1380 = vmatpush1.msra.mxu0 0.0
      %1381 = vmatprep.subr.mxu0 0.0
      %1382 = vmatpush1.msra.mxu0 0.0
      %1383 = vmatprep.subr.mxu0 0.0
      %1384 = vmatpush1.msra.mxu0 0.0
      %1385 = vmatprep.subr.mxu0 0.0
      %1386 = vmatpush1.msra.mxu0 0.0
      %1387 = vmatprep.subr.mxu0 0.0
      %1388 = vmatpush1.msra.mxu0 0.0
      %1389 = vmatprep.subr.mxu0 0.0
      %1390 = vmatpush1.msra.mxu0 0.0
      %1391 = vmatprep.subr.mxu0 0.0
      %1392 = vmatpush1.msra.mxu0 0.0
      %1393 = vmatprep.subr.mxu0 0.0
      %1394 = vmatpush1.msra.mxu0 0.0
      %1395 = vmatprep.subr.mxu0 0.0
      %1396 = vmatpush1.msra.mxu0 0.0
      %1397 = vmatprep.subr.mxu0 0.0
      %1398 = vmatpush1.msra.mxu0 0.0
      %1399 = vmatprep.subr.mxu0 0.0
      %1400 = vmatpush1.msra.mxu0 0.0
      %1401 = vmatprep.subr.mxu0 0.0
      %1402 = vmatpush1.msra.mxu0 0.0
      %1403 = vmatprep.subr.mxu0 0.0
      %1404 = vmatpush1.msra.mxu0 0.0
      %1405 = vmatprep.subr.mxu0 0.0
      %1406 = vmatpush1.msra.mxu0 0.0
      %1407 = vmatprep.subr.mxu0 0.0
      %1408 = vmatpush1.msra.mxu0 0.0
      %1409 = vmatprep.subr.mxu0 0.0
      %1410 = vmatpush1.msra.mxu0 0.0
      %1411 = vmatprep.subr.mxu0 0.0
      %1412 = vmatpush1.msra.mxu0 0.0
      %1413 = vmatprep.subr.mxu0 0.0
      %1414 = vmatpush1.msra.mxu0 0.0
      %1415 = vmatprep.subr.mxu0 0.0
      %1416 = vmatpush1.msra.mxu0 0.0
      %1417 = vmatprep.subr.mxu0 0.0
      %1418 = vmatpush1.msra.mxu0 0.0
      %1419 = vmatprep.subr.mxu0 0.0
      %1420 = vmatpush1.msra.mxu0 0.0
      %1421 = vmatprep.subr.mxu0 0.0
      %1422 = vmatpush1.msra.mxu0 0.0
      %1423 = vmatprep.subr.mxu0 0.0
      %1424 = vmatpush1.msra.mxu0 0.0
      %1425 = vmatprep.mubr.f32.mxu0 0.0
      %1426 = vmatmul.mubr.f32.gmra.mrb[0].mxu0 %v655
      %v1427 = vpop.f32.mrb[0].mxu0
      %v1428 = vadd.f32 0.0, %v1427
      %v1429 = vpop.f32.mrb[0].mxu0
      %1430 = vmatprep.mubr.f32.mxu0 0.0
      %1431 = vmatmul.mubr.f32.gmra.mrb[0].mxu0 %v657
      %v1432 = vpop.f32.mrb[0].mxu0
      %v1433 = vadd.f32 0.0, %v1432
      %v1434 = vpop.f32.mrb[0].mxu0
      %1435 = vmatprep.mubr.f32.mxu0 0.0
      %1436 = vmatmul.mubr.f32.gmra.mrb[0].mxu0 %v659
      %v1437 = vpop.f32.mrb[0].mxu0
      %v1438 = vadd.f32 0.0, %v1437
      %v1439 = vpop.f32.mrb[0].mxu0
      %1440 = vmatprep.mubr.f32.mxu0 0.0
      %1441 = vmatmul.mubr.f32.gmra.mrb[0].mxu0 %v661
      %v1442 = vpop.f32.mrb[0].mxu0
      %v1443 = vadd.f32 0.0, %v1442
      %v1444 = vpop.f32.mrb[0].mxu0
      %1445 = vmatprep.mubr.f32.mxu0 0.0
      %1446 = vmatmul.mubr.f32.gmra.mrb[0].mxu0 %v663
      %v1447 = vpop.f32.mrb[0].mxu0
      %v1448 = vadd.f32 0.0, %v1447
      %v1449 = vpop.f32.mrb[0].mxu0
      %1450 = vmatprep.mubr.f32.mxu0 0.0
      %1451 = vmatmul.mubr.f32.gmra.mrb[0].mxu0 %v665
      %v1452 = vpop.f32.mrb[0].mxu0
      %v1453 = vadd.f32 0.0, %v1452
      %v1454 = vpop.f32.mrb[0].mxu0
      %1455 = vmatprep.mubr.f32.mxu0 0.0
      %1456 = vmatmul.mubr.f32.gmra.mrb[0].mxu0 %v667
      %v1457 = vpop.f32.mrb[0].mxu0
      %v1458 = vadd.f32 0.0, %v1457
      %v1459 = vpop.f32.mrb[0].mxu0
      %1460 = vmatprep.mubr.f32.mxu0 0.0
      %1461 = vmatmul.mubr.f32.gmra.mrb[0].mxu0 %v669
      %v1462 = vpop.f32.mrb[0].mxu0
      %v1463 = vadd.f32 0.0, %v1462
      %v1464 = vpop.f32.mrb[0].mxu0
      %1465 = vmatprep.mubr.f32.mxu0 0.0
      %1466 = vmatmul.mubr.f32.gmra.mrb[0].mxu0 %v671
      %v1467 = vpop.f32.mrb[0].mxu0
      %v1468 = vadd.f32 0.0, %v1467
      %v1469 = vpop.f32.mrb[0].mxu0
      %1470 = vmatprep.mubr.f32.mxu0 0.0
      %1471 = vmatmul.mubr.f32.gmra.mrb[0].mxu0 %v673
      %v1472 = vpop.f32.mrb[0].mxu0
      %v1473 = vadd.f32 0.0, %v1472
      %v1474 = vpop.f32.mrb[0].mxu0
      %1475 = vmatprep.mubr.f32.mxu0 0.0
      %1476 = vmatmul.mubr.f32.gmra.mrb[0].mxu0 %v675
      %v1477 = vpop.f32.mrb[0].mxu0
      %v1478 = vadd.f32 0.0, %v1477
      %v1479 = vpop.f32.mrb[0].mxu0
      %1480 = vmatprep.mubr.f32.mxu0 0.0
      %1481 = vmatmul.mubr.f32.gmra.mrb[0].mxu0 %v677
      %v1482 = vpop.f32.mrb[0].mxu0
      %v1483 = vadd.f32 0.0, %v1482
      %v1484 = vpop.f32.mrb[0].mxu0
      %1485 = vmatprep.mubr.f32.mxu0 0.0
      %1486 = vmatmul.mubr.f32.gmra.mrb[0].mxu0 %v679
      %v1487 = vpop.f32.mrb[0].mxu0
      %v1488 = vadd.f32 0.0, %v1487
      %v1489 = vpop.f32.mrb[0].mxu0
      %1490 = vmatprep.mubr.f32.mxu0 0.0
      %1491 = vmatmul.mubr.f32.gmra.mrb[0].mxu0 %v681
      %v1492 = vpop.f32.mrb[0].mxu0
      %v1493 = vadd.f32 0.0, %v1492
      %v1494 = vpop.f32.mrb[0].mxu0
      %1495 = vmatprep.mubr.f32.mxu0 0.0
      %1496 = vmatmul.mubr.f32.gmra.mrb[0].mxu0 %v683
      %v1497 = vpop.f32.mrb[0].mxu0
      %v1498 = vadd.f32 0.0, %v1497
      %v1499 = vpop.f32.mrb[0].mxu0
      %1500 = vmatprep.mubr.f32.mxu0 0.0
      %1501 = vmatmul.mubr.f32.gmra.mrb[0].mxu0 %v685
      %v1502 = vpop.f32.mrb[0].mxu0
      %v1503 = vadd.f32 0.0, %v1502
      %v1504 = vpop.f32.mrb[0].mxu0
      %1505 = vmatprep.mubr.f32.mxu0 0.0
      %1506 = vmatmul.mubr.f32.gmra.mrb[0].mxu0 %v687
      %v1507 = vpop.f32.mrb[0].mxu0
      %v1508 = vadd.f32 0.0, %v1507
      %v1509 = vpop.f32.mrb[0].mxu0
      %1510 = vmatprep.mubr.f32.mxu0 0.0
      %1511 = vmatmul.mubr.f32.gmra.mrb[0].mxu0 %v689
      %v1512 = vpop.f32.mrb[0].mxu0
      %v1513 = vadd.f32 0.0, %v1512
      %v1514 = vpop.f32.mrb[0].mxu0
      %1515 = vmatprep.mubr.f32.mxu0 0.0
      %1516 = vmatmul.mubr.f32.gmra.mrb[0].mxu0 %v691
      %v1517 = vpop.f32.mrb[0].mxu0
      %v1518 = vadd.f32 0.0, %v1517
      %v1519 = vpop.f32.mrb[0].mxu0
      %1520 = vmatprep.mubr.f32.mxu0 0.0
      %1521 = vmatmul.mubr.f32.gmra.mrb[0].mxu0 %v693
      %v1522 = vpop.f32.mrb[0].mxu0
      %v1523 = vadd.f32 0.0, %v1522
      %v1524 = vpop.f32.mrb[0].mxu0
      %1525 = vmatprep.mubr.f32.mxu0 0.0
      %1526 = vmatmul.mubr.f32.gmra.mrb[0].mxu0 %v695
      %v1527 = vpop.f32.mrb[0].mxu0
      %v1528 = vadd.f32 0.0, %v1527
      %v1529 = vpop.f32.mrb[0].mxu0
      %1530 = vmatprep.mubr.f32.mxu0 0.0
      %1531 = vmatmul.mubr.f32.gmra.mrb[0].mxu0 %v697
      %v1532 = vpop.f32.mrb[0].mxu0
      %v1533 = vadd.f32 0.0, %v1532
      %v1534 = vpop.f32.mrb[0].mxu0
      %1535 = vmatprep.mubr.f32.mxu0 0.0
      %1536 = vmatmul.mubr.f32.gmra.mrb[0].mxu0 %v699
      %v1537 = vpop.f32.mrb[0].mxu0
      %v1538 = vadd.f32 0.0, %v1537
      %v1539 = vpop.f32.mrb[0].mxu0
      %1540 = vmatprep.mubr.f32.mxu0 0.0
      %1541 = vmatmul.mubr.f32.gmra.mrb[0].mxu0 %v701
      %v1542 = vpop.f32.mrb[0].mxu0
      %v1543 = vadd.f32 0.0, %v1542
      %v1544 = vpop.f32.mrb[0].mxu0
      %1545 = vmatprep.mubr.f32.mxu0 0.0
      %1546 = vmatmul.mubr.f32.gmra.mrb[0].mxu0 %v703
      %v1547 = vpop.f32.mrb[0].mxu0
      %v1548 = vadd.f32 0.0, %v1547
      %v1549 = vpop.f32.mrb[0].mxu0
      %1550 = vmatprep.mubr.f32.mxu0 0.0
      %1551 = vmatmul.mubr.f32.gmra.mrb[0].mxu0 %v705
      %v1552 = vpop.f32.mrb[0].mxu0
      %v1553 = vadd.f32 0.0, %v1552
      %v1554 = vpop.f32.mrb[0].mxu0
      %1555 = vmatprep.mubr.f32.mxu0 0.0
      %1556 = vmatmul.mubr.f32.gmra.mrb[0].mxu0 %v707
      %v1557 = vpop.f32.mrb[0].mxu0
      %v1558 = vadd.f32 0.0, %v1557
      %v1559 = vpop.f32.mrb[0].mxu0
      %1560 = vmatprep.mubr.f32.mxu0 0.0
      %1561 = vmatmul.mubr.f32.gmra.mrb[0].mxu0 %v709
      %v1562 = vpop.f32.mrb[0].mxu0
      %v1563 = vadd.f32 0.0, %v1562
      %v1564 = vpop.f32.mrb[0].mxu0
      %1565 = vmatprep.mubr.f32.mxu0 0.0
      %1566 = vmatmul.mubr.f32.gmra.mrb[0].mxu0 %v711
      %v1567 = vpop.f32.mrb[0].mxu0
      %v1568 = vadd.f32 0.0, %v1567
      %v1569 = vpop.f32.mrb[0].mxu0
      %1570 = vmatprep.mubr.f32.mxu0 0.0
      %1571 = vmatmul.mubr.f32.gmra.mrb[0].mxu0 %v713
      %v1572 = vpop.f32.mrb[0].mxu0
      %v1573 = vadd.f32 0.0, %v1572
      %v1574 = vpop.f32.mrb[0].mxu0
      %1575 = vmatprep.mubr.f32.mxu0 0.0
      %1576 = vmatmul.mubr.f32.gmra.mrb[0].mxu0 %v1353
      %v1577 = vpop.f32.mrb[0].mxu0
      %v1578 = vadd.f32 0.0, %v1577
      %v1579 = vpop.f32.mrb[0].mxu0
      %1580 = vmatprep.mubr.f32.mxu0 0.0
      %1581 = vmatmul.mubr.f32.gmra.mrb[0].mxu0 %v1356
      %v1582 = vpop.f32.mrb[0].mxu0
      %v1583 = vadd.f32 0.0, %v1582
      %v1584 = vpop.f32.mrb[0].mxu0
      %1585 = vdwg.mxu0
      %v1586 = vadd.f32 %v1318, %v1428
      %v1587 = vadd.f32 %v1319, %v1433
      %v1588 = vadd.f32 %v1320, %v1438
      %v1589 = vadd.f32 %v1321, %v1443
      %v1590 = vadd.f32 %v1322, %v1448
      %v1591 = vadd.f32 %v1323, %v1453
      %v1592 = vadd.f32 %v1324, %v1458
      %v1593 = vadd.f32 %v1325, %v1463
      %v1594 = vadd.f32 %v1326, %v1468
      %v1595 = vadd.f32 %v1327, %v1473
      %v1596 = vadd.f32 %v1328, %v1478
      %v1597 = vadd.f32 %v1329, %v1483
      %v1598 = vadd.f32 %v1330, %v1488
      %v1599 = vadd.f32 %v1331, %v1493
      %v1600 = vadd.f32 %v1332, %v1498
      %v1601 = vadd.f32 %v1333, %v1503
      %v1602 = vadd.f32 %v1334, %v1508
      %v1603 = vadd.f32 %v1335, %v1513
      %v1604 = vadd.f32 %v1336, %v1518
      %v1605 = vadd.f32 %v1337, %v1523
      %v1606 = vadd.f32 %v1338, %v1528
      %v1607 = vadd.f32 %v1339, %v1533
      %v1608 = vadd.f32 %v1340, %v1538
      %v1609 = vadd.f32 %v1341, %v1543
      %v1610 = vadd.f32 %v1342, %v1548
      %v1611 = vadd.f32 %v1343, %v1553
      %v1612 = vadd.f32 %v1344, %v1558
      %v1613 = vadd.f32 %v1345, %v1563
      %v1614 = vadd.f32 %v1346, %v1568
      %v1615 = vadd.f32 %v1347, %v1573
      %v1616 = vadd.f32 %v1348, %v1578
      %v1617 = vadd.f32 %v1349, %v1583
      %v1619 = vrot.slane %v219, 1
      %v1620 = vrot.slane %v220, 1
      %v1621 = vsel %vm274, %v1619, %v1620
      %v1622 = vrot.slane %v221, 1
      %v1623 = vsel %vm274, %v1620, %v1622
      %s1624 = scalar_lea.vmem %s1, 16
      %v1625 = vld [vmem:[%s1624] sm:$0xf]
      %v1626 = vsel %vm357, %v1621, 0
      %v1628 = vsel %vm357, %v1623, 0
      %v1631 = vsel %vm422, %v1625, 0
      %1633 = vmatprep.subr.mxu0 0.0
      %1634 = vmatpush1.msra.mxu0 %v1631
      %1635 = vmatprep.subr.mxu0 0.0
      %1636 = vmatpush1.msra.mxu0 0.0
      %1637 = vmatprep.subr.mxu0 0.0
      %1638 = vmatpush1.msra.mxu0 0.0
      %1639 = vmatprep.subr.mxu0 0.0
      %1640 = vmatpush1.msra.mxu0 0.0
      %1641 = vmatprep.subr.mxu0 0.0
      %1642 = vmatpush1.msra.mxu0 0.0
      %1643 = vmatprep.subr.mxu0 0.0
      %1644 = vmatpush1.msra.mxu0 0.0
      %1645 = vmatprep.subr.mxu0 0.0
      %1646 = vmatpush1.msra.mxu0 0.0
      %1647 = vmatprep.subr.mxu0 0.0
      %1648 = vmatpush1.msra.mxu0 0.0
      %1649 = vmatprep.subr.mxu0 0.0
      %1650 = vmatpush1.msra.mxu0 0.0
      %1651 = vmatprep.subr.mxu0 0.0
      %1652 = vmatpush1.msra.mxu0 0.0
      %1653 = vmatprep.subr.mxu0 0.0
      %1654 = vmatpush1.msra.mxu0 0.0
      %1655 = vmatprep.subr.mxu0 0.0
      %1656 = vmatpush1.msra.mxu0 0.0
      %1657 = vmatprep.subr.mxu0 0.0
      %1658 = vmatpush1.msra.mxu0 0.0
      %1659 = vmatprep.subr.mxu0 0.0
      %1660 = vmatpush1.msra.mxu0 0.0
      %1661 = vmatprep.subr.mxu0 0.0
      %1662 = vmatpush1.msra.mxu0 0.0
      %1663 = vmatprep.subr.mxu0 0.0
      %1664 = vmatpush1.msra.mxu0 0.0
      %1665 = vmatprep.subr.mxu0 0.0
      %1666 = vmatpush1.msra.mxu0 0.0
      %1667 = vmatprep.subr.mxu0 0.0
      %1668 = vmatpush1.msra.mxu0 0.0
      %1669 = vmatprep.subr.mxu0 0.0
      %1670 = vmatpush1.msra.mxu0 0.0
      %1671 = vmatprep.subr.mxu0 0.0
      %1672 = vmatpush1.msra.mxu0 0.0
      %1673 = vmatprep.subr.mxu0 0.0
      %1674 = vmatpush1.msra.mxu0 0.0
      %1675 = vmatprep.subr.mxu0 0.0
      %1676 = vmatpush1.msra.mxu0 0.0
      %1677 = vmatprep.subr.mxu0 0.0
      %1678 = vmatpush1.msra.mxu0 0.0
      %1679 = vmatprep.subr.mxu0 0.0
      %1680 = vmatpush1.msra.mxu0 0.0
      %1681 = vmatprep.subr.mxu0 0.0
      %1682 = vmatpush1.msra.mxu0 0.0
      %1683 = vmatprep.subr.mxu0 0.0
      %1684 = vmatpush1.msra.mxu0 0.0
      %1685 = vmatprep.subr.mxu0 0.0
      %1686 = vmatpush1.msra.mxu0 0.0
      %1687 = vmatprep.subr.mxu0 0.0
      %1688 = vmatpush1.msra.mxu0 0.0
      %1689 = vmatprep.subr.mxu0 0.0
      %1690 = vmatpush1.msra.mxu0 0.0
      %1691 = vmatprep.subr.mxu0 0.0
      %1692 = vmatpush1.msra.mxu0 0.0
      %1693 = vmatprep.subr.mxu0 0.0
      %1694 = vmatpush1.msra.mxu0 0.0
      %1695 = vmatprep.subr.mxu0 0.0
      %1696 = vmatpush1.msra.mxu0 0.0
      %1697 = vmatprep.mubr.f32.mxu0 0.0
      %1698 = vmatmul.mubr.f32.gmra.mrb[0].mxu0 %v362
      %v1699 = vpop.f32.mrb[0].mxu0
      %v1700 = vadd.f32 0.0, %v1699
      %v1701 = vpop.f32.mrb[0].mxu0
      %1702 = vmatprep.mubr.f32.mxu0 0.0
      %1703 = vmatmul.mubr.f32.gmra.mrb[0].mxu0 %v364
      %v1704 = vpop.f32.mrb[0].mxu0
      %v1705 = vadd.f32 0.0, %v1704
      %v1706 = vpop.f32.mrb[0].mxu0
      %1707 = vmatprep.mubr.f32.mxu0 0.0
      %1708 = vmatmul.mubr.f32.gmra.mrb[0].mxu0 %v366
      %v1709 = vpop.f32.mrb[0].mxu0
      %v1710 = vadd.f32 0.0, %v1709
      %v1711 = vpop.f32.mrb[0].mxu0
      %1712 = vmatprep.mubr.f32.mxu0 0.0
      %1713 = vmatmul.mubr.f32.gmra.mrb[0].mxu0 %v368
      %v1714 = vpop.f32.mrb[0].mxu0
      %v1715 = vadd.f32 0.0, %v1714
      %v1716 = vpop.f32.mrb[0].mxu0
      %1717 = vmatprep.mubr.f32.mxu0 0.0
      %1718 = vmatmul.mubr.f32.gmra.mrb[0].mxu0 %v370
      %v1719 = vpop.f32.mrb[0].mxu0
      %v1720 = vadd.f32 0.0, %v1719
      %v1721 = vpop.f32.mrb[0].mxu0
      %1722 = vmatprep.mubr.f32.mxu0 0.0
      %1723 = vmatmul.mubr.f32.gmra.mrb[0].mxu0 %v372
      %v1724 = vpop.f32.mrb[0].mxu0
      %v1725 = vadd.f32 0.0, %v1724
      %v1726 = vpop.f32.mrb[0].mxu0
      %1727 = vmatprep.mubr.f32.mxu0 0.0
      %1728 = vmatmul.mubr.f32.gmra.mrb[0].mxu0 %v374
      %v1729 = vpop.f32.mrb[0].mxu0
      %v1730 = vadd.f32 0.0, %v1729
      %v1731 = vpop.f32.mrb[0].mxu0
      %1732 = vmatprep.mubr.f32.mxu0 0.0
      %1733 = vmatmul.mubr.f32.gmra.mrb[0].mxu0 %v376
      %v1734 = vpop.f32.mrb[0].mxu0
      %v1735 = vadd.f32 0.0, %v1734
      %v1736 = vpop.f32.mrb[0].mxu0
      %1737 = vmatprep.mubr.f32.mxu0 0.0
      %1738 = vmatmul.mubr.f32.gmra.mrb[0].mxu0 %v378
      %v1739 = vpop.f32.mrb[0].mxu0
      %v1740 = vadd.f32 0.0, %v1739
      %v1741 = vpop.f32.mrb[0].mxu0
      %1742 = vmatprep.mubr.f32.mxu0 0.0
      %1743 = vmatmul.mubr.f32.gmra.mrb[0].mxu0 %v380
      %v1744 = vpop.f32.mrb[0].mxu0
      %v1745 = vadd.f32 0.0, %v1744
      %v1746 = vpop.f32.mrb[0].mxu0
      %1747 = vmatprep.mubr.f32.mxu0 0.0
      %1748 = vmatmul.mubr.f32.gmra.mrb[0].mxu0 %v382
      %v1749 = vpop.f32.mrb[0].mxu0
      %v1750 = vadd.f32 0.0, %v1749
      %v1751 = vpop.f32.mrb[0].mxu0
      %1752 = vmatprep.mubr.f32.mxu0 0.0
      %1753 = vmatmul.mubr.f32.gmra.mrb[0].mxu0 %v384
      %v1754 = vpop.f32.mrb[0].mxu0
      %v1755 = vadd.f32 0.0, %v1754
      %v1756 = vpop.f32.mrb[0].mxu0
      %1757 = vmatprep.mubr.f32.mxu0 0.0
      %1758 = vmatmul.mubr.f32.gmra.mrb[0].mxu0 %v386
      %v1759 = vpop.f32.mrb[0].mxu0
      %v1760 = vadd.f32 0.0, %v1759
      %v1761 = vpop.f32.mrb[0].mxu0
      %1762 = vmatprep.mubr.f32.mxu0 0.0
      %1763 = vmatmul.mubr.f32.gmra.mrb[0].mxu0 %v388
      %v1764 = vpop.f32.mrb[0].mxu0
      %v1765 = vadd.f32 0.0, %v1764
      %v1766 = vpop.f32.mrb[0].mxu0
      %1767 = vmatprep.mubr.f32.mxu0 0.0
      %1768 = vmatmul.mubr.f32.gmra.mrb[0].mxu0 %v390
      %v1769 = vpop.f32.mrb[0].mxu0
      %v1770 = vadd.f32 0.0, %v1769
      %v1771 = vpop.f32.mrb[0].mxu0
      %1772 = vmatprep.mubr.f32.mxu0 0.0
      %1773 = vmatmul.mubr.f32.gmra.mrb[0].mxu0 %v392
      %v1774 = vpop.f32.mrb[0].mxu0
      %v1775 = vadd.f32 0.0, %v1774
      %v1776 = vpop.f32.mrb[0].mxu0
      %1777 = vmatprep.mubr.f32.mxu0 0.0
      %1778 = vmatmul.mubr.f32.gmra.mrb[0].mxu0 %v394
      %v1779 = vpop.f32.mrb[0].mxu0
      %v1780 = vadd.f32 0.0, %v1779
      %v1781 = vpop.f32.mrb[0].mxu0
      %1782 = vmatprep.mubr.f32.mxu0 0.0
      %1783 = vmatmul.mubr.f32.gmra.mrb[0].mxu0 %v396
      %v1784 = vpop.f32.mrb[0].mxu0
      %v1785 = vadd.f32 0.0, %v1784
      %v1786 = vpop.f32.mrb[0].mxu0
      %1787 = vmatprep.mubr.f32.mxu0 0.0
      %1788 = vmatmul.mubr.f32.gmra.mrb[0].mxu0 %v398
      %v1789 = vpop.f32.mrb[0].mxu0
      %v1790 = vadd.f32 0.0, %v1789
      %v1791 = vpop.f32.mrb[0].mxu0
      %1792 = vmatprep.mubr.f32.mxu0 0.0
      %1793 = vmatmul.mubr.f32.gmra.mrb[0].mxu0 %v400
      %v1794 = vpop.f32.mrb[0].mxu0
      %v1795 = vadd.f32 0.0, %v1794
      %v1796 = vpop.f32.mrb[0].mxu0
      %1797 = vmatprep.mubr.f32.mxu0 0.0
      %1798 = vmatmul.mubr.f32.gmra.mrb[0].mxu0 %v402
      %v1799 = vpop.f32.mrb[0].mxu0
      %v1800 = vadd.f32 0.0, %v1799
      %v1801 = vpop.f32.mrb[0].mxu0
      %1802 = vmatprep.mubr.f32.mxu0 0.0
      %1803 = vmatmul.mubr.f32.gmra.mrb[0].mxu0 %v404
      %v1804 = vpop.f32.mrb[0].mxu0
      %v1805 = vadd.f32 0.0, %v1804
      %v1806 = vpop.f32.mrb[0].mxu0
      %1807 = vmatprep.mubr.f32.mxu0 0.0
      %1808 = vmatmul.mubr.f32.gmra.mrb[0].mxu0 %v406
      %v1809 = vpop.f32.mrb[0].mxu0
      %v1810 = vadd.f32 0.0, %v1809
      %v1811 = vpop.f32.mrb[0].mxu0
      %1812 = vmatprep.mubr.f32.mxu0 0.0
      %1813 = vmatmul.mubr.f32.gmra.mrb[0].mxu0 %v408
      %v1814 = vpop.f32.mrb[0].mxu0
      %v1815 = vadd.f32 0.0, %v1814
      %v1816 = vpop.f32.mrb[0].mxu0
      %1817 = vmatprep.mubr.f32.mxu0 0.0
      %1818 = vmatmul.mubr.f32.gmra.mrb[0].mxu0 %v410
      %v1819 = vpop.f32.mrb[0].mxu0
      %v1820 = vadd.f32 0.0, %v1819
      %v1821 = vpop.f32.mrb[0].mxu0
      %1822 = vmatprep.mubr.f32.mxu0 0.0
      %1823 = vmatmul.mubr.f32.gmra.mrb[0].mxu0 %v412
      %v1824 = vpop.f32.mrb[0].mxu0
      %v1825 = vadd.f32 0.0, %v1824
      %v1826 = vpop.f32.mrb[0].mxu0
      %1827 = vmatprep.mubr.f32.mxu0 0.0
      %1828 = vmatmul.mubr.f32.gmra.mrb[0].mxu0 %v414
      %v1829 = vpop.f32.mrb[0].mxu0
      %v1830 = vadd.f32 0.0, %v1829
      %v1831 = vpop.f32.mrb[0].mxu0
      %1832 = vmatprep.mubr.f32.mxu0 0.0
      %1833 = vmatmul.mubr.f32.gmra.mrb[0].mxu0 %v416
      %v1834 = vpop.f32.mrb[0].mxu0
      %v1835 = vadd.f32 0.0, %v1834
      %v1836 = vpop.f32.mrb[0].mxu0
      %1837 = vmatprep.mubr.f32.mxu0 0.0
      %1838 = vmatmul.mubr.f32.gmra.mrb[0].mxu0 %v418
      %v1839 = vpop.f32.mrb[0].mxu0
      %v1840 = vadd.f32 0.0, %v1839
      %v1841 = vpop.f32.mrb[0].mxu0
      %1842 = vmatprep.mubr.f32.mxu0 0.0
      %1843 = vmatmul.mubr.f32.gmra.mrb[0].mxu0 %v420
      %v1844 = vpop.f32.mrb[0].mxu0
      %v1845 = vadd.f32 0.0, %v1844
      %v1846 = vpop.f32.mrb[0].mxu0
      %1847 = vmatprep.mubr.f32.mxu0 0.0
      %1848 = vmatmul.mubr.f32.gmra.mrb[0].mxu0 %v1626
      %v1849 = vpop.f32.mrb[0].mxu0
      %v1850 = vadd.f32 0.0, %v1849
      %v1851 = vpop.f32.mrb[0].mxu0
      %1852 = vmatprep.mubr.f32.mxu0 0.0
      %1853 = vmatmul.mubr.f32.gmra.mrb[0].mxu0 %v1628
      %v1854 = vpop.f32.mrb[0].mxu0
      %v1855 = vadd.f32 0.0, %v1854
      %v1856 = vpop.f32.mrb[0].mxu0
      %1857 = vdwg.mxu0
      %v1858 = vadd.f32 %v1586, %v1700
      %v1859 = vadd.f32 %v1587, %v1705
      %v1860 = vadd.f32 %v1588, %v1710
      %v1861 = vadd.f32 %v1589, %v1715
      %v1862 = vadd.f32 %v1590, %v1720
      %v1863 = vadd.f32 %v1591, %v1725
      %v1864 = vadd.f32 %v1592, %v1730
      %v1865 = vadd.f32 %v1593, %v1735
      %v1866 = vadd.f32 %v1594, %v1740
      %v1867 = vadd.f32 %v1595, %v1745
      %v1868 = vadd.f32 %v1596, %v1750
      %v1869 = vadd.f32 %v1597, %v1755
      %v1870 = vadd.f32 %v1598, %v1760
      %v1871 = vadd.f32 %v1599, %v1765
      %v1872 = vadd.f32 %v1600, %v1770
      %v1873 = vadd.f32 %v1601, %v1775
      %v1874 = vadd.f32 %v1602, %v1780
      %v1875 = vadd.f32 %v1603, %v1785
      %v1876 = vadd.f32 %v1604, %v1790
      %v1877 = vadd.f32 %v1605, %v1795
      %v1878 = vadd.f32 %v1606, %v1800
      %v1879 = vadd.f32 %v1607, %v1805
      %v1880 = vadd.f32 %v1608, %v1810
      %v1881 = vadd.f32 %v1609, %v1815
      %v1882 = vadd.f32 %v1610, %v1820
      %v1883 = vadd.f32 %v1611, %v1825
      %v1884 = vadd.f32 %v1612, %v1830
      %v1885 = vadd.f32 %v1613, %v1835
      %v1886 = vadd.f32 %v1614, %v1840
      %v1887 = vadd.f32 %v1615, %v1845
      %v1888 = vadd.f32 %v1616, %v1850
      %v1889 = vadd.f32 %v1617, %v1855
      %v1890 = vrot.slane %v219, 2
      %v1891 = vrot.slane %v220, 2
      %v1892 = vsel %vm943, %v1890, %v1891
      %v1893 = vrot.slane %v221, 2
      %v1894 = vsel %vm943, %v1891, %v1893
      %s1895 = scalar_lea.vmem %s1, 20
      %v1896 = vld [vmem:[%s1895] sm:$0xf]
      %v1897 = vsel %vm357, %v1892, 0
      %v1899 = vsel %vm357, %v1894, 0
      %v1902 = vsel %vm422, %v1896, 0
      %1904 = vmatprep.subr.mxu0 0.0
      %1905 = vmatpush1.msra.mxu0 %v1902
      %1906 = vmatprep.subr.mxu0 0.0
      %1907 = vmatpush1.msra.mxu0 0.0
      %1908 = vmatprep.subr.mxu0 0.0
      %1909 = vmatpush1.msra.mxu0 0.0
      %1910 = vmatprep.subr.mxu0 0.0
      %1911 = vmatpush1.msra.mxu0 0.0
      %1912 = vmatprep.subr.mxu0 0.0
      %1913 = vmatpush1.msra.mxu0 0.0
      %1914 = vmatprep.subr.mxu0 0.0
      %1915 = vmatpush1.msra.mxu0 0.0
      %1916 = vmatprep.subr.mxu0 0.0
      %1917 = vmatpush1.msra.mxu0 0.0
      %1918 = vmatprep.subr.mxu0 0.0
      %1919 = vmatpush1.msra.mxu0 0.0
      %1920 = vmatprep.subr.mxu0 0.0
      %1921 = vmatpush1.msra.mxu0 0.0
      %1922 = vmatprep.subr.mxu0 0.0
      %1923 = vmatpush1.msra.mxu0 0.0
      %1924 = vmatprep.subr.mxu0 0.0
      %1925 = vmatpush1.msra.mxu0 0.0
      %1926 = vmatprep.subr.mxu0 0.0
      %1927 = vmatpush1.msra.mxu0 0.0
      %1928 = vmatprep.subr.mxu0 0.0
      %1929 = vmatpush1.msra.mxu0 0.0
      %1930 = vmatprep.subr.mxu0 0.0
      %1931 = vmatpush1.msra.mxu0 0.0
      %1932 = vmatprep.subr.mxu0 0.0
      %1933 = vmatpush1.msra.mxu0 0.0
      %1934 = vmatprep.subr.mxu0 0.0
      %1935 = vmatpush1.msra.mxu0 0.0
      %1936 = vmatprep.subr.mxu0 0.0
      %1937 = vmatpush1.msra.mxu0 0.0
      %1938 = vmatprep.subr.mxu0 0.0
      %1939 = vmatpush1.msra.mxu0 0.0
      %1940 = vmatprep.subr.mxu0 0.0
      %1941 = vmatpush1.msra.mxu0 0.0
      %1942 = vmatprep.subr.mxu0 0.0
      %1943 = vmatpush1.msra.mxu0 0.0
      %1944 = vmatprep.subr.mxu0 0.0
      %1945 = vmatpush1.msra.mxu0 0.0
      %1946 = vmatprep.subr.mxu0 0.0
      %1947 = vmatpush1.msra.mxu0 0.0
      %1948 = vmatprep.subr.mxu0 0.0
      %1949 = vmatpush1.msra.mxu0 0.0
      %1950 = vmatprep.subr.mxu0 0.0
      %1951 = vmatpush1.msra.mxu0 0.0
      %1952 = vmatprep.subr.mxu0 0.0
      %1953 = vmatpush1.msra.mxu0 0.0
      %1954 = vmatprep.subr.mxu0 0.0
      %1955 = vmatpush1.msra.mxu0 0.0
      %1956 = vmatprep.subr.mxu0 0.0
      %1957 = vmatpush1.msra.mxu0 0.0
      %1958 = vmatprep.subr.mxu0 0.0
      %1959 = vmatpush1.msra.mxu0 0.0
      %1960 = vmatprep.subr.mxu0 0.0
      %1961 = vmatpush1.msra.mxu0 0.0
      %1962 = vmatprep.subr.mxu0 0.0
      %1963 = vmatpush1.msra.mxu0 0.0
      %1964 = vmatprep.subr.mxu0 0.0
      %1965 = vmatpush1.msra.mxu0 0.0
      %1966 = vmatprep.subr.mxu0 0.0
      %1967 = vmatpush1.msra.mxu0 0.0
      %1968 = vmatprep.mubr.f32.mxu0 0.0
      %1969 = vmatmul.mubr.f32.gmra.mrb[0].mxu0 %v1030
      %v1970 = vpop.f32.mrb[0].mxu0
      %v1971 = vadd.f32 0.0, %v1970
      %v1972 = vpop.f32.mrb[0].mxu0
      %1973 = vmatprep.mubr.f32.mxu0 0.0
      %1974 = vmatmul.mubr.f32.gmra.mrb[0].mxu0 %v1032
      %v1975 = vpop.f32.mrb[0].mxu0
      %v1976 = vadd.f32 0.0, %v1975
      %v1977 = vpop.f32.mrb[0].mxu0
      %1978 = vmatprep.mubr.f32.mxu0 0.0
      %1979 = vmatmul.mubr.f32.gmra.mrb[0].mxu0 %v1034
      %v1980 = vpop.f32.mrb[0].mxu0
      %v1981 = vadd.f32 0.0, %v1980
      %v1982 = vpop.f32.mrb[0].mxu0
      %1983 = vmatprep.mubr.f32.mxu0 0.0
      %1984 = vmatmul.mubr.f32.gmra.mrb[0].mxu0 %v1036
      %v1985 = vpop.f32.mrb[0].mxu0
      %v1986 = vadd.f32 0.0, %v1985
      %v1987 = vpop.f32.mrb[0].mxu0
      %1988 = vmatprep.mubr.f32.mxu0 0.0
      %1989 = vmatmul.mubr.f32.gmra.mrb[0].mxu0 %v1038
      %v1990 = vpop.f32.mrb[0].mxu0
      %v1991 = vadd.f32 0.0, %v1990
      %v1992 = vpop.f32.mrb[0].mxu0
      %1993 = vmatprep.mubr.f32.mxu0 0.0
      %1994 = vmatmul.mubr.f32.gmra.mrb[0].mxu0 %v1040
      %v1995 = vpop.f32.mrb[0].mxu0
      %v1996 = vadd.f32 0.0, %v1995
      %v1997 = vpop.f32.mrb[0].mxu0
      %1998 = vmatprep.mubr.f32.mxu0 0.0
      %1999 = vmatmul.mubr.f32.gmra.mrb[0].mxu0 %v1042
      %v2000 = vpop.f32.mrb[0].mxu0
      %v2001 = vadd.f32 0.0, %v2000
      %v2002 = vpop.f32.mrb[0].mxu0
      %2003 = vmatprep.mubr.f32.mxu0 0.0
      %2004 = vmatmul.mubr.f32.gmra.mrb[0].mxu0 %v1044
      %v2005 = vpop.f32.mrb[0].mxu0
      %v2006 = vadd.f32 0.0, %v2005
      %v2007 = vpop.f32.mrb[0].mxu0
      %2008 = vmatprep.mubr.f32.mxu0 0.0
      %2009 = vmatmul.mubr.f32.gmra.mrb[0].mxu0 %v1046
      %v2010 = vpop.f32.mrb[0].mxu0
      %v2011 = vadd.f32 0.0, %v2010
      %v2012 = vpop.f32.mrb[0].mxu0
      %2013 = vmatprep.mubr.f32.mxu0 0.0
      %2014 = vmatmul.mubr.f32.gmra.mrb[0].mxu0 %v1048
      %v2015 = vpop.f32.mrb[0].mxu0
      %v2016 = vadd.f32 0.0, %v2015
      %v2017 = vpop.f32.mrb[0].mxu0
      %2018 = vmatprep.mubr.f32.mxu0 0.0
      %2019 = vmatmul.mubr.f32.gmra.mrb[0].mxu0 %v1050
      %v2020 = vpop.f32.mrb[0].mxu0
      %v2021 = vadd.f32 0.0, %v2020
      %v2022 = vpop.f32.mrb[0].mxu0
      %2023 = vmatprep.mubr.f32.mxu0 0.0
      %2024 = vmatmul.mubr.f32.gmra.mrb[0].mxu0 %v1052
      %v2025 = vpop.f32.mrb[0].mxu0
      %v2026 = vadd.f32 0.0, %v2025
      %v2027 = vpop.f32.mrb[0].mxu0
      %2028 = vmatprep.mubr.f32.mxu0 0.0
      %2029 = vmatmul.mubr.f32.gmra.mrb[0].mxu0 %v1054
      %v2030 = vpop.f32.mrb[0].mxu0
      %v2031 = vadd.f32 0.0, %v2030
      %v2032 = vpop.f32.mrb[0].mxu0
      %2033 = vmatprep.mubr.f32.mxu0 0.0
      %2034 = vmatmul.mubr.f32.gmra.mrb[0].mxu0 %v1056
      %v2035 = vpop.f32.mrb[0].mxu0
      %v2036 = vadd.f32 0.0, %v2035
      %v2037 = vpop.f32.mrb[0].mxu0
      %2038 = vmatprep.mubr.f32.mxu0 0.0
      %2039 = vmatmul.mubr.f32.gmra.mrb[0].mxu0 %v1058
      %v2040 = vpop.f32.mrb[0].mxu0
      %v2041 = vadd.f32 0.0, %v2040
      %v2042 = vpop.f32.mrb[0].mxu0
      %2043 = vmatprep.mubr.f32.mxu0 0.0
      %2044 = vmatmul.mubr.f32.gmra.mrb[0].mxu0 %v1060
      %v2045 = vpop.f32.mrb[0].mxu0
      %v2046 = vadd.f32 0.0, %v2045
      %v2047 = vpop.f32.mrb[0].mxu0
      %2048 = vmatprep.mubr.f32.mxu0 0.0
      %2049 = vmatmul.mubr.f32.gmra.mrb[0].mxu0 %v1062
      %v2050 = vpop.f32.mrb[0].mxu0
      %v2051 = vadd.f32 0.0, %v2050
      %v2052 = vpop.f32.mrb[0].mxu0
      %2053 = vmatprep.mubr.f32.mxu0 0.0
      %2054 = vmatmul.mubr.f32.gmra.mrb[0].mxu0 %v1064
      %v2055 = vpop.f32.mrb[0].mxu0
      %v2056 = vadd.f32 0.0, %v2055
      %v2057 = vpop.f32.mrb[0].mxu0
      %2058 = vmatprep.mubr.f32.mxu0 0.0
      %2059 = vmatmul.mubr.f32.gmra.mrb[0].mxu0 %v1066
      %v2060 = vpop.f32.mrb[0].mxu0
      %v2061 = vadd.f32 0.0, %v2060
      %v2062 = vpop.f32.mrb[0].mxu0
      %2063 = vmatprep.mubr.f32.mxu0 0.0
      %2064 = vmatmul.mubr.f32.gmra.mrb[0].mxu0 %v1068
      %v2065 = vpop.f32.mrb[0].mxu0
      %v2066 = vadd.f32 0.0, %v2065
      %v2067 = vpop.f32.mrb[0].mxu0
      %2068 = vmatprep.mubr.f32.mxu0 0.0
      %2069 = vmatmul.mubr.f32.gmra.mrb[0].mxu0 %v1070
      %v2070 = vpop.f32.mrb[0].mxu0
      %v2071 = vadd.f32 0.0, %v2070
      %v2072 = vpop.f32.mrb[0].mxu0
      %2073 = vmatprep.mubr.f32.mxu0 0.0
      %2074 = vmatmul.mubr.f32.gmra.mrb[0].mxu0 %v1072
      %v2075 = vpop.f32.mrb[0].mxu0
      %v2076 = vadd.f32 0.0, %v2075
      %v2077 = vpop.f32.mrb[0].mxu0
      %2078 = vmatprep.mubr.f32.mxu0 0.0
      %2079 = vmatmul.mubr.f32.gmra.mrb[0].mxu0 %v1074
      %v2080 = vpop.f32.mrb[0].mxu0
      %v2081 = vadd.f32 0.0, %v2080
      %v2082 = vpop.f32.mrb[0].mxu0
      %2083 = vmatprep.mubr.f32.mxu0 0.0
      %2084 = vmatmul.mubr.f32.gmra.mrb[0].mxu0 %v1076
      %v2085 = vpop.f32.mrb[0].mxu0
      %v2086 = vadd.f32 0.0, %v2085
      %v2087 = vpop.f32.mrb[0].mxu0
      %2088 = vmatprep.mubr.f32.mxu0 0.0
      %2089 = vmatmul.mubr.f32.gmra.mrb[0].mxu0 %v1078
      %v2090 = vpop.f32.mrb[0].mxu0
      %v2091 = vadd.f32 0.0, %v2090
      %v2092 = vpop.f32.mrb[0].mxu0
      %2093 = vmatprep.mubr.f32.mxu0 0.0
      %2094 = vmatmul.mubr.f32.gmra.mrb[0].mxu0 %v1080
      %v2095 = vpop.f32.mrb[0].mxu0
      %v2096 = vadd.f32 0.0, %v2095
      %v2097 = vpop.f32.mrb[0].mxu0
      %2098 = vmatprep.mubr.f32.mxu0 0.0
      %2099 = vmatmul.mubr.f32.gmra.mrb[0].mxu0 %v1082
      %v2100 = vpop.f32.mrb[0].mxu0
      %v2101 = vadd.f32 0.0, %v2100
      %v2102 = vpop.f32.mrb[0].mxu0
      %2103 = vmatprep.mubr.f32.mxu0 0.0
      %2104 = vmatmul.mubr.f32.gmra.mrb[0].mxu0 %v1084
      %v2105 = vpop.f32.mrb[0].mxu0
      %v2106 = vadd.f32 0.0, %v2105
      %v2107 = vpop.f32.mrb[0].mxu0
      %2108 = vmatprep.mubr.f32.mxu0 0.0
      %2109 = vmatmul.mubr.f32.gmra.mrb[0].mxu0 %v1086
      %v2110 = vpop.f32.mrb[0].mxu0
      %v2111 = vadd.f32 0.0, %v2110
      %v2112 = vpop.f32.mrb[0].mxu0
      %2113 = vmatprep.mubr.f32.mxu0 0.0
      %2114 = vmatmul.mubr.f32.gmra.mrb[0].mxu0 %v1088
      %v2115 = vpop.f32.mrb[0].mxu0
      %v2116 = vadd.f32 0.0, %v2115
      %v2117 = vpop.f32.mrb[0].mxu0
      %2118 = vmatprep.mubr.f32.mxu0 0.0
      %2119 = vmatmul.mubr.f32.gmra.mrb[0].mxu0 %v1897
      %v2120 = vpop.f32.mrb[0].mxu0
      %v2121 = vadd.f32 0.0, %v2120
      %v2122 = vpop.f32.mrb[0].mxu0
      %2123 = vmatprep.mubr.f32.mxu0 0.0
      %2124 = vmatmul.mubr.f32.gmra.mrb[0].mxu0 %v1899
      %v2125 = vpop.f32.mrb[0].mxu0
      %v2126 = vadd.f32 0.0, %v2125
      %v2127 = vpop.f32.mrb[0].mxu0
      %2128 = vdwg.mxu0
      %v2129 = vadd.f32 %v1858, %v1971
      %v2130 = vadd.f32 %v1859, %v1976
      %v2131 = vadd.f32 %v1860, %v1981
      %v2132 = vadd.f32 %v1861, %v1986
      %v2133 = vadd.f32 %v1862, %v1991
      %v2134 = vadd.f32 %v1863, %v1996
      %v2135 = vadd.f32 %v1864, %v2001
      %v2136 = vadd.f32 %v1865, %v2006
      %v2137 = vadd.f32 %v1866, %v2011
      %v2138 = vadd.f32 %v1867, %v2016
      %v2139 = vadd.f32 %v1868, %v2021
      %v2140 = vadd.f32 %v1869, %v2026
      %v2141 = vadd.f32 %v1870, %v2031
      %v2142 = vadd.f32 %v1871, %v2036
      %v2143 = vadd.f32 %v1872, %v2041
      %v2144 = vadd.f32 %v1873, %v2046
      %v2145 = vadd.f32 %v1874, %v2051
      %v2146 = vadd.f32 %v1875, %v2056
      %v2147 = vadd.f32 %v1876, %v2061
      %v2148 = vadd.f32 %v1877, %v2066
      %v2149 = vadd.f32 %v1878, %v2071
      %v2150 = vadd.f32 %v1879, %v2076
      %v2151 = vadd.f32 %v1880, %v2081
      %v2152 = vadd.f32 %v1881, %v2086
      %v2153 = vadd.f32 %v1882, %v2091
      %v2154 = vadd.f32 %v1883, %v2096
      %v2155 = vadd.f32 %v1884, %v2101
      %v2156 = vadd.f32 %v1885, %v2106
      %v2157 = vadd.f32 %v1886, %v2111
      %v2158 = vadd.f32 %v1887, %v2116
      %v2159 = vadd.f32 %v1888, %v2121
      %v2160 = vadd.f32 %v1889, %v2126
      %s2161 = scalar_lea.vmem %s1, 24
      %v2162 = vld [vmem:[%s2161] sm:$0xf]
      %v2164 = vsel %vm357, %v222, 0
      %v2167 = vsel %vm357, %v223, 0
      %v2170 = vsel %vm422, %v2162, 0
      %2172 = vmatprep.subr.mxu0 0.0
      %2173 = vmatpush1.msra.mxu0 %v2170
      %2174 = vmatprep.subr.mxu0 0.0
      %2175 = vmatpush1.msra.mxu0 0.0
      %2176 = vmatprep.subr.mxu0 0.0
      %2177 = vmatpush1.msra.mxu0 0.0
      %2178 = vmatprep.subr.mxu0 0.0
      %2179 = vmatpush1.msra.mxu0 0.0
      %2180 = vmatprep.subr.mxu0 0.0
      %2181 = vmatpush1.msra.mxu0 0.0
      %2182 = vmatprep.subr.mxu0 0.0
      %2183 = vmatpush1.msra.mxu0 0.0
      %2184 = vmatprep.subr.mxu0 0.0
      %2185 = vmatpush1.msra.mxu0 0.0
      %2186 = vmatprep.subr.mxu0 0.0
      %2187 = vmatpush1.msra.mxu0 0.0
      %2188 = vmatprep.subr.mxu0 0.0
      %2189 = vmatpush1.msra.mxu0 0.0
      %2190 = vmatprep.subr.mxu0 0.0
      %2191 = vmatpush1.msra.mxu0 0.0
      %2192 = vmatprep.subr.mxu0 0.0
      %2193 = vmatpush1.msra.mxu0 0.0
      %2194 = vmatprep.subr.mxu0 0.0
      %2195 = vmatpush1.msra.mxu0 0.0
      %2196 = vmatprep.subr.mxu0 0.0
      %2197 = vmatpush1.msra.mxu0 0.0
      %2198 = vmatprep.subr.mxu0 0.0
      %2199 = vmatpush1.msra.mxu0 0.0
      %2200 = vmatprep.subr.mxu0 0.0
      %2201 = vmatpush1.msra.mxu0 0.0
      %2202 = vmatprep.subr.mxu0 0.0
      %2203 = vmatpush1.msra.mxu0 0.0
      %2204 = vmatprep.subr.mxu0 0.0
      %2205 = vmatpush1.msra.mxu0 0.0
      %2206 = vmatprep.subr.mxu0 0.0
      %2207 = vmatpush1.msra.mxu0 0.0
      %2208 = vmatprep.subr.mxu0 0.0
      %2209 = vmatpush1.msra.mxu0 0.0
      %2210 = vmatprep.subr.mxu0 0.0
      %2211 = vmatpush1.msra.mxu0 0.0
      %2212 = vmatprep.subr.mxu0 0.0
      %2213 = vmatpush1.msra.mxu0 0.0
      %2214 = vmatprep.subr.mxu0 0.0
      %2215 = vmatpush1.msra.mxu0 0.0
      %2216 = vmatprep.subr.mxu0 0.0
      %2217 = vmatpush1.msra.mxu0 0.0
      %2218 = vmatprep.subr.mxu0 0.0
      %2219 = vmatpush1.msra.mxu0 0.0
      %2220 = vmatprep.subr.mxu0 0.0
      %2221 = vmatpush1.msra.mxu0 0.0
      %2222 = vmatprep.subr.mxu0 0.0
      %2223 = vmatpush1.msra.mxu0 0.0
      %2224 = vmatprep.subr.mxu0 0.0
      %2225 = vmatpush1.msra.mxu0 0.0
      %2226 = vmatprep.subr.mxu0 0.0
      %2227 = vmatpush1.msra.mxu0 0.0
      %2228 = vmatprep.subr.mxu0 0.0
      %2229 = vmatpush1.msra.mxu0 0.0
      %2230 = vmatprep.subr.mxu0 0.0
      %2231 = vmatpush1.msra.mxu0 0.0
      %2232 = vmatprep.subr.mxu0 0.0
      %2233 = vmatpush1.msra.mxu0 0.0
      %2234 = vmatprep.subr.mxu0 0.0
      %2235 = vmatpush1.msra.mxu0 0.0
      %2236 = vmatprep.mubr.f32.mxu0 0.0
      %2237 = vmatmul.mubr.f32.gmra.mrb[0].mxu0 %v659
      %v2238 = vpop.f32.mrb[0].mxu0
      %v2239 = vadd.f32 0.0, %v2238
      %v2240 = vpop.f32.mrb[0].mxu0
      %2241 = vmatprep.mubr.f32.mxu0 0.0
      %2242 = vmatmul.mubr.f32.gmra.mrb[0].mxu0 %v661
      %v2243 = vpop.f32.mrb[0].mxu0
      %v2244 = vadd.f32 0.0, %v2243
      %v2245 = vpop.f32.mrb[0].mxu0
      %2246 = vmatprep.mubr.f32.mxu0 0.0
      %2247 = vmatmul.mubr.f32.gmra.mrb[0].mxu0 %v663
      %v2248 = vpop.f32.mrb[0].mxu0
      %v2249 = vadd.f32 0.0, %v2248
      %v2250 = vpop.f32.mrb[0].mxu0
      %2251 = vmatprep.mubr.f32.mxu0 0.0
      %2252 = vmatmul.mubr.f32.gmra.mrb[0].mxu0 %v665
      %v2253 = vpop.f32.mrb[0].mxu0
      %v2254 = vadd.f32 0.0, %v2253
      %v2255 = vpop.f32.mrb[0].mxu0
      %2256 = vmatprep.mubr.f32.mxu0 0.0
      %2257 = vmatmul.mubr.f32.gmra.mrb[0].mxu0 %v667
      %v2258 = vpop.f32.mrb[0].mxu0
      %v2259 = vadd.f32 0.0, %v2258
      %v2260 = vpop.f32.mrb[0].mxu0
      %2261 = vmatprep.mubr.f32.mxu0 0.0
      %2262 = vmatmul.mubr.f32.gmra.mrb[0].mxu0 %v669
      %v2263 = vpop.f32.mrb[0].mxu0
      %v2264 = vadd.f32 0.0, %v2263
      %v2265 = vpop.f32.mrb[0].mxu0
      %2266 = vmatprep.mubr.f32.mxu0 0.0
      %2267 = vmatmul.mubr.f32.gmra.mrb[0].mxu0 %v671
      %v2268 = vpop.f32.mrb[0].mxu0
      %v2269 = vadd.f32 0.0, %v2268
      %v2270 = vpop.f32.mrb[0].mxu0
      %2271 = vmatprep.mubr.f32.mxu0 0.0
      %2272 = vmatmul.mubr.f32.gmra.mrb[0].mxu0 %v673
      %v2273 = vpop.f32.mrb[0].mxu0
      %v2274 = vadd.f32 0.0, %v2273
      %v2275 = vpop.f32.mrb[0].mxu0
      %2276 = vmatprep.mubr.f32.mxu0 0.0
      %2277 = vmatmul.mubr.f32.gmra.mrb[0].mxu0 %v675
      %v2278 = vpop.f32.mrb[0].mxu0
      %v2279 = vadd.f32 0.0, %v2278
      %v2280 = vpop.f32.mrb[0].mxu0
      %2281 = vmatprep.mubr.f32.mxu0 0.0
      %2282 = vmatmul.mubr.f32.gmra.mrb[0].mxu0 %v677
      %v2283 = vpop.f32.mrb[0].mxu0
      %v2284 = vadd.f32 0.0, %v2283
      %v2285 = vpop.f32.mrb[0].mxu0
      %2286 = vmatprep.mubr.f32.mxu0 0.0
      %2287 = vmatmul.mubr.f32.gmra.mrb[0].mxu0 %v679
      %v2288 = vpop.f32.mrb[0].mxu0
      %v2289 = vadd.f32 0.0, %v2288
      %v2290 = vpop.f32.mrb[0].mxu0
      %2291 = vmatprep.mubr.f32.mxu0 0.0
      %2292 = vmatmul.mubr.f32.gmra.mrb[0].mxu0 %v681
      %v2293 = vpop.f32.mrb[0].mxu0
      %v2294 = vadd.f32 0.0, %v2293
      %v2295 = vpop.f32.mrb[0].mxu0
      %2296 = vmatprep.mubr.f32.mxu0 0.0
      %2297 = vmatmul.mubr.f32.gmra.mrb[0].mxu0 %v683
      %v2298 = vpop.f32.mrb[0].mxu0
      %v2299 = vadd.f32 0.0, %v2298
      %v2300 = vpop.f32.mrb[0].mxu0
      %2301 = vmatprep.mubr.f32.mxu0 0.0
      %2302 = vmatmul.mubr.f32.gmra.mrb[0].mxu0 %v685
      %v2303 = vpop.f32.mrb[0].mxu0
      %v2304 = vadd.f32 0.0, %v2303
      %v2305 = vpop.f32.mrb[0].mxu0
      %2306 = vmatprep.mubr.f32.mxu0 0.0
      %2307 = vmatmul.mubr.f32.gmra.mrb[0].mxu0 %v687
      %v2308 = vpop.f32.mrb[0].mxu0
      %v2309 = vadd.f32 0.0, %v2308
      %v2310 = vpop.f32.mrb[0].mxu0
      %2311 = vmatprep.mubr.f32.mxu0 0.0
      %2312 = vmatmul.mubr.f32.gmra.mrb[0].mxu0 %v689
      %v2313 = vpop.f32.mrb[0].mxu0
      %v2314 = vadd.f32 0.0, %v2313
      %v2315 = vpop.f32.mrb[0].mxu0
      %2316 = vmatprep.mubr.f32.mxu0 0.0
      %2317 = vmatmul.mubr.f32.gmra.mrb[0].mxu0 %v691
      %v2318 = vpop.f32.mrb[0].mxu0
      %v2319 = vadd.f32 0.0, %v2318
      %v2320 = vpop.f32.mrb[0].mxu0
      %2321 = vmatprep.mubr.f32.mxu0 0.0
      %2322 = vmatmul.mubr.f32.gmra.mrb[0].mxu0 %v693
      %v2323 = vpop.f32.mrb[0].mxu0
      %v2324 = vadd.f32 0.0, %v2323
      %v2325 = vpop.f32.mrb[0].mxu0
      %2326 = vmatprep.mubr.f32.mxu0 0.0
      %2327 = vmatmul.mubr.f32.gmra.mrb[0].mxu0 %v695
      %v2328 = vpop.f32.mrb[0].mxu0
      %v2329 = vadd.f32 0.0, %v2328
      %v2330 = vpop.f32.mrb[0].mxu0
      %2331 = vmatprep.mubr.f32.mxu0 0.0
      %2332 = vmatmul.mubr.f32.gmra.mrb[0].mxu0 %v697
      %v2333 = vpop.f32.mrb[0].mxu0
      %v2334 = vadd.f32 0.0, %v2333
      %v2335 = vpop.f32.mrb[0].mxu0
      %2336 = vmatprep.mubr.f32.mxu0 0.0
      %2337 = vmatmul.mubr.f32.gmra.mrb[0].mxu0 %v699
      %v2338 = vpop.f32.mrb[0].mxu0
      %v2339 = vadd.f32 0.0, %v2338
      %v2340 = vpop.f32.mrb[0].mxu0
      %2341 = vmatprep.mubr.f32.mxu0 0.0
      %2342 = vmatmul.mubr.f32.gmra.mrb[0].mxu0 %v701
      %v2343 = vpop.f32.mrb[0].mxu0
      %v2344 = vadd.f32 0.0, %v2343
      %v2345 = vpop.f32.mrb[0].mxu0
      %2346 = vmatprep.mubr.f32.mxu0 0.0
      %2347 = vmatmul.mubr.f32.gmra.mrb[0].mxu0 %v703
      %v2348 = vpop.f32.mrb[0].mxu0
      %v2349 = vadd.f32 0.0, %v2348
      %v2350 = vpop.f32.mrb[0].mxu0
      %2351 = vmatprep.mubr.f32.mxu0 0.0
      %2352 = vmatmul.mubr.f32.gmra.mrb[0].mxu0 %v705
      %v2353 = vpop.f32.mrb[0].mxu0
      %v2354 = vadd.f32 0.0, %v2353
      %v2355 = vpop.f32.mrb[0].mxu0
      %2356 = vmatprep.mubr.f32.mxu0 0.0
      %2357 = vmatmul.mubr.f32.gmra.mrb[0].mxu0 %v707
      %v2358 = vpop.f32.mrb[0].mxu0
      %v2359 = vadd.f32 0.0, %v2358
      %v2360 = vpop.f32.mrb[0].mxu0
      %2361 = vmatprep.mubr.f32.mxu0 0.0
      %2362 = vmatmul.mubr.f32.gmra.mrb[0].mxu0 %v709
      %v2363 = vpop.f32.mrb[0].mxu0
      %v2364 = vadd.f32 0.0, %v2363
      %v2365 = vpop.f32.mrb[0].mxu0
      %2366 = vmatprep.mubr.f32.mxu0 0.0
      %2367 = vmatmul.mubr.f32.gmra.mrb[0].mxu0 %v711
      %v2368 = vpop.f32.mrb[0].mxu0
      %v2369 = vadd.f32 0.0, %v2368
      %v2370 = vpop.f32.mrb[0].mxu0
      %2371 = vmatprep.mubr.f32.mxu0 0.0
      %2372 = vmatmul.mubr.f32.gmra.mrb[0].mxu0 %v713
      %v2373 = vpop.f32.mrb[0].mxu0
      %v2374 = vadd.f32 0.0, %v2373
      %v2375 = vpop.f32.mrb[0].mxu0
      %2376 = vmatprep.mubr.f32.mxu0 0.0
      %2377 = vmatmul.mubr.f32.gmra.mrb[0].mxu0 %v1353
      %v2378 = vpop.f32.mrb[0].mxu0
      %v2379 = vadd.f32 0.0, %v2378
      %v2380 = vpop.f32.mrb[0].mxu0
      %2381 = vmatprep.mubr.f32.mxu0 0.0
      %2382 = vmatmul.mubr.f32.gmra.mrb[0].mxu0 %v1356
      %v2383 = vpop.f32.mrb[0].mxu0
      %v2384 = vadd.f32 0.0, %v2383
      %v2385 = vpop.f32.mrb[0].mxu0
      %2386 = vmatprep.mubr.f32.mxu0 0.0
      %2387 = vmatmul.mubr.f32.gmra.mrb[0].mxu0 %v2164
      %v2388 = vpop.f32.mrb[0].mxu0
      %v2389 = vadd.f32 0.0, %v2388
      %v2390 = vpop.f32.mrb[0].mxu0
      %2391 = vmatprep.mubr.f32.mxu0 0.0
      %2392 = vmatmul.mubr.f32.gmra.mrb[0].mxu0 %v2167
      %v2393 = vpop.f32.mrb[0].mxu0
      %v2394 = vadd.f32 0.0, %v2393
      %v2395 = vpop.f32.mrb[0].mxu0
      %2396 = vdwg.mxu0
      %v2397 = vadd.f32 %v2129, %v2239
      %v2398 = vadd.f32 %v2130, %v2244
      %v2399 = vadd.f32 %v2131, %v2249
      %v2400 = vadd.f32 %v2132, %v2254
      %v2401 = vadd.f32 %v2133, %v2259
      %v2402 = vadd.f32 %v2134, %v2264
      %v2403 = vadd.f32 %v2135, %v2269
      %v2404 = vadd.f32 %v2136, %v2274
      %v2405 = vadd.f32 %v2137, %v2279
      %v2406 = vadd.f32 %v2138, %v2284
      %v2407 = vadd.f32 %v2139, %v2289
      %v2408 = vadd.f32 %v2140, %v2294
      %v2409 = vadd.f32 %v2141, %v2299
      %v2410 = vadd.f32 %v2142, %v2304
      %v2411 = vadd.f32 %v2143, %v2309
      %v2412 = vadd.f32 %v2144, %v2314
      %v2413 = vadd.f32 %v2145, %v2319
      %v2414 = vadd.f32 %v2146, %v2324
      %v2415 = vadd.f32 %v2147, %v2329
      %v2416 = vadd.f32 %v2148, %v2334
      %v2417 = vadd.f32 %v2149, %v2339
      %v2418 = vadd.f32 %v2150, %v2344
      %v2419 = vadd.f32 %v2151, %v2349
      %v2420 = vadd.f32 %v2152, %v2354
      %v2421 = vadd.f32 %v2153, %v2359
      %v2422 = vadd.f32 %v2154, %v2364
      %v2423 = vadd.f32 %v2155, %v2369
      %v2424 = vadd.f32 %v2156, %v2374
      %v2425 = vadd.f32 %v2157, %v2379
      %v2426 = vadd.f32 %v2158, %v2384
      %v2427 = vadd.f32 %v2159, %v2389
      %v2428 = vadd.f32 %v2160, %v2394
      %v2430 = vrot.slane %v222, 1
      %v2431 = vrot.slane %v223, 1
      %v2432 = vsel %vm274, %v2430, %v2431
      %v2433 = vrot.slane %v224, 1
      %v2434 = vsel %vm274, %v2431, %v2433
      %s2435 = scalar_lea.vmem %s1, 28
      %v2436 = vld [vmem:[%s2435] sm:$0xf]
      %v2437 = vsel %vm357, %v2432, 0
      %v2439 = vsel %vm357, %v2434, 0
      %v2442 = vsel %vm422, %v2436, 0
      %2444 = vmatprep.subr.mxu0 0.0
      %2445 = vmatpush1.msra.mxu0 %v2442
      %2446 = vmatprep.subr.mxu0 0.0
      %2447 = vmatpush1.msra.mxu0 0.0
      %2448 = vmatprep.subr.mxu0 0.0
      %2449 = vmatpush1.msra.mxu0 0.0
      %2450 = vmatprep.subr.mxu0 0.0
      %2451 = vmatpush1.msra.mxu0 0.0
      %2452 = vmatprep.subr.mxu0 0.0
      %2453 = vmatpush1.msra.mxu0 0.0
      %2454 = vmatprep.subr.mxu0 0.0
      %2455 = vmatpush1.msra.mxu0 0.0
      %2456 = vmatprep.subr.mxu0 0.0
      %2457 = vmatpush1.msra.mxu0 0.0
      %2458 = vmatprep.subr.mxu0 0.0
      %2459 = vmatpush1.msra.mxu0 0.0
      %2460 = vmatprep.subr.mxu0 0.0
      %2461 = vmatpush1.msra.mxu0 0.0
      %2462 = vmatprep.subr.mxu0 0.0
      %2463 = vmatpush1.msra.mxu0 0.0
      %2464 = vmatprep.subr.mxu0 0.0
      %2465 = vmatpush1.msra.mxu0 0.0
      %2466 = vmatprep.subr.mxu0 0.0
      %2467 = vmatpush1.msra.mxu0 0.0
      %2468 = vmatprep.subr.mxu0 0.0
      %2469 = vmatpush1.msra.mxu0 0.0
      %2470 = vmatprep.subr.mxu0 0.0
      %2471 = vmatpush1.msra.mxu0 0.0
      %2472 = vmatprep.subr.mxu0 0.0
      %2473 = vmatpush1.msra.mxu0 0.0
      %2474 = vmatprep.subr.mxu0 0.0
      %2475 = vmatpush1.msra.mxu0 0.0
      %2476 = vmatprep.subr.mxu0 0.0
      %2477 = vmatpush1.msra.mxu0 0.0
      %2478 = vmatprep.subr.mxu0 0.0
      %2479 = vmatpush1.msra.mxu0 0.0
      %2480 = vmatprep.subr.mxu0 0.0
      %2481 = vmatpush1.msra.mxu0 0.0
      %2482 = vmatprep.subr.mxu0 0.0
      %2483 = vmatpush1.msra.mxu0 0.0
      %2484 = vmatprep.subr.mxu0 0.0
      %2485 = vmatpush1.msra.mxu0 0.0
      %2486 = vmatprep.subr.mxu0 0.0
      %2487 = vmatpush1.msra.mxu0 0.0
      %2488 = vmatprep.subr.mxu0 0.0
      %2489 = vmatpush1.msra.mxu0 0.0
      %2490 = vmatprep.subr.mxu0 0.0
      %2491 = vmatpush1.msra.mxu0 0.0
      %2492 = vmatprep.subr.mxu0 0.0
      %2493 = vmatpush1.msra.mxu0 0.0
      %2494 = vmatprep.subr.mxu0 0.0
      %2495 = vmatpush1.msra.mxu0 0.0
      %2496 = vmatprep.subr.mxu0 0.0
      %2497 = vmatpush1.msra.mxu0 0.0
      %2498 = vmatprep.subr.mxu0 0.0
      %2499 = vmatpush1.msra.mxu0 0.0
      %2500 = vmatprep.subr.mxu0 0.0
      %2501 = vmatpush1.msra.mxu0 0.0
      %2502 = vmatprep.subr.mxu0 0.0
      %2503 = vmatpush1.msra.mxu0 0.0
      %2504 = vmatprep.subr.mxu0 0.0
      %2505 = vmatpush1.msra.mxu0 0.0
      %2506 = vmatprep.subr.mxu0 0.0
      %2507 = vmatpush1.msra.mxu0 0.0
      %2508 = vmatprep.mubr.f32.mxu0 0.0
      %2509 = vmatmul.mubr.f32.gmra.mrb[0].mxu0 %v366
      %v2510 = vpop.f32.mrb[0].mxu0
      %v2511 = vadd.f32 0.0, %v2510
      %v2512 = vpop.f32.mrb[0].mxu0
      %2513 = vmatprep.mubr.f32.mxu0 0.0
      %2514 = vmatmul.mubr.f32.gmra.mrb[0].mxu0 %v368
      %v2515 = vpop.f32.mrb[0].mxu0
      %v2516 = vadd.f32 0.0, %v2515
      %v2517 = vpop.f32.mrb[0].mxu0
      %2518 = vmatprep.mubr.f32.mxu0 0.0
      %2519 = vmatmul.mubr.f32.gmra.mrb[0].mxu0 %v370
      %v2520 = vpop.f32.mrb[0].mxu0
      %v2521 = vadd.f32 0.0, %v2520
      %v2522 = vpop.f32.mrb[0].mxu0
      %2523 = vmatprep.mubr.f32.mxu0 0.0
      %2524 = vmatmul.mubr.f32.gmra.mrb[0].mxu0 %v372
      %v2525 = vpop.f32.mrb[0].mxu0
      %v2526 = vadd.f32 0.0, %v2525
      %v2527 = vpop.f32.mrb[0].mxu0
      %2528 = vmatprep.mubr.f32.mxu0 0.0
      %2529 = vmatmul.mubr.f32.gmra.mrb[0].mxu0 %v374
      %v2530 = vpop.f32.mrb[0].mxu0
      %v2531 = vadd.f32 0.0, %v2530
      %v2532 = vpop.f32.mrb[0].mxu0
      %2533 = vmatprep.mubr.f32.mxu0 0.0
      %2534 = vmatmul.mubr.f32.gmra.mrb[0].mxu0 %v376
      %v2535 = vpop.f32.mrb[0].mxu0
      %v2536 = vadd.f32 0.0, %v2535
      %v2537 = vpop.f32.mrb[0].mxu0
      %2538 = vmatprep.mubr.f32.mxu0 0.0
      %2539 = vmatmul.mubr.f32.gmra.mrb[0].mxu0 %v378
      %v2540 = vpop.f32.mrb[0].mxu0
      %v2541 = vadd.f32 0.0, %v2540
      %v2542 = vpop.f32.mrb[0].mxu0
      %2543 = vmatprep.mubr.f32.mxu0 0.0
      %2544 = vmatmul.mubr.f32.gmra.mrb[0].mxu0 %v380
      %v2545 = vpop.f32.mrb[0].mxu0
      %v2546 = vadd.f32 0.0, %v2545
      %v2547 = vpop.f32.mrb[0].mxu0
      %2548 = vmatprep.mubr.f32.mxu0 0.0
      %2549 = vmatmul.mubr.f32.gmra.mrb[0].mxu0 %v382
      %v2550 = vpop.f32.mrb[0].mxu0
      %v2551 = vadd.f32 0.0, %v2550
      %v2552 = vpop.f32.mrb[0].mxu0
      %2553 = vmatprep.mubr.f32.mxu0 0.0
      %2554 = vmatmul.mubr.f32.gmra.mrb[0].mxu0 %v384
      %v2555 = vpop.f32.mrb[0].mxu0
      %v2556 = vadd.f32 0.0, %v2555
      %v2557 = vpop.f32.mrb[0].mxu0
      %2558 = vmatprep.mubr.f32.mxu0 0.0
      %2559 = vmatmul.mubr.f32.gmra.mrb[0].mxu0 %v386
      %v2560 = vpop.f32.mrb[0].mxu0
      %v2561 = vadd.f32 0.0, %v2560
      %v2562 = vpop.f32.mrb[0].mxu0
      %2563 = vmatprep.mubr.f32.mxu0 0.0
      %2564 = vmatmul.mubr.f32.gmra.mrb[0].mxu0 %v388
      %v2565 = vpop.f32.mrb[0].mxu0
      %v2566 = vadd.f32 0.0, %v2565
      %v2567 = vpop.f32.mrb[0].mxu0
      %2568 = vmatprep.mubr.f32.mxu0 0.0
      %2569 = vmatmul.mubr.f32.gmra.mrb[0].mxu0 %v390
      %v2570 = vpop.f32.mrb[0].mxu0
      %v2571 = vadd.f32 0.0, %v2570
      %v2572 = vpop.f32.mrb[0].mxu0
      %2573 = vmatprep.mubr.f32.mxu0 0.0
      %2574 = vmatmul.mubr.f32.gmra.mrb[0].mxu0 %v392
      %v2575 = vpop.f32.mrb[0].mxu0
      %v2576 = vadd.f32 0.0, %v2575
      %v2577 = vpop.f32.mrb[0].mxu0
      %2578 = vmatprep.mubr.f32.mxu0 0.0
      %2579 = vmatmul.mubr.f32.gmra.mrb[0].mxu0 %v394
      %v2580 = vpop.f32.mrb[0].mxu0
      %v2581 = vadd.f32 0.0, %v2580
      %v2582 = vpop.f32.mrb[0].mxu0
      %2583 = vmatprep.mubr.f32.mxu0 0.0
      %2584 = vmatmul.mubr.f32.gmra.mrb[0].mxu0 %v396
      %v2585 = vpop.f32.mrb[0].mxu0
      %v2586 = vadd.f32 0.0, %v2585
      %v2587 = vpop.f32.mrb[0].mxu0
      %2588 = vmatprep.mubr.f32.mxu0 0.0
      %2589 = vmatmul.mubr.f32.gmra.mrb[0].mxu0 %v398
      %v2590 = vpop.f32.mrb[0].mxu0
      %v2591 = vadd.f32 0.0, %v2590
      %v2592 = vpop.f32.mrb[0].mxu0
      %2593 = vmatprep.mubr.f32.mxu0 0.0
      %2594 = vmatmul.mubr.f32.gmra.mrb[0].mxu0 %v400
      %v2595 = vpop.f32.mrb[0].mxu0
      %v2596 = vadd.f32 0.0, %v2595
      %v2597 = vpop.f32.mrb[0].mxu0
      %2598 = vmatprep.mubr.f32.mxu0 0.0
      %2599 = vmatmul.mubr.f32.gmra.mrb[0].mxu0 %v402
      %v2600 = vpop.f32.mrb[0].mxu0
      %v2601 = vadd.f32 0.0, %v2600
      %v2602 = vpop.f32.mrb[0].mxu0
      %2603 = vmatprep.mubr.f32.mxu0 0.0
      %2604 = vmatmul.mubr.f32.gmra.mrb[0].mxu0 %v404
      %v2605 = vpop.f32.mrb[0].mxu0
      %v2606 = vadd.f32 0.0, %v2605
      %v2607 = vpop.f32.mrb[0].mxu0
      %2608 = vmatprep.mubr.f32.mxu0 0.0
      %2609 = vmatmul.mubr.f32.gmra.mrb[0].mxu0 %v406
      %v2610 = vpop.f32.mrb[0].mxu0
      %v2611 = vadd.f32 0.0, %v2610
      %v2612 = vpop.f32.mrb[0].mxu0
      %2613 = vmatprep.mubr.f32.mxu0 0.0
      %2614 = vmatmul.mubr.f32.gmra.mrb[0].mxu0 %v408
      %v2615 = vpop.f32.mrb[0].mxu0
      %v2616 = vadd.f32 0.0, %v2615
      %v2617 = vpop.f32.mrb[0].mxu0
      %2618 = vmatprep.mubr.f32.mxu0 0.0
      %2619 = vmatmul.mubr.f32.gmra.mrb[0].mxu0 %v410
      %v2620 = vpop.f32.mrb[0].mxu0
      %v2621 = vadd.f32 0.0, %v2620
      %v2622 = vpop.f32.mrb[0].mxu0
      %2623 = vmatprep.mubr.f32.mxu0 0.0
      %2624 = vmatmul.mubr.f32.gmra.mrb[0].mxu0 %v412
      %v2625 = vpop.f32.mrb[0].mxu0
      %v2626 = vadd.f32 0.0, %v2625
      %v2627 = vpop.f32.mrb[0].mxu0
      %2628 = vmatprep.mubr.f32.mxu0 0.0
      %2629 = vmatmul.mubr.f32.gmra.mrb[0].mxu0 %v414
      %v2630 = vpop.f32.mrb[0].mxu0
      %v2631 = vadd.f32 0.0, %v2630
      %v2632 = vpop.f32.mrb[0].mxu0
      %2633 = vmatprep.mubr.f32.mxu0 0.0
      %2634 = vmatmul.mubr.f32.gmra.mrb[0].mxu0 %v416
      %v2635 = vpop.f32.mrb[0].mxu0
      %v2636 = vadd.f32 0.0, %v2635
      %v2637 = vpop.f32.mrb[0].mxu0
      %2638 = vmatprep.mubr.f32.mxu0 0.0
      %2639 = vmatmul.mubr.f32.gmra.mrb[0].mxu0 %v418
      %v2640 = vpop.f32.mrb[0].mxu0
      %v2641 = vadd.f32 0.0, %v2640
      %v2642 = vpop.f32.mrb[0].mxu0
      %2643 = vmatprep.mubr.f32.mxu0 0.0
      %2644 = vmatmul.mubr.f32.gmra.mrb[0].mxu0 %v420
      %v2645 = vpop.f32.mrb[0].mxu0
      %v2646 = vadd.f32 0.0, %v2645
      %v2647 = vpop.f32.mrb[0].mxu0
      %2648 = vmatprep.mubr.f32.mxu0 0.0
      %2649 = vmatmul.mubr.f32.gmra.mrb[0].mxu0 %v1626
      %v2650 = vpop.f32.mrb[0].mxu0
      %v2651 = vadd.f32 0.0, %v2650
      %v2652 = vpop.f32.mrb[0].mxu0
      %2653 = vmatprep.mubr.f32.mxu0 0.0
      %2654 = vmatmul.mubr.f32.gmra.mrb[0].mxu0 %v1628
      %v2655 = vpop.f32.mrb[0].mxu0
      %v2656 = vadd.f32 0.0, %v2655
      %v2657 = vpop.f32.mrb[0].mxu0
      %2658 = vmatprep.mubr.f32.mxu0 0.0
      %2659 = vmatmul.mubr.f32.gmra.mrb[0].mxu0 %v2437
      %v2660 = vpop.f32.mrb[0].mxu0
      %v2661 = vadd.f32 0.0, %v2660
      %v2662 = vpop.f32.mrb[0].mxu0
      %2663 = vmatprep.mubr.f32.mxu0 0.0
      %2664 = vmatmul.mubr.f32.gmra.mrb[0].mxu0 %v2439
      %v2665 = vpop.f32.mrb[0].mxu0
      %v2666 = vadd.f32 0.0, %v2665
      %v2667 = vpop.f32.mrb[0].mxu0
      %2668 = vdwg.mxu0
      %v2669 = vadd.f32 %v2397, %v2511
      %v2670 = vadd.f32 %v2398, %v2516
      %v2671 = vadd.f32 %v2399, %v2521
      %v2672 = vadd.f32 %v2400, %v2526
      %v2673 = vadd.f32 %v2401, %v2531
      %v2674 = vadd.f32 %v2402, %v2536
      %v2675 = vadd.f32 %v2403, %v2541
      %v2676 = vadd.f32 %v2404, %v2546
      %v2677 = vadd.f32 %v2405, %v2551
      %v2678 = vadd.f32 %v2406, %v2556
      %v2679 = vadd.f32 %v2407, %v2561
      %v2680 = vadd.f32 %v2408, %v2566
      %v2681 = vadd.f32 %v2409, %v2571
      %v2682 = vadd.f32 %v2410, %v2576
      %v2683 = vadd.f32 %v2411, %v2581
      %v2684 = vadd.f32 %v2412, %v2586
      %v2685 = vadd.f32 %v2413, %v2591
      %v2686 = vadd.f32 %v2414, %v2596
      %v2687 = vadd.f32 %v2415, %v2601
      %v2688 = vadd.f32 %v2416, %v2606
      %v2689 = vadd.f32 %v2417, %v2611
      %v2690 = vadd.f32 %v2418, %v2616
      %v2691 = vadd.f32 %v2419, %v2621
      %v2692 = vadd.f32 %v2420, %v2626
      %v2693 = vadd.f32 %v2421, %v2631
      %v2694 = vadd.f32 %v2422, %v2636
      %v2695 = vadd.f32 %v2423, %v2641
      %v2696 = vadd.f32 %v2424, %v2646
      %v2697 = vadd.f32 %v2425, %v2651
      %v2698 = vadd.f32 %v2426, %v2656
      %v2699 = vadd.f32 %v2427, %v2661
      %v2700 = vadd.f32 %v2428, %v2666
      %v2701 = vrot.slane %v222, 2
      %v2702 = vrot.slane %v223, 2
      %v2703 = vsel %vm943, %v2701, %v2702
      %v2704 = vrot.slane %v224, 2
      %v2705 = vsel %vm943, %v2702, %v2704
      %s2706 = scalar_lea.vmem %s1, 32
      %v2707 = vld [vmem:[%s2706] sm:$0xf]
      %v2708 = vsel %vm357, %v2703, 0
      %v2710 = vsel %vm357, %v2705, 0
      %v2713 = vsel %vm422, %v2707, 0
      %2715 = vmatprep.subr.mxu0 0.0
      %2716 = vmatpush1.msra.mxu0 %v2713
      %2717 = vmatprep.subr.mxu0 0.0
      %2718 = vmatpush1.msra.mxu0 0.0
      %2719 = vmatprep.subr.mxu0 0.0
      %2720 = vmatpush1.msra.mxu0 0.0
      %2721 = vmatprep.subr.mxu0 0.0
      %2722 = vmatpush1.msra.mxu0 0.0
      %2723 = vmatprep.subr.mxu0 0.0
      %2724 = vmatpush1.msra.mxu0 0.0
      %2725 = vmatprep.subr.mxu0 0.0
      %2726 = vmatpush1.msra.mxu0 0.0
      %2727 = vmatprep.subr.mxu0 0.0
      %2728 = vmatpush1.msra.mxu0 0.0
      %2729 = vmatprep.subr.mxu0 0.0
      %2730 = vmatpush1.msra.mxu0 0.0
      %2731 = vmatprep.subr.mxu0 0.0
      %2732 = vmatpush1.msra.mxu0 0.0
      %2733 = vmatprep.subr.mxu0 0.0
      %2734 = vmatpush1.msra.mxu0 0.0
      %2735 = vmatprep.subr.mxu0 0.0
      %2736 = vmatpush1.msra.mxu0 0.0
      %2737 = vmatprep.subr.mxu0 0.0
      %2738 = vmatpush1.msra.mxu0 0.0
      %2739 = vmatprep.subr.mxu0 0.0
      %2740 = vmatpush1.msra.mxu0 0.0
      %2741 = vmatprep.subr.mxu0 0.0
      %2742 = vmatpush1.msra.mxu0 0.0
      %2743 = vmatprep.subr.mxu0 0.0
      %2744 = vmatpush1.msra.mxu0 0.0
      %2745 = vmatprep.subr.mxu0 0.0
      %2746 = vmatpush1.msra.mxu0 0.0
      %2747 = vmatprep.subr.mxu0 0.0
      %2748 = vmatpush1.msra.mxu0 0.0
      %2749 = vmatprep.subr.mxu0 0.0
      %2750 = vmatpush1.msra.mxu0 0.0
      %2751 = vmatprep.subr.mxu0 0.0
      %2752 = vmatpush1.msra.mxu0 0.0
      %2753 = vmatprep.subr.mxu0 0.0
      %2754 = vmatpush1.msra.mxu0 0.0
      %2755 = vmatprep.subr.mxu0 0.0
      %2756 = vmatpush1.msra.mxu0 0.0
      %2757 = vmatprep.subr.mxu0 0.0
      %2758 = vmatpush1.msra.mxu0 0.0
      %2759 = vmatprep.subr.mxu0 0.0
      %2760 = vmatpush1.msra.mxu0 0.0
      %2761 = vmatprep.subr.mxu0 0.0
      %2762 = vmatpush1.msra.mxu0 0.0
      %2763 = vmatprep.subr.mxu0 0.0
      %2764 = vmatpush1.msra.mxu0 0.0
      %2765 = vmatprep.subr.mxu0 0.0
      %2766 = vmatpush1.msra.mxu0 0.0
      %2767 = vmatprep.subr.mxu0 0.0
      %2768 = vmatpush1.msra.mxu0 0.0
      %2769 = vmatprep.subr.mxu0 0.0
      %2770 = vmatpush1.msra.mxu0 0.0
      %2771 = vmatprep.subr.mxu0 0.0
      %2772 = vmatpush1.msra.mxu0 0.0
      %2773 = vmatprep.subr.mxu0 0.0
      %2774 = vmatpush1.msra.mxu0 0.0
      %2775 = vmatprep.subr.mxu0 0.0
      %2776 = vmatpush1.msra.mxu0 0.0
      %2777 = vmatprep.subr.mxu0 0.0
      %2778 = vmatpush1.msra.mxu0 0.0
      %2779 = vmatprep.mubr.f32.mxu0 0.0
      %2780 = vmatmul.mubr.f32.gmra.mrb[0].mxu0 %v1034
      %v2781 = vpop.f32.mrb[0].mxu0
      %v2782 = vadd.f32 0.0, %v2781
      %v2783 = vpop.f32.mrb[0].mxu0
      %2784 = vmatprep.mubr.f32.mxu0 0.0
      %2785 = vmatmul.mubr.f32.gmra.mrb[0].mxu0 %v1036
      %v2786 = vpop.f32.mrb[0].mxu0
      %v2787 = vadd.f32 0.0, %v2786
      %v2788 = vpop.f32.mrb[0].mxu0
      %2789 = vmatprep.mubr.f32.mxu0 0.0
      %2790 = vmatmul.mubr.f32.gmra.mrb[0].mxu0 %v1038
      %v2791 = vpop.f32.mrb[0].mxu0
      %v2792 = vadd.f32 0.0, %v2791
      %v2793 = vpop.f32.mrb[0].mxu0
      %2794 = vmatprep.mubr.f32.mxu0 0.0
      %2795 = vmatmul.mubr.f32.gmra.mrb[0].mxu0 %v1040
      %v2796 = vpop.f32.mrb[0].mxu0
      %v2797 = vadd.f32 0.0, %v2796
      %v2798 = vpop.f32.mrb[0].mxu0
      %2799 = vmatprep.mubr.f32.mxu0 0.0
      %2800 = vmatmul.mubr.f32.gmra.mrb[0].mxu0 %v1042
      %v2801 = vpop.f32.mrb[0].mxu0
      %v2802 = vadd.f32 0.0, %v2801
      %v2803 = vpop.f32.mrb[0].mxu0
      %2804 = vmatprep.mubr.f32.mxu0 0.0
      %2805 = vmatmul.mubr.f32.gmra.mrb[0].mxu0 %v1044
      %v2806 = vpop.f32.mrb[0].mxu0
      %v2807 = vadd.f32 0.0, %v2806
      %v2808 = vpop.f32.mrb[0].mxu0
      %2809 = vmatprep.mubr.f32.mxu0 0.0
      %2810 = vmatmul.mubr.f32.gmra.mrb[0].mxu0 %v1046
      %v2811 = vpop.f32.mrb[0].mxu0
      %v2812 = vadd.f32 0.0, %v2811
      %v2813 = vpop.f32.mrb[0].mxu0
      %2814 = vmatprep.mubr.f32.mxu0 0.0
      %2815 = vmatmul.mubr.f32.gmra.mrb[0].mxu0 %v1048
      %v2816 = vpop.f32.mrb[0].mxu0
      %v2817 = vadd.f32 0.0, %v2816
      %v2818 = vpop.f32.mrb[0].mxu0
      %2819 = vmatprep.mubr.f32.mxu0 0.0
      %2820 = vmatmul.mubr.f32.gmra.mrb[0].mxu0 %v1050
      %v2821 = vpop.f32.mrb[0].mxu0
      %v2822 = vadd.f32 0.0, %v2821
      %v2823 = vpop.f32.mrb[0].mxu0
      %2824 = vmatprep.mubr.f32.mxu0 0.0
      %2825 = vmatmul.mubr.f32.gmra.mrb[0].mxu0 %v1052
      %v2826 = vpop.f32.mrb[0].mxu0
      %v2827 = vadd.f32 0.0, %v2826
      %v2828 = vpop.f32.mrb[0].mxu0
      %2829 = vmatprep.mubr.f32.mxu0 0.0
      %2830 = vmatmul.mubr.f32.gmra.mrb[0].mxu0 %v1054
      %v2831 = vpop.f32.mrb[0].mxu0
      %v2832 = vadd.f32 0.0, %v2831
      %v2833 = vpop.f32.mrb[0].mxu0
      %2834 = vmatprep.mubr.f32.mxu0 0.0
      %2835 = vmatmul.mubr.f32.gmra.mrb[0].mxu0 %v1056
      %v2836 = vpop.f32.mrb[0].mxu0
      %v2837 = vadd.f32 0.0, %v2836
      %v2838 = vpop.f32.mrb[0].mxu0
      %2839 = vmatprep.mubr.f32.mxu0 0.0
      %2840 = vmatmul.mubr.f32.gmra.mrb[0].mxu0 %v1058
      %v2841 = vpop.f32.mrb[0].mxu0
      %v2842 = vadd.f32 0.0, %v2841
      %v2843 = vpop.f32.mrb[0].mxu0
      %2844 = vmatprep.mubr.f32.mxu0 0.0
      %2845 = vmatmul.mubr.f32.gmra.mrb[0].mxu0 %v1060
      %v2846 = vpop.f32.mrb[0].mxu0
      %v2847 = vadd.f32 0.0, %v2846
      %v2848 = vpop.f32.mrb[0].mxu0
      %2849 = vmatprep.mubr.f32.mxu0 0.0
      %2850 = vmatmul.mubr.f32.gmra.mrb[0].mxu0 %v1062
      %v2851 = vpop.f32.mrb[0].mxu0
      %v2852 = vadd.f32 0.0, %v2851
      %v2853 = vpop.f32.mrb[0].mxu0
      %2854 = vmatprep.mubr.f32.mxu0 0.0
      %2855 = vmatmul.mubr.f32.gmra.mrb[0].mxu0 %v1064
      %v2856 = vpop.f32.mrb[0].mxu0
      %v2857 = vadd.f32 0.0, %v2856
      %v2858 = vpop.f32.mrb[0].mxu0
      %2859 = vmatprep.mubr.f32.mxu0 0.0
      %2860 = vmatmul.mubr.f32.gmra.mrb[0].mxu0 %v1066
      %v2861 = vpop.f32.mrb[0].mxu0
      %v2862 = vadd.f32 0.0, %v2861
      %v2863 = vpop.f32.mrb[0].mxu0
      %2864 = vmatprep.mubr.f32.mxu0 0.0
      %2865 = vmatmul.mubr.f32.gmra.mrb[0].mxu0 %v1068
      %v2866 = vpop.f32.mrb[0].mxu0
      %v2867 = vadd.f32 0.0, %v2866
      %v2868 = vpop.f32.mrb[0].mxu0
      %2869 = vmatprep.mubr.f32.mxu0 0.0
      %2870 = vmatmul.mubr.f32.gmra.mrb[0].mxu0 %v1070
      %v2871 = vpop.f32.mrb[0].mxu0
      %v2872 = vadd.f32 0.0, %v2871
      %v2873 = vpop.f32.mrb[0].mxu0
      %2874 = vmatprep.mubr.f32.mxu0 0.0
      %2875 = vmatmul.mubr.f32.gmra.mrb[0].mxu0 %v1072
      %v2876 = vpop.f32.mrb[0].mxu0
      %v2877 = vadd.f32 0.0, %v2876
      %v2878 = vpop.f32.mrb[0].mxu0
      %2879 = vmatprep.mubr.f32.mxu0 0.0
      %2880 = vmatmul.mubr.f32.gmra.mrb[0].mxu0 %v1074
      %v2881 = vpop.f32.mrb[0].mxu0
      %v2882 = vadd.f32 0.0, %v2881
      %v2883 = vpop.f32.mrb[0].mxu0
      %2884 = vmatprep.mubr.f32.mxu0 0.0
      %2885 = vmatmul.mubr.f32.gmra.mrb[0].mxu0 %v1076
      %v2886 = vpop.f32.mrb[0].mxu0
      %v2887 = vadd.f32 0.0, %v2886
      %v2888 = vpop.f32.mrb[0].mxu0
      %2889 = vmatprep.mubr.f32.mxu0 0.0
      %2890 = vmatmul.mubr.f32.gmra.mrb[0].mxu0 %v1078
      %v2891 = vpop.f32.mrb[0].mxu0
      %v2892 = vadd.f32 0.0, %v2891
      %v2893 = vpop.f32.mrb[0].mxu0
      %2894 = vmatprep.mubr.f32.mxu0 0.0
      %2895 = vmatmul.mubr.f32.gmra.mrb[0].mxu0 %v1080
      %v2896 = vpop.f32.mrb[0].mxu0
      %v2897 = vadd.f32 0.0, %v2896
      %v2898 = vpop.f32.mrb[0].mxu0
      %2899 = vmatprep.mubr.f32.mxu0 0.0
      %2900 = vmatmul.mubr.f32.gmra.mrb[0].mxu0 %v1082
      %v2901 = vpop.f32.mrb[0].mxu0
      %v2902 = vadd.f32 0.0, %v2901
      %v2903 = vpop.f32.mrb[0].mxu0
      %2904 = vmatprep.mubr.f32.mxu0 0.0
      %2905 = vmatmul.mubr.f32.gmra.mrb[0].mxu0 %v1084
      %v2906 = vpop.f32.mrb[0].mxu0
      %v2907 = vadd.f32 0.0, %v2906
      %v2908 = vpop.f32.mrb[0].mxu0
      %2909 = vmatprep.mubr.f32.mxu0 0.0
      %2910 = vmatmul.mubr.f32.gmra.mrb[0].mxu0 %v1086
      %v2911 = vpop.f32.mrb[0].mxu0
      %v2912 = vadd.f32 0.0, %v2911
      %v2913 = vpop.f32.mrb[0].mxu0
      %2914 = vmatprep.mubr.f32.mxu0 0.0
      %2915 = vmatmul.mubr.f32.gmra.mrb[0].mxu0 %v1088
      %v2916 = vpop.f32.mrb[0].mxu0
      %v2917 = vadd.f32 0.0, %v2916
      %v2918 = vpop.f32.mrb[0].mxu0
      %2919 = vmatprep.mubr.f32.mxu0 0.0
      %2920 = vmatmul.mubr.f32.gmra.mrb[0].mxu0 %v1897
      %v2921 = vpop.f32.mrb[0].mxu0
      %v2922 = vadd.f32 0.0, %v2921
      %v2923 = vpop.f32.mrb[0].mxu0
      %2924 = vmatprep.mubr.f32.mxu0 0.0
      %2925 = vmatmul.mubr.f32.gmra.mrb[0].mxu0 %v1899
      %v2926 = vpop.f32.mrb[0].mxu0
      %v2927 = vadd.f32 0.0, %v2926
      %v2928 = vpop.f32.mrb[0].mxu0
      %2929 = vmatprep.mubr.f32.mxu0 0.0
      %2930 = vmatmul.mubr.f32.gmra.mrb[0].mxu0 %v2708
      %v2931 = vpop.f32.mrb[0].mxu0
      %v2932 = vadd.f32 0.0, %v2931
      %v2933 = vpop.f32.mrb[0].mxu0
      %2934 = vmatprep.mubr.f32.mxu0 0.0
      %2935 = vmatmul.mubr.f32.gmra.mrb[0].mxu0 %v2710
      %v2936 = vpop.f32.mrb[0].mxu0
      %v2937 = vadd.f32 0.0, %v2936
      %v2938 = vpop.f32.mrb[0].mxu0
      %2939 = vdwg.mxu0
      %v2940 = vadd.f32 %v2669, %v2782
      %v2941 = vadd.f32 %v2670, %v2787
      %v2942 = vadd.f32 %v2671, %v2792
      %v2943 = vadd.f32 %v2672, %v2797
      %v2944 = vadd.f32 %v2673, %v2802
      %v2945 = vadd.f32 %v2674, %v2807
      %v2946 = vadd.f32 %v2675, %v2812
      %v2947 = vadd.f32 %v2676, %v2817
      %v2948 = vadd.f32 %v2677, %v2822
      %v2949 = vadd.f32 %v2678, %v2827
      %v2950 = vadd.f32 %v2679, %v2832
      %v2951 = vadd.f32 %v2680, %v2837
      %v2952 = vadd.f32 %v2681, %v2842
      %v2953 = vadd.f32 %v2682, %v2847
      %v2954 = vadd.f32 %v2683, %v2852
      %v2955 = vadd.f32 %v2684, %v2857
      %v2956 = vadd.f32 %v2685, %v2862
      %v2957 = vadd.f32 %v2686, %v2867
      %v2958 = vadd.f32 %v2687, %v2872
      %v2959 = vadd.f32 %v2688, %v2877
      %v2960 = vadd.f32 %v2689, %v2882
      %v2961 = vadd.f32 %v2690, %v2887
      %v2962 = vadd.f32 %v2691, %v2892
      %v2963 = vadd.f32 %v2692, %v2897
      %v2964 = vadd.f32 %v2693, %v2902
      %v2965 = vadd.f32 %v2694, %v2907
      %v2966 = vadd.f32 %v2695, %v2912
      %v2967 = vadd.f32 %v2696, %v2917
      %v2968 = vadd.f32 %v2697, %v2922
      %v2969 = vadd.f32 %v2698, %v2927
      %v2970 = vadd.f32 %v2699, %v2932
      %v2971 = vadd.f32 %v2700, %v2937
      %v2972 = vld [vmem:[%s2] sm:$0x1]
      %v2974 = vlaneseq
      %v2975 = vshrl.u32 %v2974, 7
      %v2976 = vsub.s32 0, %v2975
      %v2977 = vrot.slane %v2972, %v2976
      %v2979 = vadd.f32 %v2940, %v2977
      %v2980 = vadd.f32 %v2941, %v2977
      %v2981 = vadd.f32 %v2942, %v2977
      %v2982 = vadd.f32 %v2943, %v2977
      %v2983 = vadd.f32 %v2944, %v2977
      %v2984 = vadd.f32 %v2945, %v2977
      %v2985 = vadd.f32 %v2946, %v2977
      %v2986 = vadd.f32 %v2947, %v2977
      %v2987 = vadd.f32 %v2948, %v2977
      %v2988 = vadd.f32 %v2949, %v2977
      %v2989 = vadd.f32 %v2950, %v2977
      %v2990 = vadd.f32 %v2951, %v2977
      %v2991 = vadd.f32 %v2952, %v2977
      %v2992 = vadd.f32 %v2953, %v2977
      %v2993 = vadd.f32 %v2954, %v2977
      %v2994 = vadd.f32 %v2955, %v2977
      %v2995 = vadd.f32 %v2956, %v2977
      %v2996 = vadd.f32 %v2957, %v2977
      %v2997 = vadd.f32 %v2958, %v2977
      %v2998 = vadd.f32 %v2959, %v2977
      %v2999 = vadd.f32 %v2960, %v2977
      %v3000 = vadd.f32 %v2961, %v2977
      %v3001 = vadd.f32 %v2962, %v2977
      %v3002 = vadd.f32 %v2963, %v2977
      %v3003 = vadd.f32 %v2964, %v2977
      %v3004 = vadd.f32 %v2965, %v2977
      %v3005 = vadd.f32 %v2966, %v2977
      %v3006 = vadd.f32 %v2967, %v2977
      %v3007 = vadd.f32 %v2968, %v2977
      %v3008 = vadd.f32 %v2969, %v2977
      %v3009 = vadd.f32 %v2970, %v2977
      %v3010 = vadd.f32 %v2971, %v2977
      %v3011 = vmax.f32 %v2979, 0.0
      %v3012 = vmax.f32 %v2980, 0.0
      %v3013 = vmax.f32 %v2981, 0.0
      %v3014 = vmax.f32 %v2982, 0.0
      %v3015 = vmax.f32 %v2983, 0.0
      %v3016 = vmax.f32 %v2984, 0.0
      %v3017 = vmax.f32 %v2985, 0.0
      %v3018 = vmax.f32 %v2986, 0.0
      %v3019 = vmax.f32 %v2987, 0.0
      %v3020 = vmax.f32 %v2988, 0.0
      %v3021 = vmax.f32 %v2989, 0.0
      %v3022 = vmax.f32 %v2990, 0.0
      %v3023 = vmax.f32 %v2991, 0.0
      %v3024 = vmax.f32 %v2992, 0.0
      %v3025 = vmax.f32 %v2993, 0.0
      %v3026 = vmax.f32 %v2994, 0.0
      %v3027 = vmax.f32 %v2995, 0.0
      %v3028 = vmax.f32 %v2996, 0.0
      %v3029 = vmax.f32 %v2997, 0.0
      %v3030 = vmax.f32 %v2998, 0.0
      %v3031 = vmax.f32 %v2999, 0.0
      %v3032 = vmax.f32 %v3000, 0.0
      %v3033 = vmax.f32 %v3001, 0.0
      %v3034 = vmax.f32 %v3002, 0.0
      %v3035 = vmax.f32 %v3003, 0.0
      %v3036 = vmax.f32 %v3004, 0.0
      %v3037 = vmax.f32 %v3005, 0.0
      %v3038 = vmax.f32 %v3006, 0.0
      %v3039 = vmax.f32 %v3007, 0.0
      %v3040 = vmax.f32 %v3008, 0.0
      %v3041 = vmax.f32 %v3009, 0.0
      %v3042 = vmax.f32 %v3010, 0.0
      %vm3043 = vcmask 64512
      %3044 = vst.msk [vmem:[%s170] sm:$0xff] %vm3043, %v3011
      %3045 = vst.msk [vmem:[%s170 + $0x8] sm:$0xff] %vm3043, %v3012
      %3046 = vst.msk [vmem:[%s170 + $0x10] sm:$0xff] %vm3043, %v3013
      %3047 = vst.msk [vmem:[%s170 + $0x18] sm:$0xff] %vm3043, %v3014
      %3048 = vst.msk [vmem:[%s170 + $0x20] sm:$0xff] %vm3043, %v3015
      %3049 = vst.msk [vmem:[%s170 + $0x28] sm:$0xff] %vm3043, %v3016
      %3050 = vst.msk [vmem:[%s170 + $0x30] sm:$0xff] %vm3043, %v3017
      %3051 = vst.msk [vmem:[%s170 + $0x38] sm:$0xff] %vm3043, %v3018
      %3052 = vst.msk [vmem:[%s170 + $0x40] sm:$0xff] %vm3043, %v3019
      %3053 = vst.msk [vmem:[%s170 + $0x48] sm:$0xff] %vm3043, %v3020
      %3054 = vst.msk [vmem:[%s170 + $0x50] sm:$0xff] %vm3043, %v3021
      %3055 = vst.msk [vmem:[%s170 + $0x58] sm:$0xff] %vm3043, %v3022
      %3056 = vst.msk [vmem:[%s170 + $0x60] sm:$0xff] %vm3043, %v3023
      %3057 = vst.msk [vmem:[%s170 + $0x68] sm:$0xff] %vm3043, %v3024
      %3058 = vst.msk [vmem:[%s170 + $0x70] sm:$0xff] %vm3043, %v3025
      %3059 = vst.msk [vmem:[%s170 + $0x78] sm:$0xff] %vm3043, %v3026
      %3060 = vst.msk [vmem:[%s170 + $0x80] sm:$0xff] %vm3043, %v3027
      %3061 = vst.msk [vmem:[%s170 + $0x88] sm:$0xff] %vm3043, %v3028
      %3062 = vst.msk [vmem:[%s170 + $0x90] sm:$0xff] %vm3043, %v3029
      %3063 = vst.msk [vmem:[%s170 + $0x98] sm:$0xff] %vm3043, %v3030
      %3064 = vst.msk [vmem:[%s170 + $0xa0] sm:$0xff] %vm3043, %v3031
      %3065 = vst.msk [vmem:[%s170 + $0xa8] sm:$0xff] %vm3043, %v3032
      %3066 = vst.msk [vmem:[%s170 + $0xb0] sm:$0xff] %vm3043, %v3033
      %3067 = vst.msk [vmem:[%s170 + $0xb8] sm:$0xff] %vm3043, %v3034
      %3068 = vst.msk [vmem:[%s170 + $0xc0] sm:$0xff] %vm3043, %v3035
      %3069 = vst.msk [vmem:[%s170 + $0xc8] sm:$0xff] %vm3043, %v3036
      %3070 = vst.msk [vmem:[%s170 + $0xd0] sm:$0xff] %vm3043, %v3037
      %3071 = vst.msk [vmem:[%s170 + $0xd8] sm:$0xff] %vm3043, %v3038
      %3072 = vst.msk [vmem:[%s170 + $0xe0] sm:$0xff] %vm3043, %v3039
      %3073 = vst.msk [vmem:[%s170 + $0xe8] sm:$0xff] %vm3043, %v3040
      %3074 = vst.msk [vmem:[%s170 + $0xf0] sm:$0xff] %vm3043, %v3041
      %3075 = vst.msk [vmem:[%s170 + $0xf8] sm:$0xff] %vm3043, %v3042
      %p3076 = scmp.lt.s32.totalorder %s14, 1
      %s3077 = scalar_select %p3076, %s14, 1
      %s3078 = smul.addr %s3077, 32
      %s3079 = smul.addr %s3078, 8
      %s3080 = scalar_lea.vmem %s3, %s3079
      // Predicated region
      $region33: #{osa_block_forward.4} parent=31 // pred_check
        %p3081 = pneg %p100
      $region34: #{osa_block_forward.4} parent=31 // pred_check_branch
        %3083 = sbr.rel (%p3081) target = $region36
      $region35: #{osa_block_forward.4} parent=31 // pred_region
        _
      $region36: #{osa_block_forward.4} parent=31 // pred_fallthru
        _
    $region32: #{osa_block_forward.4} parent=5 // pred_fallthru
      _
    %p3084 = scmp.le.s32.totalorder 2, %s9
    // Predicated region
    $region37: #{osa_block_forward.4} parent=5 // pred_check
      %p3085 = pneg %p3084
    $region38: #{osa_block_forward.4} parent=5 // pred_check_branch
      %3087 = sbr.rel (%p3085) target = $region40
    $region39: #{osa_block_forward.4} parent=5 // pred_region
      %s3088 = ssub.s32 %s9, 2
      // Predicated region
      $region41: #{osa_block_forward.4} parent=39 // pred_check
        %p3089 = pneg %p106
      $region42: #{osa_block_forward.4} parent=39 // pred_check_branch
        %3091 = sbr.rel (%p3089) target = $region44
      $region43: #{osa_block_forward.4} parent=39 // pred_region
        %p3092 = scmp.lt.s32.totalorder %s15, 1
        %s3093 = scalar_select %p3092, %s15, 1
        %s3094 = smul.addr %s3093, 32
        %s3095 = smul.addr %s3094, 8
        %s3096 = scalar_lea.vmem %s3, %s3095
      $region44: #{osa_block_forward.4} parent=39 // pred_fallthru
        _
    $region40: #{osa_block_forward.4} parent=5 // pred_fallthru
      _
  $region6: #{osa_block_forward.4} parent=0 // loop_footer
    %s13 = sadd.s32 1, %s9
  $region7: #{osa_block_forward.4} parent=0 // loop_footer_branch
    %8 = sbr.rel target = $region3
  $region8: #{osa_block_forward.4} parent=0 // loop_exit
    _

// kernel: osa_block_forward.5
$region0: #{osa_block_forward.5}
  #allocation0 [shape = 'u32[]', space=smem, size = 0x4, offset = 0x4, fixed_abs, tag = 'smem constant byte address 0x4 - core index']
  #allocation1 [shape = 'u32[144,128]{1,0:T(1,128)}', space=vmem, size = 0x12000, scoped, tag = 'internal scratch']
  %s0 = inlined_call_operand.vmem [shape: f32[2,18,18,8], index: 0, kind: input, shape index: {}]
  %s1 = inlined_call_operand.vmem [shape: f32[3,3,8,8], index: 1, kind: input, shape index: {}]
  %s2 = inlined_call_operand.vmem [shape: f32[1,8], index: 2, kind: input, shape index: {}]
  %s3 = inlined_call_operand.vmem [shape: f32[2,256,8], index: 3, kind: output, shape index: {}]
  %s4 = sld [smem:[#allocation0]]
  $region45: #{osa_block_forward.5} parent=0
    _
  %s6 = ssub.s32 1, %s4
  %s7 = scalar_select 0, %s6, %s4
  loop: start=0, step=1, limit=4
  $region2: #{osa_block_forward.5} parent=0 // loop_pre_header
    _
  $region3: #{osa_block_forward.5} parent=0 // loop_header
    %s9 = sphi 0, %s13
    %p10 = scmp.ge.s32.totalorder %s9, 4
    %s19 = sphi 0, %s21
    %s22 = sphi 0, %s19
    %s23 = sphi 0, %s22
    %s39 = sphi 0, %s23
    %s43 = sphi 0, %s43
    %s45 = sphi 0, %s43
    %s46 = sphi 0, %s45
    %s60 = sphi 0, %s46
    %s64 = sphi 0, %s64
    %s66 = sphi 0, %s64
    %s67 = sphi 0, %s66
    %s81 = sphi 0, %s67
    %s87 = sphi 0, %s89
    %s90 = sphi 0, %s87
    %s91 = sphi 0, %s90
    %s107 = sphi 0, %s91
  $region4: #{osa_block_forward.5} parent=0 // loop_header_branch
    %12 = sbr.rel (%p10) target = $region8
  $region5: #{osa_block_forward.5} parent=0 // loop_body
    %s14 = ssub.s32 %s9, 1
    %s15 = ssub.s32 %s9, 2
    %s16 = sadd.s32 %s9, 1
    %s17 = ssub.s32 %s9, %s16
    %p18 = scmp.eq.s32.totalorder %s17, 0
    %s20 = sadd.s32 %s19, 1
    %s21 = scalar_select %p18, %s19, %s20
    %p24 = pneg %p18
    %p25 = scmp.eq.s32.totalorder %s9, 1
    %p26 = por %p24, %p25
    %p27 = scmp.ne.s32.totalorder %s19, %s22
    %p28 = scmp.eq.s32.totalorder %s9, 0
    %p29 = por %p27, %p28
    %p30 = scmp.ne.s32.totalorder %s19, %s22
    %p31 = scmp.eq.s32.totalorder %s14, 1
    %p32 = por %p30, %p31
    %p33 = scmp.ne.s32.totalorder %s22, %s23
    %p34 = scmp.eq.s32.totalorder %s14, 0
    %p35 = por %p33, %p34
    %p36 = scmp.ne.s32.totalorder %s22, %s23
    %p37 = scmp.eq.s32.totalorder %s15, 1
    %p38 = por %p36, %p37
    %p40 = scmp.ne.s32.totalorder %s23, %s39
    %p41 = scmp.eq.s32.totalorder %s15, 0
    %p42 = por %p40, %p41
    %s44 = sadd.s32 %s43, 1
    %p47 = scmp.eq.s32.totalorder %s9, 1
    %p48 = scmp.ne.s32.totalorder %s43, %s45
    %p49 = scmp.eq.s32.totalorder %s9, 0
    %p50 = por %p48, %p49
    %p51 = scmp.ne.s32.totalorder %s43, %s45
    %p52 = scmp.eq.s32.totalorder %s14, 1
    %p53 = por %p51, %p52
    %p54 = scmp.ne.s32.totalorder %s45, %s46
    %p55 = scmp.eq.s32.totalorder %s14, 0
    %p56 = por %p54, %p55
    %p57 = scmp.ne.s32.totalorder %s45, %s46
    %p58 = scmp.eq.s32.totalorder %s15, 1
    %p59 = por %p57, %p58
    %p61 = scmp.ne.s32.totalorder %s46, %s60
    %p62 = scmp.eq.s32.totalorder %s15, 0
    %p63 = por %p61, %p62
    %s65 = sadd.s32 %s64, 1
    %p68 = scmp.eq.s32.totalorder %s9, 1
    %p69 = scmp.ne.s32.totalorder %s64, %s66
    %p70 = scmp.eq.s32.totalorder %s9, 0
    %p71 = por %p69, %p70
    %p72 = scmp.ne.s32.totalorder %s64, %s66
    %p73 = scmp.eq.s32.totalorder %s14, 1
    %p74 = por %p72, %p73
    %p75 = scmp.ne.s32.totalorder %s66, %s67
    %p76 = scmp.eq.s32.totalorder %s14, 0
    %p77 = por %p75, %p76
    %p78 = scmp.ne.s32.totalorder %s66, %s67
    %p79 = scmp.eq.s32.totalorder %s15, 1
    %p80 = por %p78, %p79
    %p82 = scmp.ne.s32.totalorder %s67, %s81
    %p83 = scmp.eq.s32.totalorder %s15, 0
    %p84 = por %p82, %p83
    %s85 = ssub.s32 %s9, %s16
    %p86 = scmp.eq.s32.totalorder %s85, 0
    %s88 = sadd.s32 %s87, 1
    %s89 = scalar_select %p86, %s87, %s88
    %p92 = pneg %p86
    %p93 = scmp.eq.s32.totalorder %s9, 1
    %p94 = por %p92, %p93
    %p95 = scmp.ne.s32.totalorder %s87, %s90
    %p96 = scmp.eq.s32.totalorder %s9, 0
    %p97 = por %p95, %p96
    %p98 = scmp.ne.s32.totalorder %s87, %s90
    %p99 = scmp.eq.s32.totalorder %s14, 1
    %p100 = por %p98, %p99
    %p101 = scmp.ne.s32.totalorder %s90, %s91
    %p102 = scmp.eq.s32.totalorder %s14, 0
    %p103 = por %p101, %p102
    %p104 = scmp.ne.s32.totalorder %s90, %s91
    %p105 = scmp.eq.s32.totalorder %s15, 1
    %p106 = por %p104, %p105
    %p108 = scmp.ne.s32.totalorder %s91, %s107
    %p109 = scmp.eq.s32.totalorder %s15, 0
    %p110 = por %p108, %p109
    %p111 = scmp.le.s32.totalorder 1, %s9
    %p112 = scmp.lt.s32.totalorder %s9, 3
    %p113 = pnand %p111, %p112
    %p114 = pneg %p113
    // Predicated region
    $region9: #{osa_block_forward.5} parent=5 // pred_check
      _
    $region10: #{osa_block_forward.5} parent=5 // pred_check_branch
      %116 = sbr.rel (%p113) target = $region12
    $region11: #{osa_block_forward.5} parent=5 // pred_region
      %s117 = ssub.s32 %s9, 1
      // Predicated region
      $region13: #{osa_block_forward.5} parent=11 // pred_check
        %p118 = pneg %p56
      $region14: #{osa_block_forward.5} parent=11 // pred_check_branch
        %120 = sbr.rel (%p118) target = $region16
      $region15: #{osa_block_forward.5} parent=11 // pred_region
        _
      $region16: #{osa_block_forward.5} parent=11 // pred_fallthru
        _
      // Predicated region
      $region17: #{osa_block_forward.5} parent=11 // pred_check
        %p121 = pneg %p77
      $region18: #{osa_block_forward.5} parent=11 // pred_check_branch
        %123 = sbr.rel (%p121) target = $region20
      $region19: #{osa_block_forward.5} parent=11 // pred_region
        _
      $region20: #{osa_block_forward.5} parent=11 // pred_fallthru
        _
    $region12: #{osa_block_forward.5} parent=5 // pred_fallthru
      _
    %p124 = scmp.lt.s32.totalorder %s9, 2
    // Predicated region
    $region21: #{osa_block_forward.5} parent=5 // pred_check
      %p125 = pneg %p124
    $region22: #{osa_block_forward.5} parent=5 // pred_check_branch
      %127 = sbr.rel (%p125) target = $region24
    $region23: #{osa_block_forward.5} parent=5 // pred_region
      // Predicated region
      $region25: #{osa_block_forward.5} parent=23 // pred_check
        %p128 = pneg %p29
      $region26: #{osa_block_forward.5} parent=23 // pred_check_branch
        %130 = sbr.rel (%p128) target = $region28
      $region27: #{osa_block_forward.5} parent=23 // pred_region
        %p131 = scmp.lt.s32.totalorder %s9, 1
        %s132 = scalar_select %p131, %s9, 1
        %s133 = smul.addr %s132, 54
        %s134 = smul.addr %s133, 8
        %s135 = scalar_lea.vmem %s0, %s134
      $region28: #{osa_block_forward.5} parent=23 // pred_fallthru
        _
    $region24: #{osa_block_forward.5} parent=5 // pred_fallthru
      _
    %p136 = scmp.le.s32.totalorder 1, %s9
    %p137 = scmp.lt.s32.totalorder %s9, 3
    %p138 = pnand %p136, %p137
    %p139 = pneg %p138
    // Predicated region
    $region29: #{osa_block_forward.5} parent=5 // pred_check
      _
    $region30: #{osa_block_forward.5} parent=5 // pred_check_branch
      %141 = sbr.rel (%p138) target = $region32
    $region31: #{osa_block_forward.5} parent=5 // pred_region
      %s142 = ssub.s32 %s9, 1
      %p143 = scmp.lt.s32.totalorder %s14, 1
      %s144 = scalar_select %p143, %s14, 1
      %s145 = smul.addr %s144, 54
      %s146 = smul.addr %s145, 8
      %s147 = scalar_lea.vmem %s0, %s146
      %p148 = pneg %p35
      %p149 = pneg %p32
      %p150 = pneg %p56
      %p151 = pneg %p53
      %p152 = pneg %p77
      %p153 = pneg %p74
      %p154 = pneg %p103
      %p155 = pneg %p100
      %p156 = scmp.lt.s32.totalorder %s14, 1
      %s157 = scalar_select %p156, %s14, 1
      %s158 = smul.addr %s157, 32
      %s159 = smul.addr %s158, 8
      %s160 = scalar_lea.vmem %s3, %s159
      %p161 = scmp.lt.s32.totalorder %s14, 1
      %s162 = scalar_select %p161, %s14, 1
      %s163 = smul.addr %s162, 54
      %s164 = smul.addr %s163, 8
      %s165 = scalar_lea.vmem %s0, %s164
      %p166 = scmp.lt.s32.totalorder %s14, 1
      %s167 = scalar_select %p166, %s14, 1
      %s168 = smul.addr %s167, 32
      %s169 = smul.addr %s168, 8
      %s170 = scalar_lea.vmem %s3, %s169
      %v171 = vld [vmem:[%s165] sm:$0xff]
      %v172 = vld [vmem:[%s165 + $0x8] sm:$0xff]
      %v173 = vld [vmem:[%s165 + $0x10] sm:$0x3]
      %v174 = vld [vmem:[%s165 + $0x18] sm:$0xff]
      %v175 = vld [vmem:[%s165 + $0x20] sm:$0xff]
      %v176 = vld [vmem:[%s165 + $0x28] sm:$0x3]
      %v177 = vld [vmem:[%s165 + $0x30] sm:$0xff]
      %v178 = vld [vmem:[%s165 + $0x38] sm:$0xff]
      %v179 = vld [vmem:[%s165 + $0x40] sm:$0x3]
      %v180 = vld [vmem:[%s165 + $0x48] sm:$0xff]
      %v181 = vld [vmem:[%s165 + $0x50] sm:$0xff]
      %v182 = vld [vmem:[%s165 + $0x58] sm:$0x3]
      %v183 = vld [vmem:[%s165 + $0x60] sm:$0xff]
      %v184 = vld [vmem:[%s165 + $0x68] sm:$0xff]
      %v185 = vld [vmem:[%s165 + $0x70] sm:$0x3]
      %v186 = vld [vmem:[%s165 + $0x78] sm:$0xff]
      %v187 = vld [vmem:[%s165 + $0x80] sm:$0xff]
      %v188 = vld [vmem:[%s165 + $0x88] sm:$0x3]
      %v189 = vld [vmem:[%s165 + $0x90] sm:$0xff]
      %v190 = vld [vmem:[%s165 + $0x98] sm:$0xff]
      %v191 = vld [vmem:[%s165 + $0xa0] sm:$0x3]
      %v192 = vld [vmem:[%s165 + $0xa8] sm:$0xff]
      %v193 = vld [vmem:[%s165 + $0xb0] sm:$0xff]
      %v194 = vld [vmem:[%s165 + $0xb8] sm:$0x3]
      %v195 = vld [vmem:[%s165 + $0xc0] sm:$0xff]
      %v196 = vld [vmem:[%s165 + $0xc8] sm:$0xff]
      %v197 = vld [vmem:[%s165 + $0xd0] sm:$0x3]
      %v198 = vld [vmem:[%s165 + $0xd8] sm:$0xff]
      %v199 = vld [vmem:[%s165 + $0xe0] sm:$0xff]
      %v200 = vld [vmem:[%s165 + $0xe8] sm:$0x3]
      %v201 = vld [vmem:[%s165 + $0xf0] sm:$0xff]
      %v202 = vld [vmem:[%s165 + $0xf8] sm:$0xff]
      %v203 = vld [vmem:[%s165 + $0x100] sm:$0x3]
      %v204 = vld [vmem:[%s165 + $0x108] sm:$0xff]
      %v205 = vld [vmem:[%s165 + $0x110] sm:$0xff]
      %v206 = vld [vmem:[%s165 + $0x118] sm:$0x3]
      %v207 = vld [vmem:[%s165 + $0x120] sm:$0xff]
      %v208 = vld [vmem:[%s165 + $0x128] sm:$0xff]
      %v209 = vld [vmem:[%s165 + $0x130] sm:$0x3]
      %v210 = vld [vmem:[%s165 + $0x138] sm:$0xff]
      %v211 = vld [vmem:[%s165 + $0x140] sm:$0xff]
      %v212 = vld [vmem:[%s165 + $0x148] sm:$0x3]
      %v213 = vld [vmem:[%s165 + $0x150] sm:$0xff]
      %v214 = vld [vmem:[%s165 + $0x158] sm:$0xff]
      %v215 = vld [vmem:[%s165 + $0x160] sm:$0x3]
      %v216 = vld [vmem:[%s165 + $0x168] sm:$0xff]
      %v217 = vld [vmem:[%s165 + $0x170] sm:$0xff]
      %v218 = vld [vmem:[%s165 + $0x178] sm:$0x3]
      %v219 = vld [vmem:[%s165 + $0x180] sm:$0xff]
      %v220 = vld [vmem:[%s165 + $0x188] sm:$0xff]
      %v221 = vld [vmem:[%s165 + $0x190] sm:$0x3]
      %v222 = vld [vmem:[%s165 + $0x198] sm:$0xff]
      %v223 = vld [vmem:[%s165 + $0x1a0] sm:$0xff]
      %v224 = vld [vmem:[%s165 + $0x1a8] sm:$0x3]
      %v225 = vld [vmem:[%s1] sm:$0xff]
      %vm274 = vcmask 1046528
      %v275 = vrot.slane %v171, 1
      %v276 = vrot.slane %v172, 1
      %v277 = vsel %vm274, %v275, %v276
      %v278 = vrot.slane %v173, 1
      %v279 = vsel %vm274, %v276, %v278
      %v280 = vrot.slane %v174, 1
      %v281 = vrot.slane %v175, 1
      %v282 = vsel %vm274, %v280, %v281
      %v283 = vrot.slane %v176, 1
      %v284 = vsel %vm274, %v281, %v283
      %v285 = vrot.slane %v177, 1
      %v286 = vrot.slane %v178, 1
      %v287 = vsel %vm274, %v285, %v286
      %v288 = vrot.slane %v179, 1
      %v289 = vsel %vm274, %v286, %v288
      %v290 = vrot.slane %v180, 1
      %v291 = vrot.slane %v181, 1
      %v292 = vsel %vm274, %v290, %v291
      %v293 = vrot.slane %v182, 1
      %v294 = vsel %vm274, %v291, %v293
      %v295 = vrot.slane %v183, 1
      %v296 = vrot.slane %v184, 1
      %v297 = vsel %vm274, %v295, %v296
      %v298 = vrot.slane %v185, 1
      %v299 = vsel %vm274, %v296, %v298
      %v300 = vrot.slane %v186, 1
      %v301 = vrot.slane %v187, 1
      %v302 = vsel %vm274, %v300, %v301
      %v303 = vrot.slane %v188, 1
      %v304 = vsel %vm274, %v301, %v303
      %v305 = vrot.slane %v189, 1
      %v306 = vrot.slane %v190, 1
      %v307 = vsel %vm274, %v305, %v306
      %v308 = vrot.slane %v191, 1
      %v309 = vsel %vm274, %v306, %v308
      %v310 = vrot.slane %v192, 1
      %v311 = vrot.slane %v193, 1
      %v312 = vsel %vm274, %v310, %v311
      %v313 = vrot.slane %v194, 1
      %v314 = vsel %vm274, %v311, %v313
      %v315 = vrot.slane %v195, 1
      %v316 = vrot.slane %v196, 1
      %v317 = vsel %vm274, %v315, %v316
      %v318 = vrot.slane %v197, 1
      %v319 = vsel %vm274, %v316, %v318
      %v320 = vrot.slane %v198, 1
      %v321 = vrot.slane %v199, 1
      %v322 = vsel %vm274, %v320, %v321
      %v323 = vrot.slane %v200, 1
      %v324 = vsel %vm274, %v321, %v323
      %v325 = vrot.slane %v201, 1
      %v326 = vrot.slane %v202, 1
      %v327 = vsel %vm274, %v325, %v326
      %v328 = vrot.slane %v203, 1
      %v329 = vsel %vm274, %v326, %v328
      %v330 = vrot.slane %v204, 1
      %v331 = vrot.slane %v205, 1
      %v332 = vsel %vm274, %v330, %v331
      %v333 = vrot.slane %v206, 1
      %v334 = vsel %vm274, %v331, %v333
      %v335 = vrot.slane %v207, 1
      %v336 = vrot.slane %v208, 1
      %v337 = vsel %vm274, %v335, %v336
      %v338 = vrot.slane %v209, 1
      %v339 = vsel %vm274, %v336, %v338
      %v340 = vrot.slane %v210, 1
      %v341 = vrot.slane %v211, 1
      %v342 = vsel %vm274, %v340, %v341
      %v343 = vrot.slane %v212, 1
      %v344 = vsel %vm274, %v341, %v343
      %v345 = vrot.slane %v213, 1
      %v346 = vrot.slane %v214, 1
      %v347 = vsel %vm274, %v345, %v346
      %v348 = vrot.slane %v215, 1
      %v349 = vsel %vm274, %v346, %v348
      %v350 = vrot.slane %v216, 1
      %v351 = vrot.slane %v217, 1
      %v352 = vsel %vm274, %v350, %v351
      %v353 = vrot.slane %v218, 1
      %v354 = vsel %vm274, %v351, %v353
      %s355 = scalar_lea.vmem %s1, 8
      %v356 = vld [vmem:[%s355] sm:$0xff]
      %vm357 = vcmask 64512
      %v358 = vsel %vm357, %v277, 0
      %v360 = vsel %vm357, %v279, 0
      %v362 = vsel %vm357, %v282, 0
      %v364 = vsel %vm357, %v284, 0
      %v366 = vsel %vm357, %v287, 0
      %v368 = vsel %vm357, %v289, 0
      %v370 = vsel %vm357, %v292, 0
      %v372 = vsel %vm357, %v294, 0
      %v374 = vsel %vm357, %v297, 0
      %v376 = vsel %vm357, %v299, 0
      %v378 = vsel %vm357, %v302, 0
      %v380 = vsel %vm357, %v304, 0
      %v382 = vsel %vm357, %v307, 0
      %v384 = vsel %vm357, %v309, 0
      %v386 = vsel %vm357, %v312, 0
      %v388 = vsel %vm357, %v314, 0
      %v390 = vsel %vm357, %v317, 0
      %v392 = vsel %vm357, %v319, 0
      %v394 = vsel %vm357, %v322, 0
      %v396 = vsel %vm357, %v324, 0
      %v398 = vsel %vm357, %v327, 0
      %v400 = vsel %vm357, %v329, 0
      %v402 = vsel %vm357, %v332, 0
      %v404 = vsel %vm357, %v334, 0
      %v406 = vsel %vm357, %v337, 0
      %v408 = vsel %vm357, %v339, 0
      %v410 = vsel %vm357, %v342, 0
      %v412 = vsel %vm357, %v344, 0
      %v414 = vsel %vm357, %v347, 0
      %v416 = vsel %vm357, %v349, 0
      %v418 = vsel %vm357, %v352, 0
      %v420 = vsel %vm357, %v354, 0
      %422 = vmatprep.subr.mxu0 0.0
      %423 = vmatpush1.msra.mxu0 %v356
      %424 = vmatprep.subr.mxu0 0.0
      %425 = vmatpush1.msra.mxu0 0.0
      %426 = vmatprep.subr.mxu0 0.0
      %427 = vmatpush1.msra.mxu0 0.0
      %428 = vmatprep.subr.mxu0 0.0
      %429 = vmatpush1.msra.mxu0 0.0
      %430 = vmatprep.subr.mxu0 0.0
      %431 = vmatpush1.msra.mxu0 0.0
      %432 = vmatprep.subr.mxu0 0.0
      %433 = vmatpush1.msra.mxu0 0.0
      %434 = vmatprep.subr.mxu0 0.0
      %435 = vmatpush1.msra.mxu0 0.0
      %436 = vmatprep.subr.mxu0 0.0
      %437 = vmatpush1.msra.mxu0 0.0
      %438 = vmatprep.subr.mxu0 0.0
      %439 = vmatpush1.msra.mxu0 0.0
      %440 = vmatprep.subr.mxu0 0.0
      %441 = vmatpush1.msra.mxu0 0.0
      %442 = vmatprep.subr.mxu0 0.0
      %443 = vmatpush1.msra.mxu0 0.0
      %444 = vmatprep.subr.mxu0 0.0
      %445 = vmatpush1.msra.mxu0 0.0
      %446 = vmatprep.subr.mxu0 0.0
      %447 = vmatpush1.msra.mxu0 0.0
      %448 = vmatprep.subr.mxu0 0.0
      %449 = vmatpush1.msra.mxu0 0.0
      %450 = vmatprep.subr.mxu0 0.0
      %451 = vmatpush1.msra.mxu0 0.0
      %452 = vmatprep.subr.mxu0 0.0
      %453 = vmatpush1.msra.mxu0 0.0
      %454 = vmatprep.subr.mxu0 0.0
      %455 = vmatpush1.msra.mxu0 0.0
      %456 = vmatprep.subr.mxu0 0.0
      %457 = vmatpush1.msra.mxu0 0.0
      %458 = vmatprep.subr.mxu0 0.0
      %459 = vmatpush1.msra.mxu0 0.0
      %460 = vmatprep.subr.mxu0 0.0
      %461 = vmatpush1.msra.mxu0 0.0
      %462 = vmatprep.subr.mxu0 0.0
      %463 = vmatpush1.msra.mxu0 0.0
      %464 = vmatprep.subr.mxu0 0.0
      %465 = vmatpush1.msra.mxu0 0.0
      %466 = vmatprep.subr.mxu0 0.0
      %467 = vmatpush1.msra.mxu0 0.0
      %468 = vmatprep.subr.mxu0 0.0
      %469 = vmatpush1.msra.mxu0 0.0
      %470 = vmatprep.subr.mxu0 0.0
      %471 = vmatpush1.msra.mxu0 0.0
      %472 = vmatprep.subr.mxu0 0.0
      %473 = vmatpush1.msra.mxu0 0.0
      %474 = vmatprep.subr.mxu0 0.0
      %475 = vmatpush1.msra.mxu0 0.0
      %476 = vmatprep.subr.mxu0 0.0
      %477 = vmatpush1.msra.mxu0 0.0
      %478 = vmatprep.subr.mxu0 0.0
      %479 = vmatpush1.msra.mxu0 0.0
      %480 = vmatprep.subr.mxu0 0.0
      %481 = vmatpush1.msra.mxu0 0.0
      %482 = vmatprep.subr.mxu0 0.0
      %483 = vmatpush1.msra.mxu0 0.0
      %484 = vmatprep.subr.mxu0 0.0
      %485 = vmatpush1.msra.mxu0 0.0
      %486 = vmatprep.mubr.f32.mxu0 0.0
      %487 = vmatmul.mubr.f32.gmra.mrb[0].mxu0 %v358
      %v488 = vpop.f32.mrb[0].mxu0
      %v489 = vadd.f32 0.0, %v488
      %v490 = vpop.f32.mrb[0].mxu0
      %491 = vmatprep.mubr.f32.mxu0 0.0
      %492 = vmatmul.mubr.f32.gmra.mrb[0].mxu0 %v360
      %v493 = vpop.f32.mrb[0].mxu0
      %v494 = vadd.f32 0.0, %v493
      %v495 = vpop.f32.mrb[0].mxu0
      %496 = vmatprep.mubr.f32.mxu0 0.0
      %497 = vmatmul.mubr.f32.gmra.mrb[0].mxu0 %v362
      %v498 = vpop.f32.mrb[0].mxu0
      %v499 = vadd.f32 0.0, %v498
      %v500 = vpop.f32.mrb[0].mxu0
      %501 = vmatprep.mubr.f32.mxu0 0.0
      %502 = vmatmul.mubr.f32.gmra.mrb[0].mxu0 %v364
      %v503 = vpop.f32.mrb[0].mxu0
      %v504 = vadd.f32 0.0, %v503
      %v505 = vpop.f32.mrb[0].mxu0
      %506 = vmatprep.mubr.f32.mxu0 0.0
      %507 = vmatmul.mubr.f32.gmra.mrb[0].mxu0 %v366
      %v508 = vpop.f32.mrb[0].mxu0
      %v509 = vadd.f32 0.0, %v508
      %v510 = vpop.f32.mrb[0].mxu0
      %511 = vmatprep.mubr.f32.mxu0 0.0
      %512 = vmatmul.mubr.f32.gmra.mrb[0].mxu0 %v368
      %v513 = vpop.f32.mrb[0].mxu0
      %v514 = vadd.f32 0.0, %v513
      %v515 = vpop.f32.mrb[0].mxu0
      %516 = vmatprep.mubr.f32.mxu0 0.0
      %517 = vmatmul.mubr.f32.gmra.mrb[0].mxu0 %v370
      %v518 = vpop.f32.mrb[0].mxu0
      %v519 = vadd.f32 0.0, %v518
      %v520 = vpop.f32.mrb[0].mxu0
      %521 = vmatprep.mubr.f32.mxu0 0.0
      %522 = vmatmul.mubr.f32.gmra.mrb[0].mxu0 %v372
      %v523 = vpop.f32.mrb[0].mxu0
      %v524 = vadd.f32 0.0, %v523
      %v525 = vpop.f32.mrb[0].mxu0
      %526 = vmatprep.mubr.f32.mxu0 0.0
      %527 = vmatmul.mubr.f32.gmra.mrb[0].mxu0 %v374
      %v528 = vpop.f32.mrb[0].mxu0
      %v529 = vadd.f32 0.0, %v528
      %v530 = vpop.f32.mrb[0].mxu0
      %531 = vmatprep.mubr.f32.mxu0 0.0
      %532 = vmatmul.mubr.f32.gmra.mrb[0].mxu0 %v376
      %v533 = vpop.f32.mrb[0].mxu0
      %v534 = vadd.f32 0.0, %v533
      %v535 = vpop.f32.mrb[0].mxu0
      %536 = vmatprep.mubr.f32.mxu0 0.0
      %537 = vmatmul.mubr.f32.gmra.mrb[0].mxu0 %v378
      %v538 = vpop.f32.mrb[0].mxu0
      %v539 = vadd.f32 0.0, %v538
      %v540 = vpop.f32.mrb[0].mxu0
      %541 = vmatprep.mubr.f32.mxu0 0.0
      %542 = vmatmul.mubr.f32.gmra.mrb[0].mxu0 %v380
      %v543 = vpop.f32.mrb[0].mxu0
      %v544 = vadd.f32 0.0, %v543
      %v545 = vpop.f32.mrb[0].mxu0
      %546 = vmatprep.mubr.f32.mxu0 0.0
      %547 = vmatmul.mubr.f32.gmra.mrb[0].mxu0 %v382
      %v548 = vpop.f32.mrb[0].mxu0
      %v549 = vadd.f32 0.0, %v548
      %v550 = vpop.f32.mrb[0].mxu0
      %551 = vmatprep.mubr.f32.mxu0 0.0
      %552 = vmatmul.mubr.f32.gmra.mrb[0].mxu0 %v384
      %v553 = vpop.f32.mrb[0].mxu0
      %v554 = vadd.f32 0.0, %v553
      %v555 = vpop.f32.mrb[0].mxu0
      %556 = vmatprep.mubr.f32.mxu0 0.0
      %557 = vmatmul.mubr.f32.gmra.mrb[0].mxu0 %v386
      %v558 = vpop.f32.mrb[0].mxu0
      %v559 = vadd.f32 0.0, %v558
      %v560 = vpop.f32.mrb[0].mxu0
      %561 = vmatprep.mubr.f32.mxu0 0.0
      %562 = vmatmul.mubr.f32.gmra.mrb[0].mxu0 %v388
      %v563 = vpop.f32.mrb[0].mxu0
      %v564 = vadd.f32 0.0, %v563
      %v565 = vpop.f32.mrb[0].mxu0
      %566 = vmatprep.mubr.f32.mxu0 0.0
      %567 = vmatmul.mubr.f32.gmra.mrb[0].mxu0 %v390
      %v568 = vpop.f32.mrb[0].mxu0
      %v569 = vadd.f32 0.0, %v568
      %v570 = vpop.f32.mrb[0].mxu0
      %571 = vmatprep.mubr.f32.mxu0 0.0
      %572 = vmatmul.mubr.f32.gmra.mrb[0].mxu0 %v392
      %v573 = vpop.f32.mrb[0].mxu0
      %v574 = vadd.f32 0.0, %v573
      %v575 = vpop.f32.mrb[0].mxu0
      %576 = vmatprep.mubr.f32.mxu0 0.0
      %577 = vmatmul.mubr.f32.gmra.mrb[0].mxu0 %v394
      %v578 = vpop.f32.mrb[0].mxu0
      %v579 = vadd.f32 0.0, %v578
      %v580 = vpop.f32.mrb[0].mxu0
      %581 = vmatprep.mubr.f32.mxu0 0.0
      %582 = vmatmul.mubr.f32.gmra.mrb[0].mxu0 %v396
      %v583 = vpop.f32.mrb[0].mxu0
      %v584 = vadd.f32 0.0, %v583
      %v585 = vpop.f32.mrb[0].mxu0
      %586 = vmatprep.mubr.f32.mxu0 0.0
      %587 = vmatmul.mubr.f32.gmra.mrb[0].mxu0 %v398
      %v588 = vpop.f32.mrb[0].mxu0
      %v589 = vadd.f32 0.0, %v588
      %v590 = vpop.f32.mrb[0].mxu0
      %591 = vmatprep.mubr.f32.mxu0 0.0
      %592 = vmatmul.mubr.f32.gmra.mrb[0].mxu0 %v400
      %v593 = vpop.f32.mrb[0].mxu0
      %v594 = vadd.f32 0.0, %v593
      %v595 = vpop.f32.mrb[0].mxu0
      %596 = vmatprep.mubr.f32.mxu0 0.0
      %597 = vmatmul.mubr.f32.gmra.mrb[0].mxu0 %v402
      %v598 = vpop.f32.mrb[0].mxu0
      %v599 = vadd.f32 0.0, %v598
      %v600 = vpop.f32.mrb[0].mxu0
      %601 = vmatprep.mubr.f32.mxu0 0.0
      %602 = vmatmul.mubr.f32.gmra.mrb[0].mxu0 %v404
      %v603 = vpop.f32.mrb[0].mxu0
      %v604 = vadd.f32 0.0, %v603
      %v605 = vpop.f32.mrb[0].mxu0
      %606 = vmatprep.mubr.f32.mxu0 0.0
      %607 = vmatmul.mubr.f32.gmra.mrb[0].mxu0 %v406
      %v608 = vpop.f32.mrb[0].mxu0
      %v609 = vadd.f32 0.0, %v608
      %v610 = vpop.f32.mrb[0].mxu0
      %611 = vmatprep.mubr.f32.mxu0 0.0
      %612 = vmatmul.mubr.f32.gmra.mrb[0].mxu0 %v408
      %v613 = vpop.f32.mrb[0].mxu0
      %v614 = vadd.f32 0.0, %v613
      %v615 = vpop.f32.mrb[0].mxu0
      %616 = vmatprep.mubr.f32.mxu0 0.0
      %617 = vmatmul.mubr.f32.gmra.mrb[0].mxu0 %v410
      %v618 = vpop.f32.mrb[0].mxu0
      %v619 = vadd.f32 0.0, %v618
      %v620 = vpop.f32.mrb[0].mxu0
      %621 = vmatprep.mubr.f32.mxu0 0.0
      %622 = vmatmul.mubr.f32.gmra.mrb[0].mxu0 %v412
      %v623 = vpop.f32.mrb[0].mxu0
      %v624 = vadd.f32 0.0, %v623
      %v625 = vpop.f32.mrb[0].mxu0
      %626 = vmatprep.mubr.f32.mxu0 0.0
      %627 = vmatmul.mubr.f32.gmra.mrb[0].mxu0 %v414
      %v628 = vpop.f32.mrb[0].mxu0
      %v629 = vadd.f32 0.0, %v628
      %v630 = vpop.f32.mrb[0].mxu0
      %631 = vmatprep.mubr.f32.mxu0 0.0
      %632 = vmatmul.mubr.f32.gmra.mrb[0].mxu0 %v416
      %v633 = vpop.f32.mrb[0].mxu0
      %v634 = vadd.f32 0.0, %v633
      %v635 = vpop.f32.mrb[0].mxu0
      %636 = vmatprep.mubr.f32.mxu0 0.0
      %637 = vmatmul.mubr.f32.gmra.mrb[0].mxu0 %v418
      %v638 = vpop.f32.mrb[0].mxu0
      %v639 = vadd.f32 0.0, %v638
      %v640 = vpop.f32.mrb[0].mxu0
      %641 = vmatprep.mubr.f32.mxu0 0.0
      %642 = vmatmul.mubr.f32.gmra.mrb[0].mxu0 %v420
      %v643 = vpop.f32.mrb[0].mxu0
      %v644 = vadd.f32 0.0, %v643
      %v645 = vpop.f32.mrb[0].mxu0
      %646 = vdwg.mxu0
      %v647 = vsel %vm357, %v171, 0
      %v649 = vsel %vm357, %v172, 0
      %v651 = vsel %vm357, %v174, 0
      %v653 = vsel %vm357, %v175, 0
      %v655 = vsel %vm357, %v177, 0
      %v657 = vsel %vm357, %v178, 0
      %v659 = vsel %vm357, %v180, 0
      %v661 = vsel %vm357, %v181, 0
      %v663 = vsel %vm357, %v183, 0
      %v665 = vsel %vm357, %v184, 0
      %v667 = vsel %vm357, %v186, 0
      %v669 = vsel %vm357, %v187, 0
      %v671 = vsel %vm357, %v189, 0
      %v673 = vsel %vm357, %v190, 0
      %v675 = vsel %vm357, %v192, 0
      %v677 = vsel %vm357, %v193, 0
      %v679 = vsel %vm357, %v195, 0
      %v681 = vsel %vm357, %v196, 0
      %v683 = vsel %vm357, %v198, 0
      %v685 = vsel %vm357, %v199, 0
      %v687 = vsel %vm357, %v201, 0
      %v689 = vsel %vm357, %v202, 0
      %v691 = vsel %vm357, %v204, 0
      %v693 = vsel %vm357, %v205, 0
      %v695 = vsel %vm357, %v207, 0
      %v697 = vsel %vm357, %v208, 0
      %v699 = vsel %vm357, %v210, 0
      %v701 = vsel %vm357, %v211, 0
      %v703 = vsel %vm357, %v213, 0
      %v705 = vsel %vm357, %v214, 0
      %v707 = vsel %vm357, %v216, 0
      %v709 = vsel %vm357, %v217, 0
      %711 = vmatprep.subr.mxu0 0.0
      %712 = vmatpush1.msra.mxu0 %v225
      %713 = vmatprep.subr.mxu0 0.0
      %714 = vmatpush1.msra.mxu0 0.0
      %715 = vmatprep.subr.mxu0 0.0
      %716 = vmatpush1.msra.mxu0 0.0
      %717 = vmatprep.subr.mxu0 0.0
      %718 = vmatpush1.msra.mxu0 0.0
      %719 = vmatprep.subr.mxu0 0.0
      %720 = vmatpush1.msra.mxu0 0.0
      %721 = vmatprep.subr.mxu0 0.0
      %722 = vmatpush1.msra.mxu0 0.0
      %723 = vmatprep.subr.mxu0 0.0
      %724 = vmatpush1.msra.mxu0 0.0
      %725 = vmatprep.subr.mxu0 0.0
      %726 = vmatpush1.msra.mxu0 0.0
      %727 = vmatprep.subr.mxu0 0.0
      %728 = vmatpush1.msra.mxu0 0.0
      %729 = vmatprep.subr.mxu0 0.0
      %730 = vmatpush1.msra.mxu0 0.0
      %731 = vmatprep.subr.mxu0 0.0
      %732 = vmatpush1.msra.mxu0 0.0
      %733 = vmatprep.subr.mxu0 0.0
      %734 = vmatpush1.msra.mxu0 0.0
      %735 = vmatprep.subr.mxu0 0.0
      %736 = vmatpush1.msra.mxu0 0.0
      %737 = vmatprep.subr.mxu0 0.0
      %738 = vmatpush1.msra.mxu0 0.0
      %739 = vmatprep.subr.mxu0 0.0
      %740 = vmatpush1.msra.mxu0 0.0
      %741 = vmatprep.subr.mxu0 0.0
      %742 = vmatpush1.msra.mxu0 0.0
      %743 = vmatprep.subr.mxu0 0.0
      %744 = vmatpush1.msra.mxu0 0.0
      %745 = vmatprep.subr.mxu0 0.0
      %746 = vmatpush1.msra.mxu0 0.0
      %747 = vmatprep.subr.mxu0 0.0
      %748 = vmatpush1.msra.mxu0 0.0
      %749 = vmatprep.subr.mxu0 0.0
      %750 = vmatpush1.msra.mxu0 0.0
      %751 = vmatprep.subr.mxu0 0.0
      %752 = vmatpush1.msra.mxu0 0.0
      %753 = vmatprep.subr.mxu0 0.0
      %754 = vmatpush1.msra.mxu0 0.0
      %755 = vmatprep.subr.mxu0 0.0
      %756 = vmatpush1.msra.mxu0 0.0
      %757 = vmatprep.subr.mxu0 0.0
      %758 = vmatpush1.msra.mxu0 0.0
      %759 = vmatprep.subr.mxu0 0.0
      %760 = vmatpush1.msra.mxu0 0.0
      %761 = vmatprep.subr.mxu0 0.0
      %762 = vmatpush1.msra.mxu0 0.0
      %763 = vmatprep.subr.mxu0 0.0
      %764 = vmatpush1.msra.mxu0 0.0
      %765 = vmatprep.subr.mxu0 0.0
      %766 = vmatpush1.msra.mxu0 0.0
      %767 = vmatprep.subr.mxu0 0.0
      %768 = vmatpush1.msra.mxu0 0.0
      %769 = vmatprep.subr.mxu0 0.0
      %770 = vmatpush1.msra.mxu0 0.0
      %771 = vmatprep.subr.mxu0 0.0
      %772 = vmatpush1.msra.mxu0 0.0
      %773 = vmatprep.subr.mxu0 0.0
      %774 = vmatpush1.msra.mxu0 0.0
      %775 = vmatprep.mubr.f32.mxu0 0.0
      %776 = vmatmul.mubr.f32.gmra.mrb[0].mxu0 %v647
      %v777 = vpop.f32.mrb[0].mxu0
      %v778 = vadd.f32 %v489, %v777
      %v779 = vpop.f32.mrb[0].mxu0
      %780 = vmatprep.mubr.f32.mxu0 0.0
      %781 = vmatmul.mubr.f32.gmra.mrb[0].mxu0 %v649
      %v782 = vpop.f32.mrb[0].mxu0
      %v783 = vadd.f32 %v494, %v782
      %v784 = vpop.f32.mrb[0].mxu0
      %785 = vmatprep.mubr.f32.mxu0 0.0
      %786 = vmatmul.mubr.f32.gmra.mrb[0].mxu0 %v651
      %v787 = vpop.f32.mrb[0].mxu0
      %v788 = vadd.f32 %v499, %v787
      %v789 = vpop.f32.mrb[0].mxu0
      %790 = vmatprep.mubr.f32.mxu0 0.0
      %791 = vmatmul.mubr.f32.gmra.mrb[0].mxu0 %v653
      %v792 = vpop.f32.mrb[0].mxu0
      %v793 = vadd.f32 %v504, %v792
      %v794 = vpop.f32.mrb[0].mxu0
      %795 = vmatprep.mubr.f32.mxu0 0.0
      %796 = vmatmul.mubr.f32.gmra.mrb[0].mxu0 %v655
      %v797 = vpop.f32.mrb[0].mxu0
      %v798 = vadd.f32 %v509, %v797
      %v799 = vpop.f32.mrb[0].mxu0
      %800 = vmatprep.mubr.f32.mxu0 0.0
      %801 = vmatmul.mubr.f32.gmra.mrb[0].mxu0 %v657
      %v802 = vpop.f32.mrb[0].mxu0
      %v803 = vadd.f32 %v514, %v802
      %v804 = vpop.f32.mrb[0].mxu0
      %805 = vmatprep.mubr.f32.mxu0 0.0
      %806 = vmatmul.mubr.f32.gmra.mrb[0].mxu0 %v659
      %v807 = vpop.f32.mrb[0].mxu0
      %v808 = vadd.f32 %v519, %v807
      %v809 = vpop.f32.mrb[0].mxu0
      %810 = vmatprep.mubr.f32.mxu0 0.0
      %811 = vmatmul.mubr.f32.gmra.mrb[0].mxu0 %v661
      %v812 = vpop.f32.mrb[0].mxu0
      %v813 = vadd.f32 %v524, %v812
      %v814 = vpop.f32.mrb[0].mxu0
      %815 = vmatprep.mubr.f32.mxu0 0.0
      %816 = vmatmul.mubr.f32.gmra.mrb[0].mxu0 %v663
      %v817 = vpop.f32.mrb[0].mxu0
      %v818 = vadd.f32 %v529, %v817
      %v819 = vpop.f32.mrb[0].mxu0
      %820 = vmatprep.mubr.f32.mxu0 0.0
      %821 = vmatmul.mubr.f32.gmra.mrb[0].mxu0 %v665
      %v822 = vpop.f32.mrb[0].mxu0
      %v823 = vadd.f32 %v534, %v822
      %v824 = vpop.f32.mrb[0].mxu0
      %825 = vmatprep.mubr.f32.mxu0 0.0
      %826 = vmatmul.mubr.f32.gmra.mrb[0].mxu0 %v667
      %v827 = vpop.f32.mrb[0].mxu0
      %v828 = vadd.f32 %v539, %v827
      %v829 = vpop.f32.mrb[0].mxu0
      %830 = vmatprep.mubr.f32.mxu0 0.0
      %831 = vmatmul.mubr.f32.gmra.mrb[0].mxu0 %v669
      %v832 = vpop.f32.mrb[0].mxu0
      %v833 = vadd.f32 %v544, %v832
      %v834 = vpop.f32.mrb[0].mxu0
      %835 = vmatprep.mubr.f32.mxu0 0.0
      %836 = vmatmul.mubr.f32.gmra.mrb[0].mxu0 %v671
      %v837 = vpop.f32.mrb[0].mxu0
      %v838 = vadd.f32 %v549, %v837
      %v839 = vpop.f32.mrb[0].mxu0
      %840 = vmatprep.mubr.f32.mxu0 0.0
      %841 = vmatmul.mubr.f32.gmra.mrb[0].mxu0 %v673
      %v842 = vpop.f32.mrb[0].mxu0
      %v843 = vadd.f32 %v554, %v842
      %v844 = vpop.f32.mrb[0].mxu0
      %845 = vmatprep.mubr.f32.mxu0 0.0
      %846 = vmatmul.mubr.f32.gmra.mrb[0].mxu0 %v675
      %v847 = vpop.f32.mrb[0].mxu0
      %v848 = vadd.f32 %v559, %v847
      %v849 = vpop.f32.mrb[0].mxu0
      %850 = vmatprep.mubr.f32.mxu0 0.0
      %851 = vmatmul.mubr.f32.gmra.mrb[0].mxu0 %v677
      %v852 = vpop.f32.mrb[0].mxu0
      %v853 = vadd.f32 %v564, %v852
      %v854 = vpop.f32.mrb[0].mxu0
      %855 = vmatprep.mubr.f32.mxu0 0.0
      %856 = vmatmul.mubr.f32.gmra.mrb[0].mxu0 %v679
      %v857 = vpop.f32.mrb[0].mxu0
      %v858 = vadd.f32 %v569, %v857
      %v859 = vpop.f32.mrb[0].mxu0
      %860 = vmatprep.mubr.f32.mxu0 0.0
      %861 = vmatmul.mubr.f32.gmra.mrb[0].mxu0 %v681
      %v862 = vpop.f32.mrb[0].mxu0
      %v863 = vadd.f32 %v574, %v862
      %v864 = vpop.f32.mrb[0].mxu0
      %865 = vmatprep.mubr.f32.mxu0 0.0
      %866 = vmatmul.mubr.f32.gmra.mrb[0].mxu0 %v683
      %v867 = vpop.f32.mrb[0].mxu0
      %v868 = vadd.f32 %v579, %v867
      %v869 = vpop.f32.mrb[0].mxu0
      %870 = vmatprep.mubr.f32.mxu0 0.0
      %871 = vmatmul.mubr.f32.gmra.mrb[0].mxu0 %v685
      %v872 = vpop.f32.mrb[0].mxu0
      %v873 = vadd.f32 %v584, %v872
      %v874 = vpop.f32.mrb[0].mxu0
      %875 = vmatprep.mubr.f32.mxu0 0.0
      %876 = vmatmul.mubr.f32.gmra.mrb[0].mxu0 %v687
      %v877 = vpop.f32.mrb[0].mxu0
      %v878 = vadd.f32 %v589, %v877
      %v879 = vpop.f32.mrb[0].mxu0
      %880 = vmatprep.mubr.f32.mxu0 0.0
      %881 = vmatmul.mubr.f32.gmra.mrb[0].mxu0 %v689
      %v882 = vpop.f32.mrb[0].mxu0
      %v883 = vadd.f32 %v594, %v882
      %v884 = vpop.f32.mrb[0].mxu0
      %885 = vmatprep.mubr.f32.mxu0 0.0
      %886 = vmatmul.mubr.f32.gmra.mrb[0].mxu0 %v691
      %v887 = vpop.f32.mrb[0].mxu0
      %v888 = vadd.f32 %v599, %v887
      %v889 = vpop.f32.mrb[0].mxu0
      %890 = vmatprep.mubr.f32.mxu0 0.0
      %891 = vmatmul.mubr.f32.gmra.mrb[0].mxu0 %v693
      %v892 = vpop.f32.mrb[0].mxu0
      %v893 = vadd.f32 %v604, %v892
      %v894 = vpop.f32.mrb[0].mxu0
      %895 = vmatprep.mubr.f32.mxu0 0.0
      %896 = vmatmul.mubr.f32.gmra.mrb[0].mxu0 %v695
      %v897 = vpop.f32.mrb[0].mxu0
      %v898 = vadd.f32 %v609, %v897
      %v899 = vpop.f32.mrb[0].mxu0
      %900 = vmatprep.mubr.f32.mxu0 0.0
      %901 = vmatmul.mubr.f32.gmra.mrb[0].mxu0 %v697
      %v902 = vpop.f32.mrb[0].mxu0
      %v903 = vadd.f32 %v614, %v902
      %v904 = vpop.f32.mrb[0].mxu0
      %905 = vmatprep.mubr.f32.mxu0 0.0
      %906 = vmatmul.mubr.f32.gmra.mrb[0].mxu0 %v699
      %v907 = vpop.f32.mrb[0].mxu0
      %v908 = vadd.f32 %v619, %v907
      %v909 = vpop.f32.mrb[0].mxu0
      %910 = vmatprep.mubr.f32.mxu0 0.0
      %911 = vmatmul.mubr.f32.gmra.mrb[0].mxu0 %v701
      %v912 = vpop.f32.mrb[0].mxu0
      %v913 = vadd.f32 %v624, %v912
      %v914 = vpop.f32.mrb[0].mxu0
      %915 = vmatprep.mubr.f32.mxu0 0.0
      %916 = vmatmul.mubr.f32.gmra.mrb[0].mxu0 %v703
      %v917 = vpop.f32.mrb[0].mxu0
      %v918 = vadd.f32 %v629, %v917
      %v919 = vpop.f32.mrb[0].mxu0
      %920 = vmatprep.mubr.f32.mxu0 0.0
      %921 = vmatmul.mubr.f32.gmra.mrb[0].mxu0 %v705
      %v922 = vpop.f32.mrb[0].mxu0
      %v923 = vadd.f32 %v634, %v922
      %v924 = vpop.f32.mrb[0].mxu0
      %925 = vmatprep.mubr.f32.mxu0 0.0
      %926 = vmatmul.mubr.f32.gmra.mrb[0].mxu0 %v707
      %v927 = vpop.f32.mrb[0].mxu0
      %v928 = vadd.f32 %v639, %v927
      %v929 = vpop.f32.mrb[0].mxu0
      %930 = vmatprep.mubr.f32.mxu0 0.0
      %931 = vmatmul.mubr.f32.gmra.mrb[0].mxu0 %v709
      %v932 = vpop.f32.mrb[0].mxu0
      %v933 = vadd.f32 %v644, %v932
      %v934 = vpop.f32.mrb[0].mxu0
      %935 = vdwg.mxu0
      %vm936 = vcmask 1045504
      %v937 = vrot.slane %v171, 2
      %v938 = vrot.slane %v172, 2
      %v939 = vsel %vm936, %v937, %v938
      %v940 = vrot.slane %v173, 2
      %v941 = vsel %vm936, %v938, %v940
      %v942 = vrot.slane %v174, 2
      %v943 = vrot.slane %v175, 2
      %v944 = vsel %vm936, %v942, %v943
      %v945 = vrot.slane %v176, 2
      %v946 = vsel %vm936, %v943, %v945
      %v947 = vrot.slane %v177, 2
      %v948 = vrot.slane %v178, 2
      %v949 = vsel %vm936, %v947, %v948
      %v950 = vrot.slane %v179, 2
      %v951 = vsel %vm936, %v948, %v950
      %v952 = vrot.slane %v180, 2
      %v953 = vrot.slane %v181, 2
      %v954 = vsel %vm936, %v952, %v953
      %v955 = vrot.slane %v182, 2
      %v956 = vsel %vm936, %v953, %v955
      %v957 = vrot.slane %v183, 2
      %v958 = vrot.slane %v184, 2
      %v959 = vsel %vm936, %v957, %v958
      %v960 = vrot.slane %v185, 2
      %v961 = vsel %vm936, %v958, %v960
      %v962 = vrot.slane %v186, 2
      %v963 = vrot.slane %v187, 2
      %v964 = vsel %vm936, %v962, %v963
      %v965 = vrot.slane %v188, 2
      %v966 = vsel %vm936, %v963, %v965
      %v967 = vrot.slane %v189, 2
      %v968 = vrot.slane %v190, 2
      %v969 = vsel %vm936, %v967, %v968
      %v970 = vrot.slane %v191, 2
      %v971 = vsel %vm936, %v968, %v970
      %v972 = vrot.slane %v192, 2
      %v973 = vrot.slane %v193, 2
      %v974 = vsel %vm936, %v972, %v973
      %v975 = vrot.slane %v194, 2
      %v976 = vsel %vm936, %v973, %v975
      %v977 = vrot.slane %v195, 2
      %v978 = vrot.slane %v196, 2
      %v979 = vsel %vm936, %v977, %v978
      %v980 = vrot.slane %v197, 2
      %v981 = vsel %vm936, %v978, %v980
      %v982 = vrot.slane %v198, 2
      %v983 = vrot.slane %v199, 2
      %v984 = vsel %vm936, %v982, %v983
      %v985 = vrot.slane %v200, 2
      %v986 = vsel %vm936, %v983, %v985
      %v987 = vrot.slane %v201, 2
      %v988 = vrot.slane %v202, 2
      %v989 = vsel %vm936, %v987, %v988
      %v990 = vrot.slane %v203, 2
      %v991 = vsel %vm936, %v988, %v990
      %v992 = vrot.slane %v204, 2
      %v993 = vrot.slane %v205, 2
      %v994 = vsel %vm936, %v992, %v993
      %v995 = vrot.slane %v206, 2
      %v996 = vsel %vm936, %v993, %v995
      %v997 = vrot.slane %v207, 2
      %v998 = vrot.slane %v208, 2
      %v999 = vsel %vm936, %v997, %v998
      %v1000 = vrot.slane %v209, 2
      %v1001 = vsel %vm936, %v998, %v1000
      %v1002 = vrot.slane %v210, 2
      %v1003 = vrot.slane %v211, 2
      %v1004 = vsel %vm936, %v1002, %v1003
      %v1005 = vrot.slane %v212, 2
      %v1006 = vsel %vm936, %v1003, %v1005
      %v1007 = vrot.slane %v213, 2
      %v1008 = vrot.slane %v214, 2
      %v1009 = vsel %vm936, %v1007, %v1008
      %v1010 = vrot.slane %v215, 2
      %v1011 = vsel %vm936, %v1008, %v1010
      %v1012 = vrot.slane %v216, 2
      %v1013 = vrot.slane %v217, 2
      %v1014 = vsel %vm936, %v1012, %v1013
      %v1015 = vrot.slane %v218, 2
      %v1016 = vsel %vm936, %v1013, %v1015
      %s1017 = scalar_lea.vmem %s1, 16
      %v1018 = vld [vmem:[%s1017] sm:$0xff]
      %v1019 = vsel %vm357, %v939, 0
      %v1021 = vsel %vm357, %v941, 0
      %v1023 = vsel %vm357, %v944, 0
      %v1025 = vsel %vm357, %v946, 0
      %v1027 = vsel %vm357, %v949, 0
      %v1029 = vsel %vm357, %v951, 0
      %v1031 = vsel %vm357, %v954, 0
      %v1033 = vsel %vm357, %v956, 0
      %v1035 = vsel %vm357, %v959, 0
      %v1037 = vsel %vm357, %v961, 0
      %v1039 = vsel %vm357, %v964, 0
      %v1041 = vsel %vm357, %v966, 0
      %v1043 = vsel %vm357, %v969, 0
      %v1045 = vsel %vm357, %v971, 0
      %v1047 = vsel %vm357, %v974, 0
      %v1049 = vsel %vm357, %v976, 0
      %v1051 = vsel %vm357, %v979, 0
      %v1053 = vsel %vm357, %v981, 0
      %v1055 = vsel %vm357, %v984, 0
      %v1057 = vsel %vm357, %v986, 0
      %v1059 = vsel %vm357, %v989, 0
      %v1061 = vsel %vm357, %v991, 0
      %v1063 = vsel %vm357, %v994, 0
      %v1065 = vsel %vm357, %v996, 0
      %v1067 = vsel %vm357, %v999, 0
      %v1069 = vsel %vm357, %v1001, 0
      %v1071 = vsel %vm357, %v1004, 0
      %v1073 = vsel %vm357, %v1006, 0
      %v1075 = vsel %vm357, %v1009, 0
      %v1077 = vsel %vm357, %v1011, 0
      %v1079 = vsel %vm357, %v1014, 0
      %v1081 = vsel %vm357, %v1016, 0
      %1083 = vmatprep.subr.mxu0 0.0
      %1084 = vmatpush1.msra.mxu0 %v1018
      %1085 = vmatprep.subr.mxu0 0.0
      %1086 = vmatpush1.msra.mxu0 0.0
      %1087 = vmatprep.subr.mxu0 0.0
      %1088 = vmatpush1.msra.mxu0 0.0
      %1089 = vmatprep.subr.mxu0 0.0
      %1090 = vmatpush1.msra.mxu0 0.0
      %1091 = vmatprep.subr.mxu0 0.0
      %1092 = vmatpush1.msra.mxu0 0.0
      %1093 = vmatprep.subr.mxu0 0.0
      %1094 = vmatpush1.msra.mxu0 0.0
      %1095 = vmatprep.subr.mxu0 0.0
      %1096 = vmatpush1.msra.mxu0 0.0
      %1097 = vmatprep.subr.mxu0 0.0
      %1098 = vmatpush1.msra.mxu0 0.0
      %1099 = vmatprep.subr.mxu0 0.0
      %1100 = vmatpush1.msra.mxu0 0.0
      %1101 = vmatprep.subr.mxu0 0.0
      %1102 = vmatpush1.msra.mxu0 0.0
      %1103 = vmatprep.subr.mxu0 0.0
      %1104 = vmatpush1.msra.mxu0 0.0
      %1105 = vmatprep.subr.mxu0 0.0
      %1106 = vmatpush1.msra.mxu0 0.0
      %1107 = vmatprep.subr.mxu0 0.0
      %1108 = vmatpush1.msra.mxu0 0.0
      %1109 = vmatprep.subr.mxu0 0.0
      %1110 = vmatpush1.msra.mxu0 0.0
      %1111 = vmatprep.subr.mxu0 0.0
      %1112 = vmatpush1.msra.mxu0 0.0
      %1113 = vmatprep.subr.mxu0 0.0
      %1114 = vmatpush1.msra.mxu0 0.0
      %1115 = vmatprep.subr.mxu0 0.0
      %1116 = vmatpush1.msra.mxu0 0.0
      %1117 = vmatprep.subr.mxu0 0.0
      %1118 = vmatpush1.msra.mxu0 0.0
      %1119 = vmatprep.subr.mxu0 0.0
      %1120 = vmatpush1.msra.mxu0 0.0
      %1121 = vmatprep.subr.mxu0 0.0
      %1122 = vmatpush1.msra.mxu0 0.0
      %1123 = vmatprep.subr.mxu0 0.0
      %1124 = vmatpush1.msra.mxu0 0.0
      %1125 = vmatprep.subr.mxu0 0.0
      %1126 = vmatpush1.msra.mxu0 0.0
      %1127 = vmatprep.subr.mxu0 0.0
      %1128 = vmatpush1.msra.mxu0 0.0
      %1129 = vmatprep.subr.mxu0 0.0
      %1130 = vmatpush1.msra.mxu0 0.0
      %1131 = vmatprep.subr.mxu0 0.0
      %1132 = vmatpush1.msra.mxu0 0.0
      %1133 = vmatprep.subr.mxu0 0.0
      %1134 = vmatpush1.msra.mxu0 0.0
      %1135 = vmatprep.subr.mxu0 0.0
      %1136 = vmatpush1.msra.mxu0 0.0
      %1137 = vmatprep.subr.mxu0 0.0
      %1138 = vmatpush1.msra.mxu0 0.0
      %1139 = vmatprep.subr.mxu0 0.0
      %1140 = vmatpush1.msra.mxu0 0.0
      %1141 = vmatprep.subr.mxu0 0.0
      %1142 = vmatpush1.msra.mxu0 0.0
      %1143 = vmatprep.subr.mxu0 0.0
      %1144 = vmatpush1.msra.mxu0 0.0
      %1145 = vmatprep.subr.mxu0 0.0
      %1146 = vmatpush1.msra.mxu0 0.0
      %1147 = vmatprep.mubr.f32.mxu0 0.0
      %1148 = vmatmul.mubr.f32.gmra.mrb[0].mxu0 %v1019
      %v1149 = vpop.f32.mrb[0].mxu0
      %v1150 = vadd.f32 0.0, %v1149
      %v1151 = vpop.f32.mrb[0].mxu0
      %1152 = vmatprep.mubr.f32.mxu0 0.0
      %1153 = vmatmul.mubr.f32.gmra.mrb[0].mxu0 %v1021
      %v1154 = vpop.f32.mrb[0].mxu0
      %v1155 = vadd.f32 0.0, %v1154
      %v1156 = vpop.f32.mrb[0].mxu0
      %1157 = vmatprep.mubr.f32.mxu0 0.0
      %1158 = vmatmul.mubr.f32.gmra.mrb[0].mxu0 %v1023
      %v1159 = vpop.f32.mrb[0].mxu0
      %v1160 = vadd.f32 0.0, %v1159
      %v1161 = vpop.f32.mrb[0].mxu0
      %1162 = vmatprep.mubr.f32.mxu0 0.0
      %1163 = vmatmul.mubr.f32.gmra.mrb[0].mxu0 %v1025
      %v1164 = vpop.f32.mrb[0].mxu0
      %v1165 = vadd.f32 0.0, %v1164
      %v1166 = vpop.f32.mrb[0].mxu0
      %1167 = vmatprep.mubr.f32.mxu0 0.0
      %1168 = vmatmul.mubr.f32.gmra.mrb[0].mxu0 %v1027
      %v1169 = vpop.f32.mrb[0].mxu0
      %v1170 = vadd.f32 0.0, %v1169
      %v1171 = vpop.f32.mrb[0].mxu0
      %1172 = vmatprep.mubr.f32.mxu0 0.0
      %1173 = vmatmul.mubr.f32.gmra.mrb[0].mxu0 %v1029
      %v1174 = vpop.f32.mrb[0].mxu0
      %v1175 = vadd.f32 0.0, %v1174
      %v1176 = vpop.f32.mrb[0].mxu0
      %1177 = vmatprep.mubr.f32.mxu0 0.0
      %1178 = vmatmul.mubr.f32.gmra.mrb[0].mxu0 %v1031
      %v1179 = vpop.f32.mrb[0].mxu0
      %v1180 = vadd.f32 0.0, %v1179
      %v1181 = vpop.f32.mrb[0].mxu0
      %1182 = vmatprep.mubr.f32.mxu0 0.0
      %1183 = vmatmul.mubr.f32.gmra.mrb[0].mxu0 %v1033
      %v1184 = vpop.f32.mrb[0].mxu0
      %v1185 = vadd.f32 0.0, %v1184
      %v1186 = vpop.f32.mrb[0].mxu0
      %1187 = vmatprep.mubr.f32.mxu0 0.0
      %1188 = vmatmul.mubr.f32.gmra.mrb[0].mxu0 %v1035
      %v1189 = vpop.f32.mrb[0].mxu0
      %v1190 = vadd.f32 0.0, %v1189
      %v1191 = vpop.f32.mrb[0].mxu0
      %1192 = vmatprep.mubr.f32.mxu0 0.0
      %1193 = vmatmul.mubr.f32.gmra.mrb[0].mxu0 %v1037
      %v1194 = vpop.f32.mrb[0].mxu0
      %v1195 = vadd.f32 0.0, %v1194
      %v1196 = vpop.f32.mrb[0].mxu0
      %1197 = vmatprep.mubr.f32.mxu0 0.0
      %1198 = vmatmul.mubr.f32.gmra.mrb[0].mxu0 %v1039
      %v1199 = vpop.f32.mrb[0].mxu0
      %v1200 = vadd.f32 0.0, %v1199
      %v1201 = vpop.f32.mrb[0].mxu0
      %1202 = vmatprep.mubr.f32.mxu0 0.0
      %1203 = vmatmul.mubr.f32.gmra.mrb[0].mxu0 %v1041
      %v1204 = vpop.f32.mrb[0].mxu0
      %v1205 = vadd.f32 0.0, %v1204
      %v1206 = vpop.f32.mrb[0].mxu0
      %1207 = vmatprep.mubr.f32.mxu0 0.0
      %1208 = vmatmul.mubr.f32.gmra.mrb[0].mxu0 %v1043
      %v1209 = vpop.f32.mrb[0].mxu0
      %v1210 = vadd.f32 0.0, %v1209
      %v1211 = vpop.f32.mrb[0].mxu0
      %1212 = vmatprep.mubr.f32.mxu0 0.0
      %1213 = vmatmul.mubr.f32.gmra.mrb[0].mxu0 %v1045
      %v1214 = vpop.f32.mrb[0].mxu0
      %v1215 = vadd.f32 0.0, %v1214
      %v1216 = vpop.f32.mrb[0].mxu0
      %1217 = vmatprep.mubr.f32.mxu0 0.0
      %1218 = vmatmul.mubr.f32.gmra.mrb[0].mxu0 %v1047
      %v1219 = vpop.f32.mrb[0].mxu0
      %v1220 = vadd.f32 0.0, %v1219
      %v1221 = vpop.f32.mrb[0].mxu0
      %1222 = vmatprep.mubr.f32.mxu0 0.0
      %1223 = vmatmul.mubr.f32.gmra.mrb[0].mxu0 %v1049
      %v1224 = vpop.f32.mrb[0].mxu0
      %v1225 = vadd.f32 0.0, %v1224
      %v1226 = vpop.f32.mrb[0].mxu0
      %1227 = vmatprep.mubr.f32.mxu0 0.0
      %1228 = vmatmul.mubr.f32.gmra.mrb[0].mxu0 %v1051
      %v1229 = vpop.f32.mrb[0].mxu0
      %v1230 = vadd.f32 0.0, %v1229
      %v1231 = vpop.f32.mrb[0].mxu0
      %1232 = vmatprep.mubr.f32.mxu0 0.0
      %1233 = vmatmul.mubr.f32.gmra.mrb[0].mxu0 %v1053
      %v1234 = vpop.f32.mrb[0].mxu0
      %v1235 = vadd.f32 0.0, %v1234
      %v1236 = vpop.f32.mrb[0].mxu0
      %1237 = vmatprep.mubr.f32.mxu0 0.0
      %1238 = vmatmul.mubr.f32.gmra.mrb[0].mxu0 %v1055
      %v1239 = vpop.f32.mrb[0].mxu0
      %v1240 = vadd.f32 0.0, %v1239
      %v1241 = vpop.f32.mrb[0].mxu0
      %1242 = vmatprep.mubr.f32.mxu0 0.0
      %1243 = vmatmul.mubr.f32.gmra.mrb[0].mxu0 %v1057
      %v1244 = vpop.f32.mrb[0].mxu0
      %v1245 = vadd.f32 0.0, %v1244
      %v1246 = vpop.f32.mrb[0].mxu0
      %1247 = vmatprep.mubr.f32.mxu0 0.0
      %1248 = vmatmul.mubr.f32.gmra.mrb[0].mxu0 %v1059
      %v1249 = vpop.f32.mrb[0].mxu0
      %v1250 = vadd.f32 0.0, %v1249
      %v1251 = vpop.f32.mrb[0].mxu0
      %1252 = vmatprep.mubr.f32.mxu0 0.0
      %1253 = vmatmul.mubr.f32.gmra.mrb[0].mxu0 %v1061
      %v1254 = vpop.f32.mrb[0].mxu0
      %v1255 = vadd.f32 0.0, %v1254
      %v1256 = vpop.f32.mrb[0].mxu0
      %1257 = vmatprep.mubr.f32.mxu0 0.0
      %1258 = vmatmul.mubr.f32.gmra.mrb[0].mxu0 %v1063
      %v1259 = vpop.f32.mrb[0].mxu0
      %v1260 = vadd.f32 0.0, %v1259
      %v1261 = vpop.f32.mrb[0].mxu0
      %1262 = vmatprep.mubr.f32.mxu0 0.0
      %1263 = vmatmul.mubr.f32.gmra.mrb[0].mxu0 %v1065
      %v1264 = vpop.f32.mrb[0].mxu0
      %v1265 = vadd.f32 0.0, %v1264
      %v1266 = vpop.f32.mrb[0].mxu0
      %1267 = vmatprep.mubr.f32.mxu0 0.0
      %1268 = vmatmul.mubr.f32.gmra.mrb[0].mxu0 %v1067
      %v1269 = vpop.f32.mrb[0].mxu0
      %v1270 = vadd.f32 0.0, %v1269
      %v1271 = vpop.f32.mrb[0].mxu0
      %1272 = vmatprep.mubr.f32.mxu0 0.0
      %1273 = vmatmul.mubr.f32.gmra.mrb[0].mxu0 %v1069
      %v1274 = vpop.f32.mrb[0].mxu0
      %v1275 = vadd.f32 0.0, %v1274
      %v1276 = vpop.f32.mrb[0].mxu0
      %1277 = vmatprep.mubr.f32.mxu0 0.0
      %1278 = vmatmul.mubr.f32.gmra.mrb[0].mxu0 %v1071
      %v1279 = vpop.f32.mrb[0].mxu0
      %v1280 = vadd.f32 0.0, %v1279
      %v1281 = vpop.f32.mrb[0].mxu0
      %1282 = vmatprep.mubr.f32.mxu0 0.0
      %1283 = vmatmul.mubr.f32.gmra.mrb[0].mxu0 %v1073
      %v1284 = vpop.f32.mrb[0].mxu0
      %v1285 = vadd.f32 0.0, %v1284
      %v1286 = vpop.f32.mrb[0].mxu0
      %1287 = vmatprep.mubr.f32.mxu0 0.0
      %1288 = vmatmul.mubr.f32.gmra.mrb[0].mxu0 %v1075
      %v1289 = vpop.f32.mrb[0].mxu0
      %v1290 = vadd.f32 0.0, %v1289
      %v1291 = vpop.f32.mrb[0].mxu0
      %1292 = vmatprep.mubr.f32.mxu0 0.0
      %1293 = vmatmul.mubr.f32.gmra.mrb[0].mxu0 %v1077
      %v1294 = vpop.f32.mrb[0].mxu0
      %v1295 = vadd.f32 0.0, %v1294
      %v1296 = vpop.f32.mrb[0].mxu0
      %1297 = vmatprep.mubr.f32.mxu0 0.0
      %1298 = vmatmul.mubr.f32.gmra.mrb[0].mxu0 %v1079
      %v1299 = vpop.f32.mrb[0].mxu0
      %v1300 = vadd.f32 0.0, %v1299
      %v1301 = vpop.f32.mrb[0].mxu0
      %1302 = vmatprep.mubr.f32.mxu0 0.0
      %1303 = vmatmul.mubr.f32.gmra.mrb[0].mxu0 %v1081
      %v1304 = vpop.f32.mrb[0].mxu0
      %v1305 = vadd.f32 0.0, %v1304
      %v1306 = vpop.f32.mrb[0].mxu0
      %1307 = vdwg.mxu0
      %v1308 = vadd.f32 %v778, %v1150
      %v1309 = vadd.f32 %v783, %v1155
      %v1310 = vadd.f32 %v788, %v1160
      %v1311 = vadd.f32 %v793, %v1165
      %v1312 = vadd.f32 %v798, %v1170
      %v1313 = vadd.f32 %v803, %v1175
      %v1314 = vadd.f32 %v808, %v1180
      %v1315 = vadd.f32 %v813, %v1185
      %v1316 = vadd.f32 %v818, %v1190
      %v1317 = vadd.f32 %v823, %v1195
      %v1318 = vadd.f32 %v828, %v1200
      %v1319 = vadd.f32 %v833, %v1205
      %v1320 = vadd.f32 %v838, %v1210
      %v1321 = vadd.f32 %v843, %v1215
      %v1322 = vadd.f32 %v848, %v1220
      %v1323 = vadd.f32 %v853, %v1225
      %v1324 = vadd.f32 %v858, %v1230
      %v1325 = vadd.f32 %v863, %v1235
      %v1326 = vadd.f32 %v868, %v1240
      %v1327 = vadd.f32 %v873, %v1245
      %v1328 = vadd.f32 %v878, %v1250
      %v1329 = vadd.f32 %v883, %v1255
      %v1330 = vadd.f32 %v888, %v1260
      %v1331 = vadd.f32 %v893, %v1265
      %v1332 = vadd.f32 %v898, %v1270
      %v1333 = vadd.f32 %v903, %v1275
      %v1334 = vadd.f32 %v908, %v1280
      %v1335 = vadd.f32 %v913, %v1285
      %v1336 = vadd.f32 %v918, %v1290
      %v1337 = vadd.f32 %v923, %v1295
      %v1338 = vadd.f32 %v928, %v1300
      %v1339 = vadd.f32 %v933, %v1305
      %s1340 = scalar_lea.vmem %s1, 24
      %v1341 = vld [vmem:[%s1340] sm:$0xff]
      %v1343 = vsel %vm357, %v219, 0
      %v1346 = vsel %vm357, %v220, 0
      %1348 = vmatprep.subr.mxu0 0.0
      %1349 = vmatpush1.msra.mxu0 %v1341
      %1350 = vmatprep.subr.mxu0 0.0
      %1351 = vmatpush1.msra.mxu0 0.0
      %1352 = vmatprep.subr.mxu0 0.0
      %1353 = vmatpush1.msra.mxu0 0.0
      %1354 = vmatprep.subr.mxu0 0.0
      %1355 = vmatpush1.msra.mxu0 0.0
      %1356 = vmatprep.subr.mxu0 0.0
      %1357 = vmatpush1.msra.mxu0 0.0
      %1358 = vmatprep.subr.mxu0 0.0
      %1359 = vmatpush1.msra.mxu0 0.0
      %1360 = vmatprep.subr.mxu0 0.0
      %1361 = vmatpush1.msra.mxu0 0.0
      %1362 = vmatprep.subr.mxu0 0.0
      %1363 = vmatpush1.msra.mxu0 0.0
      %1364 = vmatprep.subr.mxu0 0.0
      %1365 = vmatpush1.msra.mxu0 0.0
      %1366 = vmatprep.subr.mxu0 0.0
      %1367 = vmatpush1.msra.mxu0 0.0
      %1368 = vmatprep.subr.mxu0 0.0
      %1369 = vmatpush1.msra.mxu0 0.0
      %1370 = vmatprep.subr.mxu0 0.0
      %1371 = vmatpush1.msra.mxu0 0.0
      %1372 = vmatprep.subr.mxu0 0.0
      %1373 = vmatpush1.msra.mxu0 0.0
      %1374 = vmatprep.subr.mxu0 0.0
      %1375 = vmatpush1.msra.mxu0 0.0
      %1376 = vmatprep.subr.mxu0 0.0
      %1377 = vmatpush1.msra.mxu0 0.0
      %1378 = vmatprep.subr.mxu0 0.0
      %1379 = vmatpush1.msra.mxu0 0.0
      %1380 = vmatprep.subr.mxu0 0.0
      %1381 = vmatpush1.msra.mxu0 0.0
      %1382 = vmatprep.subr.mxu0 0.0
      %1383 = vmatpush1.msra.mxu0 0.0
      %1384 = vmatprep.subr.mxu0 0.0
      %1385 = vmatpush1.msra.mxu0 0.0
      %1386 = vmatprep.subr.mxu0 0.0
      %1387 = vmatpush1.msra.mxu0 0.0
      %1388 = vmatprep.subr.mxu0 0.0
      %1389 = vmatpush1.msra.mxu0 0.0
      %1390 = vmatprep.subr.mxu0 0.0
      %1391 = vmatpush1.msra.mxu0 0.0
      %1392 = vmatprep.subr.mxu0 0.0
      %1393 = vmatpush1.msra.mxu0 0.0
      %1394 = vmatprep.subr.mxu0 0.0
      %1395 = vmatpush1.msra.mxu0 0.0
      %1396 = vmatprep.subr.mxu0 0.0
      %1397 = vmatpush1.msra.mxu0 0.0
      %1398 = vmatprep.subr.mxu0 0.0
      %1399 = vmatpush1.msra.mxu0 0.0
      %1400 = vmatprep.subr.mxu0 0.0
      %1401 = vmatpush1.msra.mxu0 0.0
      %1402 = vmatprep.subr.mxu0 0.0
      %1403 = vmatpush1.msra.mxu0 0.0
      %1404 = vmatprep.subr.mxu0 0.0
      %1405 = vmatpush1.msra.mxu0 0.0
      %1406 = vmatprep.subr.mxu0 0.0
      %1407 = vmatpush1.msra.mxu0 0.0
      %1408 = vmatprep.subr.mxu0 0.0
      %1409 = vmatpush1.msra.mxu0 0.0
      %1410 = vmatprep.subr.mxu0 0.0
      %1411 = vmatpush1.msra.mxu0 0.0
      %1412 = vmatprep.mubr.f32.mxu0 0.0
      %1413 = vmatmul.mubr.f32.gmra.mrb[0].mxu0 %v651
      %v1414 = vpop.f32.mrb[0].mxu0
      %v1415 = vadd.f32 0.0, %v1414
      %v1416 = vpop.f32.mrb[0].mxu0
      %1417 = vmatprep.mubr.f32.mxu0 0.0
      %1418 = vmatmul.mubr.f32.gmra.mrb[0].mxu0 %v653
      %v1419 = vpop.f32.mrb[0].mxu0
      %v1420 = vadd.f32 0.0, %v1419
      %v1421 = vpop.f32.mrb[0].mxu0
      %1422 = vmatprep.mubr.f32.mxu0 0.0
      %1423 = vmatmul.mubr.f32.gmra.mrb[0].mxu0 %v655
      %v1424 = vpop.f32.mrb[0].mxu0
      %v1425 = vadd.f32 0.0, %v1424
      %v1426 = vpop.f32.mrb[0].mxu0
      %1427 = vmatprep.mubr.f32.mxu0 0.0
      %1428 = vmatmul.mubr.f32.gmra.mrb[0].mxu0 %v657
      %v1429 = vpop.f32.mrb[0].mxu0
      %v1430 = vadd.f32 0.0, %v1429
      %v1431 = vpop.f32.mrb[0].mxu0
      %1432 = vmatprep.mubr.f32.mxu0 0.0
      %1433 = vmatmul.mubr.f32.gmra.mrb[0].mxu0 %v659
      %v1434 = vpop.f32.mrb[0].mxu0
      %v1435 = vadd.f32 0.0, %v1434
      %v1436 = vpop.f32.mrb[0].mxu0
      %1437 = vmatprep.mubr.f32.mxu0 0.0
      %1438 = vmatmul.mubr.f32.gmra.mrb[0].mxu0 %v661
      %v1439 = vpop.f32.mrb[0].mxu0
      %v1440 = vadd.f32 0.0, %v1439
      %v1441 = vpop.f32.mrb[0].mxu0
      %1442 = vmatprep.mubr.f32.mxu0 0.0
      %1443 = vmatmul.mubr.f32.gmra.mrb[0].mxu0 %v663
      %v1444 = vpop.f32.mrb[0].mxu0
      %v1445 = vadd.f32 0.0, %v1444
      %v1446 = vpop.f32.mrb[0].mxu0
      %1447 = vmatprep.mubr.f32.mxu0 0.0
      %1448 = vmatmul.mubr.f32.gmra.mrb[0].mxu0 %v665
      %v1449 = vpop.f32.mrb[0].mxu0
      %v1450 = vadd.f32 0.0, %v1449
      %v1451 = vpop.f32.mrb[0].mxu0
      %1452 = vmatprep.mubr.f32.mxu0 0.0
      %1453 = vmatmul.mubr.f32.gmra.mrb[0].mxu0 %v667
      %v1454 = vpop.f32.mrb[0].mxu0
      %v1455 = vadd.f32 0.0, %v1454
      %v1456 = vpop.f32.mrb[0].mxu0
      %1457 = vmatprep.mubr.f32.mxu0 0.0
      %1458 = vmatmul.mubr.f32.gmra.mrb[0].mxu0 %v669
      %v1459 = vpop.f32.mrb[0].mxu0
      %v1460 = vadd.f32 0.0, %v1459
      %v1461 = vpop.f32.mrb[0].mxu0
      %1462 = vmatprep.mubr.f32.mxu0 0.0
      %1463 = vmatmul.mubr.f32.gmra.mrb[0].mxu0 %v671
      %v1464 = vpop.f32.mrb[0].mxu0
      %v1465 = vadd.f32 0.0, %v1464
      %v1466 = vpop.f32.mrb[0].mxu0
      %1467 = vmatprep.mubr.f32.mxu0 0.0
      %1468 = vmatmul.mubr.f32.gmra.mrb[0].mxu0 %v673
      %v1469 = vpop.f32.mrb[0].mxu0
      %v1470 = vadd.f32 0.0, %v1469
      %v1471 = vpop.f32.mrb[0].mxu0
      %1472 = vmatprep.mubr.f32.mxu0 0.0
      %1473 = vmatmul.mubr.f32.gmra.mrb[0].mxu0 %v675
      %v1474 = vpop.f32.mrb[0].mxu0
      %v1475 = vadd.f32 0.0, %v1474
      %v1476 = vpop.f32.mrb[0].mxu0
      %1477 = vmatprep.mubr.f32.mxu0 0.0
      %1478 = vmatmul.mubr.f32.gmra.mrb[0].mxu0 %v677
      %v1479 = vpop.f32.mrb[0].mxu0
      %v1480 = vadd.f32 0.0, %v1479
      %v1481 = vpop.f32.mrb[0].mxu0
      %1482 = vmatprep.mubr.f32.mxu0 0.0
      %1483 = vmatmul.mubr.f32.gmra.mrb[0].mxu0 %v679
      %v1484 = vpop.f32.mrb[0].mxu0
      %v1485 = vadd.f32 0.0, %v1484
      %v1486 = vpop.f32.mrb[0].mxu0
      %1487 = vmatprep.mubr.f32.mxu0 0.0
      %1488 = vmatmul.mubr.f32.gmra.mrb[0].mxu0 %v681
      %v1489 = vpop.f32.mrb[0].mxu0
      %v1490 = vadd.f32 0.0, %v1489
      %v1491 = vpop.f32.mrb[0].mxu0
      %1492 = vmatprep.mubr.f32.mxu0 0.0
      %1493 = vmatmul.mubr.f32.gmra.mrb[0].mxu0 %v683
      %v1494 = vpop.f32.mrb[0].mxu0
      %v1495 = vadd.f32 0.0, %v1494
      %v1496 = vpop.f32.mrb[0].mxu0
      %1497 = vmatprep.mubr.f32.mxu0 0.0
      %1498 = vmatmul.mubr.f32.gmra.mrb[0].mxu0 %v685
      %v1499 = vpop.f32.mrb[0].mxu0
      %v1500 = vadd.f32 0.0, %v1499
      %v1501 = vpop.f32.mrb[0].mxu0
      %1502 = vmatprep.mubr.f32.mxu0 0.0
      %1503 = vmatmul.mubr.f32.gmra.mrb[0].mxu0 %v687
      %v1504 = vpop.f32.mrb[0].mxu0
      %v1505 = vadd.f32 0.0, %v1504
      %v1506 = vpop.f32.mrb[0].mxu0
      %1507 = vmatprep.mubr.f32.mxu0 0.0
      %1508 = vmatmul.mubr.f32.gmra.mrb[0].mxu0 %v689
      %v1509 = vpop.f32.mrb[0].mxu0
      %v1510 = vadd.f32 0.0, %v1509
      %v1511 = vpop.f32.mrb[0].mxu0
      %1512 = vmatprep.mubr.f32.mxu0 0.0
      %1513 = vmatmul.mubr.f32.gmra.mrb[0].mxu0 %v691
      %v1514 = vpop.f32.mrb[0].mxu0
      %v1515 = vadd.f32 0.0, %v1514
      %v1516 = vpop.f32.mrb[0].mxu0
      %1517 = vmatprep.mubr.f32.mxu0 0.0
      %1518 = vmatmul.mubr.f32.gmra.mrb[0].mxu0 %v693
      %v1519 = vpop.f32.mrb[0].mxu0
      %v1520 = vadd.f32 0.0, %v1519
      %v1521 = vpop.f32.mrb[0].mxu0
      %1522 = vmatprep.mubr.f32.mxu0 0.0
      %1523 = vmatmul.mubr.f32.gmra.mrb[0].mxu0 %v695
      %v1524 = vpop.f32.mrb[0].mxu0
      %v1525 = vadd.f32 0.0, %v1524
      %v1526 = vpop.f32.mrb[0].mxu0
      %1527 = vmatprep.mubr.f32.mxu0 0.0
      %1528 = vmatmul.mubr.f32.gmra.mrb[0].mxu0 %v697
      %v1529 = vpop.f32.mrb[0].mxu0
      %v1530 = vadd.f32 0.0, %v1529
      %v1531 = vpop.f32.mrb[0].mxu0
      %1532 = vmatprep.mubr.f32.mxu0 0.0
      %1533 = vmatmul.mubr.f32.gmra.mrb[0].mxu0 %v699
      %v1534 = vpop.f32.mrb[0].mxu0
      %v1535 = vadd.f32 0.0, %v1534
      %v1536 = vpop.f32.mrb[0].mxu0
      %1537 = vmatprep.mubr.f32.mxu0 0.0
      %1538 = vmatmul.mubr.f32.gmra.mrb[0].mxu0 %v701
      %v1539 = vpop.f32.mrb[0].mxu0
      %v1540 = vadd.f32 0.0, %v1539
      %v1541 = vpop.f32.mrb[0].mxu0
      %1542 = vmatprep.mubr.f32.mxu0 0.0
      %1543 = vmatmul.mubr.f32.gmra.mrb[0].mxu0 %v703
      %v1544 = vpop.f32.mrb[0].mxu0
      %v1545 = vadd.f32 0.0, %v1544
      %v1546 = vpop.f32.mrb[0].mxu0
      %1547 = vmatprep.mubr.f32.mxu0 0.0
      %1548 = vmatmul.mubr.f32.gmra.mrb[0].mxu0 %v705
      %v1549 = vpop.f32.mrb[0].mxu0
      %v1550 = vadd.f32 0.0, %v1549
      %v1551 = vpop.f32.mrb[0].mxu0
      %1552 = vmatprep.mubr.f32.mxu0 0.0
      %1553 = vmatmul.mubr.f32.gmra.mrb[0].mxu0 %v707
      %v1554 = vpop.f32.mrb[0].mxu0
      %v1555 = vadd.f32 0.0, %v1554
      %v1556 = vpop.f32.mrb[0].mxu0
      %1557 = vmatprep.mubr.f32.mxu0 0.0
      %1558 = vmatmul.mubr.f32.gmra.mrb[0].mxu0 %v709
      %v1559 = vpop.f32.mrb[0].mxu0
      %v1560 = vadd.f32 0.0, %v1559
      %v1561 = vpop.f32.mrb[0].mxu0
      %1562 = vmatprep.mubr.f32.mxu0 0.0
      %1563 = vmatmul.mubr.f32.gmra.mrb[0].mxu0 %v1343
      %v1564 = vpop.f32.mrb[0].mxu0
      %v1565 = vadd.f32 0.0, %v1564
      %v1566 = vpop.f32.mrb[0].mxu0
      %1567 = vmatprep.mubr.f32.mxu0 0.0
      %1568 = vmatmul.mubr.f32.gmra.mrb[0].mxu0 %v1346
      %v1569 = vpop.f32.mrb[0].mxu0
      %v1570 = vadd.f32 0.0, %v1569
      %v1571 = vpop.f32.mrb[0].mxu0
      %1572 = vdwg.mxu0
      %v1573 = vadd.f32 %v1308, %v1415
      %v1574 = vadd.f32 %v1309, %v1420
      %v1575 = vadd.f32 %v1310, %v1425
      %v1576 = vadd.f32 %v1311, %v1430
      %v1577 = vadd.f32 %v1312, %v1435
      %v1578 = vadd.f32 %v1313, %v1440
      %v1579 = vadd.f32 %v1314, %v1445
      %v1580 = vadd.f32 %v1315, %v1450
      %v1581 = vadd.f32 %v1316, %v1455
      %v1582 = vadd.f32 %v1317, %v1460
      %v1583 = vadd.f32 %v1318, %v1465
      %v1584 = vadd.f32 %v1319, %v1470
      %v1585 = vadd.f32 %v1320, %v1475
      %v1586 = vadd.f32 %v1321, %v1480
      %v1587 = vadd.f32 %v1322, %v1485
      %v1588 = vadd.f32 %v1323, %v1490
      %v1589 = vadd.f32 %v1324, %v1495
      %v1590 = vadd.f32 %v1325, %v1500
      %v1591 = vadd.f32 %v1326, %v1505
      %v1592 = vadd.f32 %v1327, %v1510
      %v1593 = vadd.f32 %v1328, %v1515
      %v1594 = vadd.f32 %v1329, %v1520
      %v1595 = vadd.f32 %v1330, %v1525
      %v1596 = vadd.f32 %v1331, %v1530
      %v1597 = vadd.f32 %v1332, %v1535
      %v1598 = vadd.f32 %v1333, %v1540
      %v1599 = vadd.f32 %v1334, %v1545
      %v1600 = vadd.f32 %v1335, %v1550
      %v1601 = vadd.f32 %v1336, %v1555
      %v1602 = vadd.f32 %v1337, %v1560
      %v1603 = vadd.f32 %v1338, %v1565
      %v1604 = vadd.f32 %v1339, %v1570
      %v1606 = vrot.slane %v219, 1
      %v1607 = vrot.slane %v220, 1
      %v1608 = vsel %vm274, %v1606, %v1607
      %v1609 = vrot.slane %v221, 1
      %v1610 = vsel %vm274, %v1607, %v1609
      %s1611 = scalar_lea.vmem %s1, 32
      %v1612 = vld [vmem:[%s1611] sm:$0xff]
      %v1613 = vsel %vm357, %v1608, 0
      %v1615 = vsel %vm357, %v1610, 0
      %1617 = vmatprep.subr.mxu0 0.0
      %1618 = vmatpush1.msra.mxu0 %v1612
      %1619 = vmatprep.subr.mxu0 0.0
      %1620 = vmatpush1.msra.mxu0 0.0
      %1621 = vmatprep.subr.mxu0 0.0
      %1622 = vmatpush1.msra.mxu0 0.0
      %1623 = vmatprep.subr.mxu0 0.0
      %1624 = vmatpush1.msra.mxu0 0.0
      %1625 = vmatprep.subr.mxu0 0.0
      %1626 = vmatpush1.msra.mxu0 0.0
      %1627 = vmatprep.subr.mxu0 0.0
      %1628 = vmatpush1.msra.mxu0 0.0
      %1629 = vmatprep.subr.mxu0 0.0
      %1630 = vmatpush1.msra.mxu0 0.0
      %1631 = vmatprep.subr.mxu0 0.0
      %1632 = vmatpush1.msra.mxu0 0.0
      %1633 = vmatprep.subr.mxu0 0.0
      %1634 = vmatpush1.msra.mxu0 0.0
      %1635 = vmatprep.subr.mxu0 0.0
      %1636 = vmatpush1.msra.mxu0 0.0
      %1637 = vmatprep.subr.mxu0 0.0
      %1638 = vmatpush1.msra.mxu0 0.0
      %1639 = vmatprep.subr.mxu0 0.0
      %1640 = vmatpush1.msra.mxu0 0.0
      %1641 = vmatprep.subr.mxu0 0.0
      %1642 = vmatpush1.msra.mxu0 0.0
      %1643 = vmatprep.subr.mxu0 0.0
      %1644 = vmatpush1.msra.mxu0 0.0
      %1645 = vmatprep.subr.mxu0 0.0
      %1646 = vmatpush1.msra.mxu0 0.0
      %1647 = vmatprep.subr.mxu0 0.0
      %1648 = vmatpush1.msra.mxu0 0.0
      %1649 = vmatprep.subr.mxu0 0.0
      %1650 = vmatpush1.msra.mxu0 0.0
      %1651 = vmatprep.subr.mxu0 0.0
      %1652 = vmatpush1.msra.mxu0 0.0
      %1653 = vmatprep.subr.mxu0 0.0
      %1654 = vmatpush1.msra.mxu0 0.0
      %1655 = vmatprep.subr.mxu0 0.0
      %1656 = vmatpush1.msra.mxu0 0.0
      %1657 = vmatprep.subr.mxu0 0.0
      %1658 = vmatpush1.msra.mxu0 0.0
      %1659 = vmatprep.subr.mxu0 0.0
      %1660 = vmatpush1.msra.mxu0 0.0
      %1661 = vmatprep.subr.mxu0 0.0
      %1662 = vmatpush1.msra.mxu0 0.0
      %1663 = vmatprep.subr.mxu0 0.0
      %1664 = vmatpush1.msra.mxu0 0.0
      %1665 = vmatprep.subr.mxu0 0.0
      %1666 = vmatpush1.msra.mxu0 0.0
      %1667 = vmatprep.subr.mxu0 0.0
      %1668 = vmatpush1.msra.mxu0 0.0
      %1669 = vmatprep.subr.mxu0 0.0
      %1670 = vmatpush1.msra.mxu0 0.0
      %1671 = vmatprep.subr.mxu0 0.0
      %1672 = vmatpush1.msra.mxu0 0.0
      %1673 = vmatprep.subr.mxu0 0.0
      %1674 = vmatpush1.msra.mxu0 0.0
      %1675 = vmatprep.subr.mxu0 0.0
      %1676 = vmatpush1.msra.mxu0 0.0
      %1677 = vmatprep.subr.mxu0 0.0
      %1678 = vmatpush1.msra.mxu0 0.0
      %1679 = vmatprep.subr.mxu0 0.0
      %1680 = vmatpush1.msra.mxu0 0.0
      %1681 = vmatprep.mubr.f32.mxu0 0.0
      %1682 = vmatmul.mubr.f32.gmra.mrb[0].mxu0 %v362
      %v1683 = vpop.f32.mrb[0].mxu0
      %v1684 = vadd.f32 0.0, %v1683
      %v1685 = vpop.f32.mrb[0].mxu0
      %1686 = vmatprep.mubr.f32.mxu0 0.0
      %1687 = vmatmul.mubr.f32.gmra.mrb[0].mxu0 %v364
      %v1688 = vpop.f32.mrb[0].mxu0
      %v1689 = vadd.f32 0.0, %v1688
      %v1690 = vpop.f32.mrb[0].mxu0
      %1691 = vmatprep.mubr.f32.mxu0 0.0
      %1692 = vmatmul.mubr.f32.gmra.mrb[0].mxu0 %v366
      %v1693 = vpop.f32.mrb[0].mxu0
      %v1694 = vadd.f32 0.0, %v1693
      %v1695 = vpop.f32.mrb[0].mxu0
      %1696 = vmatprep.mubr.f32.mxu0 0.0
      %1697 = vmatmul.mubr.f32.gmra.mrb[0].mxu0 %v368
      %v1698 = vpop.f32.mrb[0].mxu0
      %v1699 = vadd.f32 0.0, %v1698
      %v1700 = vpop.f32.mrb[0].mxu0
      %1701 = vmatprep.mubr.f32.mxu0 0.0
      %1702 = vmatmul.mubr.f32.gmra.mrb[0].mxu0 %v370
      %v1703 = vpop.f32.mrb[0].mxu0
      %v1704 = vadd.f32 0.0, %v1703
      %v1705 = vpop.f32.mrb[0].mxu0
      %1706 = vmatprep.mubr.f32.mxu0 0.0
      %1707 = vmatmul.mubr.f32.gmra.mrb[0].mxu0 %v372
      %v1708 = vpop.f32.mrb[0].mxu0
      %v1709 = vadd.f32 0.0, %v1708
      %v1710 = vpop.f32.mrb[0].mxu0
      %1711 = vmatprep.mubr.f32.mxu0 0.0
      %1712 = vmatmul.mubr.f32.gmra.mrb[0].mxu0 %v374
      %v1713 = vpop.f32.mrb[0].mxu0
      %v1714 = vadd.f32 0.0, %v1713
      %v1715 = vpop.f32.mrb[0].mxu0
      %1716 = vmatprep.mubr.f32.mxu0 0.0
      %1717 = vmatmul.mubr.f32.gmra.mrb[0].mxu0 %v376
      %v1718 = vpop.f32.mrb[0].mxu0
      %v1719 = vadd.f32 0.0, %v1718
      %v1720 = vpop.f32.mrb[0].mxu0
      %1721 = vmatprep.mubr.f32.mxu0 0.0
      %1722 = vmatmul.mubr.f32.gmra.mrb[0].mxu0 %v378
      %v1723 = vpop.f32.mrb[0].mxu0
      %v1724 = vadd.f32 0.0, %v1723
      %v1725 = vpop.f32.mrb[0].mxu0
      %1726 = vmatprep.mubr.f32.mxu0 0.0
      %1727 = vmatmul.mubr.f32.gmra.mrb[0].mxu0 %v380
      %v1728 = vpop.f32.mrb[0].mxu0
      %v1729 = vadd.f32 0.0, %v1728
      %v1730 = vpop.f32.mrb[0].mxu0
      %1731 = vmatprep.mubr.f32.mxu0 0.0
      %1732 = vmatmul.mubr.f32.gmra.mrb[0].mxu0 %v382
      %v1733 = vpop.f32.mrb[0].mxu0
      %v1734 = vadd.f32 0.0, %v1733
      %v1735 = vpop.f32.mrb[0].mxu0
      %1736 = vmatprep.mubr.f32.mxu0 0.0
      %1737 = vmatmul.mubr.f32.gmra.mrb[0].mxu0 %v384
      %v1738 = vpop.f32.mrb[0].mxu0
      %v1739 = vadd.f32 0.0, %v1738
      %v1740 = vpop.f32.mrb[0].mxu0
      %1741 = vmatprep.mubr.f32.mxu0 0.0
      %1742 = vmatmul.mubr.f32.gmra.mrb[0].mxu0 %v386
      %v1743 = vpop.f32.mrb[0].mxu0
      %v1744 = vadd.f32 0.0, %v1743
      %v1745 = vpop.f32.mrb[0].mxu0
      %1746 = vmatprep.mubr.f32.mxu0 0.0
      %1747 = vmatmul.mubr.f32.gmra.mrb[0].mxu0 %v388
      %v1748 = vpop.f32.mrb[0].mxu0
      %v1749 = vadd.f32 0.0, %v1748
      %v1750 = vpop.f32.mrb[0].mxu0
      %1751 = vmatprep.mubr.f32.mxu0 0.0
      %1752 = vmatmul.mubr.f32.gmra.mrb[0].mxu0 %v390
      %v1753 = vpop.f32.mrb[0].mxu0
      %v1754 = vadd.f32 0.0, %v1753
      %v1755 = vpop.f32.mrb[0].mxu0
      %1756 = vmatprep.mubr.f32.mxu0 0.0
      %1757 = vmatmul.mubr.f32.gmra.mrb[0].mxu0 %v392
      %v1758 = vpop.f32.mrb[0].mxu0
      %v1759 = vadd.f32 0.0, %v1758
      %v1760 = vpop.f32.mrb[0].mxu0
      %1761 = vmatprep.mubr.f32.mxu0 0.0
      %1762 = vmatmul.mubr.f32.gmra.mrb[0].mxu0 %v394
      %v1763 = vpop.f32.mrb[0].mxu0
      %v1764 = vadd.f32 0.0, %v1763
      %v1765 = vpop.f32.mrb[0].mxu0
      %1766 = vmatprep.mubr.f32.mxu0 0.0
      %1767 = vmatmul.mubr.f32.gmra.mrb[0].mxu0 %v396
      %v1768 = vpop.f32.mrb[0].mxu0
      %v1769 = vadd.f32 0.0, %v1768
      %v1770 = vpop.f32.mrb[0].mxu0
      %1771 = vmatprep.mubr.f32.mxu0 0.0
      %1772 = vmatmul.mubr.f32.gmra.mrb[0].mxu0 %v398
      %v1773 = vpop.f32.mrb[0].mxu0
      %v1774 = vadd.f32 0.0, %v1773
      %v1775 = vpop.f32.mrb[0].mxu0
      %1776 = vmatprep.mubr.f32.mxu0 0.0
      %1777 = vmatmul.mubr.f32.gmra.mrb[0].mxu0 %v400
      %v1778 = vpop.f32.mrb[0].mxu0
      %v1779 = vadd.f32 0.0, %v1778
      %v1780 = vpop.f32.mrb[0].mxu0
      %1781 = vmatprep.mubr.f32.mxu0 0.0
      %1782 = vmatmul.mubr.f32.gmra.mrb[0].mxu0 %v402
      %v1783 = vpop.f32.mrb[0].mxu0
      %v1784 = vadd.f32 0.0, %v1783
      %v1785 = vpop.f32.mrb[0].mxu0
      %1786 = vmatprep.mubr.f32.mxu0 0.0
      %1787 = vmatmul.mubr.f32.gmra.mrb[0].mxu0 %v404
      %v1788 = vpop.f32.mrb[0].mxu0
      %v1789 = vadd.f32 0.0, %v1788
      %v1790 = vpop.f32.mrb[0].mxu0
      %1791 = vmatprep.mubr.f32.mxu0 0.0
      %1792 = vmatmul.mubr.f32.gmra.mrb[0].mxu0 %v406
      %v1793 = vpop.f32.mrb[0].mxu0
      %v1794 = vadd.f32 0.0, %v1793
      %v1795 = vpop.f32.mrb[0].mxu0
      %1796 = vmatprep.mubr.f32.mxu0 0.0
      %1797 = vmatmul.mubr.f32.gmra.mrb[0].mxu0 %v408
      %v1798 = vpop.f32.mrb[0].mxu0
      %v1799 = vadd.f32 0.0, %v1798
      %v1800 = vpop.f32.mrb[0].mxu0
      %1801 = vmatprep.mubr.f32.mxu0 0.0
      %1802 = vmatmul.mubr.f32.gmra.mrb[0].mxu0 %v410
      %v1803 = vpop.f32.mrb[0].mxu0
      %v1804 = vadd.f32 0.0, %v1803
      %v1805 = vpop.f32.mrb[0].mxu0
      %1806 = vmatprep.mubr.f32.mxu0 0.0
      %1807 = vmatmul.mubr.f32.gmra.mrb[0].mxu0 %v412
      %v1808 = vpop.f32.mrb[0].mxu0
      %v1809 = vadd.f32 0.0, %v1808
      %v1810 = vpop.f32.mrb[0].mxu0
      %1811 = vmatprep.mubr.f32.mxu0 0.0
      %1812 = vmatmul.mubr.f32.gmra.mrb[0].mxu0 %v414
      %v1813 = vpop.f32.mrb[0].mxu0
      %v1814 = vadd.f32 0.0, %v1813
      %v1815 = vpop.f32.mrb[0].mxu0
      %1816 = vmatprep.mubr.f32.mxu0 0.0
      %1817 = vmatmul.mubr.f32.gmra.mrb[0].mxu0 %v416
      %v1818 = vpop.f32.mrb[0].mxu0
      %v1819 = vadd.f32 0.0, %v1818
      %v1820 = vpop.f32.mrb[0].mxu0
      %1821 = vmatprep.mubr.f32.mxu0 0.0
      %1822 = vmatmul.mubr.f32.gmra.mrb[0].mxu0 %v418
      %v1823 = vpop.f32.mrb[0].mxu0
      %v1824 = vadd.f32 0.0, %v1823
      %v1825 = vpop.f32.mrb[0].mxu0
      %1826 = vmatprep.mubr.f32.mxu0 0.0
      %1827 = vmatmul.mubr.f32.gmra.mrb[0].mxu0 %v420
      %v1828 = vpop.f32.mrb[0].mxu0
      %v1829 = vadd.f32 0.0, %v1828
      %v1830 = vpop.f32.mrb[0].mxu0
      %1831 = vmatprep.mubr.f32.mxu0 0.0
      %1832 = vmatmul.mubr.f32.gmra.mrb[0].mxu0 %v1613
      %v1833 = vpop.f32.mrb[0].mxu0
      %v1834 = vadd.f32 0.0, %v1833
      %v1835 = vpop.f32.mrb[0].mxu0
      %1836 = vmatprep.mubr.f32.mxu0 0.0
      %1837 = vmatmul.mubr.f32.gmra.mrb[0].mxu0 %v1615
      %v1838 = vpop.f32.mrb[0].mxu0
      %v1839 = vadd.f32 0.0, %v1838
      %v1840 = vpop.f32.mrb[0].mxu0
      %1841 = vdwg.mxu0
      %v1842 = vadd.f32 %v1573, %v1684
      %v1843 = vadd.f32 %v1574, %v1689
      %v1844 = vadd.f32 %v1575, %v1694
      %v1845 = vadd.f32 %v1576, %v1699
      %v1846 = vadd.f32 %v1577, %v1704
      %v1847 = vadd.f32 %v1578, %v1709
      %v1848 = vadd.f32 %v1579, %v1714
      %v1849 = vadd.f32 %v1580, %v1719
      %v1850 = vadd.f32 %v1581, %v1724
      %v1851 = vadd.f32 %v1582, %v1729
      %v1852 = vadd.f32 %v1583, %v1734
      %v1853 = vadd.f32 %v1584, %v1739
      %v1854 = vadd.f32 %v1585, %v1744
      %v1855 = vadd.f32 %v1586, %v1749
      %v1856 = vadd.f32 %v1587, %v1754
      %v1857 = vadd.f32 %v1588, %v1759
      %v1858 = vadd.f32 %v1589, %v1764
      %v1859 = vadd.f32 %v1590, %v1769
      %v1860 = vadd.f32 %v1591, %v1774
      %v1861 = vadd.f32 %v1592, %v1779
      %v1862 = vadd.f32 %v1593, %v1784
      %v1863 = vadd.f32 %v1594, %v1789
      %v1864 = vadd.f32 %v1595, %v1794
      %v1865 = vadd.f32 %v1596, %v1799
      %v1866 = vadd.f32 %v1597, %v1804
      %v1867 = vadd.f32 %v1598, %v1809
      %v1868 = vadd.f32 %v1599, %v1814
      %v1869 = vadd.f32 %v1600, %v1819
      %v1870 = vadd.f32 %v1601, %v1824
      %v1871 = vadd.f32 %v1602, %v1829
      %v1872 = vadd.f32 %v1603, %v1834
      %v1873 = vadd.f32 %v1604, %v1839
      %v1874 = vrot.slane %v219, 2
      %v1875 = vrot.slane %v220, 2
      %v1876 = vsel %vm936, %v1874, %v1875
      %v1877 = vrot.slane %v221, 2
      %v1878 = vsel %vm936, %v1875, %v1877
      %s1879 = scalar_lea.vmem %s1, 40
      %v1880 = vld [vmem:[%s1879] sm:$0xff]
      %v1881 = vsel %vm357, %v1876, 0
      %v1883 = vsel %vm357, %v1878, 0
      %1885 = vmatprep.subr.mxu0 0.0
      %1886 = vmatpush1.msra.mxu0 %v1880
      %1887 = vmatprep.subr.mxu0 0.0
      %1888 = vmatpush1.msra.mxu0 0.0
      %1889 = vmatprep.subr.mxu0 0.0
      %1890 = vmatpush1.msra.mxu0 0.0
      %1891 = vmatprep.subr.mxu0 0.0
      %1892 = vmatpush1.msra.mxu0 0.0
      %1893 = vmatprep.subr.mxu0 0.0
      %1894 = vmatpush1.msra.mxu0 0.0
      %1895 = vmatprep.subr.mxu0 0.0
      %1896 = vmatpush1.msra.mxu0 0.0
      %1897 = vmatprep.subr.mxu0 0.0
      %1898 = vmatpush1.msra.mxu0 0.0
      %1899 = vmatprep.subr.mxu0 0.0
      %1900 = vmatpush1.msra.mxu0 0.0
      %1901 = vmatprep.subr.mxu0 0.0
      %1902 = vmatpush1.msra.mxu0 0.0
      %1903 = vmatprep.subr.mxu0 0.0
      %1904 = vmatpush1.msra.mxu0 0.0
      %1905 = vmatprep.subr.mxu0 0.0
      %1906 = vmatpush1.msra.mxu0 0.0
      %1907 = vmatprep.subr.mxu0 0.0
      %1908 = vmatpush1.msra.mxu0 0.0
      %1909 = vmatprep.subr.mxu0 0.0
      %1910 = vmatpush1.msra.mxu0 0.0
      %1911 = vmatprep.subr.mxu0 0.0
      %1912 = vmatpush1.msra.mxu0 0.0
      %1913 = vmatprep.subr.mxu0 0.0
      %1914 = vmatpush1.msra.mxu0 0.0
      %1915 = vmatprep.subr.mxu0 0.0
      %1916 = vmatpush1.msra.mxu0 0.0
      %1917 = vmatprep.subr.mxu0 0.0
      %1918 = vmatpush1.msra.mxu0 0.0
      %1919 = vmatprep.subr.mxu0 0.0
      %1920 = vmatpush1.msra.mxu0 0.0
      %1921 = vmatprep.subr.mxu0 0.0
      %1922 = vmatpush1.msra.mxu0 0.0
      %1923 = vmatprep.subr.mxu0 0.0
      %1924 = vmatpush1.msra.mxu0 0.0
      %1925 = vmatprep.subr.mxu0 0.0
      %1926 = vmatpush1.msra.mxu0 0.0
      %1927 = vmatprep.subr.mxu0 0.0
      %1928 = vmatpush1.msra.mxu0 0.0
      %1929 = vmatprep.subr.mxu0 0.0
      %1930 = vmatpush1.msra.mxu0 0.0
      %1931 = vmatprep.subr.mxu0 0.0
      %1932 = vmatpush1.msra.mxu0 0.0
      %1933 = vmatprep.subr.mxu0 0.0
      %1934 = vmatpush1.msra.mxu0 0.0
      %1935 = vmatprep.subr.mxu0 0.0
      %1936 = vmatpush1.msra.mxu0 0.0
      %1937 = vmatprep.subr.mxu0 0.0
      %1938 = vmatpush1.msra.mxu0 0.0
      %1939 = vmatprep.subr.mxu0 0.0
      %1940 = vmatpush1.msra.mxu0 0.0
      %1941 = vmatprep.subr.mxu0 0.0
      %1942 = vmatpush1.msra.mxu0 0.0
      %1943 = vmatprep.subr.mxu0 0.0
      %1944 = vmatpush1.msra.mxu0 0.0
      %1945 = vmatprep.subr.mxu0 0.0
      %1946 = vmatpush1.msra.mxu0 0.0
      %1947 = vmatprep.subr.mxu0 0.0
      %1948 = vmatpush1.msra.mxu0 0.0
      %1949 = vmatprep.mubr.f32.mxu0 0.0
      %1950 = vmatmul.mubr.f32.gmra.mrb[0].mxu0 %v1023
      %v1951 = vpop.f32.mrb[0].mxu0
      %v1952 = vadd.f32 0.0, %v1951
      %v1953 = vpop.f32.mrb[0].mxu0
      %1954 = vmatprep.mubr.f32.mxu0 0.0
      %1955 = vmatmul.mubr.f32.gmra.mrb[0].mxu0 %v1025
      %v1956 = vpop.f32.mrb[0].mxu0
      %v1957 = vadd.f32 0.0, %v1956
      %v1958 = vpop.f32.mrb[0].mxu0
      %1959 = vmatprep.mubr.f32.mxu0 0.0
      %1960 = vmatmul.mubr.f32.gmra.mrb[0].mxu0 %v1027
      %v1961 = vpop.f32.mrb[0].mxu0
      %v1962 = vadd.f32 0.0, %v1961
      %v1963 = vpop.f32.mrb[0].mxu0
      %1964 = vmatprep.mubr.f32.mxu0 0.0
      %1965 = vmatmul.mubr.f32.gmra.mrb[0].mxu0 %v1029
      %v1966 = vpop.f32.mrb[0].mxu0
      %v1967 = vadd.f32 0.0, %v1966
      %v1968 = vpop.f32.mrb[0].mxu0
      %1969 = vmatprep.mubr.f32.mxu0 0.0
      %1970 = vmatmul.mubr.f32.gmra.mrb[0].mxu0 %v1031
      %v1971 = vpop.f32.mrb[0].mxu0
      %v1972 = vadd.f32 0.0, %v1971
      %v1973 = vpop.f32.mrb[0].mxu0
      %1974 = vmatprep.mubr.f32.mxu0 0.0
      %1975 = vmatmul.mubr.f32.gmra.mrb[0].mxu0 %v1033
      %v1976 = vpop.f32.mrb[0].mxu0
      %v1977 = vadd.f32 0.0, %v1976
      %v1978 = vpop.f32.mrb[0].mxu0
      %1979 = vmatprep.mubr.f32.mxu0 0.0
      %1980 = vmatmul.mubr.f32.gmra.mrb[0].mxu0 %v1035
      %v1981 = vpop.f32.mrb[0].mxu0
      %v1982 = vadd.f32 0.0, %v1981
      %v1983 = vpop.f32.mrb[0].mxu0
      %1984 = vmatprep.mubr.f32.mxu0 0.0
      %1985 = vmatmul.mubr.f32.gmra.mrb[0].mxu0 %v1037
      %v1986 = vpop.f32.mrb[0].mxu0
      %v1987 = vadd.f32 0.0, %v1986
      %v1988 = vpop.f32.mrb[0].mxu0
      %1989 = vmatprep.mubr.f32.mxu0 0.0
      %1990 = vmatmul.mubr.f32.gmra.mrb[0].mxu0 %v1039
      %v1991 = vpop.f32.mrb[0].mxu0
      %v1992 = vadd.f32 0.0, %v1991
      %v1993 = vpop.f32.mrb[0].mxu0
      %1994 = vmatprep.mubr.f32.mxu0 0.0
      %1995 = vmatmul.mubr.f32.gmra.mrb[0].mxu0 %v1041
      %v1996 = vpop.f32.mrb[0].mxu0
      %v1997 = vadd.f32 0.0, %v1996
      %v1998 = vpop.f32.mrb[0].mxu0
      %1999 = vmatprep.mubr.f32.mxu0 0.0
      %2000 = vmatmul.mubr.f32.gmra.mrb[0].mxu0 %v1043
      %v2001 = vpop.f32.mrb[0].mxu0
      %v2002 = vadd.f32 0.0, %v2001
      %v2003 = vpop.f32.mrb[0].mxu0
      %2004 = vmatprep.mubr.f32.mxu0 0.0
      %2005 = vmatmul.mubr.f32.gmra.mrb[0].mxu0 %v1045
      %v2006 = vpop.f32.mrb[0].mxu0
      %v2007 = vadd.f32 0.0, %v2006
      %v2008 = vpop.f32.mrb[0].mxu0
      %2009 = vmatprep.mubr.f32.mxu0 0.0
      %2010 = vmatmul.mubr.f32.gmra.mrb[0].mxu0 %v1047
      %v2011 = vpop.f32.mrb[0].mxu0
      %v2012 = vadd.f32 0.0, %v2011
      %v2013 = vpop.f32.mrb[0].mxu0
      %2014 = vmatprep.mubr.f32.mxu0 0.0
      %2015 = vmatmul.mubr.f32.gmra.mrb[0].mxu0 %v1049
      %v2016 = vpop.f32.mrb[0].mxu0
      %v2017 = vadd.f32 0.0, %v2016
      %v2018 = vpop.f32.mrb[0].mxu0
      %2019 = vmatprep.mubr.f32.mxu0 0.0
      %2020 = vmatmul.mubr.f32.gmra.mrb[0].mxu0 %v1051
      %v2021 = vpop.f32.mrb[0].mxu0
      %v2022 = vadd.f32 0.0, %v2021
      %v2023 = vpop.f32.mrb[0].mxu0
      %2024 = vmatprep.mubr.f32.mxu0 0.0
      %2025 = vmatmul.mubr.f32.gmra.mrb[0].mxu0 %v1053
      %v2026 = vpop.f32.mrb[0].mxu0
      %v2027 = vadd.f32 0.0, %v2026
      %v2028 = vpop.f32.mrb[0].mxu0
      %2029 = vmatprep.mubr.f32.mxu0 0.0
      %2030 = vmatmul.mubr.f32.gmra.mrb[0].mxu0 %v1055
      %v2031 = vpop.f32.mrb[0].mxu0
      %v2032 = vadd.f32 0.0, %v2031
      %v2033 = vpop.f32.mrb[0].mxu0
      %2034 = vmatprep.mubr.f32.mxu0 0.0
      %2035 = vmatmul.mubr.f32.gmra.mrb[0].mxu0 %v1057
      %v2036 = vpop.f32.mrb[0].mxu0
      %v2037 = vadd.f32 0.0, %v2036
      %v2038 = vpop.f32.mrb[0].mxu0
      %2039 = vmatprep.mubr.f32.mxu0 0.0
      %2040 = vmatmul.mubr.f32.gmra.mrb[0].mxu0 %v1059
      %v2041 = vpop.f32.mrb[0].mxu0
      %v2042 = vadd.f32 0.0, %v2041
      %v2043 = vpop.f32.mrb[0].mxu0
      %2044 = vmatprep.mubr.f32.mxu0 0.0
      %2045 = vmatmul.mubr.f32.gmra.mrb[0].mxu0 %v1061
      %v2046 = vpop.f32.mrb[0].mxu0
      %v2047 = vadd.f32 0.0, %v2046
      %v2048 = vpop.f32.mrb[0].mxu0
      %2049 = vmatprep.mubr.f32.mxu0 0.0
      %2050 = vmatmul.mubr.f32.gmra.mrb[0].mxu0 %v1063
      %v2051 = vpop.f32.mrb[0].mxu0
      %v2052 = vadd.f32 0.0, %v2051
      %v2053 = vpop.f32.mrb[0].mxu0
      %2054 = vmatprep.mubr.f32.mxu0 0.0
      %2055 = vmatmul.mubr.f32.gmra.mrb[0].mxu0 %v1065
      %v2056 = vpop.f32.mrb[0].mxu0
      %v2057 = vadd.f32 0.0, %v2056
      %v2058 = vpop.f32.mrb[0].mxu0
      %2059 = vmatprep.mubr.f32.mxu0 0.0
      %2060 = vmatmul.mubr.f32.gmra.mrb[0].mxu0 %v1067
      %v2061 = vpop.f32.mrb[0].mxu0
      %v2062 = vadd.f32 0.0, %v2061
      %v2063 = vpop.f32.mrb[0].mxu0
      %2064 = vmatprep.mubr.f32.mxu0 0.0
      %2065 = vmatmul.mubr.f32.gmra.mrb[0].mxu0 %v1069
      %v2066 = vpop.f32.mrb[0].mxu0
      %v2067 = vadd.f32 0.0, %v2066
      %v2068 = vpop.f32.mrb[0].mxu0
      %2069 = vmatprep.mubr.f32.mxu0 0.0
      %2070 = vmatmul.mubr.f32.gmra.mrb[0].mxu0 %v1071
      %v2071 = vpop.f32.mrb[0].mxu0
      %v2072 = vadd.f32 0.0, %v2071
      %v2073 = vpop.f32.mrb[0].mxu0
      %2074 = vmatprep.mubr.f32.mxu0 0.0
      %2075 = vmatmul.mubr.f32.gmra.mrb[0].mxu0 %v1073
      %v2076 = vpop.f32.mrb[0].mxu0
      %v2077 = vadd.f32 0.0, %v2076
      %v2078 = vpop.f32.mrb[0].mxu0
      %2079 = vmatprep.mubr.f32.mxu0 0.0
      %2080 = vmatmul.mubr.f32.gmra.mrb[0].mxu0 %v1075
      %v2081 = vpop.f32.mrb[0].mxu0
      %v2082 = vadd.f32 0.0, %v2081
      %v2083 = vpop.f32.mrb[0].mxu0
      %2084 = vmatprep.mubr.f32.mxu0 0.0
      %2085 = vmatmul.mubr.f32.gmra.mrb[0].mxu0 %v1077
      %v2086 = vpop.f32.mrb[0].mxu0
      %v2087 = vadd.f32 0.0, %v2086
      %v2088 = vpop.f32.mrb[0].mxu0
      %2089 = vmatprep.mubr.f32.mxu0 0.0
      %2090 = vmatmul.mubr.f32.gmra.mrb[0].mxu0 %v1079
      %v2091 = vpop.f32.mrb[0].mxu0
      %v2092 = vadd.f32 0.0, %v2091
      %v2093 = vpop.f32.mrb[0].mxu0
      %2094 = vmatprep.mubr.f32.mxu0 0.0
      %2095 = vmatmul.mubr.f32.gmra.mrb[0].mxu0 %v1081
      %v2096 = vpop.f32.mrb[0].mxu0
      %v2097 = vadd.f32 0.0, %v2096
      %v2098 = vpop.f32.mrb[0].mxu0
      %2099 = vmatprep.mubr.f32.mxu0 0.0
      %2100 = vmatmul.mubr.f32.gmra.mrb[0].mxu0 %v1881
      %v2101 = vpop.f32.mrb[0].mxu0
      %v2102 = vadd.f32 0.0, %v2101
      %v2103 = vpop.f32.mrb[0].mxu0
      %2104 = vmatprep.mubr.f32.mxu0 0.0
      %2105 = vmatmul.mubr.f32.gmra.mrb[0].mxu0 %v1883
      %v2106 = vpop.f32.mrb[0].mxu0
      %v2107 = vadd.f32 0.0, %v2106
      %v2108 = vpop.f32.mrb[0].mxu0
      %2109 = vdwg.mxu0
      %v2110 = vadd.f32 %v1842, %v1952
      %v2111 = vadd.f32 %v1843, %v1957
      %v2112 = vadd.f32 %v1844, %v1962
      %v2113 = vadd.f32 %v1845, %v1967
      %v2114 = vadd.f32 %v1846, %v1972
      %v2115 = vadd.f32 %v1847, %v1977
      %v2116 = vadd.f32 %v1848, %v1982
      %v2117 = vadd.f32 %v1849, %v1987
      %v2118 = vadd.f32 %v1850, %v1992
      %v2119 = vadd.f32 %v1851, %v1997
      %v2120 = vadd.f32 %v1852, %v2002
      %v2121 = vadd.f32 %v1853, %v2007
      %v2122 = vadd.f32 %v1854, %v2012
      %v2123 = vadd.f32 %v1855, %v2017
      %v2124 = vadd.f32 %v1856, %v2022
      %v2125 = vadd.f32 %v1857, %v2027
      %v2126 = vadd.f32 %v1858, %v2032
      %v2127 = vadd.f32 %v1859, %v2037
      %v2128 = vadd.f32 %v1860, %v2042
      %v2129 = vadd.f32 %v1861, %v2047
      %v2130 = vadd.f32 %v1862, %v2052
      %v2131 = vadd.f32 %v1863, %v2057
      %v2132 = vadd.f32 %v1864, %v2062
      %v2133 = vadd.f32 %v1865, %v2067
      %v2134 = vadd.f32 %v1866, %v2072
      %v2135 = vadd.f32 %v1867, %v2077
      %v2136 = vadd.f32 %v1868, %v2082
      %v2137 = vadd.f32 %v1869, %v2087
      %v2138 = vadd.f32 %v1870, %v2092
      %v2139 = vadd.f32 %v1871, %v2097
      %v2140 = vadd.f32 %v1872, %v2102
      %v2141 = vadd.f32 %v1873, %v2107
      %s2142 = scalar_lea.vmem %s1, 48
      %v2143 = vld [vmem:[%s2142] sm:$0xff]
      %v2145 = vsel %vm357, %v222, 0
      %v2148 = vsel %vm357, %v223, 0
      %2150 = vmatprep.subr.mxu0 0.0
      %2151 = vmatpush1.msra.mxu0 %v2143
      %2152 = vmatprep.subr.mxu0 0.0
      %2153 = vmatpush1.msra.mxu0 0.0
      %2154 = vmatprep.subr.mxu0 0.0
      %2155 = vmatpush1.msra.mxu0 0.0
      %2156 = vmatprep.subr.mxu0 0.0
      %2157 = vmatpush1.msra.mxu0 0.0
      %2158 = vmatprep.subr.mxu0 0.0
      %2159 = vmatpush1.msra.mxu0 0.0
      %2160 = vmatprep.subr.mxu0 0.0
      %2161 = vmatpush1.msra.mxu0 0.0
      %2162 = vmatprep.subr.mxu0 0.0
      %2163 = vmatpush1.msra.mxu0 0.0
      %2164 = vmatprep.subr.mxu0 0.0
      %2165 = vmatpush1.msra.mxu0 0.0
      %2166 = vmatprep.subr.mxu0 0.0
      %2167 = vmatpush1.msra.mxu0 0.0
      %2168 = vmatprep.subr.mxu0 0.0
      %2169 = vmatpush1.msra.mxu0 0.0
      %2170 = vmatprep.subr.mxu0 0.0
      %2171 = vmatpush1.msra.mxu0 0.0
      %2172 = vmatprep.subr.mxu0 0.0
      %2173 = vmatpush1.msra.mxu0 0.0
      %2174 = vmatprep.subr.mxu0 0.0
      %2175 = vmatpush1.msra.mxu0 0.0
      %2176 = vmatprep.subr.mxu0 0.0
      %2177 = vmatpush1.msra.mxu0 0.0
      %2178 = vmatprep.subr.mxu0 0.0
      %2179 = vmatpush1.msra.mxu0 0.0
      %2180 = vmatprep.subr.mxu0 0.0
      %2181 = vmatpush1.msra.mxu0 0.0
      %2182 = vmatprep.subr.mxu0 0.0
      %2183 = vmatpush1.msra.mxu0 0.0
      %2184 = vmatprep.subr.mxu0 0.0
      %2185 = vmatpush1.msra.mxu0 0.0
      %2186 = vmatprep.subr.mxu0 0.0
      %2187 = vmatpush1.msra.mxu0 0.0
      %2188 = vmatprep.subr.mxu0 0.0
      %2189 = vmatpush1.msra.mxu0 0.0
      %2190 = vmatprep.subr.mxu0 0.0
      %2191 = vmatpush1.msra.mxu0 0.0
      %2192 = vmatprep.subr.mxu0 0.0
      %2193 = vmatpush1.msra.mxu0 0.0
      %2194 = vmatprep.subr.mxu0 0.0
      %2195 = vmatpush1.msra.mxu0 0.0
      %2196 = vmatprep.subr.mxu0 0.0
      %2197 = vmatpush1.msra.mxu0 0.0
      %2198 = vmatprep.subr.mxu0 0.0
      %2199 = vmatpush1.msra.mxu0 0.0
      %2200 = vmatprep.subr.mxu0 0.0
      %2201 = vmatpush1.msra.mxu0 0.0
      %2202 = vmatprep.subr.mxu0 0.0
      %2203 = vmatpush1.msra.mxu0 0.0
      %2204 = vmatprep.subr.mxu0 0.0
      %2205 = vmatpush1.msra.mxu0 0.0
      %2206 = vmatprep.subr.mxu0 0.0
      %2207 = vmatpush1.msra.mxu0 0.0
      %2208 = vmatprep.subr.mxu0 0.0
      %2209 = vmatpush1.msra.mxu0 0.0
      %2210 = vmatprep.subr.mxu0 0.0
      %2211 = vmatpush1.msra.mxu0 0.0
      %2212 = vmatprep.subr.mxu0 0.0
      %2213 = vmatpush1.msra.mxu0 0.0
      %2214 = vmatprep.mubr.f32.mxu0 0.0
      %2215 = vmatmul.mubr.f32.gmra.mrb[0].mxu0 %v655
      %v2216 = vpop.f32.mrb[0].mxu0
      %v2217 = vadd.f32 0.0, %v2216
      %v2218 = vpop.f32.mrb[0].mxu0
      %2219 = vmatprep.mubr.f32.mxu0 0.0
      %2220 = vmatmul.mubr.f32.gmra.mrb[0].mxu0 %v657
      %v2221 = vpop.f32.mrb[0].mxu0
      %v2222 = vadd.f32 0.0, %v2221
      %v2223 = vpop.f32.mrb[0].mxu0
      %2224 = vmatprep.mubr.f32.mxu0 0.0
      %2225 = vmatmul.mubr.f32.gmra.mrb[0].mxu0 %v659
      %v2226 = vpop.f32.mrb[0].mxu0
      %v2227 = vadd.f32 0.0, %v2226
      %v2228 = vpop.f32.mrb[0].mxu0
      %2229 = vmatprep.mubr.f32.mxu0 0.0
      %2230 = vmatmul.mubr.f32.gmra.mrb[0].mxu0 %v661
      %v2231 = vpop.f32.mrb[0].mxu0
      %v2232 = vadd.f32 0.0, %v2231
      %v2233 = vpop.f32.mrb[0].mxu0
      %2234 = vmatprep.mubr.f32.mxu0 0.0
      %2235 = vmatmul.mubr.f32.gmra.mrb[0].mxu0 %v663
      %v2236 = vpop.f32.mrb[0].mxu0
      %v2237 = vadd.f32 0.0, %v2236
      %v2238 = vpop.f32.mrb[0].mxu0
      %2239 = vmatprep.mubr.f32.mxu0 0.0
      %2240 = vmatmul.mubr.f32.gmra.mrb[0].mxu0 %v665
      %v2241 = vpop.f32.mrb[0].mxu0
      %v2242 = vadd.f32 0.0, %v2241
      %v2243 = vpop.f32.mrb[0].mxu0
      %2244 = vmatprep.mubr.f32.mxu0 0.0
      %2245 = vmatmul.mubr.f32.gmra.mrb[0].mxu0 %v667
      %v2246 = vpop.f32.mrb[0].mxu0
      %v2247 = vadd.f32 0.0, %v2246
      %v2248 = vpop.f32.mrb[0].mxu0
      %2249 = vmatprep.mubr.f32.mxu0 0.0
      %2250 = vmatmul.mubr.f32.gmra.mrb[0].mxu0 %v669
      %v2251 = vpop.f32.mrb[0].mxu0
      %v2252 = vadd.f32 0.0, %v2251
      %v2253 = vpop.f32.mrb[0].mxu0
      %2254 = vmatprep.mubr.f32.mxu0 0.0
      %2255 = vmatmul.mubr.f32.gmra.mrb[0].mxu0 %v671
      %v2256 = vpop.f32.mrb[0].mxu0
      %v2257 = vadd.f32 0.0, %v2256
      %v2258 = vpop.f32.mrb[0].mxu0
      %2259 = vmatprep.mubr.f32.mxu0 0.0
      %2260 = vmatmul.mubr.f32.gmra.mrb[0].mxu0 %v673
      %v2261 = vpop.f32.mrb[0].mxu0
      %v2262 = vadd.f32 0.0, %v2261
      %v2263 = vpop.f32.mrb[0].mxu0
      %2264 = vmatprep.mubr.f32.mxu0 0.0
      %2265 = vmatmul.mubr.f32.gmra.mrb[0].mxu0 %v675
      %v2266 = vpop.f32.mrb[0].mxu0
      %v2267 = vadd.f32 0.0, %v2266
      %v2268 = vpop.f32.mrb[0].mxu0
      %2269 = vmatprep.mubr.f32.mxu0 0.0
      %2270 = vmatmul.mubr.f32.gmra.mrb[0].mxu0 %v677
      %v2271 = vpop.f32.mrb[0].mxu0
      %v2272 = vadd.f32 0.0, %v2271
      %v2273 = vpop.f32.mrb[0].mxu0
      %2274 = vmatprep.mubr.f32.mxu0 0.0
      %2275 = vmatmul.mubr.f32.gmra.mrb[0].mxu0 %v679
      %v2276 = vpop.f32.mrb[0].mxu0
      %v2277 = vadd.f32 0.0, %v2276
      %v2278 = vpop.f32.mrb[0].mxu0
      %2279 = vmatprep.mubr.f32.mxu0 0.0
      %2280 = vmatmul.mubr.f32.gmra.mrb[0].mxu0 %v681
      %v2281 = vpop.f32.mrb[0].mxu0
      %v2282 = vadd.f32 0.0, %v2281
      %v2283 = vpop.f32.mrb[0].mxu0
      %2284 = vmatprep.mubr.f32.mxu0 0.0
      %2285 = vmatmul.mubr.f32.gmra.mrb[0].mxu0 %v683
      %v2286 = vpop.f32.mrb[0].mxu0
      %v2287 = vadd.f32 0.0, %v2286
      %v2288 = vpop.f32.mrb[0].mxu0
      %2289 = vmatprep.mubr.f32.mxu0 0.0
      %2290 = vmatmul.mubr.f32.gmra.mrb[0].mxu0 %v685
      %v2291 = vpop.f32.mrb[0].mxu0
      %v2292 = vadd.f32 0.0, %v2291
      %v2293 = vpop.f32.mrb[0].mxu0
      %2294 = vmatprep.mubr.f32.mxu0 0.0
      %2295 = vmatmul.mubr.f32.gmra.mrb[0].mxu0 %v687
      %v2296 = vpop.f32.mrb[0].mxu0
      %v2297 = vadd.f32 0.0, %v2296
      %v2298 = vpop.f32.mrb[0].mxu0
      %2299 = vmatprep.mubr.f32.mxu0 0.0
      %2300 = vmatmul.mubr.f32.gmra.mrb[0].mxu0 %v689
      %v2301 = vpop.f32.mrb[0].mxu0
      %v2302 = vadd.f32 0.0, %v2301
      %v2303 = vpop.f32.mrb[0].mxu0
      %2304 = vmatprep.mubr.f32.mxu0 0.0
      %2305 = vmatmul.mubr.f32.gmra.mrb[0].mxu0 %v691
      %v2306 = vpop.f32.mrb[0].mxu0
      %v2307 = vadd.f32 0.0, %v2306
      %v2308 = vpop.f32.mrb[0].mxu0
      %2309 = vmatprep.mubr.f32.mxu0 0.0
      %2310 = vmatmul.mubr.f32.gmra.mrb[0].mxu0 %v693
      %v2311 = vpop.f32.mrb[0].mxu0
      %v2312 = vadd.f32 0.0, %v2311
      %v2313 = vpop.f32.mrb[0].mxu0
      %2314 = vmatprep.mubr.f32.mxu0 0.0
      %2315 = vmatmul.mubr.f32.gmra.mrb[0].mxu0 %v695
      %v2316 = vpop.f32.mrb[0].mxu0
      %v2317 = vadd.f32 0.0, %v2316
      %v2318 = vpop.f32.mrb[0].mxu0
      %2319 = vmatprep.mubr.f32.mxu0 0.0
      %2320 = vmatmul.mubr.f32.gmra.mrb[0].mxu0 %v697
      %v2321 = vpop.f32.mrb[0].mxu0
      %v2322 = vadd.f32 0.0, %v2321
      %v2323 = vpop.f32.mrb[0].mxu0
      %2324 = vmatprep.mubr.f32.mxu0 0.0
      %2325 = vmatmul.mubr.f32.gmra.mrb[0].mxu0 %v699
      %v2326 = vpop.f32.mrb[0].mxu0
      %v2327 = vadd.f32 0.0, %v2326
      %v2328 = vpop.f32.mrb[0].mxu0
      %2329 = vmatprep.mubr.f32.mxu0 0.0
      %2330 = vmatmul.mubr.f32.gmra.mrb[0].mxu0 %v701
      %v2331 = vpop.f32.mrb[0].mxu0
      %v2332 = vadd.f32 0.0, %v2331
      %v2333 = vpop.f32.mrb[0].mxu0
      %2334 = vmatprep.mubr.f32.mxu0 0.0
      %2335 = vmatmul.mubr.f32.gmra.mrb[0].mxu0 %v703
      %v2336 = vpop.f32.mrb[0].mxu0
      %v2337 = vadd.f32 0.0, %v2336
      %v2338 = vpop.f32.mrb[0].mxu0
      %2339 = vmatprep.mubr.f32.mxu0 0.0
      %2340 = vmatmul.mubr.f32.gmra.mrb[0].mxu0 %v705
      %v2341 = vpop.f32.mrb[0].mxu0
      %v2342 = vadd.f32 0.0, %v2341
      %v2343 = vpop.f32.mrb[0].mxu0
      %2344 = vmatprep.mubr.f32.mxu0 0.0
      %2345 = vmatmul.mubr.f32.gmra.mrb[0].mxu0 %v707
      %v2346 = vpop.f32.mrb[0].mxu0
      %v2347 = vadd.f32 0.0, %v2346
      %v2348 = vpop.f32.mrb[0].mxu0
      %2349 = vmatprep.mubr.f32.mxu0 0.0
      %2350 = vmatmul.mubr.f32.gmra.mrb[0].mxu0 %v709
      %v2351 = vpop.f32.mrb[0].mxu0
      %v2352 = vadd.f32 0.0, %v2351
      %v2353 = vpop.f32.mrb[0].mxu0
      %2354 = vmatprep.mubr.f32.mxu0 0.0
      %2355 = vmatmul.mubr.f32.gmra.mrb[0].mxu0 %v1343
      %v2356 = vpop.f32.mrb[0].mxu0
      %v2357 = vadd.f32 0.0, %v2356
      %v2358 = vpop.f32.mrb[0].mxu0
      %2359 = vmatprep.mubr.f32.mxu0 0.0
      %2360 = vmatmul.mubr.f32.gmra.mrb[0].mxu0 %v1346
      %v2361 = vpop.f32.mrb[0].mxu0
      %v2362 = vadd.f32 0.0, %v2361
      %v2363 = vpop.f32.mrb[0].mxu0
      %2364 = vmatprep.mubr.f32.mxu0 0.0
      %2365 = vmatmul.mubr.f32.gmra.mrb[0].mxu0 %v2145
      %v2366 = vpop.f32.mrb[0].mxu0
      %v2367 = vadd.f32 0.0, %v2366
      %v2368 = vpop.f32.mrb[0].mxu0
      %2369 = vmatprep.mubr.f32.mxu0 0.0
      %2370 = vmatmul.mubr.f32.gmra.mrb[0].mxu0 %v2148
      %v2371 = vpop.f32.mrb[0].mxu0
      %v2372 = vadd.f32 0.0, %v2371
      %v2373 = vpop.f32.mrb[0].mxu0
      %2374 = vdwg.mxu0
      %v2375 = vadd.f32 %v2110, %v2217
      %v2376 = vadd.f32 %v2111, %v2222
      %v2377 = vadd.f32 %v2112, %v2227
      %v2378 = vadd.f32 %v2113, %v2232
      %v2379 = vadd.f32 %v2114, %v2237
      %v2380 = vadd.f32 %v2115, %v2242
      %v2381 = vadd.f32 %v2116, %v2247
      %v2382 = vadd.f32 %v2117, %v2252
      %v2383 = vadd.f32 %v2118, %v2257
      %v2384 = vadd.f32 %v2119, %v2262
      %v2385 = vadd.f32 %v2120, %v2267
      %v2386 = vadd.f32 %v2121, %v2272
      %v2387 = vadd.f32 %v2122, %v2277
      %v2388 = vadd.f32 %v2123, %v2282
      %v2389 = vadd.f32 %v2124, %v2287
      %v2390 = vadd.f32 %v2125, %v2292
      %v2391 = vadd.f32 %v2126, %v2297
      %v2392 = vadd.f32 %v2127, %v2302
      %v2393 = vadd.f32 %v2128, %v2307
      %v2394 = vadd.f32 %v2129, %v2312
      %v2395 = vadd.f32 %v2130, %v2317
      %v2396 = vadd.f32 %v2131, %v2322
      %v2397 = vadd.f32 %v2132, %v2327
      %v2398 = vadd.f32 %v2133, %v2332
      %v2399 = vadd.f32 %v2134, %v2337
      %v2400 = vadd.f32 %v2135, %v2342
      %v2401 = vadd.f32 %v2136, %v2347
      %v2402 = vadd.f32 %v2137, %v2352
      %v2403 = vadd.f32 %v2138, %v2357
      %v2404 = vadd.f32 %v2139, %v2362
      %v2405 = vadd.f32 %v2140, %v2367
      %v2406 = vadd.f32 %v2141, %v2372
      %v2408 = vrot.slane %v222, 1
      %v2409 = vrot.slane %v223, 1
      %v2410 = vsel %vm274, %v2408, %v2409
      %v2411 = vrot.slane %v224, 1
      %v2412 = vsel %vm274, %v2409, %v2411
      %s2413 = scalar_lea.vmem %s1, 56
      %v2414 = vld [vmem:[%s2413] sm:$0xff]
      %v2415 = vsel %vm357, %v2410, 0
      %v2417 = vsel %vm357, %v2412, 0
      %2419 = vmatprep.subr.mxu0 0.0
      %2420 = vmatpush1.msra.mxu0 %v2414
      %2421 = vmatprep.subr.mxu0 0.0
      %2422 = vmatpush1.msra.mxu0 0.0
      %2423 = vmatprep.subr.mxu0 0.0
      %2424 = vmatpush1.msra.mxu0 0.0
      %2425 = vmatprep.subr.mxu0 0.0
      %2426 = vmatpush1.msra.mxu0 0.0
      %2427 = vmatprep.subr.mxu0 0.0
      %2428 = vmatpush1.msra.mxu0 0.0
      %2429 = vmatprep.subr.mxu0 0.0
      %2430 = vmatpush1.msra.mxu0 0.0
      %2431 = vmatprep.subr.mxu0 0.0
      %2432 = vmatpush1.msra.mxu0 0.0
      %2433 = vmatprep.subr.mxu0 0.0
      %2434 = vmatpush1.msra.mxu0 0.0
      %2435 = vmatprep.subr.mxu0 0.0
      %2436 = vmatpush1.msra.mxu0 0.0
      %2437 = vmatprep.subr.mxu0 0.0
      %2438 = vmatpush1.msra.mxu0 0.0
      %2439 = vmatprep.subr.mxu0 0.0
      %2440 = vmatpush1.msra.mxu0 0.0
      %2441 = vmatprep.subr.mxu0 0.0
      %2442 = vmatpush1.msra.mxu0 0.0
      %2443 = vmatprep.subr.mxu0 0.0
      %2444 = vmatpush1.msra.mxu0 0.0
      %2445 = vmatprep.subr.mxu0 0.0
      %2446 = vmatpush1.msra.mxu0 0.0
      %2447 = vmatprep.subr.mxu0 0.0
      %2448 = vmatpush1.msra.mxu0 0.0
      %2449 = vmatprep.subr.mxu0 0.0
      %2450 = vmatpush1.msra.mxu0 0.0
      %2451 = vmatprep.subr.mxu0 0.0
      %2452 = vmatpush1.msra.mxu0 0.0
      %2453 = vmatprep.subr.mxu0 0.0
      %2454 = vmatpush1.msra.mxu0 0.0
      %2455 = vmatprep.subr.mxu0 0.0
      %2456 = vmatpush1.msra.mxu0 0.0
      %2457 = vmatprep.subr.mxu0 0.0
      %2458 = vmatpush1.msra.mxu0 0.0
      %2459 = vmatprep.subr.mxu0 0.0
      %2460 = vmatpush1.msra.mxu0 0.0
      %2461 = vmatprep.subr.mxu0 0.0
      %2462 = vmatpush1.msra.mxu0 0.0
      %2463 = vmatprep.subr.mxu0 0.0
      %2464 = vmatpush1.msra.mxu0 0.0
      %2465 = vmatprep.subr.mxu0 0.0
      %2466 = vmatpush1.msra.mxu0 0.0
      %2467 = vmatprep.subr.mxu0 0.0
      %2468 = vmatpush1.msra.mxu0 0.0
      %2469 = vmatprep.subr.mxu0 0.0
      %2470 = vmatpush1.msra.mxu0 0.0
      %2471 = vmatprep.subr.mxu0 0.0
      %2472 = vmatpush1.msra.mxu0 0.0
      %2473 = vmatprep.subr.mxu0 0.0
      %2474 = vmatpush1.msra.mxu0 0.0
      %2475 = vmatprep.subr.mxu0 0.0
      %2476 = vmatpush1.msra.mxu0 0.0
      %2477 = vmatprep.subr.mxu0 0.0
      %2478 = vmatpush1.msra.mxu0 0.0
      %2479 = vmatprep.subr.mxu0 0.0
      %2480 = vmatpush1.msra.mxu0 0.0
      %2481 = vmatprep.subr.mxu0 0.0
      %2482 = vmatpush1.msra.mxu0 0.0
      %2483 = vmatprep.mubr.f32.mxu0 0.0
      %2484 = vmatmul.mubr.f32.gmra.mrb[0].mxu0 %v366
      %v2485 = vpop.f32.mrb[0].mxu0
      %v2486 = vadd.f32 0.0, %v2485
      %v2487 = vpop.f32.mrb[0].mxu0
      %2488 = vmatprep.mubr.f32.mxu0 0.0
      %2489 = vmatmul.mubr.f32.gmra.mrb[0].mxu0 %v368
      %v2490 = vpop.f32.mrb[0].mxu0
      %v2491 = vadd.f32 0.0, %v2490
      %v2492 = vpop.f32.mrb[0].mxu0
      %2493 = vmatprep.mubr.f32.mxu0 0.0
      %2494 = vmatmul.mubr.f32.gmra.mrb[0].mxu0 %v370
      %v2495 = vpop.f32.mrb[0].mxu0
      %v2496 = vadd.f32 0.0, %v2495
      %v2497 = vpop.f32.mrb[0].mxu0
      %2498 = vmatprep.mubr.f32.mxu0 0.0
      %2499 = vmatmul.mubr.f32.gmra.mrb[0].mxu0 %v372
      %v2500 = vpop.f32.mrb[0].mxu0
      %v2501 = vadd.f32 0.0, %v2500
      %v2502 = vpop.f32.mrb[0].mxu0
      %2503 = vmatprep.mubr.f32.mxu0 0.0
      %2504 = vmatmul.mubr.f32.gmra.mrb[0].mxu0 %v374
      %v2505 = vpop.f32.mrb[0].mxu0
      %v2506 = vadd.f32 0.0, %v2505
      %v2507 = vpop.f32.mrb[0].mxu0
      %2508 = vmatprep.mubr.f32.mxu0 0.0
      %2509 = vmatmul.mubr.f32.gmra.mrb[0].mxu0 %v376
      %v2510 = vpop.f32.mrb[0].mxu0
      %v2511 = vadd.f32 0.0, %v2510
      %v2512 = vpop.f32.mrb[0].mxu0
      %2513 = vmatprep.mubr.f32.mxu0 0.0
      %2514 = vmatmul.mubr.f32.gmra.mrb[0].mxu0 %v378
      %v2515 = vpop.f32.mrb[0].mxu0
      %v2516 = vadd.f32 0.0, %v2515
      %v2517 = vpop.f32.mrb[0].mxu0
      %2518 = vmatprep.mubr.f32.mxu0 0.0
      %2519 = vmatmul.mubr.f32.gmra.mrb[0].mxu0 %v380
      %v2520 = vpop.f32.mrb[0].mxu0
      %v2521 = vadd.f32 0.0, %v2520
      %v2522 = vpop.f32.mrb[0].mxu0
      %2523 = vmatprep.mubr.f32.mxu0 0.0
      %2524 = vmatmul.mubr.f32.gmra.mrb[0].mxu0 %v382
      %v2525 = vpop.f32.mrb[0].mxu0
      %v2526 = vadd.f32 0.0, %v2525
      %v2527 = vpop.f32.mrb[0].mxu0
      %2528 = vmatprep.mubr.f32.mxu0 0.0
      %2529 = vmatmul.mubr.f32.gmra.mrb[0].mxu0 %v384
      %v2530 = vpop.f32.mrb[0].mxu0
      %v2531 = vadd.f32 0.0, %v2530
      %v2532 = vpop.f32.mrb[0].mxu0
      %2533 = vmatprep.mubr.f32.mxu0 0.0
      %2534 = vmatmul.mubr.f32.gmra.mrb[0].mxu0 %v386
      %v2535 = vpop.f32.mrb[0].mxu0
      %v2536 = vadd.f32 0.0, %v2535
      %v2537 = vpop.f32.mrb[0].mxu0
      %2538 = vmatprep.mubr.f32.mxu0 0.0
      %2539 = vmatmul.mubr.f32.gmra.mrb[0].mxu0 %v388
      %v2540 = vpop.f32.mrb[0].mxu0
      %v2541 = vadd.f32 0.0, %v2540
      %v2542 = vpop.f32.mrb[0].mxu0
      %2543 = vmatprep.mubr.f32.mxu0 0.0
      %2544 = vmatmul.mubr.f32.gmra.mrb[0].mxu0 %v390
      %v2545 = vpop.f32.mrb[0].mxu0
      %v2546 = vadd.f32 0.0, %v2545
      %v2547 = vpop.f32.mrb[0].mxu0
      %2548 = vmatprep.mubr.f32.mxu0 0.0
      %2549 = vmatmul.mubr.f32.gmra.mrb[0].mxu0 %v392
      %v2550 = vpop.f32.mrb[0].mxu0
      %v2551 = vadd.f32 0.0, %v2550
      %v2552 = vpop.f32.mrb[0].mxu0
      %2553 = vmatprep.mubr.f32.mxu0 0.0
      %2554 = vmatmul.mubr.f32.gmra.mrb[0].mxu0 %v394
      %v2555 = vpop.f32.mrb[0].mxu0
      %v2556 = vadd.f32 0.0, %v2555
      %v2557 = vpop.f32.mrb[0].mxu0
      %2558 = vmatprep.mubr.f32.mxu0 0.0
      %2559 = vmatmul.mubr.f32.gmra.mrb[0].mxu0 %v396
      %v2560 = vpop.f32.mrb[0].mxu0
      %v2561 = vadd.f32 0.0, %v2560
      %v2562 = vpop.f32.mrb[0].mxu0
      %2563 = vmatprep.mubr.f32.mxu0 0.0
      %2564 = vmatmul.mubr.f32.gmra.mrb[0].mxu0 %v398
      %v2565 = vpop.f32.mrb[0].mxu0
      %v2566 = vadd.f32 0.0, %v2565
      %v2567 = vpop.f32.mrb[0].mxu0
      %2568 = vmatprep.mubr.f32.mxu0 0.0
      %2569 = vmatmul.mubr.f32.gmra.mrb[0].mxu0 %v400
      %v2570 = vpop.f32.mrb[0].mxu0
      %v2571 = vadd.f32 0.0, %v2570
      %v2572 = vpop.f32.mrb[0].mxu0
      %2573 = vmatprep.mubr.f32.mxu0 0.0
      %2574 = vmatmul.mubr.f32.gmra.mrb[0].mxu0 %v402
      %v2575 = vpop.f32.mrb[0].mxu0
      %v2576 = vadd.f32 0.0, %v2575
      %v2577 = vpop.f32.mrb[0].mxu0
      %2578 = vmatprep.mubr.f32.mxu0 0.0
      %2579 = vmatmul.mubr.f32.gmra.mrb[0].mxu0 %v404
      %v2580 = vpop.f32.mrb[0].mxu0
      %v2581 = vadd.f32 0.0, %v2580
      %v2582 = vpop.f32.mrb[0].mxu0
      %2583 = vmatprep.mubr.f32.mxu0 0.0
      %2584 = vmatmul.mubr.f32.gmra.mrb[0].mxu0 %v406
      %v2585 = vpop.f32.mrb[0].mxu0
      %v2586 = vadd.f32 0.0, %v2585
      %v2587 = vpop.f32.mrb[0].mxu0
      %2588 = vmatprep.mubr.f32.mxu0 0.0
      %2589 = vmatmul.mubr.f32.gmra.mrb[0].mxu0 %v408
      %v2590 = vpop.f32.mrb[0].mxu0
      %v2591 = vadd.f32 0.0, %v2590
      %v2592 = vpop.f32.mrb[0].mxu0
      %2593 = vmatprep.mubr.f32.mxu0 0.0
      %2594 = vmatmul.mubr.f32.gmra.mrb[0].mxu0 %v410
      %v2595 = vpop.f32.mrb[0].mxu0
      %v2596 = vadd.f32 0.0, %v2595
      %v2597 = vpop.f32.mrb[0].mxu0
      %2598 = vmatprep.mubr.f32.mxu0 0.0
      %2599 = vmatmul.mubr.f32.gmra.mrb[0].mxu0 %v412
      %v2600 = vpop.f32.mrb[0].mxu0
      %v2601 = vadd.f32 0.0, %v2600
      %v2602 = vpop.f32.mrb[0].mxu0
      %2603 = vmatprep.mubr.f32.mxu0 0.0
      %2604 = vmatmul.mubr.f32.gmra.mrb[0].mxu0 %v414
      %v2605 = vpop.f32.mrb[0].mxu0
      %v2606 = vadd.f32 0.0, %v2605
      %v2607 = vpop.f32.mrb[0].mxu0
      %2608 = vmatprep.mubr.f32.mxu0 0.0
      %2609 = vmatmul.mubr.f32.gmra.mrb[0].mxu0 %v416
      %v2610 = vpop.f32.mrb[0].mxu0
      %v2611 = vadd.f32 0.0, %v2610
      %v2612 = vpop.f32.mrb[0].mxu0
      %2613 = vmatprep.mubr.f32.mxu0 0.0
      %2614 = vmatmul.mubr.f32.gmra.mrb[0].mxu0 %v418
      %v2615 = vpop.f32.mrb[0].mxu0
      %v2616 = vadd.f32 0.0, %v2615
      %v2617 = vpop.f32.mrb[0].mxu0
      %2618 = vmatprep.mubr.f32.mxu0 0.0
      %2619 = vmatmul.mubr.f32.gmra.mrb[0].mxu0 %v420
      %v2620 = vpop.f32.mrb[0].mxu0
      %v2621 = vadd.f32 0.0, %v2620
      %v2622 = vpop.f32.mrb[0].mxu0
      %2623 = vmatprep.mubr.f32.mxu0 0.0
      %2624 = vmatmul.mubr.f32.gmra.mrb[0].mxu0 %v1613
      %v2625 = vpop.f32.mrb[0].mxu0
      %v2626 = vadd.f32 0.0, %v2625
      %v2627 = vpop.f32.mrb[0].mxu0
      %2628 = vmatprep.mubr.f32.mxu0 0.0
      %2629 = vmatmul.mubr.f32.gmra.mrb[0].mxu0 %v1615
      %v2630 = vpop.f32.mrb[0].mxu0
      %v2631 = vadd.f32 0.0, %v2630
      %v2632 = vpop.f32.mrb[0].mxu0
      %2633 = vmatprep.mubr.f32.mxu0 0.0
      %2634 = vmatmul.mubr.f32.gmra.mrb[0].mxu0 %v2415
      %v2635 = vpop.f32.mrb[0].mxu0
      %v2636 = vadd.f32 0.0, %v2635
      %v2637 = vpop.f32.mrb[0].mxu0
      %2638 = vmatprep.mubr.f32.mxu0 0.0
      %2639 = vmatmul.mubr.f32.gmra.mrb[0].mxu0 %v2417
      %v2640 = vpop.f32.mrb[0].mxu0
      %v2641 = vadd.f32 0.0, %v2640
      %v2642 = vpop.f32.mrb[0].mxu0
      %2643 = vdwg.mxu0
      %v2644 = vadd.f32 %v2375, %v2486
      %v2645 = vadd.f32 %v2376, %v2491
      %v2646 = vadd.f32 %v2377, %v2496
      %v2647 = vadd.f32 %v2378, %v2501
      %v2648 = vadd.f32 %v2379, %v2506
      %v2649 = vadd.f32 %v2380, %v2511
      %v2650 = vadd.f32 %v2381, %v2516
      %v2651 = vadd.f32 %v2382, %v2521
      %v2652 = vadd.f32 %v2383, %v2526
      %v2653 = vadd.f32 %v2384, %v2531
      %v2654 = vadd.f32 %v2385, %v2536
      %v2655 = vadd.f32 %v2386, %v2541
      %v2656 = vadd.f32 %v2387, %v2546
      %v2657 = vadd.f32 %v2388, %v2551
      %v2658 = vadd.f32 %v2389, %v2556
      %v2659 = vadd.f32 %v2390, %v2561
      %v2660 = vadd.f32 %v2391, %v2566
      %v2661 = vadd.f32 %v2392, %v2571
      %v2662 = vadd.f32 %v2393, %v2576
      %v2663 = vadd.f32 %v2394, %v2581
      %v2664 = vadd.f32 %v2395, %v2586
      %v2665 = vadd.f32 %v2396, %v2591
      %v2666 = vadd.f32 %v2397, %v2596
      %v2667 = vadd.f32 %v2398, %v2601
      %v2668 = vadd.f32 %v2399, %v2606
      %v2669 = vadd.f32 %v2400, %v2611
      %v2670 = vadd.f32 %v2401, %v2616
      %v2671 = vadd.f32 %v2402, %v2621
      %v2672 = vadd.f32 %v2403, %v2626
      %v2673 = vadd.f32 %v2404, %v2631
      %v2674 = vadd.f32 %v2405, %v2636
      %v2675 = vadd.f32 %v2406, %v2641
      %v2676 = vrot.slane %v222, 2
      %v2677 = vrot.slane %v223, 2
      %v2678 = vsel %vm936, %v2676, %v2677
      %v2679 = vrot.slane %v224, 2
      %v2680 = vsel %vm936, %v2677, %v2679
      %s2681 = scalar_lea.vmem %s1, 64
      %v2682 = vld [vmem:[%s2681] sm:$0xff]
      %v2683 = vsel %vm357, %v2678, 0
      %v2685 = vsel %vm357, %v2680, 0
      %2687 = vmatprep.subr.mxu0 0.0
      %2688 = vmatpush1.msra.mxu0 %v2682
      %2689 = vmatprep.subr.mxu0 0.0
      %2690 = vmatpush1.msra.mxu0 0.0
      %2691 = vmatprep.subr.mxu0 0.0
      %2692 = vmatpush1.msra.mxu0 0.0
      %2693 = vmatprep.subr.mxu0 0.0
      %2694 = vmatpush1.msra.mxu0 0.0
      %2695 = vmatprep.subr.mxu0 0.0
      %2696 = vmatpush1.msra.mxu0 0.0
      %2697 = vmatprep.subr.mxu0 0.0
      %2698 = vmatpush1.msra.mxu0 0.0
      %2699 = vmatprep.subr.mxu0 0.0
      %2700 = vmatpush1.msra.mxu0 0.0
      %2701 = vmatprep.subr.mxu0 0.0
      %2702 = vmatpush1.msra.mxu0 0.0
      %2703 = vmatprep.subr.mxu0 0.0
      %2704 = vmatpush1.msra.mxu0 0.0
      %2705 = vmatprep.subr.mxu0 0.0
      %2706 = vmatpush1.msra.mxu0 0.0
      %2707 = vmatprep.subr.mxu0 0.0
      %2708 = vmatpush1.msra.mxu0 0.0
      %2709 = vmatprep.subr.mxu0 0.0
      %2710 = vmatpush1.msra.mxu0 0.0
      %2711 = vmatprep.subr.mxu0 0.0
      %2712 = vmatpush1.msra.mxu0 0.0
      %2713 = vmatprep.subr.mxu0 0.0
      %2714 = vmatpush1.msra.mxu0 0.0
      %2715 = vmatprep.subr.mxu0 0.0
      %2716 = vmatpush1.msra.mxu0 0.0
      %2717 = vmatprep.subr.mxu0 0.0
      %2718 = vmatpush1.msra.mxu0 0.0
      %2719 = vmatprep.subr.mxu0 0.0
      %2720 = vmatpush1.msra.mxu0 0.0
      %2721 = vmatprep.subr.mxu0 0.0
      %2722 = vmatpush1.msra.mxu0 0.0
      %2723 = vmatprep.subr.mxu0 0.0
      %2724 = vmatpush1.msra.mxu0 0.0
      %2725 = vmatprep.subr.mxu0 0.0
      %2726 = vmatpush1.msra.mxu0 0.0
      %2727 = vmatprep.subr.mxu0 0.0
      %2728 = vmatpush1.msra.mxu0 0.0
      %2729 = vmatprep.subr.mxu0 0.0
      %2730 = vmatpush1.msra.mxu0 0.0
      %2731 = vmatprep.subr.mxu0 0.0
      %2732 = vmatpush1.msra.mxu0 0.0
      %2733 = vmatprep.subr.mxu0 0.0
      %2734 = vmatpush1.msra.mxu0 0.0
      %2735 = vmatprep.subr.mxu0 0.0
      %2736 = vmatpush1.msra.mxu0 0.0
      %2737 = vmatprep.subr.mxu0 0.0
      %2738 = vmatpush1.msra.mxu0 0.0
      %2739 = vmatprep.subr.mxu0 0.0
      %2740 = vmatpush1.msra.mxu0 0.0
      %2741 = vmatprep.subr.mxu0 0.0
      %2742 = vmatpush1.msra.mxu0 0.0
      %2743 = vmatprep.subr.mxu0 0.0
      %2744 = vmatpush1.msra.mxu0 0.0
      %2745 = vmatprep.subr.mxu0 0.0
      %2746 = vmatpush1.msra.mxu0 0.0
      %2747 = vmatprep.subr.mxu0 0.0
      %2748 = vmatpush1.msra.mxu0 0.0
      %2749 = vmatprep.subr.mxu0 0.0
      %2750 = vmatpush1.msra.mxu0 0.0
      %2751 = vmatprep.mubr.f32.mxu0 0.0
      %2752 = vmatmul.mubr.f32.gmra.mrb[0].mxu0 %v1027
      %v2753 = vpop.f32.mrb[0].mxu0
      %v2754 = vadd.f32 0.0, %v2753
      %v2755 = vpop.f32.mrb[0].mxu0
      %2756 = vmatprep.mubr.f32.mxu0 0.0
      %2757 = vmatmul.mubr.f32.gmra.mrb[0].mxu0 %v1029
      %v2758 = vpop.f32.mrb[0].mxu0
      %v2759 = vadd.f32 0.0, %v2758
      %v2760 = vpop.f32.mrb[0].mxu0
      %2761 = vmatprep.mubr.f32.mxu0 0.0
      %2762 = vmatmul.mubr.f32.gmra.mrb[0].mxu0 %v1031
      %v2763 = vpop.f32.mrb[0].mxu0
      %v2764 = vadd.f32 0.0, %v2763
      %v2765 = vpop.f32.mrb[0].mxu0
      %2766 = vmatprep.mubr.f32.mxu0 0.0
      %2767 = vmatmul.mubr.f32.gmra.mrb[0].mxu0 %v1033
      %v2768 = vpop.f32.mrb[0].mxu0
      %v2769 = vadd.f32 0.0, %v2768
      %v2770 = vpop.f32.mrb[0].mxu0
      %2771 = vmatprep.mubr.f32.mxu0 0.0
      %2772 = vmatmul.mubr.f32.gmra.mrb[0].mxu0 %v1035
      %v2773 = vpop.f32.mrb[0].mxu0
      %v2774 = vadd.f32 0.0, %v2773
      %v2775 = vpop.f32.mrb[0].mxu0
      %2776 = vmatprep.mubr.f32.mxu0 0.0
      %2777 = vmatmul.mubr.f32.gmra.mrb[0].mxu0 %v1037
      %v2778 = vpop.f32.mrb[0].mxu0
      %v2779 = vadd.f32 0.0, %v2778
      %v2780 = vpop.f32.mrb[0].mxu0
      %2781 = vmatprep.mubr.f32.mxu0 0.0
      %2782 = vmatmul.mubr.f32.gmra.mrb[0].mxu0 %v1039
      %v2783 = vpop.f32.mrb[0].mxu0
      %v2784 = vadd.f32 0.0, %v2783
      %v2785 = vpop.f32.mrb[0].mxu0
      %2786 = vmatprep.mubr.f32.mxu0 0.0
      %2787 = vmatmul.mubr.f32.gmra.mrb[0].mxu0 %v1041
      %v2788 = vpop.f32.mrb[0].mxu0
      %v2789 = vadd.f32 0.0, %v2788
      %v2790 = vpop.f32.mrb[0].mxu0
      %2791 = vmatprep.mubr.f32.mxu0 0.0
      %2792 = vmatmul.mubr.f32.gmra.mrb[0].mxu0 %v1043
      %v2793 = vpop.f32.mrb[0].mxu0
      %v2794 = vadd.f32 0.0, %v2793
      %v2795 = vpop.f32.mrb[0].mxu0
      %2796 = vmatprep.mubr.f32.mxu0 0.0
      %2797 = vmatmul.mubr.f32.gmra.mrb[0].mxu0 %v1045
      %v2798 = vpop.f32.mrb[0].mxu0
      %v2799 = vadd.f32 0.0, %v2798
      %v2800 = vpop.f32.mrb[0].mxu0
      %2801 = vmatprep.mubr.f32.mxu0 0.0
      %2802 = vmatmul.mubr.f32.gmra.mrb[0].mxu0 %v1047
      %v2803 = vpop.f32.mrb[0].mxu0
      %v2804 = vadd.f32 0.0, %v2803
      %v2805 = vpop.f32.mrb[0].mxu0
      %2806 = vmatprep.mubr.f32.mxu0 0.0
      %2807 = vmatmul.mubr.f32.gmra.mrb[0].mxu0 %v1049
      %v2808 = vpop.f32.mrb[0].mxu0
      %v2809 = vadd.f32 0.0, %v2808
      %v2810 = vpop.f32.mrb[0].mxu0
      %2811 = vmatprep.mubr.f32.mxu0 0.0
      %2812 = vmatmul.mubr.f32.gmra.mrb[0].mxu0 %v1051
      %v2813 = vpop.f32.mrb[0].mxu0
      %v2814 = vadd.f32 0.0, %v2813
      %v2815 = vpop.f32.mrb[0].mxu0
      %2816 = vmatprep.mubr.f32.mxu0 0.0
      %2817 = vmatmul.mubr.f32.gmra.mrb[0].mxu0 %v1053
      %v2818 = vpop.f32.mrb[0].mxu0
      %v2819 = vadd.f32 0.0, %v2818
      %v2820 = vpop.f32.mrb[0].mxu0
      %2821 = vmatprep.mubr.f32.mxu0 0.0
      %2822 = vmatmul.mubr.f32.gmra.mrb[0].mxu0 %v1055
      %v2823 = vpop.f32.mrb[0].mxu0
      %v2824 = vadd.f32 0.0, %v2823
      %v2825 = vpop.f32.mrb[0].mxu0
      %2826 = vmatprep.mubr.f32.mxu0 0.0
      %2827 = vmatmul.mubr.f32.gmra.mrb[0].mxu0 %v1057
      %v2828 = vpop.f32.mrb[0].mxu0
      %v2829 = vadd.f32 0.0, %v2828
      %v2830 = vpop.f32.mrb[0].mxu0
      %2831 = vmatprep.mubr.f32.mxu0 0.0
      %2832 = vmatmul.mubr.f32.gmra.mrb[0].mxu0 %v1059
      %v2833 = vpop.f32.mrb[0].mxu0
      %v2834 = vadd.f32 0.0, %v2833
      %v2835 = vpop.f32.mrb[0].mxu0
      %2836 = vmatprep.mubr.f32.mxu0 0.0
      %2837 = vmatmul.mubr.f32.gmra.mrb[0].mxu0 %v1061
      %v2838 = vpop.f32.mrb[0].mxu0
      %v2839 = vadd.f32 0.0, %v2838
      %v2840 = vpop.f32.mrb[0].mxu0
      %2841 = vmatprep.mubr.f32.mxu0 0.0
      %2842 = vmatmul.mubr.f32.gmra.mrb[0].mxu0 %v1063
      %v2843 = vpop.f32.mrb[0].mxu0
      %v2844 = vadd.f32 0.0, %v2843
      %v2845 = vpop.f32.mrb[0].mxu0
      %2846 = vmatprep.mubr.f32.mxu0 0.0
      %2847 = vmatmul.mubr.f32.gmra.mrb[0].mxu0 %v1065
      %v2848 = vpop.f32.mrb[0].mxu0
      %v2849 = vadd.f32 0.0, %v2848
      %v2850 = vpop.f32.mrb[0].mxu0
      %2851 = vmatprep.mubr.f32.mxu0 0.0
      %2852 = vmatmul.mubr.f32.gmra.mrb[0].mxu0 %v1067
      %v2853 = vpop.f32.mrb[0].mxu0
      %v2854 = vadd.f32 0.0, %v2853
      %v2855 = vpop.f32.mrb[0].mxu0
      %2856 = vmatprep.mubr.f32.mxu0 0.0
      %2857 = vmatmul.mubr.f32.gmra.mrb[0].mxu0 %v1069
      %v2858 = vpop.f32.mrb[0].mxu0
      %v2859 = vadd.f32 0.0, %v2858
      %v2860 = vpop.f32.mrb[0].mxu0
      %2861 = vmatprep.mubr.f32.mxu0 0.0
      %2862 = vmatmul.mubr.f32.gmra.mrb[0].mxu0 %v1071
      %v2863 = vpop.f32.mrb[0].mxu0
      %v2864 = vadd.f32 0.0, %v2863
      %v2865 = vpop.f32.mrb[0].mxu0
      %2866 = vmatprep.mubr.f32.mxu0 0.0
      %2867 = vmatmul.mubr.f32.gmra.mrb[0].mxu0 %v1073
      %v2868 = vpop.f32.mrb[0].mxu0
      %v2869 = vadd.f32 0.0, %v2868
      %v2870 = vpop.f32.mrb[0].mxu0
      %2871 = vmatprep.mubr.f32.mxu0 0.0
      %2872 = vmatmul.mubr.f32.gmra.mrb[0].mxu0 %v1075
      %v2873 = vpop.f32.mrb[0].mxu0
      %v2874 = vadd.f32 0.0, %v2873
      %v2875 = vpop.f32.mrb[0].mxu0
      %2876 = vmatprep.mubr.f32.mxu0 0.0
      %2877 = vmatmul.mubr.f32.gmra.mrb[0].mxu0 %v1077
      %v2878 = vpop.f32.mrb[0].mxu0
      %v2879 = vadd.f32 0.0, %v2878
      %v2880 = vpop.f32.mrb[0].mxu0
      %2881 = vmatprep.mubr.f32.mxu0 0.0
      %2882 = vmatmul.mubr.f32.gmra.mrb[0].mxu0 %v1079
      %v2883 = vpop.f32.mrb[0].mxu0
      %v2884 = vadd.f32 0.0, %v2883
      %v2885 = vpop.f32.mrb[0].mxu0
      %2886 = vmatprep.mubr.f32.mxu0 0.0
      %2887 = vmatmul.mubr.f32.gmra.mrb[0].mxu0 %v1081
      %v2888 = vpop.f32.mrb[0].mxu0
      %v2889 = vadd.f32 0.0, %v2888
      %v2890 = vpop.f32.mrb[0].mxu0
      %2891 = vmatprep.mubr.f32.mxu0 0.0
      %2892 = vmatmul.mubr.f32.gmra.mrb[0].mxu0 %v1881
      %v2893 = vpop.f32.mrb[0].mxu0
      %v2894 = vadd.f32 0.0, %v2893
      %v2895 = vpop.f32.mrb[0].mxu0
      %2896 = vmatprep.mubr.f32.mxu0 0.0
      %2897 = vmatmul.mubr.f32.gmra.mrb[0].mxu0 %v1883
      %v2898 = vpop.f32.mrb[0].mxu0
      %v2899 = vadd.f32 0.0, %v2898
      %v2900 = vpop.f32.mrb[0].mxu0
      %2901 = vmatprep.mubr.f32.mxu0 0.0
      %2902 = vmatmul.mubr.f32.gmra.mrb[0].mxu0 %v2683
      %v2903 = vpop.f32.mrb[0].mxu0
      %v2904 = vadd.f32 0.0, %v2903
      %v2905 = vpop.f32.mrb[0].mxu0
      %2906 = vmatprep.mubr.f32.mxu0 0.0
      %2907 = vmatmul.mubr.f32.gmra.mrb[0].mxu0 %v2685
      %v2908 = vpop.f32.mrb[0].mxu0
      %v2909 = vadd.f32 0.0, %v2908
      %v2910 = vpop.f32.mrb[0].mxu0
      %2911 = vdwg.mxu0
      %v2912 = vadd.f32 %v2644, %v2754
      %v2913 = vadd.f32 %v2645, %v2759
      %v2914 = vadd.f32 %v2646, %v2764
      %v2915 = vadd.f32 %v2647, %v2769
      %v2916 = vadd.f32 %v2648, %v2774
      %v2917 = vadd.f32 %v2649, %v2779
      %v2918 = vadd.f32 %v2650, %v2784
      %v2919 = vadd.f32 %v2651, %v2789
      %v2920 = vadd.f32 %v2652, %v2794
      %v2921 = vadd.f32 %v2653, %v2799
      %v2922 = vadd.f32 %v2654, %v2804
      %v2923 = vadd.f32 %v2655, %v2809
      %v2924 = vadd.f32 %v2656, %v2814
      %v2925 = vadd.f32 %v2657, %v2819
      %v2926 = vadd.f32 %v2658, %v2824
      %v2927 = vadd.f32 %v2659, %v2829
      %v2928 = vadd.f32 %v2660, %v2834
      %v2929 = vadd.f32 %v2661, %v2839
      %v2930 = vadd.f32 %v2662, %v2844
      %v2931 = vadd.f32 %v2663, %v2849
      %v2932 = vadd.f32 %v2664, %v2854
      %v2933 = vadd.f32 %v2665, %v2859
      %v2934 = vadd.f32 %v2666, %v2864
      %v2935 = vadd.f32 %v2667, %v2869
      %v2936 = vadd.f32 %v2668, %v2874
      %v2937 = vadd.f32 %v2669, %v2879
      %v2938 = vadd.f32 %v2670, %v2884
      %v2939 = vadd.f32 %v2671, %v2889
      %v2940 = vadd.f32 %v2672, %v2894
      %v2941 = vadd.f32 %v2673, %v2899
      %v2942 = vadd.f32 %v2674, %v2904
      %v2943 = vadd.f32 %v2675, %v2909
      %v2944 = vld [vmem:[%s2] sm:$0x1]
      %v2946 = vlaneseq
      %v2947 = vshrl.u32 %v2946, 7
      %v2948 = vsub.s32 0, %v2947
      %v2949 = vrot.slane %v2944, %v2948
      %v2951 = vadd.f32 %v2912, %v2949
      %v2952 = vadd.f32 %v2913, %v2949
      %v2953 = vadd.f32 %v2914, %v2949
      %v2954 = vadd.f32 %v2915, %v2949
      %v2955 = vadd.f32 %v2916, %v2949
      %v2956 = vadd.f32 %v2917, %v2949
      %v2957 = vadd.f32 %v2918, %v2949
      %v2958 = vadd.f32 %v2919, %v2949
      %v2959 = vadd.f32 %v2920, %v2949
      %v2960 = vadd.f32 %v2921, %v2949
      %v2961 = vadd.f32 %v2922, %v2949
      %v2962 = vadd.f32 %v2923, %v2949
      %v2963 = vadd.f32 %v2924, %v2949
      %v2964 = vadd.f32 %v2925, %v2949
      %v2965 = vadd.f32 %v2926, %v2949
      %v2966 = vadd.f32 %v2927, %v2949
      %v2967 = vadd.f32 %v2928, %v2949
      %v2968 = vadd.f32 %v2929, %v2949
      %v2969 = vadd.f32 %v2930, %v2949
      %v2970 = vadd.f32 %v2931, %v2949
      %v2971 = vadd.f32 %v2932, %v2949
      %v2972 = vadd.f32 %v2933, %v2949
      %v2973 = vadd.f32 %v2934, %v2949
      %v2974 = vadd.f32 %v2935, %v2949
      %v2975 = vadd.f32 %v2936, %v2949
      %v2976 = vadd.f32 %v2937, %v2949
      %v2977 = vadd.f32 %v2938, %v2949
      %v2978 = vadd.f32 %v2939, %v2949
      %v2979 = vadd.f32 %v2940, %v2949
      %v2980 = vadd.f32 %v2941, %v2949
      %v2981 = vadd.f32 %v2942, %v2949
      %v2982 = vadd.f32 %v2943, %v2949
      %v2983 = vmax.f32 %v2951, 0.0
      %v2984 = vmax.f32 %v2952, 0.0
      %v2985 = vmax.f32 %v2953, 0.0
      %v2986 = vmax.f32 %v2954, 0.0
      %v2987 = vmax.f32 %v2955, 0.0
      %v2988 = vmax.f32 %v2956, 0.0
      %v2989 = vmax.f32 %v2957, 0.0
      %v2990 = vmax.f32 %v2958, 0.0
      %v2991 = vmax.f32 %v2959, 0.0
      %v2992 = vmax.f32 %v2960, 0.0
      %v2993 = vmax.f32 %v2961, 0.0
      %v2994 = vmax.f32 %v2962, 0.0
      %v2995 = vmax.f32 %v2963, 0.0
      %v2996 = vmax.f32 %v2964, 0.0
      %v2997 = vmax.f32 %v2965, 0.0
      %v2998 = vmax.f32 %v2966, 0.0
      %v2999 = vmax.f32 %v2967, 0.0
      %v3000 = vmax.f32 %v2968, 0.0
      %v3001 = vmax.f32 %v2969, 0.0
      %v3002 = vmax.f32 %v2970, 0.0
      %v3003 = vmax.f32 %v2971, 0.0
      %v3004 = vmax.f32 %v2972, 0.0
      %v3005 = vmax.f32 %v2973, 0.0
      %v3006 = vmax.f32 %v2974, 0.0
      %v3007 = vmax.f32 %v2975, 0.0
      %v3008 = vmax.f32 %v2976, 0.0
      %v3009 = vmax.f32 %v2977, 0.0
      %v3010 = vmax.f32 %v2978, 0.0
      %v3011 = vmax.f32 %v2979, 0.0
      %v3012 = vmax.f32 %v2980, 0.0
      %v3013 = vmax.f32 %v2981, 0.0
      %v3014 = vmax.f32 %v2982, 0.0
      %3015 = vst.msk [vmem:[%s170] sm:$0xff] %vm357, %v2983
      %3016 = vst.msk [vmem:[%s170 + $0x8] sm:$0xff] %vm357, %v2984
      %3017 = vst.msk [vmem:[%s170 + $0x10] sm:$0xff] %vm357, %v2985
      %3018 = vst.msk [vmem:[%s170 + $0x18] sm:$0xff] %vm357, %v2986
      %3019 = vst.msk [vmem:[%s170 + $0x20] sm:$0xff] %vm357, %v2987
      %3020 = vst.msk [vmem:[%s170 + $0x28] sm:$0xff] %vm357, %v2988
      %3021 = vst.msk [vmem:[%s170 + $0x30] sm:$0xff] %vm357, %v2989
      %3022 = vst.msk [vmem:[%s170 + $0x38] sm:$0xff] %vm357, %v2990
      %3023 = vst.msk [vmem:[%s170 + $0x40] sm:$0xff] %vm357, %v2991
      %3024 = vst.msk [vmem:[%s170 + $0x48] sm:$0xff] %vm357, %v2992
      %3025 = vst.msk [vmem:[%s170 + $0x50] sm:$0xff] %vm357, %v2993
      %3026 = vst.msk [vmem:[%s170 + $0x58] sm:$0xff] %vm357, %v2994
      %3027 = vst.msk [vmem:[%s170 + $0x60] sm:$0xff] %vm357, %v2995
      %3028 = vst.msk [vmem:[%s170 + $0x68] sm:$0xff] %vm357, %v2996
      %3029 = vst.msk [vmem:[%s170 + $0x70] sm:$0xff] %vm357, %v2997
      %3030 = vst.msk [vmem:[%s170 + $0x78] sm:$0xff] %vm357, %v2998
      %3031 = vst.msk [vmem:[%s170 + $0x80] sm:$0xff] %vm357, %v2999
      %3032 = vst.msk [vmem:[%s170 + $0x88] sm:$0xff] %vm357, %v3000
      %3033 = vst.msk [vmem:[%s170 + $0x90] sm:$0xff] %vm357, %v3001
      %3034 = vst.msk [vmem:[%s170 + $0x98] sm:$0xff] %vm357, %v3002
      %3035 = vst.msk [vmem:[%s170 + $0xa0] sm:$0xff] %vm357, %v3003
      %3036 = vst.msk [vmem:[%s170 + $0xa8] sm:$0xff] %vm357, %v3004
      %3037 = vst.msk [vmem:[%s170 + $0xb0] sm:$0xff] %vm357, %v3005
      %3038 = vst.msk [vmem:[%s170 + $0xb8] sm:$0xff] %vm357, %v3006
      %3039 = vst.msk [vmem:[%s170 + $0xc0] sm:$0xff] %vm357, %v3007
      %3040 = vst.msk [vmem:[%s170 + $0xc8] sm:$0xff] %vm357, %v3008
      %3041 = vst.msk [vmem:[%s170 + $0xd0] sm:$0xff] %vm357, %v3009
      %3042 = vst.msk [vmem:[%s170 + $0xd8] sm:$0xff] %vm357, %v3010
      %3043 = vst.msk [vmem:[%s170 + $0xe0] sm:$0xff] %vm357, %v3011
      %3044 = vst.msk [vmem:[%s170 + $0xe8] sm:$0xff] %vm357, %v3012
      %3045 = vst.msk [vmem:[%s170 + $0xf0] sm:$0xff] %vm357, %v3013
      %3046 = vst.msk [vmem:[%s170 + $0xf8] sm:$0xff] %vm357, %v3014
      %p3047 = scmp.lt.s32.totalorder %s14, 1
      %s3048 = scalar_select %p3047, %s14, 1
      %s3049 = smul.addr %s3048, 32
      %s3050 = smul.addr %s3049, 8
      %s3051 = scalar_lea.vmem %s3, %s3050
      // Predicated region
      $region33: #{osa_block_forward.5} parent=31 // pred_check
        %p3052 = pneg %p100
      $region34: #{osa_block_forward.5} parent=31 // pred_check_branch
        %3054 = sbr.rel (%p3052) target = $region36
      $region35: #{osa_block_forward.5} parent=31 // pred_region
        _
      $region36: #{osa_block_forward.5} parent=31 // pred_fallthru
        _
    $region32: #{osa_block_forward.5} parent=5 // pred_fallthru
      _
    %p3055 = scmp.le.s32.totalorder 2, %s9
    // Predicated region
    $region37: #{osa_block_forward.5} parent=5 // pred_check
      %p3056 = pneg %p3055
    $region38: #{osa_block_forward.5} parent=5 // pred_check_branch
      %3058 = sbr.rel (%p3056) target = $region40
    $region39: #{osa_block_forward.5} parent=5 // pred_region
      %s3059 = ssub.s32 %s9, 2
      // Predicated region
      $region41: #{osa_block_forward.5} parent=39 // pred_check
        %p3060 = pneg %p106
      $region42: #{osa_block_forward.5} parent=39 // pred_check_branch
        %3062 = sbr.rel (%p3060) target = $region44
      $region43: #{osa_block_forward.5} parent=39 // pred_region
        %p3063 = scmp.lt.s32.totalorder %s15, 1
        %s3064 = scalar_select %p3063, %s15, 1
        %s3065 = smul.addr %s3064, 32
        %s3066 = smul.addr %s3065, 8
        %s3067 = scalar_lea.vmem %s3, %s3066
      $region44: #{osa_block_forward.5} parent=39 // pred_fallthru
        _
    $region40: #{osa_block_forward.5} parent=5 // pred_fallthru
      _
  $region6: #{osa_block_forward.5} parent=0 // loop_footer
    %s13 = sadd.s32 1, %s9
  $region7: #{osa_block_forward.5} parent=0 // loop_footer_branch
    %8 = sbr.rel target = $region3
  $region8: #{osa_block_forward.5} parent=0 // loop_exit
    _

</llo_original>
